<compile_context>
chip_gen: v7x
topology: tpu7x:2x2x1
jax: 0.10.0
libtpu: 0.0.40
codegen_flags: <defaults>
</compile_context>

<pallas_src>
import math
from functools import partial

import jax
import jax.numpy as jnp
from jax import lax
from jax.experimental import pallas as pl
from jax.experimental.pallas import tpu as pltpu  # noqa: F401  (TPU backend assumed)


_NEG_LARGE = -1e30  # acts as -inf padding for the max-pool windows


# -----------------------------------------------------------------------------
# In-kernel helpers (operate on VMEM-resident jnp values)
# -----------------------------------------------------------------------------
def _layernorm(x, g, b, eps=1e-5):
    mu = jnp.mean(x, axis=-1, keepdims=True)
    xc = x - mu
    var = jnp.mean(xc * xc, axis=-1, keepdims=True)
    return xc * lax.rsqrt(var + eps) * g + b


def _gelu(y):
    return 0.5 * y * (1.0 + lax.erf(y * 0.7071067811865476))   # exact erf GELU


def _circ_conv3(xb, w3, bias):
    """Circular Conv1d(kernel=3, padding=1) along rows of xb (Lc, Cin).

    w3: (3, Cin, Cout) taps for [x[t-1], x[t], x[t+1]].  The rolled copies stay
    in VMEM/vregs (no HBM im2col); three accumulating dots hit the MXU.
    """
    prv = jnp.roll(xb, 1, axis=0)     # x[t-1] (circular)
    nxt = jnp.roll(xb, -1, axis=0)    # x[t+1] (circular)
    y = jnp.dot(prv, w3[0], preferred_element_type=jnp.float32)
    y = y + jnp.dot(xb, w3[1], preferred_element_type=jnp.float32)
    y = y + jnp.dot(nxt, w3[2], preferred_element_type=jnp.float32)
    return y if bias is None else y + bias


def _attention_heads(qb, kb, vb, wo, n_heads):
    """Per-batch multi-head softmax attention, already passed through the output
    projection:  sum_h softmax(q_h k_h^T) v_h @ Wo[h-block]  ==  Wo(concat_h o_h).
    Avoids lane concatenation of narrow (Lc, dh) head outputs.  Scale is already
    folded into qb."""
    Lc, D = qb.shape
    dh = D // n_heads
    acc = None
    for hh in range(n_heads):
        sl = slice(hh * dh, (hh + 1) * dh)
        s = lax.dot_general(qb[:, sl], kb[:, sl], (((1,), (1,)), ((), ())),
                            preferred_element_type=jnp.float32)        # (Lc, Lc)
        m = jnp.max(s, axis=-1, keepdims=True)
        p = jnp.exp(s - m)
        p = p * pl.reciprocal(jnp.sum(p, axis=-1, keepdims=True), approx=True)
        oh = jnp.dot(p, vb[:, sl], preferred_element_type=jnp.float32)  # (Lc, dh)
        contrib = jnp.dot(oh, wo[sl, :], preferred_element_type=jnp.float32)
        acc = contrib if acc is None else acc + contrib
    return acc                                                           # (Lc, D)


# -----------------------------------------------------------------------------
# Single fused kernel: the whole Informer encoder forward
# -----------------------------------------------------------------------------
def _informer_kernel(x_ref, wtok_ref, pos_ref,
                     wq_ref, bq_ref, wk_ref, bk_ref, wv_ref, bv_ref, wo_ref, bo_ref,
                     wff1_ref, bff1_ref, wff2_ref, bff2_ref,
                     g1_ref, be1_ref, g2_ref, be2_ref,
                     cw_ref, cb_ref, cg_ref, cbe_ref,
                     gout_ref, bout_ref,
                     o_ref,
                     *, B, L0, n_heads, e_layers):
    x = x_ref[...]                 # (B*L0, enc_in)   batches stacked along rows
    wtok = wtok_ref[...]           # (3, enc_in, D)
    pos = pos_ref[...]             # (L0, D)

    # --- DataEmbedding: TokenEmbedding (circular conv, bias=False) + fixed PE ---
    # TODO(synk): TemporalEmbedding omitted — forward() only receives x_enc (no x_mark).
    emb = []
    for b in range(B):
        xb = x[b * L0:(b + 1) * L0]
        emb.append(_circ_conv3(xb, wtok, None) + pos)
    h = jnp.concatenate(emb, axis=0)                     # (B*L0, D)

    Lc = L0
    for l in range(e_layers):
        D = h.shape[-1]
        dh = D // n_heads
        scale = 1.0 / math.sqrt(dh)

        # ----- EncoderLayer: self attention (ProbAttention == full attention here)
        wq = wq_ref[l]; wk = wk_ref[l]; wv = wv_ref[l]; wo = wo_ref[l]
        q = (jnp.dot(h, wq, preferred_element_type=jnp.float32) + bq_ref[l]) * scale
        k = jnp.dot(h, wk, preferred_element_type=jnp.float32) + bk_ref[l]
        v = jnp.dot(h, wv, preferred_element_type=jnp.float32) + bv_ref[l]

        attn_b = []
        for b in range(B):
            rows = slice(b * Lc, (b + 1) * Lc)
            attn_b.append(_attention_heads(q[rows], k[rows], v[rows], wo, n_heads))
        attn = jnp.concatenate(attn_b, axis=0) + bo_ref[l]   # (B*Lc, D)

        h1 = _layernorm(h + attn, g1_ref[l], be1_ref[l])     # norm1(x + attn)

        # ----- position-wise FFN (1x1 convs) + gelu
        y = _gelu(jnp.dot(h1, wff1_ref[l], preferred_element_type=jnp.float32)
                  + bff1_ref[l])
        y = jnp.dot(y, wff2_ref[l], preferred_element_type=jnp.float32) + bff2_ref[l]
        h = _layernorm(h1 + y, g2_ref[l], be2_ref[l])        # norm2(x + y)

        # ----- distilling ConvLayer between encoder layers
        if l < e_layers - 1:
            cw = cw_ref[l]                                   # (3, D, D)
            cb = cb_ref[l]; cg = cg_ref[l]; cbeta = cbe_ref[l]

            conv_b = []
            for b in range(B):
                hb = h[b * Lc:(b + 1) * Lc]
                conv_b.append(_circ_conv3(hb, cw, cb))       # downConv (circular k=3)
            yc = jnp.concatenate(conv_b, axis=0)             # (B*Lc, D)

            # BatchNorm1d (training-mode stats over batch AND length), then ELU.
            mu = jnp.mean(yc, axis=0, keepdims=True)
            d = yc - mu
            var = jnp.mean(d * d, axis=0, keepdims=True)
            yn = d * lax.rsqrt(var + 1e-5) * cg + cbeta
            ye = jnp.where(yn > 0, yn, jnp.exp(jnp.minimum(yn, 0.0)) - 1.0)  # ELU(1)

            # MaxPool1d(kernel=3, stride=2, padding=1): max over shifted copies
            # (-inf padded at the ends), then select even rows.
            Lout = (Lc - 1) // 2 + 1
            pooled = []
            for b in range(B):
                yb = ye[b * Lc:(b + 1) * Lc]
                pad = jnp.full((1, yb.shape[-1]), _NEG_LARGE, jnp.float32)
                prv = jnp.concatenate([pad, yb[:-1]], axis=0)   # y[t-1] (pad at t=0)
                nxt = jnp.concatenate([yb[1:], pad], axis=0)    # y[t+1] (pad at end)
                m3 = jnp.maximum(jnp.maximum(prv, yb), nxt)     # window max at t
                pooled.append(jnp.concatenate(
                    [m3[2 * i:2 * i + 1] for i in range(Lout)], axis=0))
            h = jnp.concatenate(pooled, axis=0)                 # (B*Lout, D)
            Lc = Lout

    # ----- Encoder final LayerNorm (no dummy zero add)
    o_ref[...] = _layernorm(h, gout_ref[...], bout_ref[...])


# -----------------------------------------------------------------------------
# Wrapper: one pallas_call, everything resident in VMEM
# -----------------------------------------------------------------------------
@partial(jax.jit, static_argnames=("n_heads", "e_layers"))
def informer_forward(x_enc, params, *, n_heads, e_layers):
    B, L0, Cin = x_enc.shape
    D = params["w_tok"].shape[-1]

    Lf = L0
    for _ in range(e_layers - 1):
        Lf = (Lf - 1) // 2 + 1        # MaxPool1d(k=3, s=2, p=1) output length

    flat = [
        x_enc.reshape(B * L0, Cin),
        params["w_tok"], params["pos"][:L0],
        params["wq"], params["bq"], params["wk"], params["bk"],
        params["wv"], params["bv"], params["wo"], params["bo"],
        params["w_ff1"], params["b_ff1"], params["w_ff2"], params["b_ff2"],
        params["g1"], params["be1"], params["g2"], params["be2"],
        params["cw"], params["cb"], params["cg"], params["cbe"],
        params["g_out"], params["b_out"],
    ]
    out2d = pl.pallas_call(
        partial(_informer_kernel, B=B, L0=L0, n_heads=n_heads, e_layers=e_layers),
        out_shape=jax.ShapeDtypeStruct((B * Lf, D), jnp.float32),
        # no grid / no BlockSpecs: single invocation, full arrays in VMEM
        # (total weights + activations < 200 KiB — fits every TPU generation).
        # TODO(synk): a 2-way "parallel" grid over B (for v7x's 2 TensorCores) is
        # skipped because BatchNorm1d needs cross-batch statistics.
    )(*flat)
    return out2d.reshape(B, Lf, D)


# -----------------------------------------------------------------------------
# Parameter init (random, same distributions/layout semantics as before)
# -----------------------------------------------------------------------------
def init_params(key, *, enc_in, d_model, d_ff, e_layers, max_len):
    keys = iter(jax.random.split(key, 64))

    def nrm(shape, fan_in):
        return jax.random.normal(next(keys), shape, jnp.float32) / math.sqrt(float(fan_in))

    zeros = lambda *s: jnp.zeros(s, jnp.float32)
    ones = lambda *s: jnp.ones(s, jnp.float32)

    # fixed sinusoidal positional embedding
    posi = jnp.arange(max_len, dtype=jnp.float32)[:, None]
    div = jnp.exp(jnp.arange(0, d_model, 2, dtype=jnp.float32)
                  * (-math.log(10000.0) / d_model))
    pe = jnp.zeros((max_len, d_model), jnp.float32)
    pe = pe.at[:, 0::2].set(jnp.sin(posi * div))
    pe = pe.at[:, 1::2].set(jnp.cos(posi * div))

    E, D = e_layers, d_model
    return dict(
        w_tok=nrm((3, enc_in, D), 3 * enc_in),            # TokenEmbedding conv, bias=False
        pos=pe,
        wq=nrm((E, D, D), D), bq=zeros(E, 1, D),
        wk=nrm((E, D, D), D), bk=zeros(E, 1, D),
        wv=nrm((E, D, D), D), bv=zeros(E, 1, D),
        wo=nrm((E, D, D), D), bo=zeros(E, 1, D),
        w_ff1=nrm((E, D, d_ff), D), b_ff1=zeros(E, 1, d_ff),
        w_ff2=nrm((E, d_ff, D), d_ff), b_ff2=zeros(E, 1, D),
        g1=ones(E, 1, D), be1=zeros(E, 1, D),
        g2=ones(E, 1, D), be2=zeros(E, 1, D),
        cw=nrm((E - 1, 3, D, D), 3 * D), cb=zeros(E - 1, 1, D),   # downConv
        cg=ones(E - 1, 1, D), cbe=zeros(E - 1, 1, D),             # BatchNorm affine
        g_out=ones(1, D), b_out=zeros(1, D),
    )


if __name__ == "__main__":
    # Small shapes consistent with the module (enc_in channels, seq len, d_model, heads)
    B, L, enc_in = 2, 8, 4
    d_model, n_heads, d_ff, e_layers, factor = 32, 4, 64, 3, 5

    # ProbAttention == full attention only while factor*ceil(ln(L)) >= L at every
    # layer's sequence length (8 -> 4 -> 2 here).  Fail loudly otherwise.
    seq = L
    for _ in range(e_layers):
        assert factor * math.ceil(math.log(seq)) >= seq, \
            "ProbAttention sparse top-u path not implemented for this sequence length"
        seq = (seq - 1) // 2 + 1

    key = jax.random.PRNGKey(0)
    kx, kp = jax.random.split(key)
    x_enc = jax.random.normal(kx, (B, L, enc_in), dtype=jnp.float32)
    params = init_params(kp, enc_in=enc_in, d_model=d_model, d_ff=d_ff,
                         e_layers=e_layers, max_len=L)

    out = informer_forward(x_enc, params, n_heads=n_heads, e_layers=e_layers)
    out = jax.block_until_ready(out)

    # sequence length 8 -> 4 -> 2 through the two distilling ConvLayers
    assert out.shape == (B, 2, d_model), out.shape
    assert bool(jnp.all(jnp.isfinite(out)))
    print("KERNEL_OK")
</pallas_src>

<mosaic_0001>
module attributes {stable_mosaic.version = 11 : i64} {
  func.func @_informer_kernel(%arg0: memref<16x4xf32, #tpu.memory_space<vmem>>, %arg1: memref<3x4x32xf32, #tpu.memory_space<vmem>>, %arg2: memref<8x32xf32, #tpu.memory_space<vmem>>, %arg3: memref<3x32x32xf32, #tpu.memory_space<vmem>>, %arg4: memref<3x1x32xf32, #tpu.memory_space<vmem>>, %arg5: memref<3x32x32xf32, #tpu.memory_space<vmem>>, %arg6: memref<3x1x32xf32, #tpu.memory_space<vmem>>, %arg7: memref<3x32x32xf32, #tpu.memory_space<vmem>>, %arg8: memref<3x1x32xf32, #tpu.memory_space<vmem>>, %arg9: memref<3x32x32xf32, #tpu.memory_space<vmem>>, %arg10: memref<3x1x32xf32, #tpu.memory_space<vmem>>, %arg11: memref<3x32x64xf32, #tpu.memory_space<vmem>>, %arg12: memref<3x1x64xf32, #tpu.memory_space<vmem>>, %arg13: memref<3x64x32xf32, #tpu.memory_space<vmem>>, %arg14: memref<3x1x32xf32, #tpu.memory_space<vmem>>, %arg15: memref<3x1x32xf32, #tpu.memory_space<vmem>>, %arg16: memref<3x1x32xf32, #tpu.memory_space<vmem>>, %arg17: memref<3x1x32xf32, #tpu.memory_space<vmem>>, %arg18: memref<3x1x32xf32, #tpu.memory_space<vmem>>, %arg19: memref<2x3x32x32xf32, #tpu.memory_space<vmem>>, %arg20: memref<2x1x32xf32, #tpu.memory_space<vmem>>, %arg21: memref<2x1x32xf32, #tpu.memory_space<vmem>>, %arg22: memref<2x1x32xf32, #tpu.memory_space<vmem>>, %arg23: memref<1x32xf32, #tpu.memory_space<vmem>>, %arg24: memref<1x32xf32, #tpu.memory_space<vmem>>, %arg25: memref<4x32xf32, #tpu.memory_space<vmem>>) attributes {dimension_semantics = [], scalar_prefetch = 0 : i64, scratch_operands = 0 : i64, tpu.core_type = #tpu.core_type<tc>} {
    %c0 = arith.constant 0 : index
    %c0_0 = arith.constant 0 : index
    %0 = vector.load %arg0[%c0, %c0_0] : memref<16x4xf32, #tpu.memory_space<vmem>>, vector<16x4xf32>
    %c0_1 = arith.constant 0 : index
    %c0_2 = arith.constant 0 : index
    %c0_3 = arith.constant 0 : index
    %1 = vector.load %arg1[%c0_1, %c0_2, %c0_3] : memref<3x4x32xf32, #tpu.memory_space<vmem>>, vector<3x4x32xf32>
    %c0_4 = arith.constant 0 : index
    %c0_5 = arith.constant 0 : index
    %2 = vector.load %arg2[%c0_4, %c0_5] : memref<8x32xf32, #tpu.memory_space<vmem>>, vector<8x32xf32>
    %3 = vector.extract_strided_slice %0 {offsets = [0, 0], sizes = [8, 4], strides = [1, 1]} : vector<16x4xf32> to vector<8x4xf32>
    %4 = vector.extract_strided_slice %3 {offsets = [7, 0], sizes = [1, 4], strides = [1, 1]} : vector<8x4xf32> to vector<1x4xf32>
    %5 = vector.extract_strided_slice %3 {offsets = [0, 0], sizes = [7, 4], strides = [1, 1]} : vector<8x4xf32> to vector<7x4xf32>
    %6 = tpu.concatenate %4, %5 in 0 : vector<1x4xf32>, vector<7x4xf32> -> vector<8x4xf32>
    %7 = vector.extract_strided_slice %3 {offsets = [1, 0], sizes = [7, 4], strides = [1, 1]} : vector<8x4xf32> to vector<7x4xf32>
    %8 = vector.extract_strided_slice %3 {offsets = [0, 0], sizes = [1, 4], strides = [1, 1]} : vector<8x4xf32> to vector<1x4xf32>
    %9 = tpu.concatenate %7, %8 in 0 : vector<7x4xf32>, vector<1x4xf32> -> vector<8x4xf32>
    %10 = vector.extract_strided_slice %1 {offsets = [0, 0, 0], sizes = [1, 4, 32], strides = [1, 1, 1]} : vector<3x4x32xf32> to vector<1x4x32xf32>
    %11 = vector.shape_cast %10 : vector<1x4x32xf32> to vector<4x32xf32>
    %cst = arith.constant dense<0.000000e+00> : vector<8x32xf32>
    %12 = tpu.matmul %6, %11, %cst {dimension_numbers = #tpu.dot_dimension_numbers<[1], [0], [0], [1], [0, 0, 1, 1], [], []>} : vector<8x4xf32>, vector<4x32xf32>, vector<8x32xf32> -> vector<8x32xf32>
    %13 = vector.extract_strided_slice %1 {offsets = [1, 0, 0], sizes = [1, 4, 32], strides = [1, 1, 1]} : vector<3x4x32xf32> to vector<1x4x32xf32>
    %14 = vector.shape_cast %13 : vector<1x4x32xf32> to vector<4x32xf32>
    %cst_6 = arith.constant dense<0.000000e+00> : vector<8x32xf32>
    %15 = tpu.matmul %3, %14, %cst_6 {dimension_numbers = #tpu.dot_dimension_numbers<[1], [0], [0], [1], [0, 0, 1, 1], [], []>} : vector<8x4xf32>, vector<4x32xf32>, vector<8x32xf32> -> vector<8x32xf32>
    %16 = arith.addf %12, %15 : vector<8x32xf32>
    %17 = vector.extract_strided_slice %1 {offsets = [2, 0, 0], sizes = [1, 4, 32], strides = [1, 1, 1]} : vector<3x4x32xf32> to vector<1x4x32xf32>
    %18 = vector.shape_cast %17 : vector<1x4x32xf32> to vector<4x32xf32>
    %cst_7 = arith.constant dense<0.000000e+00> : vector<8x32xf32>
    %19 = tpu.matmul %9, %18, %cst_7 {dimension_numbers = #tpu.dot_dimension_numbers<[1], [0], [0], [1], [0, 0, 1, 1], [], []>} : vector<8x4xf32>, vector<4x32xf32>, vector<8x32xf32> -> vector<8x32xf32>
    %20 = arith.addf %16, %19 : vector<8x32xf32>
    %21 = arith.addf %20, %2 : vector<8x32xf32>
    %22 = vector.extract_strided_slice %0 {offsets = [8, 0], sizes = [8, 4], strides = [1, 1]} : vector<16x4xf32> to vector<8x4xf32>
    %23 = vector.extract_strided_slice %22 {offsets = [7, 0], sizes = [1, 4], strides = [1, 1]} : vector<8x4xf32> to vector<1x4xf32>
    %24 = vector.extract_strided_slice %22 {offsets = [0, 0], sizes = [7, 4], strides = [1, 1]} : vector<8x4xf32> to vector<7x4xf32>
    %25 = tpu.concatenate %23, %24 in 0 : vector<1x4xf32>, vector<7x4xf32> -> vector<8x4xf32>
    %26 = vector.extract_strided_slice %22 {offsets = [1, 0], sizes = [7, 4], strides = [1, 1]} : vector<8x4xf32> to vector<7x4xf32>
    %27 = vector.extract_strided_slice %22 {offsets = [0, 0], sizes = [1, 4], strides = [1, 1]} : vector<8x4xf32> to vector<1x4xf32>
    %28 = tpu.concatenate %26, %27 in 0 : vector<7x4xf32>, vector<1x4xf32> -> vector<8x4xf32>
    %29 = vector.extract_strided_slice %1 {offsets = [0, 0, 0], sizes = [1, 4, 32], strides = [1, 1, 1]} : vector<3x4x32xf32> to vector<1x4x32xf32>
    %30 = vector.shape_cast %29 : vector<1x4x32xf32> to vector<4x32xf32>
    %cst_8 = arith.constant dense<0.000000e+00> : vector<8x32xf32>
    %31 = tpu.matmul %25, %30, %cst_8 {dimension_numbers = #tpu.dot_dimension_numbers<[1], [0], [0], [1], [0, 0, 1, 1], [], []>} : vector<8x4xf32>, vector<4x32xf32>, vector<8x32xf32> -> vector<8x32xf32>
    %32 = vector.extract_strided_slice %1 {offsets = [1, 0, 0], sizes = [1, 4, 32], strides = [1, 1, 1]} : vector<3x4x32xf32> to vector<1x4x32xf32>
    %33 = vector.shape_cast %32 : vector<1x4x32xf32> to vector<4x32xf32>
    %cst_9 = arith.constant dense<0.000000e+00> : vector<8x32xf32>
    %34 = tpu.matmul %22, %33, %cst_9 {dimension_numbers = #tpu.dot_dimension_numbers<[1], [0], [0], [1], [0, 0, 1, 1], [], []>} : vector<8x4xf32>, vector<4x32xf32>, vector<8x32xf32> -> vector<8x32xf32>
    %35 = arith.addf %31, %34 : vector<8x32xf32>
    %36 = vector.extract_strided_slice %1 {offsets = [2, 0, 0], sizes = [1, 4, 32], strides = [1, 1, 1]} : vector<3x4x32xf32> to vector<1x4x32xf32>
    %37 = vector.shape_cast %36 : vector<1x4x32xf32> to vector<4x32xf32>
    %cst_10 = arith.constant dense<0.000000e+00> : vector<8x32xf32>
    %38 = tpu.matmul %28, %37, %cst_10 {dimension_numbers = #tpu.dot_dimension_numbers<[1], [0], [0], [1], [0, 0, 1, 1], [], []>} : vector<8x4xf32>, vector<4x32xf32>, vector<8x32xf32> -> vector<8x32xf32>
    %39 = arith.addf %35, %38 : vector<8x32xf32>
    %40 = arith.addf %39, %2 : vector<8x32xf32>
    %41 = tpu.concatenate %21, %40 in 0 : vector<8x32xf32>, vector<8x32xf32> -> vector<16x32xf32>
    %c0_11 = arith.constant 0 : index
    %c0_12 = arith.constant 0 : index
    %c0_13 = arith.constant 0 : index
    %42 = vector.load %arg3[%c0_11, %c0_12, %c0_13] : memref<3x32x32xf32, #tpu.memory_space<vmem>>, vector<1x32x32xf32>
    %43 = vector.shape_cast %42 : vector<1x32x32xf32> to vector<32x32xf32>
    %c0_14 = arith.constant 0 : index
    %c0_15 = arith.constant 0 : index
    %c0_16 = arith.constant 0 : index
    %44 = vector.load %arg5[%c0_14, %c0_15, %c0_16] : memref<3x32x32xf32, #tpu.memory_space<vmem>>, vector<1x32x32xf32>
    %45 = vector.shape_cast %44 : vector<1x32x32xf32> to vector<32x32xf32>
    %c0_17 = arith.constant 0 : index
    %c0_18 = arith.constant 0 : index
    %c0_19 = arith.constant 0 : index
    %46 = vector.load %arg7[%c0_17, %c0_18, %c0_19] : memref<3x32x32xf32, #tpu.memory_space<vmem>>, vector<1x32x32xf32>
    %47 = vector.shape_cast %46 : vector<1x32x32xf32> to vector<32x32xf32>
    %c0_20 = arith.constant 0 : index
    %c0_21 = arith.constant 0 : index
    %c0_22 = arith.constant 0 : index
    %48 = vector.load %arg9[%c0_20, %c0_21, %c0_22] : memref<3x32x32xf32, #tpu.memory_space<vmem>>, vector<1x32x32xf32>
    %49 = vector.shape_cast %48 : vector<1x32x32xf32> to vector<32x32xf32>
    %cst_23 = arith.constant dense<0.000000e+00> : vector<16x32xf32>
    %50 = tpu.matmul %41, %43, %cst_23 {dimension_numbers = #tpu.dot_dimension_numbers<[1], [0], [0], [1], [0, 0, 1, 1], [], []>} : vector<16x32xf32>, vector<32x32xf32>, vector<16x32xf32> -> vector<16x32xf32>
    %c0_24 = arith.constant 0 : index
    %c0_25 = arith.constant 0 : index
    %c0_26 = arith.constant 0 : index
    %51 = vector.load %arg4[%c0_24, %c0_25, %c0_26] : memref<3x1x32xf32, #tpu.memory_space<vmem>>, vector<1x1x32xf32>
    %52 = vector.shape_cast %51 : vector<1x1x32xf32> to vector<1x32xf32>
    %53 = vector.broadcast %52 : vector<1x32xf32> to vector<16x32xf32>
    %54 = arith.addf %50, %53 : vector<16x32xf32>
    %cst_27 = arith.constant 0.353553385 : f32
    %55 = vector.broadcast %cst_27 : f32 to vector<16x32xf32>
    %56 = arith.mulf %54, %55 : vector<16x32xf32>
    %cst_28 = arith.constant dense<0.000000e+00> : vector<16x32xf32>
    %57 = tpu.matmul %41, %45, %cst_28 {dimension_numbers = #tpu.dot_dimension_numbers<[1], [0], [0], [1], [0, 0, 1, 1], [], []>} : vector<16x32xf32>, vector<32x32xf32>, vector<16x32xf32> -> vector<16x32xf32>
    %c0_29 = arith.constant 0 : index
    %c0_30 = arith.constant 0 : index
    %c0_31 = arith.constant 0 : index
    %58 = vector.load %arg6[%c0_29, %c0_30, %c0_31] : memref<3x1x32xf32, #tpu.memory_space<vmem>>, vector<1x1x32xf32>
    %59 = vector.shape_cast %58 : vector<1x1x32xf32> to vector<1x32xf32>
    %60 = vector.broadcast %59 : vector<1x32xf32> to vector<16x32xf32>
    %61 = arith.addf %57, %60 : vector<16x32xf32>
    %cst_32 = arith.constant dense<0.000000e+00> : vector<16x32xf32>
    %62 = tpu.matmul %41, %47, %cst_32 {dimension_numbers = #tpu.dot_dimension_numbers<[1], [0], [0], [1], [0, 0, 1, 1], [], []>} : vector<16x32xf32>, vector<32x32xf32>, vector<16x32xf32> -> vector<16x32xf32>
    %c0_33 = arith.constant 0 : index
    %c0_34 = arith.constant 0 : index
    %c0_35 = arith.constant 0 : index
    %63 = vector.load %arg8[%c0_33, %c0_34, %c0_35] : memref<3x1x32xf32, #tpu.memory_space<vmem>>, vector<1x1x32xf32>
    %64 = vector.shape_cast %63 : vector<1x1x32xf32> to vector<1x32xf32>
    %65 = vector.broadcast %64 : vector<1x32xf32> to vector<16x32xf32>
    %66 = arith.addf %62, %65 : vector<16x32xf32>
    %67 = vector.extract_strided_slice %56 {offsets = [0, 0], sizes = [8, 32], strides = [1, 1]} : vector<16x32xf32> to vector<8x32xf32>
    %68 = vector.extract_strided_slice %61 {offsets = [0, 0], sizes = [8, 32], strides = [1, 1]} : vector<16x32xf32> to vector<8x32xf32>
    %69 = vector.extract_strided_slice %66 {offsets = [0, 0], sizes = [8, 32], strides = [1, 1]} : vector<16x32xf32> to vector<8x32xf32>
    %70 = vector.extract_strided_slice %67 {offsets = [0, 0], sizes = [8, 8], strides = [1, 1]} : vector<8x32xf32> to vector<8x8xf32>
    %71 = vector.extract_strided_slice %68 {offsets = [0, 0], sizes = [8, 8], strides = [1, 1]} : vector<8x32xf32> to vector<8x8xf32>
    %cst_36 = arith.constant dense<0.000000e+00> : vector<8x8xf32>
    %72 = tpu.matmul %70, %71, %cst_36 {dimension_numbers = #tpu.dot_dimension_numbers<[1], [1], [0], [0], [0, 0, 1, 0], [], []>} : vector<8x8xf32>, vector<8x8xf32>, vector<8x8xf32> -> vector<8x8xf32>
    %cst_37 = arith.constant dense<0xFF800000> : vector<8xf32>
    %73 = vector.multi_reduction <maximumf>, %72, %cst_37 [1] : vector<8x8xf32> to vector<8xf32>
    %74 = vector.shape_cast %73 : vector<8xf32> to vector<8x1xf32>
    %75 = vector.broadcast %74 : vector<8x1xf32> to vector<8x8xf32>
    %76 = arith.subf %72, %75 : vector<8x8xf32>
    %77 = math.exp %76 : vector<8x8xf32>
    %cst_38 = arith.constant dense<0.000000e+00> : vector<8xf32>
    %78 = vector.multi_reduction <add>, %77, %cst_38 [1] : vector<8x8xf32> to vector<8xf32>
    %79 = vector.shape_cast %78 : vector<8xf32> to vector<8x1xf32>
    %80 = tpu.reciprocal %79 {approx = true} : vector<8x1xf32> -> vector<8x1xf32>
    %81 = vector.broadcast %80 : vector<8x1xf32> to vector<8x8xf32>
    %82 = arith.mulf %77, %81 : vector<8x8xf32>
    %83 = vector.extract_strided_slice %69 {offsets = [0, 0], sizes = [8, 8], strides = [1, 1]} : vector<8x32xf32> to vector<8x8xf32>
    %cst_39 = arith.constant dense<0.000000e+00> : vector<8x8xf32>
    %84 = tpu.matmul %82, %83, %cst_39 {dimension_numbers = #tpu.dot_dimension_numbers<[1], [0], [0], [1], [0, 0, 1, 1], [], []>} : vector<8x8xf32>, vector<8x8xf32>, vector<8x8xf32> -> vector<8x8xf32>
    %85 = vector.extract_strided_slice %49 {offsets = [0, 0], sizes = [8, 32], strides = [1, 1]} : vector<32x32xf32> to vector<8x32xf32>
    %cst_40 = arith.constant dense<0.000000e+00> : vector<8x32xf32>
    %86 = tpu.matmul %84, %85, %cst_40 {dimension_numbers = #tpu.dot_dimension_numbers<[1], [0], [0], [1], [0, 0, 1, 1], [], []>} : vector<8x8xf32>, vector<8x32xf32>, vector<8x32xf32> -> vector<8x32xf32>
    %87 = vector.extract_strided_slice %67 {offsets = [0, 8], sizes = [8, 8], strides = [1, 1]} : vector<8x32xf32> to vector<8x8xf32>
    %88 = vector.extract_strided_slice %68 {offsets = [0, 8], sizes = [8, 8], strides = [1, 1]} : vector<8x32xf32> to vector<8x8xf32>
    %cst_41 = arith.constant dense<0.000000e+00> : vector<8x8xf32>
    %89 = tpu.matmul %87, %88, %cst_41 {dimension_numbers = #tpu.dot_dimension_numbers<[1], [1], [0], [0], [0, 0, 1, 0], [], []>} : vector<8x8xf32>, vector<8x8xf32>, vector<8x8xf32> -> vector<8x8xf32>
    %cst_42 = arith.constant dense<0xFF800000> : vector<8xf32>
    %90 = vector.multi_reduction <maximumf>, %89, %cst_42 [1] : vector<8x8xf32> to vector<8xf32>
    %91 = vector.shape_cast %90 : vector<8xf32> to vector<8x1xf32>
    %92 = vector.broadcast %91 : vector<8x1xf32> to vector<8x8xf32>
    %93 = arith.subf %89, %92 : vector<8x8xf32>
    %94 = math.exp %93 : vector<8x8xf32>
    %cst_43 = arith.constant dense<0.000000e+00> : vector<8xf32>
    %95 = vector.multi_reduction <add>, %94, %cst_43 [1] : vector<8x8xf32> to vector<8xf32>
    %96 = vector.shape_cast %95 : vector<8xf32> to vector<8x1xf32>
    %97 = tpu.reciprocal %96 {approx = true} : vector<8x1xf32> -> vector<8x1xf32>
    %98 = vector.broadcast %97 : vector<8x1xf32> to vector<8x8xf32>
    %99 = arith.mulf %94, %98 : vector<8x8xf32>
    %100 = vector.extract_strided_slice %69 {offsets = [0, 8], sizes = [8, 8], strides = [1, 1]} : vector<8x32xf32> to vector<8x8xf32>
    %cst_44 = arith.constant dense<0.000000e+00> : vector<8x8xf32>
    %101 = tpu.matmul %99, %100, %cst_44 {dimension_numbers = #tpu.dot_dimension_numbers<[1], [0], [0], [1], [0, 0, 1, 1], [], []>} : vector<8x8xf32>, vector<8x8xf32>, vector<8x8xf32> -> vector<8x8xf32>
    %102 = vector.extract_strided_slice %49 {offsets = [8, 0], sizes = [8, 32], strides = [1, 1]} : vector<32x32xf32> to vector<8x32xf32>
    %cst_45 = arith.constant dense<0.000000e+00> : vector<8x32xf32>
    %103 = tpu.matmul %101, %102, %cst_45 {dimension_numbers = #tpu.dot_dimension_numbers<[1], [0], [0], [1], [0, 0, 1, 1], [], []>} : vector<8x8xf32>, vector<8x32xf32>, vector<8x32xf32> -> vector<8x32xf32>
    %104 = arith.addf %86, %103 : vector<8x32xf32>
    %105 = vector.extract_strided_slice %67 {offsets = [0, 16], sizes = [8, 8], strides = [1, 1]} : vector<8x32xf32> to vector<8x8xf32>
    %106 = vector.extract_strided_slice %68 {offsets = [0, 16], sizes = [8, 8], strides = [1, 1]} : vector<8x32xf32> to vector<8x8xf32>
    %cst_46 = arith.constant dense<0.000000e+00> : vector<8x8xf32>
    %107 = tpu.matmul %105, %106, %cst_46 {dimension_numbers = #tpu.dot_dimension_numbers<[1], [1], [0], [0], [0, 0, 1, 0], [], []>} : vector<8x8xf32>, vector<8x8xf32>, vector<8x8xf32> -> vector<8x8xf32>
    %cst_47 = arith.constant dense<0xFF800000> : vector<8xf32>
    %108 = vector.multi_reduction <maximumf>, %107, %cst_47 [1] : vector<8x8xf32> to vector<8xf32>
    %109 = vector.shape_cast %108 : vector<8xf32> to vector<8x1xf32>
    %110 = vector.broadcast %109 : vector<8x1xf32> to vector<8x8xf32>
    %111 = arith.subf %107, %110 : vector<8x8xf32>
    %112 = math.exp %111 : vector<8x8xf32>
    %cst_48 = arith.constant dense<0.000000e+00> : vector<8xf32>
    %113 = vector.multi_reduction <add>, %112, %cst_48 [1] : vector<8x8xf32> to vector<8xf32>
    %114 = vector.shape_cast %113 : vector<8xf32> to vector<8x1xf32>
    %115 = tpu.reciprocal %114 {approx = true} : vector<8x1xf32> -> vector<8x1xf32>
    %116 = vector.broadcast %115 : vector<8x1xf32> to vector<8x8xf32>
    %117 = arith.mulf %112, %116 : vector<8x8xf32>
    %118 = vector.extract_strided_slice %69 {offsets = [0, 16], sizes = [8, 8], strides = [1, 1]} : vector<8x32xf32> to vector<8x8xf32>
    %cst_49 = arith.constant dense<0.000000e+00> : vector<8x8xf32>
    %119 = tpu.matmul %117, %118, %cst_49 {dimension_numbers = #tpu.dot_dimension_numbers<[1], [0], [0], [1], [0, 0, 1, 1], [], []>} : vector<8x8xf32>, vector<8x8xf32>, vector<8x8xf32> -> vector<8x8xf32>
    %120 = vector.extract_strided_slice %49 {offsets = [16, 0], sizes = [8, 32], strides = [1, 1]} : vector<32x32xf32> to vector<8x32xf32>
    %cst_50 = arith.constant dense<0.000000e+00> : vector<8x32xf32>
    %121 = tpu.matmul %119, %120, %cst_50 {dimension_numbers = #tpu.dot_dimension_numbers<[1], [0], [0], [1], [0, 0, 1, 1], [], []>} : vector<8x8xf32>, vector<8x32xf32>, vector<8x32xf32> -> vector<8x32xf32>
    %122 = arith.addf %104, %121 : vector<8x32xf32>
    %123 = vector.extract_strided_slice %67 {offsets = [0, 24], sizes = [8, 8], strides = [1, 1]} : vector<8x32xf32> to vector<8x8xf32>
    %124 = vector.extract_strided_slice %68 {offsets = [0, 24], sizes = [8, 8], strides = [1, 1]} : vector<8x32xf32> to vector<8x8xf32>
    %cst_51 = arith.constant dense<0.000000e+00> : vector<8x8xf32>
    %125 = tpu.matmul %123, %124, %cst_51 {dimension_numbers = #tpu.dot_dimension_numbers<[1], [1], [0], [0], [0, 0, 1, 0], [], []>} : vector<8x8xf32>, vector<8x8xf32>, vector<8x8xf32> -> vector<8x8xf32>
    %cst_52 = arith.constant dense<0xFF800000> : vector<8xf32>
    %126 = vector.multi_reduction <maximumf>, %125, %cst_52 [1] : vector<8x8xf32> to vector<8xf32>
    %127 = vector.shape_cast %126 : vector<8xf32> to vector<8x1xf32>
    %128 = vector.broadcast %127 : vector<8x1xf32> to vector<8x8xf32>
    %129 = arith.subf %125, %128 : vector<8x8xf32>
    %130 = math.exp %129 : vector<8x8xf32>
    %cst_53 = arith.constant dense<0.000000e+00> : vector<8xf32>
    %131 = vector.multi_reduction <add>, %130, %cst_53 [1] : vector<8x8xf32> to vector<8xf32>
    %132 = vector.shape_cast %131 : vector<8xf32> to vector<8x1xf32>
    %133 = tpu.reciprocal %132 {approx = true} : vector<8x1xf32> -> vector<8x1xf32>
    %134 = vector.broadcast %133 : vector<8x1xf32> to vector<8x8xf32>
    %135 = arith.mulf %130, %134 : vector<8x8xf32>
    %136 = vector.extract_strided_slice %69 {offsets = [0, 24], sizes = [8, 8], strides = [1, 1]} : vector<8x32xf32> to vector<8x8xf32>
    %cst_54 = arith.constant dense<0.000000e+00> : vector<8x8xf32>
    %137 = tpu.matmul %135, %136, %cst_54 {dimension_numbers = #tpu.dot_dimension_numbers<[1], [0], [0], [1], [0, 0, 1, 1], [], []>} : vector<8x8xf32>, vector<8x8xf32>, vector<8x8xf32> -> vector<8x8xf32>
    %138 = vector.extract_strided_slice %49 {offsets = [24, 0], sizes = [8, 32], strides = [1, 1]} : vector<32x32xf32> to vector<8x32xf32>
    %cst_55 = arith.constant dense<0.000000e+00> : vector<8x32xf32>
    %139 = tpu.matmul %137, %138, %cst_55 {dimension_numbers = #tpu.dot_dimension_numbers<[1], [0], [0], [1], [0, 0, 1, 1], [], []>} : vector<8x8xf32>, vector<8x32xf32>, vector<8x32xf32> -> vector<8x32xf32>
    %140 = arith.addf %122, %139 : vector<8x32xf32>
    %141 = vector.extract_strided_slice %56 {offsets = [8, 0], sizes = [8, 32], strides = [1, 1]} : vector<16x32xf32> to vector<8x32xf32>
    %142 = vector.extract_strided_slice %61 {offsets = [8, 0], sizes = [8, 32], strides = [1, 1]} : vector<16x32xf32> to vector<8x32xf32>
    %143 = vector.extract_strided_slice %66 {offsets = [8, 0], sizes = [8, 32], strides = [1, 1]} : vector<16x32xf32> to vector<8x32xf32>
    %144 = vector.extract_strided_slice %141 {offsets = [0, 0], sizes = [8, 8], strides = [1, 1]} : vector<8x32xf32> to vector<8x8xf32>
    %145 = vector.extract_strided_slice %142 {offsets = [0, 0], sizes = [8, 8], strides = [1, 1]} : vector<8x32xf32> to vector<8x8xf32>
    %cst_56 = arith.constant dense<0.000000e+00> : vector<8x8xf32>
    %146 = tpu.matmul %144, %145, %cst_56 {dimension_numbers = #tpu.dot_dimension_numbers<[1], [1], [0], [0], [0, 0, 1, 0], [], []>} : vector<8x8xf32>, vector<8x8xf32>, vector<8x8xf32> -> vector<8x8xf32>
    %cst_57 = arith.constant dense<0xFF800000> : vector<8xf32>
    %147 = vector.multi_reduction <maximumf>, %146, %cst_57 [1] : vector<8x8xf32> to vector<8xf32>
    %148 = vector.shape_cast %147 : vector<8xf32> to vector<8x1xf32>
    %149 = vector.broadcast %148 : vector<8x1xf32> to vector<8x8xf32>
    %150 = arith.subf %146, %149 : vector<8x8xf32>
    %151 = math.exp %150 : vector<8x8xf32>
    %cst_58 = arith.constant dense<0.000000e+00> : vector<8xf32>
    %152 = vector.multi_reduction <add>, %151, %cst_58 [1] : vector<8x8xf32> to vector<8xf32>
    %153 = vector.shape_cast %152 : vector<8xf32> to vector<8x1xf32>
    %154 = tpu.reciprocal %153 {approx = true} : vector<8x1xf32> -> vector<8x1xf32>
    %155 = vector.broadcast %154 : vector<8x1xf32> to vector<8x8xf32>
    %156 = arith.mulf %151, %155 : vector<8x8xf32>
    %157 = vector.extract_strided_slice %143 {offsets = [0, 0], sizes = [8, 8], strides = [1, 1]} : vector<8x32xf32> to vector<8x8xf32>
    %cst_59 = arith.constant dense<0.000000e+00> : vector<8x8xf32>
    %158 = tpu.matmul %156, %157, %cst_59 {dimension_numbers = #tpu.dot_dimension_numbers<[1], [0], [0], [1], [0, 0, 1, 1], [], []>} : vector<8x8xf32>, vector<8x8xf32>, vector<8x8xf32> -> vector<8x8xf32>
    %159 = vector.extract_strided_slice %49 {offsets = [0, 0], sizes = [8, 32], strides = [1, 1]} : vector<32x32xf32> to vector<8x32xf32>
    %cst_60 = arith.constant dense<0.000000e+00> : vector<8x32xf32>
    %160 = tpu.matmul %158, %159, %cst_60 {dimension_numbers = #tpu.dot_dimension_numbers<[1], [0], [0], [1], [0, 0, 1, 1], [], []>} : vector<8x8xf32>, vector<8x32xf32>, vector<8x32xf32> -> vector<8x32xf32>
    %161 = vector.extract_strided_slice %141 {offsets = [0, 8], sizes = [8, 8], strides = [1, 1]} : vector<8x32xf32> to vector<8x8xf32>
    %162 = vector.extract_strided_slice %142 {offsets = [0, 8], sizes = [8, 8], strides = [1, 1]} : vector<8x32xf32> to vector<8x8xf32>
    %cst_61 = arith.constant dense<0.000000e+00> : vector<8x8xf32>
    %163 = tpu.matmul %161, %162, %cst_61 {dimension_numbers = #tpu.dot_dimension_numbers<[1], [1], [0], [0], [0, 0, 1, 0], [], []>} : vector<8x8xf32>, vector<8x8xf32>, vector<8x8xf32> -> vector<8x8xf32>
    %cst_62 = arith.constant dense<0xFF800000> : vector<8xf32>
    %164 = vector.multi_reduction <maximumf>, %163, %cst_62 [1] : vector<8x8xf32> to vector<8xf32>
    %165 = vector.shape_cast %164 : vector<8xf32> to vector<8x1xf32>
    %166 = vector.broadcast %165 : vector<8x1xf32> to vector<8x8xf32>
    %167 = arith.subf %163, %166 : vector<8x8xf32>
    %168 = math.exp %167 : vector<8x8xf32>
    %cst_63 = arith.constant dense<0.000000e+00> : vector<8xf32>
    %169 = vector.multi_reduction <add>, %168, %cst_63 [1] : vector<8x8xf32> to vector<8xf32>
    %170 = vector.shape_cast %169 : vector<8xf32> to vector<8x1xf32>
    %171 = tpu.reciprocal %170 {approx = true} : vector<8x1xf32> -> vector<8x1xf32>
    %172 = vector.broadcast %171 : vector<8x1xf32> to vector<8x8xf32>
    %173 = arith.mulf %168, %172 : vector<8x8xf32>
    %174 = vector.extract_strided_slice %143 {offsets = [0, 8], sizes = [8, 8], strides = [1, 1]} : vector<8x32xf32> to vector<8x8xf32>
    %cst_64 = arith.constant dense<0.000000e+00> : vector<8x8xf32>
    %175 = tpu.matmul %173, %174, %cst_64 {dimension_numbers = #tpu.dot_dimension_numbers<[1], [0], [0], [1], [0, 0, 1, 1], [], []>} : vector<8x8xf32>, vector<8x8xf32>, vector<8x8xf32> -> vector<8x8xf32>
    %176 = vector.extract_strided_slice %49 {offsets = [8, 0], sizes = [8, 32], strides = [1, 1]} : vector<32x32xf32> to vector<8x32xf32>
    %cst_65 = arith.constant dense<0.000000e+00> : vector<8x32xf32>
    %177 = tpu.matmul %175, %176, %cst_65 {dimension_numbers = #tpu.dot_dimension_numbers<[1], [0], [0], [1], [0, 0, 1, 1], [], []>} : vector<8x8xf32>, vector<8x32xf32>, vector<8x32xf32> -> vector<8x32xf32>
    %178 = arith.addf %160, %177 : vector<8x32xf32>
    %179 = vector.extract_strided_slice %141 {offsets = [0, 16], sizes = [8, 8], strides = [1, 1]} : vector<8x32xf32> to vector<8x8xf32>
    %180 = vector.extract_strided_slice %142 {offsets = [0, 16], sizes = [8, 8], strides = [1, 1]} : vector<8x32xf32> to vector<8x8xf32>
    %cst_66 = arith.constant dense<0.000000e+00> : vector<8x8xf32>
    %181 = tpu.matmul %179, %180, %cst_66 {dimension_numbers = #tpu.dot_dimension_numbers<[1], [1], [0], [0], [0, 0, 1, 0], [], []>} : vector<8x8xf32>, vector<8x8xf32>, vector<8x8xf32> -> vector<8x8xf32>
    %cst_67 = arith.constant dense<0xFF800000> : vector<8xf32>
    %182 = vector.multi_reduction <maximumf>, %181, %cst_67 [1] : vector<8x8xf32> to vector<8xf32>
    %183 = vector.shape_cast %182 : vector<8xf32> to vector<8x1xf32>
    %184 = vector.broadcast %183 : vector<8x1xf32> to vector<8x8xf32>
    %185 = arith.subf %181, %184 : vector<8x8xf32>
    %186 = math.exp %185 : vector<8x8xf32>
    %cst_68 = arith.constant dense<0.000000e+00> : vector<8xf32>
    %187 = vector.multi_reduction <add>, %186, %cst_68 [1] : vector<8x8xf32> to vector<8xf32>
    %188 = vector.shape_cast %187 : vector<8xf32> to vector<8x1xf32>
    %189 = tpu.reciprocal %188 {approx = true} : vector<8x1xf32> -> vector<8x1xf32>
    %190 = vector.broadcast %189 : vector<8x1xf32> to vector<8x8xf32>
    %191 = arith.mulf %186, %190 : vector<8x8xf32>
    %192 = vector.extract_strided_slice %143 {offsets = [0, 16], sizes = [8, 8], strides = [1, 1]} : vector<8x32xf32> to vector<8x8xf32>
    %cst_69 = arith.constant dense<0.000000e+00> : vector<8x8xf32>
    %193 = tpu.matmul %191, %192, %cst_69 {dimension_numbers = #tpu.dot_dimension_numbers<[1], [0], [0], [1], [0, 0, 1, 1], [], []>} : vector<8x8xf32>, vector<8x8xf32>, vector<8x8xf32> -> vector<8x8xf32>
    %194 = vector.extract_strided_slice %49 {offsets = [16, 0], sizes = [8, 32], strides = [1, 1]} : vector<32x32xf32> to vector<8x32xf32>
    %cst_70 = arith.constant dense<0.000000e+00> : vector<8x32xf32>
    %195 = tpu.matmul %193, %194, %cst_70 {dimension_numbers = #tpu.dot_dimension_numbers<[1], [0], [0], [1], [0, 0, 1, 1], [], []>} : vector<8x8xf32>, vector<8x32xf32>, vector<8x32xf32> -> vector<8x32xf32>
    %196 = arith.addf %178, %195 : vector<8x32xf32>
    %197 = vector.extract_strided_slice %141 {offsets = [0, 24], sizes = [8, 8], strides = [1, 1]} : vector<8x32xf32> to vector<8x8xf32>
    %198 = vector.extract_strided_slice %142 {offsets = [0, 24], sizes = [8, 8], strides = [1, 1]} : vector<8x32xf32> to vector<8x8xf32>
    %cst_71 = arith.constant dense<0.000000e+00> : vector<8x8xf32>
    %199 = tpu.matmul %197, %198, %cst_71 {dimension_numbers = #tpu.dot_dimension_numbers<[1], [1], [0], [0], [0, 0, 1, 0], [], []>} : vector<8x8xf32>, vector<8x8xf32>, vector<8x8xf32> -> vector<8x8xf32>
    %cst_72 = arith.constant dense<0xFF800000> : vector<8xf32>
    %200 = vector.multi_reduction <maximumf>, %199, %cst_72 [1] : vector<8x8xf32> to vector<8xf32>
    %201 = vector.shape_cast %200 : vector<8xf32> to vector<8x1xf32>
    %202 = vector.broadcast %201 : vector<8x1xf32> to vector<8x8xf32>
    %203 = arith.subf %199, %202 : vector<8x8xf32>
    %204 = math.exp %203 : vector<8x8xf32>
    %cst_73 = arith.constant dense<0.000000e+00> : vector<8xf32>
    %205 = vector.multi_reduction <add>, %204, %cst_73 [1] : vector<8x8xf32> to vector<8xf32>
    %206 = vector.shape_cast %205 : vector<8xf32> to vector<8x1xf32>
    %207 = tpu.reciprocal %206 {approx = true} : vector<8x1xf32> -> vector<8x1xf32>
    %208 = vector.broadcast %207 : vector<8x1xf32> to vector<8x8xf32>
    %209 = arith.mulf %204, %208 : vector<8x8xf32>
    %210 = vector.extract_strided_slice %143 {offsets = [0, 24], sizes = [8, 8], strides = [1, 1]} : vector<8x32xf32> to vector<8x8xf32>
    %cst_74 = arith.constant dense<0.000000e+00> : vector<8x8xf32>
    %211 = tpu.matmul %209, %210, %cst_74 {dimension_numbers = #tpu.dot_dimension_numbers<[1], [0], [0], [1], [0, 0, 1, 1], [], []>} : vector<8x8xf32>, vector<8x8xf32>, vector<8x8xf32> -> vector<8x8xf32>
    %212 = vector.extract_strided_slice %49 {offsets = [24, 0], sizes = [8, 32], strides = [1, 1]} : vector<32x32xf32> to vector<8x32xf32>
    %cst_75 = arith.constant dense<0.000000e+00> : vector<8x32xf32>
    %213 = tpu.matmul %211, %212, %cst_75 {dimension_numbers = #tpu.dot_dimension_numbers<[1], [0], [0], [1], [0, 0, 1, 1], [], []>} : vector<8x8xf32>, vector<8x32xf32>, vector<8x32xf32> -> vector<8x32xf32>
    %214 = arith.addf %196, %213 : vector<8x32xf32>
    %215 = tpu.concatenate %140, %214 in 0 : vector<8x32xf32>, vector<8x32xf32> -> vector<16x32xf32>
    %c0_76 = arith.constant 0 : index
    %c0_77 = arith.constant 0 : index
    %c0_78 = arith.constant 0 : index
    %216 = vector.load %arg10[%c0_76, %c0_77, %c0_78] : memref<3x1x32xf32, #tpu.memory_space<vmem>>, vector<1x1x32xf32>
    %217 = vector.shape_cast %216 : vector<1x1x32xf32> to vector<1x32xf32>
    %218 = vector.broadcast %217 : vector<1x32xf32> to vector<16x32xf32>
    %219 = arith.addf %215, %218 : vector<16x32xf32>
    %220 = arith.addf %41, %219 : vector<16x32xf32>
    %c0_79 = arith.constant 0 : index
    %c0_80 = arith.constant 0 : index
    %c0_81 = arith.constant 0 : index
    %221 = vector.load %arg15[%c0_79, %c0_80, %c0_81] : memref<3x1x32xf32, #tpu.memory_space<vmem>>, vector<1x1x32xf32>
    %222 = vector.shape_cast %221 : vector<1x1x32xf32> to vector<1x32xf32>
    %c0_82 = arith.constant 0 : index
    %c0_83 = arith.constant 0 : index
    %c0_84 = arith.constant 0 : index
    %223 = vector.load %arg16[%c0_82, %c0_83, %c0_84] : memref<3x1x32xf32, #tpu.memory_space<vmem>>, vector<1x1x32xf32>
    %224 = vector.shape_cast %223 : vector<1x1x32xf32> to vector<1x32xf32>
    %cst_85 = arith.constant dense<0.000000e+00> : vector<16xf32>
    %225 = vector.multi_reduction <add>, %220, %cst_85 [1] : vector<16x32xf32> to vector<16xf32>
    %226 = vector.shape_cast %225 : vector<16xf32> to vector<16x1xf32>
    %cst_86 = arith.constant 3.200000e+01 : f32
    %227 = vector.broadcast %cst_86 : f32 to vector<16x1xf32>
    %228 = arith.divf %226, %227 : vector<16x1xf32>
    %229 = vector.broadcast %228 : vector<16x1xf32> to vector<16x32xf32>
    %230 = arith.subf %220, %229 : vector<16x32xf32>
    %231 = arith.mulf %230, %230 : vector<16x32xf32>
    %cst_87 = arith.constant dense<0.000000e+00> : vector<16xf32>
    %232 = vector.multi_reduction <add>, %231, %cst_87 [1] : vector<16x32xf32> to vector<16xf32>
    %233 = vector.shape_cast %232 : vector<16xf32> to vector<16x1xf32>
    %cst_88 = arith.constant 3.200000e+01 : f32
    %234 = vector.broadcast %cst_88 : f32 to vector<16x1xf32>
    %235 = arith.divf %233, %234 : vector<16x1xf32>
    %cst_89 = arith.constant 9.99999974E-6 : f32
    %236 = vector.broadcast %cst_89 : f32 to vector<16x1xf32>
    %237 = arith.addf %235, %236 : vector<16x1xf32>
    %238 = math.rsqrt %237 : vector<16x1xf32>
    %239 = vector.broadcast %238 : vector<16x1xf32> to vector<16x32xf32>
    %240 = arith.mulf %230, %239 : vector<16x32xf32>
    %241 = vector.broadcast %222 : vector<1x32xf32> to vector<16x32xf32>
    %242 = arith.mulf %240, %241 : vector<16x32xf32>
    %243 = vector.broadcast %224 : vector<1x32xf32> to vector<16x32xf32>
    %244 = arith.addf %242, %243 : vector<16x32xf32>
    %c0_90 = arith.constant 0 : index
    %c0_91 = arith.constant 0 : index
    %c0_92 = arith.constant 0 : index
    %245 = vector.load %arg11[%c0_90, %c0_91, %c0_92] : memref<3x32x64xf32, #tpu.memory_space<vmem>>, vector<1x32x64xf32>
    %246 = vector.shape_cast %245 : vector<1x32x64xf32> to vector<32x64xf32>
    %cst_93 = arith.constant dense<0.000000e+00> : vector<16x64xf32>
    %247 = tpu.matmul %244, %246, %cst_93 {dimension_numbers = #tpu.dot_dimension_numbers<[1], [0], [0], [1], [0, 0, 1, 1], [], []>} : vector<16x32xf32>, vector<32x64xf32>, vector<16x64xf32> -> vector<16x64xf32>
    %c0_94 = arith.constant 0 : index
    %c0_95 = arith.constant 0 : index
    %c0_96 = arith.constant 0 : index
    %248 = vector.load %arg12[%c0_94, %c0_95, %c0_96] : memref<3x1x64xf32, #tpu.memory_space<vmem>>, vector<1x1x64xf32>
    %249 = vector.shape_cast %248 : vector<1x1x64xf32> to vector<1x64xf32>
    %250 = vector.broadcast %249 : vector<1x64xf32> to vector<16x64xf32>
    %251 = arith.addf %247, %250 : vector<16x64xf32>
    %cst_97 = arith.constant 5.000000e-01 : f32
    %252 = vector.broadcast %cst_97 : f32 to vector<16x64xf32>
    %253 = arith.mulf %252, %251 : vector<16x64xf32>
    %cst_98 = arith.constant 0.707106769 : f32
    %254 = vector.broadcast %cst_98 : f32 to vector<16x64xf32>
    %255 = arith.mulf %251, %254 : vector<16x64xf32>
    %256 = math.erf %255 : vector<16x64xf32>
    %cst_99 = arith.constant 1.000000e+00 : f32
    %257 = vector.broadcast %cst_99 : f32 to vector<16x64xf32>
    %258 = arith.addf %257, %256 : vector<16x64xf32>
    %259 = arith.mulf %253, %258 : vector<16x64xf32>
    %c0_100 = arith.constant 0 : index
    %c0_101 = arith.constant 0 : index
    %c0_102 = arith.constant 0 : index
    %260 = vector.load %arg13[%c0_100, %c0_101, %c0_102] : memref<3x64x32xf32, #tpu.memory_space<vmem>>, vector<1x64x32xf32>
    %261 = vector.shape_cast %260 : vector<1x64x32xf32> to vector<64x32xf32>
    %cst_103 = arith.constant dense<0.000000e+00> : vector<16x32xf32>
    %262 = tpu.matmul %259, %261, %cst_103 {dimension_numbers = #tpu.dot_dimension_numbers<[1], [0], [0], [1], [0, 0, 1, 1], [], []>} : vector<16x64xf32>, vector<64x32xf32>, vector<16x32xf32> -> vector<16x32xf32>
    %c0_104 = arith.constant 0 : index
    %c0_105 = arith.constant 0 : index
    %c0_106 = arith.constant 0 : index
    %263 = vector.load %arg14[%c0_104, %c0_105, %c0_106] : memref<3x1x32xf32, #tpu.memory_space<vmem>>, vector<1x1x32xf32>
    %264 = vector.shape_cast %263 : vector<1x1x32xf32> to vector<1x32xf32>
    %265 = vector.broadcast %264 : vector<1x32xf32> to vector<16x32xf32>
    %266 = arith.addf %262, %265 : vector<16x32xf32>
    %267 = arith.addf %244, %266 : vector<16x32xf32>
    %c0_107 = arith.constant 0 : index
    %c0_108 = arith.constant 0 : index
    %c0_109 = arith.constant 0 : index
    %268 = vector.load %arg17[%c0_107, %c0_108, %c0_109] : memref<3x1x32xf32, #tpu.memory_space<vmem>>, vector<1x1x32xf32>
    %269 = vector.shape_cast %268 : vector<1x1x32xf32> to vector<1x32xf32>
    %c0_110 = arith.constant 0 : index
    %c0_111 = arith.constant 0 : index
    %c0_112 = arith.constant 0 : index
    %270 = vector.load %arg18[%c0_110, %c0_111, %c0_112] : memref<3x1x32xf32, #tpu.memory_space<vmem>>, vector<1x1x32xf32>
    %271 = vector.shape_cast %270 : vector<1x1x32xf32> to vector<1x32xf32>
    %cst_113 = arith.constant dense<0.000000e+00> : vector<16xf32>
    %272 = vector.multi_reduction <add>, %267, %cst_113 [1] : vector<16x32xf32> to vector<16xf32>
    %273 = vector.shape_cast %272 : vector<16xf32> to vector<16x1xf32>
    %cst_114 = arith.constant 3.200000e+01 : f32
    %274 = vector.broadcast %cst_114 : f32 to vector<16x1xf32>
    %275 = arith.divf %273, %274 : vector<16x1xf32>
    %276 = vector.broadcast %275 : vector<16x1xf32> to vector<16x32xf32>
    %277 = arith.subf %267, %276 : vector<16x32xf32>
    %278 = arith.mulf %277, %277 : vector<16x32xf32>
    %cst_115 = arith.constant dense<0.000000e+00> : vector<16xf32>
    %279 = vector.multi_reduction <add>, %278, %cst_115 [1] : vector<16x32xf32> to vector<16xf32>
    %280 = vector.shape_cast %279 : vector<16xf32> to vector<16x1xf32>
    %cst_116 = arith.constant 3.200000e+01 : f32
    %281 = vector.broadcast %cst_116 : f32 to vector<16x1xf32>
    %282 = arith.divf %280, %281 : vector<16x1xf32>
    %cst_117 = arith.constant 9.99999974E-6 : f32
    %283 = vector.broadcast %cst_117 : f32 to vector<16x1xf32>
    %284 = arith.addf %282, %283 : vector<16x1xf32>
    %285 = math.rsqrt %284 : vector<16x1xf32>
    %286 = vector.broadcast %285 : vector<16x1xf32> to vector<16x32xf32>
    %287 = arith.mulf %277, %286 : vector<16x32xf32>
    %288 = vector.broadcast %269 : vector<1x32xf32> to vector<16x32xf32>
    %289 = arith.mulf %287, %288 : vector<16x32xf32>
    %290 = vector.broadcast %271 : vector<1x32xf32> to vector<16x32xf32>
    %291 = arith.addf %289, %290 : vector<16x32xf32>
    %c0_118 = arith.constant 0 : index
    %c0_119 = arith.constant 0 : index
    %c0_120 = arith.constant 0 : index
    %c0_121 = arith.constant 0 : index
    %292 = vector.load %arg19[%c0_118, %c0_119, %c0_120, %c0_121] : memref<2x3x32x32xf32, #tpu.memory_space<vmem>>, vector<1x3x32x32xf32>
    %293 = vector.shape_cast %292 : vector<1x3x32x32xf32> to vector<3x32x32xf32>
    %c0_122 = arith.constant 0 : index
    %c0_123 = arith.constant 0 : index
    %c0_124 = arith.constant 0 : index
    %294 = vector.load %arg20[%c0_122, %c0_123, %c0_124] : memref<2x1x32xf32, #tpu.memory_space<vmem>>, vector<1x1x32xf32>
    %295 = vector.shape_cast %294 : vector<1x1x32xf32> to vector<1x32xf32>
    %c0_125 = arith.constant 0 : index
    %c0_126 = arith.constant 0 : index
    %c0_127 = arith.constant 0 : index
    %296 = vector.load %arg21[%c0_125, %c0_126, %c0_127] : memref<2x1x32xf32, #tpu.memory_space<vmem>>, vector<1x1x32xf32>
    %297 = vector.shape_cast %296 : vector<1x1x32xf32> to vector<1x32xf32>
    %c0_128 = arith.constant 0 : index
    %c0_129 = arith.constant 0 : index
    %c0_130 = arith.constant 0 : index
    %298 = vector.load %arg22[%c0_128, %c0_129, %c0_130] : memref<2x1x32xf32, #tpu.memory_space<vmem>>, vector<1x1x32xf32>
    %299 = vector.shape_cast %298 : vector<1x1x32xf32> to vector<1x32xf32>
    %300 = vector.extract_strided_slice %291 {offsets = [0, 0], sizes = [8, 32], strides = [1, 1]} : vector<16x32xf32> to vector<8x32xf32>
    %301 = vector.extract_strided_slice %300 {offsets = [7, 0], sizes = [1, 32], strides = [1, 1]} : vector<8x32xf32> to vector<1x32xf32>
    %302 = vector.extract_strided_slice %300 {offsets = [0, 0], sizes = [7, 32], strides = [1, 1]} : vector<8x32xf32> to vector<7x32xf32>
    %303 = tpu.concatenate %301, %302 in 0 : vector<1x32xf32>, vector<7x32xf32> -> vector<8x32xf32>
    %304 = vector.extract_strided_slice %300 {offsets = [1, 0], sizes = [7, 32], strides = [1, 1]} : vector<8x32xf32> to vector<7x32xf32>
    %305 = vector.extract_strided_slice %300 {offsets = [0, 0], sizes = [1, 32], strides = [1, 1]} : vector<8x32xf32> to vector<1x32xf32>
    %306 = tpu.concatenate %304, %305 in 0 : vector<7x32xf32>, vector<1x32xf32> -> vector<8x32xf32>
    %307 = vector.extract_strided_slice %293 {offsets = [0, 0, 0], sizes = [1, 32, 32], strides = [1, 1, 1]} : vector<3x32x32xf32> to vector<1x32x32xf32>
    %308 = vector.shape_cast %307 : vector<1x32x32xf32> to vector<32x32xf32>
    %cst_131 = arith.constant dense<0.000000e+00> : vector<8x32xf32>
    %309 = tpu.matmul %303, %308, %cst_131 {dimension_numbers = #tpu.dot_dimension_numbers<[1], [0], [0], [1], [0, 0, 1, 1], [], []>} : vector<8x32xf32>, vector<32x32xf32>, vector<8x32xf32> -> vector<8x32xf32>
    %310 = vector.extract_strided_slice %293 {offsets = [1, 0, 0], sizes = [1, 32, 32], strides = [1, 1, 1]} : vector<3x32x32xf32> to vector<1x32x32xf32>
    %311 = vector.shape_cast %310 : vector<1x32x32xf32> to vector<32x32xf32>
    %cst_132 = arith.constant dense<0.000000e+00> : vector<8x32xf32>
    %312 = tpu.matmul %300, %311, %cst_132 {dimension_numbers = #tpu.dot_dimension_numbers<[1], [0], [0], [1], [0, 0, 1, 1], [], []>} : vector<8x32xf32>, vector<32x32xf32>, vector<8x32xf32> -> vector<8x32xf32>
    %313 = arith.addf %309, %312 : vector<8x32xf32>
    %314 = vector.extract_strided_slice %293 {offsets = [2, 0, 0], sizes = [1, 32, 32], strides = [1, 1, 1]} : vector<3x32x32xf32> to vector<1x32x32xf32>
    %315 = vector.shape_cast %314 : vector<1x32x32xf32> to vector<32x32xf32>
    %cst_133 = arith.constant dense<0.000000e+00> : vector<8x32xf32>
    %316 = tpu.matmul %306, %315, %cst_133 {dimension_numbers = #tpu.dot_dimension_numbers<[1], [0], [0], [1], [0, 0, 1, 1], [], []>} : vector<8x32xf32>, vector<32x32xf32>, vector<8x32xf32> -> vector<8x32xf32>
    %317 = arith.addf %313, %316 : vector<8x32xf32>
    %318 = vector.broadcast %295 : vector<1x32xf32> to vector<8x32xf32>
    %319 = arith.addf %317, %318 : vector<8x32xf32>
    %320 = vector.extract_strided_slice %291 {offsets = [8, 0], sizes = [8, 32], strides = [1, 1]} : vector<16x32xf32> to vector<8x32xf32>
    %321 = vector.extract_strided_slice %320 {offsets = [7, 0], sizes = [1, 32], strides = [1, 1]} : vector<8x32xf32> to vector<1x32xf32>
    %322 = vector.extract_strided_slice %320 {offsets = [0, 0], sizes = [7, 32], strides = [1, 1]} : vector<8x32xf32> to vector<7x32xf32>
    %323 = tpu.concatenate %321, %322 in 0 : vector<1x32xf32>, vector<7x32xf32> -> vector<8x32xf32>
    %324 = vector.extract_strided_slice %320 {offsets = [1, 0], sizes = [7, 32], strides = [1, 1]} : vector<8x32xf32> to vector<7x32xf32>
    %325 = vector.extract_strided_slice %320 {offsets = [0, 0], sizes = [1, 32], strides = [1, 1]} : vector<8x32xf32> to vector<1x32xf32>
    %326 = tpu.concatenate %324, %325 in 0 : vector<7x32xf32>, vector<1x32xf32> -> vector<8x32xf32>
    %327 = vector.extract_strided_slice %293 {offsets = [0, 0, 0], sizes = [1, 32, 32], strides = [1, 1, 1]} : vector<3x32x32xf32> to vector<1x32x32xf32>
    %328 = vector.shape_cast %327 : vector<1x32x32xf32> to vector<32x32xf32>
    %cst_134 = arith.constant dense<0.000000e+00> : vector<8x32xf32>
    %329 = tpu.matmul %323, %328, %cst_134 {dimension_numbers = #tpu.dot_dimension_numbers<[1], [0], [0], [1], [0, 0, 1, 1], [], []>} : vector<8x32xf32>, vector<32x32xf32>, vector<8x32xf32> -> vector<8x32xf32>
    %330 = vector.extract_strided_slice %293 {offsets = [1, 0, 0], sizes = [1, 32, 32], strides = [1, 1, 1]} : vector<3x32x32xf32> to vector<1x32x32xf32>
    %331 = vector.shape_cast %330 : vector<1x32x32xf32> to vector<32x32xf32>
    %cst_135 = arith.constant dense<0.000000e+00> : vector<8x32xf32>
    %332 = tpu.matmul %320, %331, %cst_135 {dimension_numbers = #tpu.dot_dimension_numbers<[1], [0], [0], [1], [0, 0, 1, 1], [], []>} : vector<8x32xf32>, vector<32x32xf32>, vector<8x32xf32> -> vector<8x32xf32>
    %333 = arith.addf %329, %332 : vector<8x32xf32>
    %334 = vector.extract_strided_slice %293 {offsets = [2, 0, 0], sizes = [1, 32, 32], strides = [1, 1, 1]} : vector<3x32x32xf32> to vector<1x32x32xf32>
    %335 = vector.shape_cast %334 : vector<1x32x32xf32> to vector<32x32xf32>
    %cst_136 = arith.constant dense<0.000000e+00> : vector<8x32xf32>
    %336 = tpu.matmul %326, %335, %cst_136 {dimension_numbers = #tpu.dot_dimension_numbers<[1], [0], [0], [1], [0, 0, 1, 1], [], []>} : vector<8x32xf32>, vector<32x32xf32>, vector<8x32xf32> -> vector<8x32xf32>
    %337 = arith.addf %333, %336 : vector<8x32xf32>
    %338 = vector.broadcast %295 : vector<1x32xf32> to vector<8x32xf32>
    %339 = arith.addf %337, %338 : vector<8x32xf32>
    %340 = tpu.concatenate %319, %339 in 0 : vector<8x32xf32>, vector<8x32xf32> -> vector<16x32xf32>
    %cst_137 = arith.constant dense<0.000000e+00> : vector<32xf32>
    %341 = vector.multi_reduction <add>, %340, %cst_137 [0] : vector<16x32xf32> to vector<32xf32>
    %342 = vector.shape_cast %341 : vector<32xf32> to vector<1x32xf32>
    %cst_138 = arith.constant 1.600000e+01 : f32
    %343 = vector.broadcast %cst_138 : f32 to vector<1x32xf32>
    %344 = arith.divf %342, %343 : vector<1x32xf32>
    %345 = vector.broadcast %344 : vector<1x32xf32> to vector<16x32xf32>
    %346 = arith.subf %340, %345 : vector<16x32xf32>
    %347 = arith.mulf %346, %346 : vector<16x32xf32>
    %cst_139 = arith.constant dense<0.000000e+00> : vector<32xf32>
    %348 = vector.multi_reduction <add>, %347, %cst_139 [0] : vector<16x32xf32> to vector<32xf32>
    %349 = vector.shape_cast %348 : vector<32xf32> to vector<1x32xf32>
    %cst_140 = arith.constant 1.600000e+01 : f32
    %350 = vector.broadcast %cst_140 : f32 to vector<1x32xf32>
    %351 = arith.divf %349, %350 : vector<1x32xf32>
    %cst_141 = arith.constant 9.99999974E-6 : f32
    %352 = vector.broadcast %cst_141 : f32 to vector<1x32xf32>
    %353 = arith.addf %351, %352 : vector<1x32xf32>
    %354 = math.rsqrt %353 : vector<1x32xf32>
    %355 = vector.broadcast %354 : vector<1x32xf32> to vector<16x32xf32>
    %356 = arith.mulf %346, %355 : vector<16x32xf32>
    %357 = vector.broadcast %297 : vector<1x32xf32> to vector<16x32xf32>
    %358 = arith.mulf %356, %357 : vector<16x32xf32>
    %359 = vector.broadcast %299 : vector<1x32xf32> to vector<16x32xf32>
    %360 = arith.addf %358, %359 : vector<16x32xf32>
    %cst_142 = arith.constant 0.000000e+00 : f32
    %361 = vector.broadcast %cst_142 : f32 to vector<16x32xf32>
    %362 = arith.cmpf ogt, %360, %361 : vector<16x32xf32>
    %cst_143 = arith.constant 0.000000e+00 : f32
    %363 = vector.broadcast %cst_143 : f32 to vector<16x32xf32>
    %364 = arith.minimumf %360, %363 : vector<16x32xf32>
    %365 = math.exp %364 : vector<16x32xf32>
    %cst_144 = arith.constant 1.000000e+00 : f32
    %366 = vector.broadcast %cst_144 : f32 to vector<16x32xf32>
    %367 = arith.subf %365, %366 : vector<16x32xf32>
    %368 = arith.select %362, %360, %367 : vector<16x32xi1>, vector<16x32xf32>
    %369 = vector.extract_strided_slice %368 {offsets = [0, 0], sizes = [8, 32], strides = [1, 1]} : vector<16x32xf32> to vector<8x32xf32>
    %cst_145 = arith.constant -1.000000e+30 : f32
    %370 = vector.broadcast %cst_145 : f32 to vector<1x32xf32>
    %371 = vector.extract_strided_slice %369 {offsets = [0, 0], sizes = [7, 32], strides = [1, 1]} : vector<8x32xf32> to vector<7x32xf32>
    %372 = tpu.concatenate %370, %371 in 0 : vector<1x32xf32>, vector<7x32xf32> -> vector<8x32xf32>
    %373 = vector.extract_strided_slice %369 {offsets = [1, 0], sizes = [7, 32], strides = [1, 1]} : vector<8x32xf32> to vector<7x32xf32>
    %374 = tpu.concatenate %373, %370 in 0 : vector<7x32xf32>, vector<1x32xf32> -> vector<8x32xf32>
    %375 = arith.maximumf %372, %369 : vector<8x32xf32>
    %376 = arith.maximumf %375, %374 : vector<8x32xf32>
    %377 = vector.extract_strided_slice %376 {offsets = [0, 0], sizes = [1, 32], strides = [1, 1]} : vector<8x32xf32> to vector<1x32xf32>
    %378 = vector.extract_strided_slice %376 {offsets = [2, 0], sizes = [1, 32], strides = [1, 1]} : vector<8x32xf32> to vector<1x32xf32>
    %379 = vector.extract_strided_slice %376 {offsets = [4, 0], sizes = [1, 32], strides = [1, 1]} : vector<8x32xf32> to vector<1x32xf32>
    %380 = vector.extract_strided_slice %376 {offsets = [6, 0], sizes = [1, 32], strides = [1, 1]} : vector<8x32xf32> to vector<1x32xf32>
    %381 = tpu.concatenate %377, %378, %379, %380 in 0 : vector<1x32xf32>, vector<1x32xf32>, vector<1x32xf32>, vector<1x32xf32> -> vector<4x32xf32>
    %382 = vector.extract_strided_slice %368 {offsets = [8, 0], sizes = [8, 32], strides = [1, 1]} : vector<16x32xf32> to vector<8x32xf32>
    %cst_146 = arith.constant -1.000000e+30 : f32
    %383 = vector.broadcast %cst_146 : f32 to vector<1x32xf32>
    %384 = vector.extract_strided_slice %382 {offsets = [0, 0], sizes = [7, 32], strides = [1, 1]} : vector<8x32xf32> to vector<7x32xf32>
    %385 = tpu.concatenate %383, %384 in 0 : vector<1x32xf32>, vector<7x32xf32> -> vector<8x32xf32>
    %386 = vector.extract_strided_slice %382 {offsets = [1, 0], sizes = [7, 32], strides = [1, 1]} : vector<8x32xf32> to vector<7x32xf32>
    %387 = tpu.concatenate %386, %383 in 0 : vector<7x32xf32>, vector<1x32xf32> -> vector<8x32xf32>
    %388 = arith.maximumf %385, %382 : vector<8x32xf32>
    %389 = arith.maximumf %388, %387 : vector<8x32xf32>
    %390 = vector.extract_strided_slice %389 {offsets = [0, 0], sizes = [1, 32], strides = [1, 1]} : vector<8x32xf32> to vector<1x32xf32>
    %391 = vector.extract_strided_slice %389 {offsets = [2, 0], sizes = [1, 32], strides = [1, 1]} : vector<8x32xf32> to vector<1x32xf32>
    %392 = vector.extract_strided_slice %389 {offsets = [4, 0], sizes = [1, 32], strides = [1, 1]} : vector<8x32xf32> to vector<1x32xf32>
    %393 = vector.extract_strided_slice %389 {offsets = [6, 0], sizes = [1, 32], strides = [1, 1]} : vector<8x32xf32> to vector<1x32xf32>
    %394 = tpu.concatenate %390, %391, %392, %393 in 0 : vector<1x32xf32>, vector<1x32xf32>, vector<1x32xf32>, vector<1x32xf32> -> vector<4x32xf32>
    %395 = tpu.concatenate %381, %394 in 0 : vector<4x32xf32>, vector<4x32xf32> -> vector<8x32xf32>
    %c1 = arith.constant 1 : index
    %c0_147 = arith.constant 0 : index
    %c0_148 = arith.constant 0 : index
    %396 = vector.load %arg3[%c1, %c0_147, %c0_148] : memref<3x32x32xf32, #tpu.memory_space<vmem>>, vector<1x32x32xf32>
    %397 = vector.shape_cast %396 : vector<1x32x32xf32> to vector<32x32xf32>
    %c1_149 = arith.constant 1 : index
    %c0_150 = arith.constant 0 : index
    %c0_151 = arith.constant 0 : index
    %398 = vector.load %arg5[%c1_149, %c0_150, %c0_151] : memref<3x32x32xf32, #tpu.memory_space<vmem>>, vector<1x32x32xf32>
    %399 = vector.shape_cast %398 : vector<1x32x32xf32> to vector<32x32xf32>
    %c1_152 = arith.constant 1 : index
    %c0_153 = arith.constant 0 : index
    %c0_154 = arith.constant 0 : index
    %400 = vector.load %arg7[%c1_152, %c0_153, %c0_154] : memref<3x32x32xf32, #tpu.memory_space<vmem>>, vector<1x32x32xf32>
    %401 = vector.shape_cast %400 : vector<1x32x32xf32> to vector<32x32xf32>
    %c1_155 = arith.constant 1 : index
    %c0_156 = arith.constant 0 : index
    %c0_157 = arith.constant 0 : index
    %402 = vector.load %arg9[%c1_155, %c0_156, %c0_157] : memref<3x32x32xf32, #tpu.memory_space<vmem>>, vector<1x32x32xf32>
    %403 = vector.shape_cast %402 : vector<1x32x32xf32> to vector<32x32xf32>
    %cst_158 = arith.constant dense<0.000000e+00> : vector<8x32xf32>
    %404 = tpu.matmul %395, %397, %cst_158 {dimension_numbers = #tpu.dot_dimension_numbers<[1], [0], [0], [1], [0, 0, 1, 1], [], []>} : vector<8x32xf32>, vector<32x32xf32>, vector<8x32xf32> -> vector<8x32xf32>
    %c1_159 = arith.constant 1 : index
    %c0_160 = arith.constant 0 : index
    %c0_161 = arith.constant 0 : index
    %405 = vector.load %arg4[%c1_159, %c0_160, %c0_161] : memref<3x1x32xf32, #tpu.memory_space<vmem>>, vector<1x1x32xf32>
    %406 = vector.shape_cast %405 : vector<1x1x32xf32> to vector<1x32xf32>
    %407 = vector.broadcast %406 : vector<1x32xf32> to vector<8x32xf32>
    %408 = arith.addf %404, %407 : vector<8x32xf32>
    %cst_162 = arith.constant 0.353553385 : f32
    %409 = vector.broadcast %cst_162 : f32 to vector<8x32xf32>
    %410 = arith.mulf %408, %409 : vector<8x32xf32>
    %cst_163 = arith.constant dense<0.000000e+00> : vector<8x32xf32>
    %411 = tpu.matmul %395, %399, %cst_163 {dimension_numbers = #tpu.dot_dimension_numbers<[1], [0], [0], [1], [0, 0, 1, 1], [], []>} : vector<8x32xf32>, vector<32x32xf32>, vector<8x32xf32> -> vector<8x32xf32>
    %c1_164 = arith.constant 1 : index
    %c0_165 = arith.constant 0 : index
    %c0_166 = arith.constant 0 : index
    %412 = vector.load %arg6[%c1_164, %c0_165, %c0_166] : memref<3x1x32xf32, #tpu.memory_space<vmem>>, vector<1x1x32xf32>
    %413 = vector.shape_cast %412 : vector<1x1x32xf32> to vector<1x32xf32>
    %414 = vector.broadcast %413 : vector<1x32xf32> to vector<8x32xf32>
    %415 = arith.addf %411, %414 : vector<8x32xf32>
    %cst_167 = arith.constant dense<0.000000e+00> : vector<8x32xf32>
    %416 = tpu.matmul %395, %401, %cst_167 {dimension_numbers = #tpu.dot_dimension_numbers<[1], [0], [0], [1], [0, 0, 1, 1], [], []>} : vector<8x32xf32>, vector<32x32xf32>, vector<8x32xf32> -> vector<8x32xf32>
    %c1_168 = arith.constant 1 : index
    %c0_169 = arith.constant 0 : index
    %c0_170 = arith.constant 0 : index
    %417 = vector.load %arg8[%c1_168, %c0_169, %c0_170] : memref<3x1x32xf32, #tpu.memory_space<vmem>>, vector<1x1x32xf32>
    %418 = vector.shape_cast %417 : vector<1x1x32xf32> to vector<1x32xf32>
    %419 = vector.broadcast %418 : vector<1x32xf32> to vector<8x32xf32>
    %420 = arith.addf %416, %419 : vector<8x32xf32>
    %421 = vector.extract_strided_slice %410 {offsets = [0, 0], sizes = [4, 32], strides = [1, 1]} : vector<8x32xf32> to vector<4x32xf32>
    %422 = vector.extract_strided_slice %415 {offsets = [0, 0], sizes = [4, 32], strides = [1, 1]} : vector<8x32xf32> to vector<4x32xf32>
    %423 = vector.extract_strided_slice %420 {offsets = [0, 0], sizes = [4, 32], strides = [1, 1]} : vector<8x32xf32> to vector<4x32xf32>
    %424 = vector.extract_strided_slice %421 {offsets = [0, 0], sizes = [4, 8], strides = [1, 1]} : vector<4x32xf32> to vector<4x8xf32>
    %425 = vector.extract_strided_slice %422 {offsets = [0, 0], sizes = [4, 8], strides = [1, 1]} : vector<4x32xf32> to vector<4x8xf32>
    %cst_171 = arith.constant dense<0.000000e+00> : vector<4x4xf32>
    %426 = tpu.matmul %424, %425, %cst_171 {dimension_numbers = #tpu.dot_dimension_numbers<[1], [1], [0], [0], [0, 0, 1, 0], [], []>} : vector<4x8xf32>, vector<4x8xf32>, vector<4x4xf32> -> vector<4x4xf32>
    %cst_172 = arith.constant dense<0xFF800000> : vector<4xf32>
    %427 = vector.multi_reduction <maximumf>, %426, %cst_172 [1] : vector<4x4xf32> to vector<4xf32>
    %428 = vector.shape_cast %427 : vector<4xf32> to vector<4x1xf32>
    %429 = vector.broadcast %428 : vector<4x1xf32> to vector<4x4xf32>
    %430 = arith.subf %426, %429 : vector<4x4xf32>
    %431 = math.exp %430 : vector<4x4xf32>
    %cst_173 = arith.constant dense<0.000000e+00> : vector<4xf32>
    %432 = vector.multi_reduction <add>, %431, %cst_173 [1] : vector<4x4xf32> to vector<4xf32>
    %433 = vector.shape_cast %432 : vector<4xf32> to vector<4x1xf32>
    %434 = tpu.reciprocal %433 {approx = true} : vector<4x1xf32> -> vector<4x1xf32>
    %435 = vector.broadcast %434 : vector<4x1xf32> to vector<4x4xf32>
    %436 = arith.mulf %431, %435 : vector<4x4xf32>
    %437 = vector.extract_strided_slice %423 {offsets = [0, 0], sizes = [4, 8], strides = [1, 1]} : vector<4x32xf32> to vector<4x8xf32>
    %cst_174 = arith.constant dense<0.000000e+00> : vector<4x8xf32>
    %438 = tpu.matmul %436, %437, %cst_174 {dimension_numbers = #tpu.dot_dimension_numbers<[1], [0], [0], [1], [0, 0, 1, 1], [], []>} : vector<4x4xf32>, vector<4x8xf32>, vector<4x8xf32> -> vector<4x8xf32>
    %439 = vector.extract_strided_slice %403 {offsets = [0, 0], sizes = [8, 32], strides = [1, 1]} : vector<32x32xf32> to vector<8x32xf32>
    %cst_175 = arith.constant dense<0.000000e+00> : vector<4x32xf32>
    %440 = tpu.matmul %438, %439, %cst_175 {dimension_numbers = #tpu.dot_dimension_numbers<[1], [0], [0], [1], [0, 0, 1, 1], [], []>} : vector<4x8xf32>, vector<8x32xf32>, vector<4x32xf32> -> vector<4x32xf32>
    %441 = vector.extract_strided_slice %421 {offsets = [0, 8], sizes = [4, 8], strides = [1, 1]} : vector<4x32xf32> to vector<4x8xf32>
    %442 = vector.extract_strided_slice %422 {offsets = [0, 8], sizes = [4, 8], strides = [1, 1]} : vector<4x32xf32> to vector<4x8xf32>
    %cst_176 = arith.constant dense<0.000000e+00> : vector<4x4xf32>
    %443 = tpu.matmul %441, %442, %cst_176 {dimension_numbers = #tpu.dot_dimension_numbers<[1], [1], [0], [0], [0, 0, 1, 0], [], []>} : vector<4x8xf32>, vector<4x8xf32>, vector<4x4xf32> -> vector<4x4xf32>
    %cst_177 = arith.constant dense<0xFF800000> : vector<4xf32>
    %444 = vector.multi_reduction <maximumf>, %443, %cst_177 [1] : vector<4x4xf32> to vector<4xf32>
    %445 = vector.shape_cast %444 : vector<4xf32> to vector<4x1xf32>
    %446 = vector.broadcast %445 : vector<4x1xf32> to vector<4x4xf32>
    %447 = arith.subf %443, %446 : vector<4x4xf32>
    %448 = math.exp %447 : vector<4x4xf32>
    %cst_178 = arith.constant dense<0.000000e+00> : vector<4xf32>
    %449 = vector.multi_reduction <add>, %448, %cst_178 [1] : vector<4x4xf32> to vector<4xf32>
    %450 = vector.shape_cast %449 : vector<4xf32> to vector<4x1xf32>
    %451 = tpu.reciprocal %450 {approx = true} : vector<4x1xf32> -> vector<4x1xf32>
    %452 = vector.broadcast %451 : vector<4x1xf32> to vector<4x4xf32>
    %453 = arith.mulf %448, %452 : vector<4x4xf32>
    %454 = vector.extract_strided_slice %423 {offsets = [0, 8], sizes = [4, 8], strides = [1, 1]} : vector<4x32xf32> to vector<4x8xf32>
    %cst_179 = arith.constant dense<0.000000e+00> : vector<4x8xf32>
    %455 = tpu.matmul %453, %454, %cst_179 {dimension_numbers = #tpu.dot_dimension_numbers<[1], [0], [0], [1], [0, 0, 1, 1], [], []>} : vector<4x4xf32>, vector<4x8xf32>, vector<4x8xf32> -> vector<4x8xf32>
    %456 = vector.extract_strided_slice %403 {offsets = [8, 0], sizes = [8, 32], strides = [1, 1]} : vector<32x32xf32> to vector<8x32xf32>
    %cst_180 = arith.constant dense<0.000000e+00> : vector<4x32xf32>
    %457 = tpu.matmul %455, %456, %cst_180 {dimension_numbers = #tpu.dot_dimension_numbers<[1], [0], [0], [1], [0, 0, 1, 1], [], []>} : vector<4x8xf32>, vector<8x32xf32>, vector<4x32xf32> -> vector<4x32xf32>
    %458 = arith.addf %440, %457 : vector<4x32xf32>
    %459 = vector.extract_strided_slice %421 {offsets = [0, 16], sizes = [4, 8], strides = [1, 1]} : vector<4x32xf32> to vector<4x8xf32>
    %460 = vector.extract_strided_slice %422 {offsets = [0, 16], sizes = [4, 8], strides = [1, 1]} : vector<4x32xf32> to vector<4x8xf32>
    %cst_181 = arith.constant dense<0.000000e+00> : vector<4x4xf32>
    %461 = tpu.matmul %459, %460, %cst_181 {dimension_numbers = #tpu.dot_dimension_numbers<[1], [1], [0], [0], [0, 0, 1, 0], [], []>} : vector<4x8xf32>, vector<4x8xf32>, vector<4x4xf32> -> vector<4x4xf32>
    %cst_182 = arith.constant dense<0xFF800000> : vector<4xf32>
    %462 = vector.multi_reduction <maximumf>, %461, %cst_182 [1] : vector<4x4xf32> to vector<4xf32>
    %463 = vector.shape_cast %462 : vector<4xf32> to vector<4x1xf32>
    %464 = vector.broadcast %463 : vector<4x1xf32> to vector<4x4xf32>
    %465 = arith.subf %461, %464 : vector<4x4xf32>
    %466 = math.exp %465 : vector<4x4xf32>
    %cst_183 = arith.constant dense<0.000000e+00> : vector<4xf32>
    %467 = vector.multi_reduction <add>, %466, %cst_183 [1] : vector<4x4xf32> to vector<4xf32>
    %468 = vector.shape_cast %467 : vector<4xf32> to vector<4x1xf32>
    %469 = tpu.reciprocal %468 {approx = true} : vector<4x1xf32> -> vector<4x1xf32>
    %470 = vector.broadcast %469 : vector<4x1xf32> to vector<4x4xf32>
    %471 = arith.mulf %466, %470 : vector<4x4xf32>
    %472 = vector.extract_strided_slice %423 {offsets = [0, 16], sizes = [4, 8], strides = [1, 1]} : vector<4x32xf32> to vector<4x8xf32>
    %cst_184 = arith.constant dense<0.000000e+00> : vector<4x8xf32>
    %473 = tpu.matmul %471, %472, %cst_184 {dimension_numbers = #tpu.dot_dimension_numbers<[1], [0], [0], [1], [0, 0, 1, 1], [], []>} : vector<4x4xf32>, vector<4x8xf32>, vector<4x8xf32> -> vector<4x8xf32>
    %474 = vector.extract_strided_slice %403 {offsets = [16, 0], sizes = [8, 32], strides = [1, 1]} : vector<32x32xf32> to vector<8x32xf32>
    %cst_185 = arith.constant dense<0.000000e+00> : vector<4x32xf32>
    %475 = tpu.matmul %473, %474, %cst_185 {dimension_numbers = #tpu.dot_dimension_numbers<[1], [0], [0], [1], [0, 0, 1, 1], [], []>} : vector<4x8xf32>, vector<8x32xf32>, vector<4x32xf32> -> vector<4x32xf32>
    %476 = arith.addf %458, %475 : vector<4x32xf32>
    %477 = vector.extract_strided_slice %421 {offsets = [0, 24], sizes = [4, 8], strides = [1, 1]} : vector<4x32xf32> to vector<4x8xf32>
    %478 = vector.extract_strided_slice %422 {offsets = [0, 24], sizes = [4, 8], strides = [1, 1]} : vector<4x32xf32> to vector<4x8xf32>
    %cst_186 = arith.constant dense<0.000000e+00> : vector<4x4xf32>
    %479 = tpu.matmul %477, %478, %cst_186 {dimension_numbers = #tpu.dot_dimension_numbers<[1], [1], [0], [0], [0, 0, 1, 0], [], []>} : vector<4x8xf32>, vector<4x8xf32>, vector<4x4xf32> -> vector<4x4xf32>
    %cst_187 = arith.constant dense<0xFF800000> : vector<4xf32>
    %480 = vector.multi_reduction <maximumf>, %479, %cst_187 [1] : vector<4x4xf32> to vector<4xf32>
    %481 = vector.shape_cast %480 : vector<4xf32> to vector<4x1xf32>
    %482 = vector.broadcast %481 : vector<4x1xf32> to vector<4x4xf32>
    %483 = arith.subf %479, %482 : vector<4x4xf32>
    %484 = math.exp %483 : vector<4x4xf32>
    %cst_188 = arith.constant dense<0.000000e+00> : vector<4xf32>
    %485 = vector.multi_reduction <add>, %484, %cst_188 [1] : vector<4x4xf32> to vector<4xf32>
    %486 = vector.shape_cast %485 : vector<4xf32> to vector<4x1xf32>
    %487 = tpu.reciprocal %486 {approx = true} : vector<4x1xf32> -> vector<4x1xf32>
    %488 = vector.broadcast %487 : vector<4x1xf32> to vector<4x4xf32>
    %489 = arith.mulf %484, %488 : vector<4x4xf32>
    %490 = vector.extract_strided_slice %423 {offsets = [0, 24], sizes = [4, 8], strides = [1, 1]} : vector<4x32xf32> to vector<4x8xf32>
    %cst_189 = arith.constant dense<0.000000e+00> : vector<4x8xf32>
    %491 = tpu.matmul %489, %490, %cst_189 {dimension_numbers = #tpu.dot_dimension_numbers<[1], [0], [0], [1], [0, 0, 1, 1], [], []>} : vector<4x4xf32>, vector<4x8xf32>, vector<4x8xf32> -> vector<4x8xf32>
    %492 = vector.extract_strided_slice %403 {offsets = [24, 0], sizes = [8, 32], strides = [1, 1]} : vector<32x32xf32> to vector<8x32xf32>
    %cst_190 = arith.constant dense<0.000000e+00> : vector<4x32xf32>
    %493 = tpu.matmul %491, %492, %cst_190 {dimension_numbers = #tpu.dot_dimension_numbers<[1], [0], [0], [1], [0, 0, 1, 1], [], []>} : vector<4x8xf32>, vector<8x32xf32>, vector<4x32xf32> -> vector<4x32xf32>
    %494 = arith.addf %476, %493 : vector<4x32xf32>
    %495 = vector.extract_strided_slice %410 {offsets = [4, 0], sizes = [4, 32], strides = [1, 1]} : vector<8x32xf32> to vector<4x32xf32>
    %496 = vector.extract_strided_slice %415 {offsets = [4, 0], sizes = [4, 32], strides = [1, 1]} : vector<8x32xf32> to vector<4x32xf32>
    %497 = vector.extract_strided_slice %420 {offsets = [4, 0], sizes = [4, 32], strides = [1, 1]} : vector<8x32xf32> to vector<4x32xf32>
    %498 = vector.extract_strided_slice %495 {offsets = [0, 0], sizes = [4, 8], strides = [1, 1]} : vector<4x32xf32> to vector<4x8xf32>
    %499 = vector.extract_strided_slice %496 {offsets = [0, 0], sizes = [4, 8], strides = [1, 1]} : vector<4x32xf32> to vector<4x8xf32>
    %cst_191 = arith.constant dense<0.000000e+00> : vector<4x4xf32>
    %500 = tpu.matmul %498, %499, %cst_191 {dimension_numbers = #tpu.dot_dimension_numbers<[1], [1], [0], [0], [0, 0, 1, 0], [], []>} : vector<4x8xf32>, vector<4x8xf32>, vector<4x4xf32> -> vector<4x4xf32>
    %cst_192 = arith.constant dense<0xFF800000> : vector<4xf32>
    %501 = vector.multi_reduction <maximumf>, %500, %cst_192 [1] : vector<4x4xf32> to vector<4xf32>
    %502 = vector.shape_cast %501 : vector<4xf32> to vector<4x1xf32>
    %503 = vector.broadcast %502 : vector<4x1xf32> to vector<4x4xf32>
    %504 = arith.subf %500, %503 : vector<4x4xf32>
    %505 = math.exp %504 : vector<4x4xf32>
    %cst_193 = arith.constant dense<0.000000e+00> : vector<4xf32>
    %506 = vector.multi_reduction <add>, %505, %cst_193 [1] : vector<4x4xf32> to vector<4xf32>
    %507 = vector.shape_cast %506 : vector<4xf32> to vector<4x1xf32>
    %508 = tpu.reciprocal %507 {approx = true} : vector<4x1xf32> -> vector<4x1xf32>
    %509 = vector.broadcast %508 : vector<4x1xf32> to vector<4x4xf32>
    %510 = arith.mulf %505, %509 : vector<4x4xf32>
    %511 = vector.extract_strided_slice %497 {offsets = [0, 0], sizes = [4, 8], strides = [1, 1]} : vector<4x32xf32> to vector<4x8xf32>
    %cst_194 = arith.constant dense<0.000000e+00> : vector<4x8xf32>
    %512 = tpu.matmul %510, %511, %cst_194 {dimension_numbers = #tpu.dot_dimension_numbers<[1], [0], [0], [1], [0, 0, 1, 1], [], []>} : vector<4x4xf32>, vector<4x8xf32>, vector<4x8xf32> -> vector<4x8xf32>
    %513 = vector.extract_strided_slice %403 {offsets = [0, 0], sizes = [8, 32], strides = [1, 1]} : vector<32x32xf32> to vector<8x32xf32>
    %cst_195 = arith.constant dense<0.000000e+00> : vector<4x32xf32>
    %514 = tpu.matmul %512, %513, %cst_195 {dimension_numbers = #tpu.dot_dimension_numbers<[1], [0], [0], [1], [0, 0, 1, 1], [], []>} : vector<4x8xf32>, vector<8x32xf32>, vector<4x32xf32> -> vector<4x32xf32>
    %515 = vector.extract_strided_slice %495 {offsets = [0, 8], sizes = [4, 8], strides = [1, 1]} : vector<4x32xf32> to vector<4x8xf32>
    %516 = vector.extract_strided_slice %496 {offsets = [0, 8], sizes = [4, 8], strides = [1, 1]} : vector<4x32xf32> to vector<4x8xf32>
    %cst_196 = arith.constant dense<0.000000e+00> : vector<4x4xf32>
    %517 = tpu.matmul %515, %516, %cst_196 {dimension_numbers = #tpu.dot_dimension_numbers<[1], [1], [0], [0], [0, 0, 1, 0], [], []>} : vector<4x8xf32>, vector<4x8xf32>, vector<4x4xf32> -> vector<4x4xf32>
    %cst_197 = arith.constant dense<0xFF800000> : vector<4xf32>
    %518 = vector.multi_reduction <maximumf>, %517, %cst_197 [1] : vector<4x4xf32> to vector<4xf32>
    %519 = vector.shape_cast %518 : vector<4xf32> to vector<4x1xf32>
    %520 = vector.broadcast %519 : vector<4x1xf32> to vector<4x4xf32>
    %521 = arith.subf %517, %520 : vector<4x4xf32>
    %522 = math.exp %521 : vector<4x4xf32>
    %cst_198 = arith.constant dense<0.000000e+00> : vector<4xf32>
    %523 = vector.multi_reduction <add>, %522, %cst_198 [1] : vector<4x4xf32> to vector<4xf32>
    %524 = vector.shape_cast %523 : vector<4xf32> to vector<4x1xf32>
    %525 = tpu.reciprocal %524 {approx = true} : vector<4x1xf32> -> vector<4x1xf32>
    %526 = vector.broadcast %525 : vector<4x1xf32> to vector<4x4xf32>
    %527 = arith.mulf %522, %526 : vector<4x4xf32>
    %528 = vector.extract_strided_slice %497 {offsets = [0, 8], sizes = [4, 8], strides = [1, 1]} : vector<4x32xf32> to vector<4x8xf32>
    %cst_199 = arith.constant dense<0.000000e+00> : vector<4x8xf32>
    %529 = tpu.matmul %527, %528, %cst_199 {dimension_numbers = #tpu.dot_dimension_numbers<[1], [0], [0], [1], [0, 0, 1, 1], [], []>} : vector<4x4xf32>, vector<4x8xf32>, vector<4x8xf32> -> vector<4x8xf32>
    %530 = vector.extract_strided_slice %403 {offsets = [8, 0], sizes = [8, 32], strides = [1, 1]} : vector<32x32xf32> to vector<8x32xf32>
    %cst_200 = arith.constant dense<0.000000e+00> : vector<4x32xf32>
    %531 = tpu.matmul %529, %530, %cst_200 {dimension_numbers = #tpu.dot_dimension_numbers<[1], [0], [0], [1], [0, 0, 1, 1], [], []>} : vector<4x8xf32>, vector<8x32xf32>, vector<4x32xf32> -> vector<4x32xf32>
    %532 = arith.addf %514, %531 : vector<4x32xf32>
    %533 = vector.extract_strided_slice %495 {offsets = [0, 16], sizes = [4, 8], strides = [1, 1]} : vector<4x32xf32> to vector<4x8xf32>
    %534 = vector.extract_strided_slice %496 {offsets = [0, 16], sizes = [4, 8], strides = [1, 1]} : vector<4x32xf32> to vector<4x8xf32>
    %cst_201 = arith.constant dense<0.000000e+00> : vector<4x4xf32>
    %535 = tpu.matmul %533, %534, %cst_201 {dimension_numbers = #tpu.dot_dimension_numbers<[1], [1], [0], [0], [0, 0, 1, 0], [], []>} : vector<4x8xf32>, vector<4x8xf32>, vector<4x4xf32> -> vector<4x4xf32>
    %cst_202 = arith.constant dense<0xFF800000> : vector<4xf32>
    %536 = vector.multi_reduction <maximumf>, %535, %cst_202 [1] : vector<4x4xf32> to vector<4xf32>
    %537 = vector.shape_cast %536 : vector<4xf32> to vector<4x1xf32>
    %538 = vector.broadcast %537 : vector<4x1xf32> to vector<4x4xf32>
    %539 = arith.subf %535, %538 : vector<4x4xf32>
    %540 = math.exp %539 : vector<4x4xf32>
    %cst_203 = arith.constant dense<0.000000e+00> : vector<4xf32>
    %541 = vector.multi_reduction <add>, %540, %cst_203 [1] : vector<4x4xf32> to vector<4xf32>
    %542 = vector.shape_cast %541 : vector<4xf32> to vector<4x1xf32>
    %543 = tpu.reciprocal %542 {approx = true} : vector<4x1xf32> -> vector<4x1xf32>
    %544 = vector.broadcast %543 : vector<4x1xf32> to vector<4x4xf32>
    %545 = arith.mulf %540, %544 : vector<4x4xf32>
    %546 = vector.extract_strided_slice %497 {offsets = [0, 16], sizes = [4, 8], strides = [1, 1]} : vector<4x32xf32> to vector<4x8xf32>
    %cst_204 = arith.constant dense<0.000000e+00> : vector<4x8xf32>
    %547 = tpu.matmul %545, %546, %cst_204 {dimension_numbers = #tpu.dot_dimension_numbers<[1], [0], [0], [1], [0, 0, 1, 1], [], []>} : vector<4x4xf32>, vector<4x8xf32>, vector<4x8xf32> -> vector<4x8xf32>
    %548 = vector.extract_strided_slice %403 {offsets = [16, 0], sizes = [8, 32], strides = [1, 1]} : vector<32x32xf32> to vector<8x32xf32>
    %cst_205 = arith.constant dense<0.000000e+00> : vector<4x32xf32>
    %549 = tpu.matmul %547, %548, %cst_205 {dimension_numbers = #tpu.dot_dimension_numbers<[1], [0], [0], [1], [0, 0, 1, 1], [], []>} : vector<4x8xf32>, vector<8x32xf32>, vector<4x32xf32> -> vector<4x32xf32>
    %550 = arith.addf %532, %549 : vector<4x32xf32>
    %551 = vector.extract_strided_slice %495 {offsets = [0, 24], sizes = [4, 8], strides = [1, 1]} : vector<4x32xf32> to vector<4x8xf32>
    %552 = vector.extract_strided_slice %496 {offsets = [0, 24], sizes = [4, 8], strides = [1, 1]} : vector<4x32xf32> to vector<4x8xf32>
    %cst_206 = arith.constant dense<0.000000e+00> : vector<4x4xf32>
    %553 = tpu.matmul %551, %552, %cst_206 {dimension_numbers = #tpu.dot_dimension_numbers<[1], [1], [0], [0], [0, 0, 1, 0], [], []>} : vector<4x8xf32>, vector<4x8xf32>, vector<4x4xf32> -> vector<4x4xf32>
    %cst_207 = arith.constant dense<0xFF800000> : vector<4xf32>
    %554 = vector.multi_reduction <maximumf>, %553, %cst_207 [1] : vector<4x4xf32> to vector<4xf32>
    %555 = vector.shape_cast %554 : vector<4xf32> to vector<4x1xf32>
    %556 = vector.broadcast %555 : vector<4x1xf32> to vector<4x4xf32>
    %557 = arith.subf %553, %556 : vector<4x4xf32>
    %558 = math.exp %557 : vector<4x4xf32>
    %cst_208 = arith.constant dense<0.000000e+00> : vector<4xf32>
    %559 = vector.multi_reduction <add>, %558, %cst_208 [1] : vector<4x4xf32> to vector<4xf32>
    %560 = vector.shape_cast %559 : vector<4xf32> to vector<4x1xf32>
    %561 = tpu.reciprocal %560 {approx = true} : vector<4x1xf32> -> vector<4x1xf32>
    %562 = vector.broadcast %561 : vector<4x1xf32> to vector<4x4xf32>
    %563 = arith.mulf %558, %562 : vector<4x4xf32>
    %564 = vector.extract_strided_slice %497 {offsets = [0, 24], sizes = [4, 8], strides = [1, 1]} : vector<4x32xf32> to vector<4x8xf32>
    %cst_209 = arith.constant dense<0.000000e+00> : vector<4x8xf32>
    %565 = tpu.matmul %563, %564, %cst_209 {dimension_numbers = #tpu.dot_dimension_numbers<[1], [0], [0], [1], [0, 0, 1, 1], [], []>} : vector<4x4xf32>, vector<4x8xf32>, vector<4x8xf32> -> vector<4x8xf32>
    %566 = vector.extract_strided_slice %403 {offsets = [24, 0], sizes = [8, 32], strides = [1, 1]} : vector<32x32xf32> to vector<8x32xf32>
    %cst_210 = arith.constant dense<0.000000e+00> : vector<4x32xf32>
    %567 = tpu.matmul %565, %566, %cst_210 {dimension_numbers = #tpu.dot_dimension_numbers<[1], [0], [0], [1], [0, 0, 1, 1], [], []>} : vector<4x8xf32>, vector<8x32xf32>, vector<4x32xf32> -> vector<4x32xf32>
    %568 = arith.addf %550, %567 : vector<4x32xf32>
    %569 = tpu.concatenate %494, %568 in 0 : vector<4x32xf32>, vector<4x32xf32> -> vector<8x32xf32>
    %c1_211 = arith.constant 1 : index
    %c0_212 = arith.constant 0 : index
    %c0_213 = arith.constant 0 : index
    %570 = vector.load %arg10[%c1_211, %c0_212, %c0_213] : memref<3x1x32xf32, #tpu.memory_space<vmem>>, vector<1x1x32xf32>
    %571 = vector.shape_cast %570 : vector<1x1x32xf32> to vector<1x32xf32>
    %572 = vector.broadcast %571 : vector<1x32xf32> to vector<8x32xf32>
    %573 = arith.addf %569, %572 : vector<8x32xf32>
    %574 = arith.addf %395, %573 : vector<8x32xf32>
    %c1_214 = arith.constant 1 : index
    %c0_215 = arith.constant 0 : index
    %c0_216 = arith.constant 0 : index
    %575 = vector.load %arg15[%c1_214, %c0_215, %c0_216] : memref<3x1x32xf32, #tpu.memory_space<vmem>>, vector<1x1x32xf32>
    %576 = vector.shape_cast %575 : vector<1x1x32xf32> to vector<1x32xf32>
    %c1_217 = arith.constant 1 : index
    %c0_218 = arith.constant 0 : index
    %c0_219 = arith.constant 0 : index
    %577 = vector.load %arg16[%c1_217, %c0_218, %c0_219] : memref<3x1x32xf32, #tpu.memory_space<vmem>>, vector<1x1x32xf32>
    %578 = vector.shape_cast %577 : vector<1x1x32xf32> to vector<1x32xf32>
    %cst_220 = arith.constant dense<0.000000e+00> : vector<8xf32>
    %579 = vector.multi_reduction <add>, %574, %cst_220 [1] : vector<8x32xf32> to vector<8xf32>
    %580 = vector.shape_cast %579 : vector<8xf32> to vector<8x1xf32>
    %cst_221 = arith.constant 3.200000e+01 : f32
    %581 = vector.broadcast %cst_221 : f32 to vector<8x1xf32>
    %582 = arith.divf %580, %581 : vector<8x1xf32>
    %583 = vector.broadcast %582 : vector<8x1xf32> to vector<8x32xf32>
    %584 = arith.subf %574, %583 : vector<8x32xf32>
    %585 = arith.mulf %584, %584 : vector<8x32xf32>
    %cst_222 = arith.constant dense<0.000000e+00> : vector<8xf32>
    %586 = vector.multi_reduction <add>, %585, %cst_222 [1] : vector<8x32xf32> to vector<8xf32>
    %587 = vector.shape_cast %586 : vector<8xf32> to vector<8x1xf32>
    %cst_223 = arith.constant 3.200000e+01 : f32
    %588 = vector.broadcast %cst_223 : f32 to vector<8x1xf32>
    %589 = arith.divf %587, %588 : vector<8x1xf32>
    %cst_224 = arith.constant 9.99999974E-6 : f32
    %590 = vector.broadcast %cst_224 : f32 to vector<8x1xf32>
    %591 = arith.addf %589, %590 : vector<8x1xf32>
    %592 = math.rsqrt %591 : vector<8x1xf32>
    %593 = vector.broadcast %592 : vector<8x1xf32> to vector<8x32xf32>
    %594 = arith.mulf %584, %593 : vector<8x32xf32>
    %595 = vector.broadcast %576 : vector<1x32xf32> to vector<8x32xf32>
    %596 = arith.mulf %594, %595 : vector<8x32xf32>
    %597 = vector.broadcast %578 : vector<1x32xf32> to vector<8x32xf32>
    %598 = arith.addf %596, %597 : vector<8x32xf32>
    %c1_225 = arith.constant 1 : index
    %c0_226 = arith.constant 0 : index
    %c0_227 = arith.constant 0 : index
    %599 = vector.load %arg11[%c1_225, %c0_226, %c0_227] : memref<3x32x64xf32, #tpu.memory_space<vmem>>, vector<1x32x64xf32>
    %600 = vector.shape_cast %599 : vector<1x32x64xf32> to vector<32x64xf32>
    %cst_228 = arith.constant dense<0.000000e+00> : vector<8x64xf32>
    %601 = tpu.matmul %598, %600, %cst_228 {dimension_numbers = #tpu.dot_dimension_numbers<[1], [0], [0], [1], [0, 0, 1, 1], [], []>} : vector<8x32xf32>, vector<32x64xf32>, vector<8x64xf32> -> vector<8x64xf32>
    %c1_229 = arith.constant 1 : index
    %c0_230 = arith.constant 0 : index
    %c0_231 = arith.constant 0 : index
    %602 = vector.load %arg12[%c1_229, %c0_230, %c0_231] : memref<3x1x64xf32, #tpu.memory_space<vmem>>, vector<1x1x64xf32>
    %603 = vector.shape_cast %602 : vector<1x1x64xf32> to vector<1x64xf32>
    %604 = vector.broadcast %603 : vector<1x64xf32> to vector<8x64xf32>
    %605 = arith.addf %601, %604 : vector<8x64xf32>
    %cst_232 = arith.constant 5.000000e-01 : f32
    %606 = vector.broadcast %cst_232 : f32 to vector<8x64xf32>
    %607 = arith.mulf %606, %605 : vector<8x64xf32>
    %cst_233 = arith.constant 0.707106769 : f32
    %608 = vector.broadcast %cst_233 : f32 to vector<8x64xf32>
    %609 = arith.mulf %605, %608 : vector<8x64xf32>
    %610 = math.erf %609 : vector<8x64xf32>
    %cst_234 = arith.constant 1.000000e+00 : f32
    %611 = vector.broadcast %cst_234 : f32 to vector<8x64xf32>
    %612 = arith.addf %611, %610 : vector<8x64xf32>
    %613 = arith.mulf %607, %612 : vector<8x64xf32>
    %c1_235 = arith.constant 1 : index
    %c0_236 = arith.constant 0 : index
    %c0_237 = arith.constant 0 : index
    %614 = vector.load %arg13[%c1_235, %c0_236, %c0_237] : memref<3x64x32xf32, #tpu.memory_space<vmem>>, vector<1x64x32xf32>
    %615 = vector.shape_cast %614 : vector<1x64x32xf32> to vector<64x32xf32>
    %cst_238 = arith.constant dense<0.000000e+00> : vector<8x32xf32>
    %616 = tpu.matmul %613, %615, %cst_238 {dimension_numbers = #tpu.dot_dimension_numbers<[1], [0], [0], [1], [0, 0, 1, 1], [], []>} : vector<8x64xf32>, vector<64x32xf32>, vector<8x32xf32> -> vector<8x32xf32>
    %c1_239 = arith.constant 1 : index
    %c0_240 = arith.constant 0 : index
    %c0_241 = arith.constant 0 : index
    %617 = vector.load %arg14[%c1_239, %c0_240, %c0_241] : memref<3x1x32xf32, #tpu.memory_space<vmem>>, vector<1x1x32xf32>
    %618 = vector.shape_cast %617 : vector<1x1x32xf32> to vector<1x32xf32>
    %619 = vector.broadcast %618 : vector<1x32xf32> to vector<8x32xf32>
    %620 = arith.addf %616, %619 : vector<8x32xf32>
    %621 = arith.addf %598, %620 : vector<8x32xf32>
    %c1_242 = arith.constant 1 : index
    %c0_243 = arith.constant 0 : index
    %c0_244 = arith.constant 0 : index
    %622 = vector.load %arg17[%c1_242, %c0_243, %c0_244] : memref<3x1x32xf32, #tpu.memory_space<vmem>>, vector<1x1x32xf32>
    %623 = vector.shape_cast %622 : vector<1x1x32xf32> to vector<1x32xf32>
    %c1_245 = arith.constant 1 : index
    %c0_246 = arith.constant 0 : index
    %c0_247 = arith.constant 0 : index
    %624 = vector.load %arg18[%c1_245, %c0_246, %c0_247] : memref<3x1x32xf32, #tpu.memory_space<vmem>>, vector<1x1x32xf32>
    %625 = vector.shape_cast %624 : vector<1x1x32xf32> to vector<1x32xf32>
    %cst_248 = arith.constant dense<0.000000e+00> : vector<8xf32>
    %626 = vector.multi_reduction <add>, %621, %cst_248 [1] : vector<8x32xf32> to vector<8xf32>
    %627 = vector.shape_cast %626 : vector<8xf32> to vector<8x1xf32>
    %cst_249 = arith.constant 3.200000e+01 : f32
    %628 = vector.broadcast %cst_249 : f32 to vector<8x1xf32>
    %629 = arith.divf %627, %628 : vector<8x1xf32>
    %630 = vector.broadcast %629 : vector<8x1xf32> to vector<8x32xf32>
    %631 = arith.subf %621, %630 : vector<8x32xf32>
    %632 = arith.mulf %631, %631 : vector<8x32xf32>
    %cst_250 = arith.constant dense<0.000000e+00> : vector<8xf32>
    %633 = vector.multi_reduction <add>, %632, %cst_250 [1] : vector<8x32xf32> to vector<8xf32>
    %634 = vector.shape_cast %633 : vector<8xf32> to vector<8x1xf32>
    %cst_251 = arith.constant 3.200000e+01 : f32
    %635 = vector.broadcast %cst_251 : f32 to vector<8x1xf32>
    %636 = arith.divf %634, %635 : vector<8x1xf32>
    %cst_252 = arith.constant 9.99999974E-6 : f32
    %637 = vector.broadcast %cst_252 : f32 to vector<8x1xf32>
    %638 = arith.addf %636, %637 : vector<8x1xf32>
    %639 = math.rsqrt %638 : vector<8x1xf32>
    %640 = vector.broadcast %639 : vector<8x1xf32> to vector<8x32xf32>
    %641 = arith.mulf %631, %640 : vector<8x32xf32>
    %642 = vector.broadcast %623 : vector<1x32xf32> to vector<8x32xf32>
    %643 = arith.mulf %641, %642 : vector<8x32xf32>
    %644 = vector.broadcast %625 : vector<1x32xf32> to vector<8x32xf32>
    %645 = arith.addf %643, %644 : vector<8x32xf32>
    %c1_253 = arith.constant 1 : index
    %c0_254 = arith.constant 0 : index
    %c0_255 = arith.constant 0 : index
    %c0_256 = arith.constant 0 : index
    %646 = vector.load %arg19[%c1_253, %c0_254, %c0_255, %c0_256] : memref<2x3x32x32xf32, #tpu.memory_space<vmem>>, vector<1x3x32x32xf32>
    %647 = vector.shape_cast %646 : vector<1x3x32x32xf32> to vector<3x32x32xf32>
    %c1_257 = arith.constant 1 : index
    %c0_258 = arith.constant 0 : index
    %c0_259 = arith.constant 0 : index
    %648 = vector.load %arg20[%c1_257, %c0_258, %c0_259] : memref<2x1x32xf32, #tpu.memory_space<vmem>>, vector<1x1x32xf32>
    %649 = vector.shape_cast %648 : vector<1x1x32xf32> to vector<1x32xf32>
    %c1_260 = arith.constant 1 : index
    %c0_261 = arith.constant 0 : index
    %c0_262 = arith.constant 0 : index
    %650 = vector.load %arg21[%c1_260, %c0_261, %c0_262] : memref<2x1x32xf32, #tpu.memory_space<vmem>>, vector<1x1x32xf32>
    %651 = vector.shape_cast %650 : vector<1x1x32xf32> to vector<1x32xf32>
    %c1_263 = arith.constant 1 : index
    %c0_264 = arith.constant 0 : index
    %c0_265 = arith.constant 0 : index
    %652 = vector.load %arg22[%c1_263, %c0_264, %c0_265] : memref<2x1x32xf32, #tpu.memory_space<vmem>>, vector<1x1x32xf32>
    %653 = vector.shape_cast %652 : vector<1x1x32xf32> to vector<1x32xf32>
    %654 = vector.extract_strided_slice %645 {offsets = [0, 0], sizes = [4, 32], strides = [1, 1]} : vector<8x32xf32> to vector<4x32xf32>
    %655 = vector.extract_strided_slice %654 {offsets = [3, 0], sizes = [1, 32], strides = [1, 1]} : vector<4x32xf32> to vector<1x32xf32>
    %656 = vector.extract_strided_slice %654 {offsets = [0, 0], sizes = [3, 32], strides = [1, 1]} : vector<4x32xf32> to vector<3x32xf32>
    %657 = tpu.concatenate %655, %656 in 0 : vector<1x32xf32>, vector<3x32xf32> -> vector<4x32xf32>
    %658 = vector.extract_strided_slice %654 {offsets = [1, 0], sizes = [3, 32], strides = [1, 1]} : vector<4x32xf32> to vector<3x32xf32>
    %659 = vector.extract_strided_slice %654 {offsets = [0, 0], sizes = [1, 32], strides = [1, 1]} : vector<4x32xf32> to vector<1x32xf32>
    %660 = tpu.concatenate %658, %659 in 0 : vector<3x32xf32>, vector<1x32xf32> -> vector<4x32xf32>
    %661 = vector.extract_strided_slice %647 {offsets = [0, 0, 0], sizes = [1, 32, 32], strides = [1, 1, 1]} : vector<3x32x32xf32> to vector<1x32x32xf32>
    %662 = vector.shape_cast %661 : vector<1x32x32xf32> to vector<32x32xf32>
    %cst_266 = arith.constant dense<0.000000e+00> : vector<4x32xf32>
    %663 = tpu.matmul %657, %662, %cst_266 {dimension_numbers = #tpu.dot_dimension_numbers<[1], [0], [0], [1], [0, 0, 1, 1], [], []>} : vector<4x32xf32>, vector<32x32xf32>, vector<4x32xf32> -> vector<4x32xf32>
    %664 = vector.extract_strided_slice %647 {offsets = [1, 0, 0], sizes = [1, 32, 32], strides = [1, 1, 1]} : vector<3x32x32xf32> to vector<1x32x32xf32>
    %665 = vector.shape_cast %664 : vector<1x32x32xf32> to vector<32x32xf32>
    %cst_267 = arith.constant dense<0.000000e+00> : vector<4x32xf32>
    %666 = tpu.matmul %654, %665, %cst_267 {dimension_numbers = #tpu.dot_dimension_numbers<[1], [0], [0], [1], [0, 0, 1, 1], [], []>} : vector<4x32xf32>, vector<32x32xf32>, vector<4x32xf32> -> vector<4x32xf32>
    %667 = arith.addf %663, %666 : vector<4x32xf32>
    %668 = vector.extract_strided_slice %647 {offsets = [2, 0, 0], sizes = [1, 32, 32], strides = [1, 1, 1]} : vector<3x32x32xf32> to vector<1x32x32xf32>
    %669 = vector.shape_cast %668 : vector<1x32x32xf32> to vector<32x32xf32>
    %cst_268 = arith.constant dense<0.000000e+00> : vector<4x32xf32>
    %670 = tpu.matmul %660, %669, %cst_268 {dimension_numbers = #tpu.dot_dimension_numbers<[1], [0], [0], [1], [0, 0, 1, 1], [], []>} : vector<4x32xf32>, vector<32x32xf32>, vector<4x32xf32> -> vector<4x32xf32>
    %671 = arith.addf %667, %670 : vector<4x32xf32>
    %672 = vector.broadcast %649 : vector<1x32xf32> to vector<4x32xf32>
    %673 = arith.addf %671, %672 : vector<4x32xf32>
    %674 = vector.extract_strided_slice %645 {offsets = [4, 0], sizes = [4, 32], strides = [1, 1]} : vector<8x32xf32> to vector<4x32xf32>
    %675 = vector.extract_strided_slice %674 {offsets = [3, 0], sizes = [1, 32], strides = [1, 1]} : vector<4x32xf32> to vector<1x32xf32>
    %676 = vector.extract_strided_slice %674 {offsets = [0, 0], sizes = [3, 32], strides = [1, 1]} : vector<4x32xf32> to vector<3x32xf32>
    %677 = tpu.concatenate %675, %676 in 0 : vector<1x32xf32>, vector<3x32xf32> -> vector<4x32xf32>
    %678 = vector.extract_strided_slice %674 {offsets = [1, 0], sizes = [3, 32], strides = [1, 1]} : vector<4x32xf32> to vector<3x32xf32>
    %679 = vector.extract_strided_slice %674 {offsets = [0, 0], sizes = [1, 32], strides = [1, 1]} : vector<4x32xf32> to vector<1x32xf32>
    %680 = tpu.concatenate %678, %679 in 0 : vector<3x32xf32>, vector<1x32xf32> -> vector<4x32xf32>
    %681 = vector.extract_strided_slice %647 {offsets = [0, 0, 0], sizes = [1, 32, 32], strides = [1, 1, 1]} : vector<3x32x32xf32> to vector<1x32x32xf32>
    %682 = vector.shape_cast %681 : vector<1x32x32xf32> to vector<32x32xf32>
    %cst_269 = arith.constant dense<0.000000e+00> : vector<4x32xf32>
    %683 = tpu.matmul %677, %682, %cst_269 {dimension_numbers = #tpu.dot_dimension_numbers<[1], [0], [0], [1], [0, 0, 1, 1], [], []>} : vector<4x32xf32>, vector<32x32xf32>, vector<4x32xf32> -> vector<4x32xf32>
    %684 = vector.extract_strided_slice %647 {offsets = [1, 0, 0], sizes = [1, 32, 32], strides = [1, 1, 1]} : vector<3x32x32xf32> to vector<1x32x32xf32>
    %685 = vector.shape_cast %684 : vector<1x32x32xf32> to vector<32x32xf32>
    %cst_270 = arith.constant dense<0.000000e+00> : vector<4x32xf32>
    %686 = tpu.matmul %674, %685, %cst_270 {dimension_numbers = #tpu.dot_dimension_numbers<[1], [0], [0], [1], [0, 0, 1, 1], [], []>} : vector<4x32xf32>, vector<32x32xf32>, vector<4x32xf32> -> vector<4x32xf32>
    %687 = arith.addf %683, %686 : vector<4x32xf32>
    %688 = vector.extract_strided_slice %647 {offsets = [2, 0, 0], sizes = [1, 32, 32], strides = [1, 1, 1]} : vector<3x32x32xf32> to vector<1x32x32xf32>
    %689 = vector.shape_cast %688 : vector<1x32x32xf32> to vector<32x32xf32>
    %cst_271 = arith.constant dense<0.000000e+00> : vector<4x32xf32>
    %690 = tpu.matmul %680, %689, %cst_271 {dimension_numbers = #tpu.dot_dimension_numbers<[1], [0], [0], [1], [0, 0, 1, 1], [], []>} : vector<4x32xf32>, vector<32x32xf32>, vector<4x32xf32> -> vector<4x32xf32>
    %691 = arith.addf %687, %690 : vector<4x32xf32>
    %692 = vector.broadcast %649 : vector<1x32xf32> to vector<4x32xf32>
    %693 = arith.addf %691, %692 : vector<4x32xf32>
    %694 = tpu.concatenate %673, %693 in 0 : vector<4x32xf32>, vector<4x32xf32> -> vector<8x32xf32>
    %cst_272 = arith.constant dense<0.000000e+00> : vector<32xf32>
    %695 = vector.multi_reduction <add>, %694, %cst_272 [0] : vector<8x32xf32> to vector<32xf32>
    %696 = vector.shape_cast %695 : vector<32xf32> to vector<1x32xf32>
    %cst_273 = arith.constant 8.000000e+00 : f32
    %697 = vector.broadcast %cst_273 : f32 to vector<1x32xf32>
    %698 = arith.divf %696, %697 : vector<1x32xf32>
    %699 = vector.broadcast %698 : vector<1x32xf32> to vector<8x32xf32>
    %700 = arith.subf %694, %699 : vector<8x32xf32>
    %701 = arith.mulf %700, %700 : vector<8x32xf32>
    %cst_274 = arith.constant dense<0.000000e+00> : vector<32xf32>
    %702 = vector.multi_reduction <add>, %701, %cst_274 [0] : vector<8x32xf32> to vector<32xf32>
    %703 = vector.shape_cast %702 : vector<32xf32> to vector<1x32xf32>
    %cst_275 = arith.constant 8.000000e+00 : f32
    %704 = vector.broadcast %cst_275 : f32 to vector<1x32xf32>
    %705 = arith.divf %703, %704 : vector<1x32xf32>
    %cst_276 = arith.constant 9.99999974E-6 : f32
    %706 = vector.broadcast %cst_276 : f32 to vector<1x32xf32>
    %707 = arith.addf %705, %706 : vector<1x32xf32>
    %708 = math.rsqrt %707 : vector<1x32xf32>
    %709 = vector.broadcast %708 : vector<1x32xf32> to vector<8x32xf32>
    %710 = arith.mulf %700, %709 : vector<8x32xf32>
    %711 = vector.broadcast %651 : vector<1x32xf32> to vector<8x32xf32>
    %712 = arith.mulf %710, %711 : vector<8x32xf32>
    %713 = vector.broadcast %653 : vector<1x32xf32> to vector<8x32xf32>
    %714 = arith.addf %712, %713 : vector<8x32xf32>
    %cst_277 = arith.constant 0.000000e+00 : f32
    %715 = vector.broadcast %cst_277 : f32 to vector<8x32xf32>
    %716 = arith.cmpf ogt, %714, %715 : vector<8x32xf32>
    %cst_278 = arith.constant 0.000000e+00 : f32
    %717 = vector.broadcast %cst_278 : f32 to vector<8x32xf32>
    %718 = arith.minimumf %714, %717 : vector<8x32xf32>
    %719 = math.exp %718 : vector<8x32xf32>
    %cst_279 = arith.constant 1.000000e+00 : f32
    %720 = vector.broadcast %cst_279 : f32 to vector<8x32xf32>
    %721 = arith.subf %719, %720 : vector<8x32xf32>
    %722 = arith.select %716, %714, %721 : vector<8x32xi1>, vector<8x32xf32>
    %723 = vector.extract_strided_slice %722 {offsets = [0, 0], sizes = [4, 32], strides = [1, 1]} : vector<8x32xf32> to vector<4x32xf32>
    %cst_280 = arith.constant -1.000000e+30 : f32
    %724 = vector.broadcast %cst_280 : f32 to vector<1x32xf32>
    %725 = vector.extract_strided_slice %723 {offsets = [0, 0], sizes = [3, 32], strides = [1, 1]} : vector<4x32xf32> to vector<3x32xf32>
    %726 = tpu.concatenate %724, %725 in 0 : vector<1x32xf32>, vector<3x32xf32> -> vector<4x32xf32>
    %727 = vector.extract_strided_slice %723 {offsets = [1, 0], sizes = [3, 32], strides = [1, 1]} : vector<4x32xf32> to vector<3x32xf32>
    %728 = tpu.concatenate %727, %724 in 0 : vector<3x32xf32>, vector<1x32xf32> -> vector<4x32xf32>
    %729 = arith.maximumf %726, %723 : vector<4x32xf32>
    %730 = arith.maximumf %729, %728 : vector<4x32xf32>
    %731 = vector.extract_strided_slice %730 {offsets = [0, 0], sizes = [1, 32], strides = [1, 1]} : vector<4x32xf32> to vector<1x32xf32>
    %732 = vector.extract_strided_slice %730 {offsets = [2, 0], sizes = [1, 32], strides = [1, 1]} : vector<4x32xf32> to vector<1x32xf32>
    %733 = tpu.concatenate %731, %732 in 0 : vector<1x32xf32>, vector<1x32xf32> -> vector<2x32xf32>
    %734 = vector.extract_strided_slice %722 {offsets = [4, 0], sizes = [4, 32], strides = [1, 1]} : vector<8x32xf32> to vector<4x32xf32>
    %cst_281 = arith.constant -1.000000e+30 : f32
    %735 = vector.broadcast %cst_281 : f32 to vector<1x32xf32>
    %736 = vector.extract_strided_slice %734 {offsets = [0, 0], sizes = [3, 32], strides = [1, 1]} : vector<4x32xf32> to vector<3x32xf32>
    %737 = tpu.concatenate %735, %736 in 0 : vector<1x32xf32>, vector<3x32xf32> -> vector<4x32xf32>
    %738 = vector.extract_strided_slice %734 {offsets = [1, 0], sizes = [3, 32], strides = [1, 1]} : vector<4x32xf32> to vector<3x32xf32>
    %739 = tpu.concatenate %738, %735 in 0 : vector<3x32xf32>, vector<1x32xf32> -> vector<4x32xf32>
    %740 = arith.maximumf %737, %734 : vector<4x32xf32>
    %741 = arith.maximumf %740, %739 : vector<4x32xf32>
    %742 = vector.extract_strided_slice %741 {offsets = [0, 0], sizes = [1, 32], strides = [1, 1]} : vector<4x32xf32> to vector<1x32xf32>
    %743 = vector.extract_strided_slice %741 {offsets = [2, 0], sizes = [1, 32], strides = [1, 1]} : vector<4x32xf32> to vector<1x32xf32>
    %744 = tpu.concatenate %742, %743 in 0 : vector<1x32xf32>, vector<1x32xf32> -> vector<2x32xf32>
    %745 = tpu.concatenate %733, %744 in 0 : vector<2x32xf32>, vector<2x32xf32> -> vector<4x32xf32>
    %c2 = arith.constant 2 : index
    %c0_282 = arith.constant 0 : index
    %c0_283 = arith.constant 0 : index
    %746 = vector.load %arg3[%c2, %c0_282, %c0_283] : memref<3x32x32xf32, #tpu.memory_space<vmem>>, vector<1x32x32xf32>
    %747 = vector.shape_cast %746 : vector<1x32x32xf32> to vector<32x32xf32>
    %c2_284 = arith.constant 2 : index
    %c0_285 = arith.constant 0 : index
    %c0_286 = arith.constant 0 : index
    %748 = vector.load %arg5[%c2_284, %c0_285, %c0_286] : memref<3x32x32xf32, #tpu.memory_space<vmem>>, vector<1x32x32xf32>
    %749 = vector.shape_cast %748 : vector<1x32x32xf32> to vector<32x32xf32>
    %c2_287 = arith.constant 2 : index
    %c0_288 = arith.constant 0 : index
    %c0_289 = arith.constant 0 : index
    %750 = vector.load %arg7[%c2_287, %c0_288, %c0_289] : memref<3x32x32xf32, #tpu.memory_space<vmem>>, vector<1x32x32xf32>
    %751 = vector.shape_cast %750 : vector<1x32x32xf32> to vector<32x32xf32>
    %c2_290 = arith.constant 2 : index
    %c0_291 = arith.constant 0 : index
    %c0_292 = arith.constant 0 : index
    %752 = vector.load %arg9[%c2_290, %c0_291, %c0_292] : memref<3x32x32xf32, #tpu.memory_space<vmem>>, vector<1x32x32xf32>
    %753 = vector.shape_cast %752 : vector<1x32x32xf32> to vector<32x32xf32>
    %cst_293 = arith.constant dense<0.000000e+00> : vector<4x32xf32>
    %754 = tpu.matmul %745, %747, %cst_293 {dimension_numbers = #tpu.dot_dimension_numbers<[1], [0], [0], [1], [0, 0, 1, 1], [], []>} : vector<4x32xf32>, vector<32x32xf32>, vector<4x32xf32> -> vector<4x32xf32>
    %c2_294 = arith.constant 2 : index
    %c0_295 = arith.constant 0 : index
    %c0_296 = arith.constant 0 : index
    %755 = vector.load %arg4[%c2_294, %c0_295, %c0_296] : memref<3x1x32xf32, #tpu.memory_space<vmem>>, vector<1x1x32xf32>
    %756 = vector.shape_cast %755 : vector<1x1x32xf32> to vector<1x32xf32>
    %757 = vector.broadcast %756 : vector<1x32xf32> to vector<4x32xf32>
    %758 = arith.addf %754, %757 : vector<4x32xf32>
    %cst_297 = arith.constant 0.353553385 : f32
    %759 = vector.broadcast %cst_297 : f32 to vector<4x32xf32>
    %760 = arith.mulf %758, %759 : vector<4x32xf32>
    %cst_298 = arith.constant dense<0.000000e+00> : vector<4x32xf32>
    %761 = tpu.matmul %745, %749, %cst_298 {dimension_numbers = #tpu.dot_dimension_numbers<[1], [0], [0], [1], [0, 0, 1, 1], [], []>} : vector<4x32xf32>, vector<32x32xf32>, vector<4x32xf32> -> vector<4x32xf32>
    %c2_299 = arith.constant 2 : index
    %c0_300 = arith.constant 0 : index
    %c0_301 = arith.constant 0 : index
    %762 = vector.load %arg6[%c2_299, %c0_300, %c0_301] : memref<3x1x32xf32, #tpu.memory_space<vmem>>, vector<1x1x32xf32>
    %763 = vector.shape_cast %762 : vector<1x1x32xf32> to vector<1x32xf32>
    %764 = vector.broadcast %763 : vector<1x32xf32> to vector<4x32xf32>
    %765 = arith.addf %761, %764 : vector<4x32xf32>
    %cst_302 = arith.constant dense<0.000000e+00> : vector<4x32xf32>
    %766 = tpu.matmul %745, %751, %cst_302 {dimension_numbers = #tpu.dot_dimension_numbers<[1], [0], [0], [1], [0, 0, 1, 1], [], []>} : vector<4x32xf32>, vector<32x32xf32>, vector<4x32xf32> -> vector<4x32xf32>
    %c2_303 = arith.constant 2 : index
    %c0_304 = arith.constant 0 : index
    %c0_305 = arith.constant 0 : index
    %767 = vector.load %arg8[%c2_303, %c0_304, %c0_305] : memref<3x1x32xf32, #tpu.memory_space<vmem>>, vector<1x1x32xf32>
    %768 = vector.shape_cast %767 : vector<1x1x32xf32> to vector<1x32xf32>
    %769 = vector.broadcast %768 : vector<1x32xf32> to vector<4x32xf32>
    %770 = arith.addf %766, %769 : vector<4x32xf32>
    %771 = vector.extract_strided_slice %760 {offsets = [0, 0], sizes = [2, 32], strides = [1, 1]} : vector<4x32xf32> to vector<2x32xf32>
    %772 = vector.extract_strided_slice %765 {offsets = [0, 0], sizes = [2, 32], strides = [1, 1]} : vector<4x32xf32> to vector<2x32xf32>
    %773 = vector.extract_strided_slice %770 {offsets = [0, 0], sizes = [2, 32], strides = [1, 1]} : vector<4x32xf32> to vector<2x32xf32>
    %774 = vector.extract_strided_slice %771 {offsets = [0, 0], sizes = [2, 8], strides = [1, 1]} : vector<2x32xf32> to vector<2x8xf32>
    %775 = vector.extract_strided_slice %772 {offsets = [0, 0], sizes = [2, 8], strides = [1, 1]} : vector<2x32xf32> to vector<2x8xf32>
    %cst_306 = arith.constant dense<0.000000e+00> : vector<2x2xf32>
    %776 = tpu.matmul %774, %775, %cst_306 {dimension_numbers = #tpu.dot_dimension_numbers<[1], [1], [0], [0], [0, 0, 1, 0], [], []>} : vector<2x8xf32>, vector<2x8xf32>, vector<2x2xf32> -> vector<2x2xf32>
    %cst_307 = arith.constant dense<0xFF800000> : vector<2xf32>
    %777 = vector.multi_reduction <maximumf>, %776, %cst_307 [1] : vector<2x2xf32> to vector<2xf32>
    %778 = vector.shape_cast %777 : vector<2xf32> to vector<2x1xf32>
    %779 = vector.broadcast %778 : vector<2x1xf32> to vector<2x2xf32>
    %780 = arith.subf %776, %779 : vector<2x2xf32>
    %781 = math.exp %780 : vector<2x2xf32>
    %cst_308 = arith.constant dense<0.000000e+00> : vector<2xf32>
    %782 = vector.multi_reduction <add>, %781, %cst_308 [1] : vector<2x2xf32> to vector<2xf32>
    %783 = vector.shape_cast %782 : vector<2xf32> to vector<2x1xf32>
    %784 = tpu.reciprocal %783 {approx = true} : vector<2x1xf32> -> vector<2x1xf32>
    %785 = vector.broadcast %784 : vector<2x1xf32> to vector<2x2xf32>
    %786 = arith.mulf %781, %785 : vector<2x2xf32>
    %787 = vector.extract_strided_slice %773 {offsets = [0, 0], sizes = [2, 8], strides = [1, 1]} : vector<2x32xf32> to vector<2x8xf32>
    %cst_309 = arith.constant dense<0.000000e+00> : vector<2x8xf32>
    %788 = tpu.matmul %786, %787, %cst_309 {dimension_numbers = #tpu.dot_dimension_numbers<[1], [0], [0], [1], [0, 0, 1, 1], [], []>} : vector<2x2xf32>, vector<2x8xf32>, vector<2x8xf32> -> vector<2x8xf32>
    %789 = vector.extract_strided_slice %753 {offsets = [0, 0], sizes = [8, 32], strides = [1, 1]} : vector<32x32xf32> to vector<8x32xf32>
    %cst_310 = arith.constant dense<0.000000e+00> : vector<2x32xf32>
    %790 = tpu.matmul %788, %789, %cst_310 {dimension_numbers = #tpu.dot_dimension_numbers<[1], [0], [0], [1], [0, 0, 1, 1], [], []>} : vector<2x8xf32>, vector<8x32xf32>, vector<2x32xf32> -> vector<2x32xf32>
    %791 = vector.extract_strided_slice %771 {offsets = [0, 8], sizes = [2, 8], strides = [1, 1]} : vector<2x32xf32> to vector<2x8xf32>
    %792 = vector.extract_strided_slice %772 {offsets = [0, 8], sizes = [2, 8], strides = [1, 1]} : vector<2x32xf32> to vector<2x8xf32>
    %cst_311 = arith.constant dense<0.000000e+00> : vector<2x2xf32>
    %793 = tpu.matmul %791, %792, %cst_311 {dimension_numbers = #tpu.dot_dimension_numbers<[1], [1], [0], [0], [0, 0, 1, 0], [], []>} : vector<2x8xf32>, vector<2x8xf32>, vector<2x2xf32> -> vector<2x2xf32>
    %cst_312 = arith.constant dense<0xFF800000> : vector<2xf32>
    %794 = vector.multi_reduction <maximumf>, %793, %cst_312 [1] : vector<2x2xf32> to vector<2xf32>
    %795 = vector.shape_cast %794 : vector<2xf32> to vector<2x1xf32>
    %796 = vector.broadcast %795 : vector<2x1xf32> to vector<2x2xf32>
    %797 = arith.subf %793, %796 : vector<2x2xf32>
    %798 = math.exp %797 : vector<2x2xf32>
    %cst_313 = arith.constant dense<0.000000e+00> : vector<2xf32>
    %799 = vector.multi_reduction <add>, %798, %cst_313 [1] : vector<2x2xf32> to vector<2xf32>
    %800 = vector.shape_cast %799 : vector<2xf32> to vector<2x1xf32>
    %801 = tpu.reciprocal %800 {approx = true} : vector<2x1xf32> -> vector<2x1xf32>
    %802 = vector.broadcast %801 : vector<2x1xf32> to vector<2x2xf32>
    %803 = arith.mulf %798, %802 : vector<2x2xf32>
    %804 = vector.extract_strided_slice %773 {offsets = [0, 8], sizes = [2, 8], strides = [1, 1]} : vector<2x32xf32> to vector<2x8xf32>
    %cst_314 = arith.constant dense<0.000000e+00> : vector<2x8xf32>
    %805 = tpu.matmul %803, %804, %cst_314 {dimension_numbers = #tpu.dot_dimension_numbers<[1], [0], [0], [1], [0, 0, 1, 1], [], []>} : vector<2x2xf32>, vector<2x8xf32>, vector<2x8xf32> -> vector<2x8xf32>
    %806 = vector.extract_strided_slice %753 {offsets = [8, 0], sizes = [8, 32], strides = [1, 1]} : vector<32x32xf32> to vector<8x32xf32>
    %cst_315 = arith.constant dense<0.000000e+00> : vector<2x32xf32>
    %807 = tpu.matmul %805, %806, %cst_315 {dimension_numbers = #tpu.dot_dimension_numbers<[1], [0], [0], [1], [0, 0, 1, 1], [], []>} : vector<2x8xf32>, vector<8x32xf32>, vector<2x32xf32> -> vector<2x32xf32>
    %808 = arith.addf %790, %807 : vector<2x32xf32>
    %809 = vector.extract_strided_slice %771 {offsets = [0, 16], sizes = [2, 8], strides = [1, 1]} : vector<2x32xf32> to vector<2x8xf32>
    %810 = vector.extract_strided_slice %772 {offsets = [0, 16], sizes = [2, 8], strides = [1, 1]} : vector<2x32xf32> to vector<2x8xf32>
    %cst_316 = arith.constant dense<0.000000e+00> : vector<2x2xf32>
    %811 = tpu.matmul %809, %810, %cst_316 {dimension_numbers = #tpu.dot_dimension_numbers<[1], [1], [0], [0], [0, 0, 1, 0], [], []>} : vector<2x8xf32>, vector<2x8xf32>, vector<2x2xf32> -> vector<2x2xf32>
    %cst_317 = arith.constant dense<0xFF800000> : vector<2xf32>
    %812 = vector.multi_reduction <maximumf>, %811, %cst_317 [1] : vector<2x2xf32> to vector<2xf32>
    %813 = vector.shape_cast %812 : vector<2xf32> to vector<2x1xf32>
    %814 = vector.broadcast %813 : vector<2x1xf32> to vector<2x2xf32>
    %815 = arith.subf %811, %814 : vector<2x2xf32>
    %816 = math.exp %815 : vector<2x2xf32>
    %cst_318 = arith.constant dense<0.000000e+00> : vector<2xf32>
    %817 = vector.multi_reduction <add>, %816, %cst_318 [1] : vector<2x2xf32> to vector<2xf32>
    %818 = vector.shape_cast %817 : vector<2xf32> to vector<2x1xf32>
    %819 = tpu.reciprocal %818 {approx = true} : vector<2x1xf32> -> vector<2x1xf32>
    %820 = vector.broadcast %819 : vector<2x1xf32> to vector<2x2xf32>
    %821 = arith.mulf %816, %820 : vector<2x2xf32>
    %822 = vector.extract_strided_slice %773 {offsets = [0, 16], sizes = [2, 8], strides = [1, 1]} : vector<2x32xf32> to vector<2x8xf32>
    %cst_319 = arith.constant dense<0.000000e+00> : vector<2x8xf32>
    %823 = tpu.matmul %821, %822, %cst_319 {dimension_numbers = #tpu.dot_dimension_numbers<[1], [0], [0], [1], [0, 0, 1, 1], [], []>} : vector<2x2xf32>, vector<2x8xf32>, vector<2x8xf32> -> vector<2x8xf32>
    %824 = vector.extract_strided_slice %753 {offsets = [16, 0], sizes = [8, 32], strides = [1, 1]} : vector<32x32xf32> to vector<8x32xf32>
    %cst_320 = arith.constant dense<0.000000e+00> : vector<2x32xf32>
    %825 = tpu.matmul %823, %824, %cst_320 {dimension_numbers = #tpu.dot_dimension_numbers<[1], [0], [0], [1], [0, 0, 1, 1], [], []>} : vector<2x8xf32>, vector<8x32xf32>, vector<2x32xf32> -> vector<2x32xf32>
    %826 = arith.addf %808, %825 : vector<2x32xf32>
    %827 = vector.extract_strided_slice %771 {offsets = [0, 24], sizes = [2, 8], strides = [1, 1]} : vector<2x32xf32> to vector<2x8xf32>
    %828 = vector.extract_strided_slice %772 {offsets = [0, 24], sizes = [2, 8], strides = [1, 1]} : vector<2x32xf32> to vector<2x8xf32>
    %cst_321 = arith.constant dense<0.000000e+00> : vector<2x2xf32>
    %829 = tpu.matmul %827, %828, %cst_321 {dimension_numbers = #tpu.dot_dimension_numbers<[1], [1], [0], [0], [0, 0, 1, 0], [], []>} : vector<2x8xf32>, vector<2x8xf32>, vector<2x2xf32> -> vector<2x2xf32>
    %cst_322 = arith.constant dense<0xFF800000> : vector<2xf32>
    %830 = vector.multi_reduction <maximumf>, %829, %cst_322 [1] : vector<2x2xf32> to vector<2xf32>
    %831 = vector.shape_cast %830 : vector<2xf32> to vector<2x1xf32>
    %832 = vector.broadcast %831 : vector<2x1xf32> to vector<2x2xf32>
    %833 = arith.subf %829, %832 : vector<2x2xf32>
    %834 = math.exp %833 : vector<2x2xf32>
    %cst_323 = arith.constant dense<0.000000e+00> : vector<2xf32>
    %835 = vector.multi_reduction <add>, %834, %cst_323 [1] : vector<2x2xf32> to vector<2xf32>
    %836 = vector.shape_cast %835 : vector<2xf32> to vector<2x1xf32>
    %837 = tpu.reciprocal %836 {approx = true} : vector<2x1xf32> -> vector<2x1xf32>
    %838 = vector.broadcast %837 : vector<2x1xf32> to vector<2x2xf32>
    %839 = arith.mulf %834, %838 : vector<2x2xf32>
    %840 = vector.extract_strided_slice %773 {offsets = [0, 24], sizes = [2, 8], strides = [1, 1]} : vector<2x32xf32> to vector<2x8xf32>
    %cst_324 = arith.constant dense<0.000000e+00> : vector<2x8xf32>
    %841 = tpu.matmul %839, %840, %cst_324 {dimension_numbers = #tpu.dot_dimension_numbers<[1], [0], [0], [1], [0, 0, 1, 1], [], []>} : vector<2x2xf32>, vector<2x8xf32>, vector<2x8xf32> -> vector<2x8xf32>
    %842 = vector.extract_strided_slice %753 {offsets = [24, 0], sizes = [8, 32], strides = [1, 1]} : vector<32x32xf32> to vector<8x32xf32>
    %cst_325 = arith.constant dense<0.000000e+00> : vector<2x32xf32>
    %843 = tpu.matmul %841, %842, %cst_325 {dimension_numbers = #tpu.dot_dimension_numbers<[1], [0], [0], [1], [0, 0, 1, 1], [], []>} : vector<2x8xf32>, vector<8x32xf32>, vector<2x32xf32> -> vector<2x32xf32>
    %844 = arith.addf %826, %843 : vector<2x32xf32>
    %845 = vector.extract_strided_slice %760 {offsets = [2, 0], sizes = [2, 32], strides = [1, 1]} : vector<4x32xf32> to vector<2x32xf32>
    %846 = vector.extract_strided_slice %765 {offsets = [2, 0], sizes = [2, 32], strides = [1, 1]} : vector<4x32xf32> to vector<2x32xf32>
    %847 = vector.extract_strided_slice %770 {offsets = [2, 0], sizes = [2, 32], strides = [1, 1]} : vector<4x32xf32> to vector<2x32xf32>
    %848 = vector.extract_strided_slice %845 {offsets = [0, 0], sizes = [2, 8], strides = [1, 1]} : vector<2x32xf32> to vector<2x8xf32>
    %849 = vector.extract_strided_slice %846 {offsets = [0, 0], sizes = [2, 8], strides = [1, 1]} : vector<2x32xf32> to vector<2x8xf32>
    %cst_326 = arith.constant dense<0.000000e+00> : vector<2x2xf32>
    %850 = tpu.matmul %848, %849, %cst_326 {dimension_numbers = #tpu.dot_dimension_numbers<[1], [1], [0], [0], [0, 0, 1, 0], [], []>} : vector<2x8xf32>, vector<2x8xf32>, vector<2x2xf32> -> vector<2x2xf32>
    %cst_327 = arith.constant dense<0xFF800000> : vector<2xf32>
    %851 = vector.multi_reduction <maximumf>, %850, %cst_327 [1] : vector<2x2xf32> to vector<2xf32>
    %852 = vector.shape_cast %851 : vector<2xf32> to vector<2x1xf32>
    %853 = vector.broadcast %852 : vector<2x1xf32> to vector<2x2xf32>
    %854 = arith.subf %850, %853 : vector<2x2xf32>
    %855 = math.exp %854 : vector<2x2xf32>
    %cst_328 = arith.constant dense<0.000000e+00> : vector<2xf32>
    %856 = vector.multi_reduction <add>, %855, %cst_328 [1] : vector<2x2xf32> to vector<2xf32>
    %857 = vector.shape_cast %856 : vector<2xf32> to vector<2x1xf32>
    %858 = tpu.reciprocal %857 {approx = true} : vector<2x1xf32> -> vector<2x1xf32>
    %859 = vector.broadcast %858 : vector<2x1xf32> to vector<2x2xf32>
    %860 = arith.mulf %855, %859 : vector<2x2xf32>
    %861 = vector.extract_strided_slice %847 {offsets = [0, 0], sizes = [2, 8], strides = [1, 1]} : vector<2x32xf32> to vector<2x8xf32>
    %cst_329 = arith.constant dense<0.000000e+00> : vector<2x8xf32>
    %862 = tpu.matmul %860, %861, %cst_329 {dimension_numbers = #tpu.dot_dimension_numbers<[1], [0], [0], [1], [0, 0, 1, 1], [], []>} : vector<2x2xf32>, vector<2x8xf32>, vector<2x8xf32> -> vector<2x8xf32>
    %863 = vector.extract_strided_slice %753 {offsets = [0, 0], sizes = [8, 32], strides = [1, 1]} : vector<32x32xf32> to vector<8x32xf32>
    %cst_330 = arith.constant dense<0.000000e+00> : vector<2x32xf32>
    %864 = tpu.matmul %862, %863, %cst_330 {dimension_numbers = #tpu.dot_dimension_numbers<[1], [0], [0], [1], [0, 0, 1, 1], [], []>} : vector<2x8xf32>, vector<8x32xf32>, vector<2x32xf32> -> vector<2x32xf32>
    %865 = vector.extract_strided_slice %845 {offsets = [0, 8], sizes = [2, 8], strides = [1, 1]} : vector<2x32xf32> to vector<2x8xf32>
    %866 = vector.extract_strided_slice %846 {offsets = [0, 8], sizes = [2, 8], strides = [1, 1]} : vector<2x32xf32> to vector<2x8xf32>
    %cst_331 = arith.constant dense<0.000000e+00> : vector<2x2xf32>
    %867 = tpu.matmul %865, %866, %cst_331 {dimension_numbers = #tpu.dot_dimension_numbers<[1], [1], [0], [0], [0, 0, 1, 0], [], []>} : vector<2x8xf32>, vector<2x8xf32>, vector<2x2xf32> -> vector<2x2xf32>
    %cst_332 = arith.constant dense<0xFF800000> : vector<2xf32>
    %868 = vector.multi_reduction <maximumf>, %867, %cst_332 [1] : vector<2x2xf32> to vector<2xf32>
    %869 = vector.shape_cast %868 : vector<2xf32> to vector<2x1xf32>
    %870 = vector.broadcast %869 : vector<2x1xf32> to vector<2x2xf32>
    %871 = arith.subf %867, %870 : vector<2x2xf32>
    %872 = math.exp %871 : vector<2x2xf32>
    %cst_333 = arith.constant dense<0.000000e+00> : vector<2xf32>
    %873 = vector.multi_reduction <add>, %872, %cst_333 [1] : vector<2x2xf32> to vector<2xf32>
    %874 = vector.shape_cast %873 : vector<2xf32> to vector<2x1xf32>
    %875 = tpu.reciprocal %874 {approx = true} : vector<2x1xf32> -> vector<2x1xf32>
    %876 = vector.broadcast %875 : vector<2x1xf32> to vector<2x2xf32>
    %877 = arith.mulf %872, %876 : vector<2x2xf32>
    %878 = vector.extract_strided_slice %847 {offsets = [0, 8], sizes = [2, 8], strides = [1, 1]} : vector<2x32xf32> to vector<2x8xf32>
    %cst_334 = arith.constant dense<0.000000e+00> : vector<2x8xf32>
    %879 = tpu.matmul %877, %878, %cst_334 {dimension_numbers = #tpu.dot_dimension_numbers<[1], [0], [0], [1], [0, 0, 1, 1], [], []>} : vector<2x2xf32>, vector<2x8xf32>, vector<2x8xf32> -> vector<2x8xf32>
    %880 = vector.extract_strided_slice %753 {offsets = [8, 0], sizes = [8, 32], strides = [1, 1]} : vector<32x32xf32> to vector<8x32xf32>
    %cst_335 = arith.constant dense<0.000000e+00> : vector<2x32xf32>
    %881 = tpu.matmul %879, %880, %cst_335 {dimension_numbers = #tpu.dot_dimension_numbers<[1], [0], [0], [1], [0, 0, 1, 1], [], []>} : vector<2x8xf32>, vector<8x32xf32>, vector<2x32xf32> -> vector<2x32xf32>
    %882 = arith.addf %864, %881 : vector<2x32xf32>
    %883 = vector.extract_strided_slice %845 {offsets = [0, 16], sizes = [2, 8], strides = [1, 1]} : vector<2x32xf32> to vector<2x8xf32>
    %884 = vector.extract_strided_slice %846 {offsets = [0, 16], sizes = [2, 8], strides = [1, 1]} : vector<2x32xf32> to vector<2x8xf32>
    %cst_336 = arith.constant dense<0.000000e+00> : vector<2x2xf32>
    %885 = tpu.matmul %883, %884, %cst_336 {dimension_numbers = #tpu.dot_dimension_numbers<[1], [1], [0], [0], [0, 0, 1, 0], [], []>} : vector<2x8xf32>, vector<2x8xf32>, vector<2x2xf32> -> vector<2x2xf32>
    %cst_337 = arith.constant dense<0xFF800000> : vector<2xf32>
    %886 = vector.multi_reduction <maximumf>, %885, %cst_337 [1] : vector<2x2xf32> to vector<2xf32>
    %887 = vector.shape_cast %886 : vector<2xf32> to vector<2x1xf32>
    %888 = vector.broadcast %887 : vector<2x1xf32> to vector<2x2xf32>
    %889 = arith.subf %885, %888 : vector<2x2xf32>
    %890 = math.exp %889 : vector<2x2xf32>
    %cst_338 = arith.constant dense<0.000000e+00> : vector<2xf32>
    %891 = vector.multi_reduction <add>, %890, %cst_338 [1] : vector<2x2xf32> to vector<2xf32>
    %892 = vector.shape_cast %891 : vector<2xf32> to vector<2x1xf32>
    %893 = tpu.reciprocal %892 {approx = true} : vector<2x1xf32> -> vector<2x1xf32>
    %894 = vector.broadcast %893 : vector<2x1xf32> to vector<2x2xf32>
    %895 = arith.mulf %890, %894 : vector<2x2xf32>
    %896 = vector.extract_strided_slice %847 {offsets = [0, 16], sizes = [2, 8], strides = [1, 1]} : vector<2x32xf32> to vector<2x8xf32>
    %cst_339 = arith.constant dense<0.000000e+00> : vector<2x8xf32>
    %897 = tpu.matmul %895, %896, %cst_339 {dimension_numbers = #tpu.dot_dimension_numbers<[1], [0], [0], [1], [0, 0, 1, 1], [], []>} : vector<2x2xf32>, vector<2x8xf32>, vector<2x8xf32> -> vector<2x8xf32>
    %898 = vector.extract_strided_slice %753 {offsets = [16, 0], sizes = [8, 32], strides = [1, 1]} : vector<32x32xf32> to vector<8x32xf32>
    %cst_340 = arith.constant dense<0.000000e+00> : vector<2x32xf32>
    %899 = tpu.matmul %897, %898, %cst_340 {dimension_numbers = #tpu.dot_dimension_numbers<[1], [0], [0], [1], [0, 0, 1, 1], [], []>} : vector<2x8xf32>, vector<8x32xf32>, vector<2x32xf32> -> vector<2x32xf32>
    %900 = arith.addf %882, %899 : vector<2x32xf32>
    %901 = vector.extract_strided_slice %845 {offsets = [0, 24], sizes = [2, 8], strides = [1, 1]} : vector<2x32xf32> to vector<2x8xf32>
    %902 = vector.extract_strided_slice %846 {offsets = [0, 24], sizes = [2, 8], strides = [1, 1]} : vector<2x32xf32> to vector<2x8xf32>
    %cst_341 = arith.constant dense<0.000000e+00> : vector<2x2xf32>
    %903 = tpu.matmul %901, %902, %cst_341 {dimension_numbers = #tpu.dot_dimension_numbers<[1], [1], [0], [0], [0, 0, 1, 0], [], []>} : vector<2x8xf32>, vector<2x8xf32>, vector<2x2xf32> -> vector<2x2xf32>
    %cst_342 = arith.constant dense<0xFF800000> : vector<2xf32>
    %904 = vector.multi_reduction <maximumf>, %903, %cst_342 [1] : vector<2x2xf32> to vector<2xf32>
    %905 = vector.shape_cast %904 : vector<2xf32> to vector<2x1xf32>
    %906 = vector.broadcast %905 : vector<2x1xf32> to vector<2x2xf32>
    %907 = arith.subf %903, %906 : vector<2x2xf32>
    %908 = math.exp %907 : vector<2x2xf32>
    %cst_343 = arith.constant dense<0.000000e+00> : vector<2xf32>
    %909 = vector.multi_reduction <add>, %908, %cst_343 [1] : vector<2x2xf32> to vector<2xf32>
    %910 = vector.shape_cast %909 : vector<2xf32> to vector<2x1xf32>
    %911 = tpu.reciprocal %910 {approx = true} : vector<2x1xf32> -> vector<2x1xf32>
    %912 = vector.broadcast %911 : vector<2x1xf32> to vector<2x2xf32>
    %913 = arith.mulf %908, %912 : vector<2x2xf32>
    %914 = vector.extract_strided_slice %847 {offsets = [0, 24], sizes = [2, 8], strides = [1, 1]} : vector<2x32xf32> to vector<2x8xf32>
    %cst_344 = arith.constant dense<0.000000e+00> : vector<2x8xf32>
    %915 = tpu.matmul %913, %914, %cst_344 {dimension_numbers = #tpu.dot_dimension_numbers<[1], [0], [0], [1], [0, 0, 1, 1], [], []>} : vector<2x2xf32>, vector<2x8xf32>, vector<2x8xf32> -> vector<2x8xf32>
    %916 = vector.extract_strided_slice %753 {offsets = [24, 0], sizes = [8, 32], strides = [1, 1]} : vector<32x32xf32> to vector<8x32xf32>
    %cst_345 = arith.constant dense<0.000000e+00> : vector<2x32xf32>
    %917 = tpu.matmul %915, %916, %cst_345 {dimension_numbers = #tpu.dot_dimension_numbers<[1], [0], [0], [1], [0, 0, 1, 1], [], []>} : vector<2x8xf32>, vector<8x32xf32>, vector<2x32xf32> -> vector<2x32xf32>
    %918 = arith.addf %900, %917 : vector<2x32xf32>
    %919 = tpu.concatenate %844, %918 in 0 : vector<2x32xf32>, vector<2x32xf32> -> vector<4x32xf32>
    %c2_346 = arith.constant 2 : index
    %c0_347 = arith.constant 0 : index
    %c0_348 = arith.constant 0 : index
    %920 = vector.load %arg10[%c2_346, %c0_347, %c0_348] : memref<3x1x32xf32, #tpu.memory_space<vmem>>, vector<1x1x32xf32>
    %921 = vector.shape_cast %920 : vector<1x1x32xf32> to vector<1x32xf32>
    %922 = vector.broadcast %921 : vector<1x32xf32> to vector<4x32xf32>
    %923 = arith.addf %919, %922 : vector<4x32xf32>
    %924 = arith.addf %745, %923 : vector<4x32xf32>
    %c2_349 = arith.constant 2 : index
    %c0_350 = arith.constant 0 : index
    %c0_351 = arith.constant 0 : index
    %925 = vector.load %arg15[%c2_349, %c0_350, %c0_351] : memref<3x1x32xf32, #tpu.memory_space<vmem>>, vector<1x1x32xf32>
    %926 = vector.shape_cast %925 : vector<1x1x32xf32> to vector<1x32xf32>
    %c2_352 = arith.constant 2 : index
    %c0_353 = arith.constant 0 : index
    %c0_354 = arith.constant 0 : index
    %927 = vector.load %arg16[%c2_352, %c0_353, %c0_354] : memref<3x1x32xf32, #tpu.memory_space<vmem>>, vector<1x1x32xf32>
    %928 = vector.shape_cast %927 : vector<1x1x32xf32> to vector<1x32xf32>
    %cst_355 = arith.constant dense<0.000000e+00> : vector<4xf32>
    %929 = vector.multi_reduction <add>, %924, %cst_355 [1] : vector<4x32xf32> to vector<4xf32>
    %930 = vector.shape_cast %929 : vector<4xf32> to vector<4x1xf32>
    %cst_356 = arith.constant 3.200000e+01 : f32
    %931 = vector.broadcast %cst_356 : f32 to vector<4x1xf32>
    %932 = arith.divf %930, %931 : vector<4x1xf32>
    %933 = vector.broadcast %932 : vector<4x1xf32> to vector<4x32xf32>
    %934 = arith.subf %924, %933 : vector<4x32xf32>
    %935 = arith.mulf %934, %934 : vector<4x32xf32>
    %cst_357 = arith.constant dense<0.000000e+00> : vector<4xf32>
    %936 = vector.multi_reduction <add>, %935, %cst_357 [1] : vector<4x32xf32> to vector<4xf32>
    %937 = vector.shape_cast %936 : vector<4xf32> to vector<4x1xf32>
    %cst_358 = arith.constant 3.200000e+01 : f32
    %938 = vector.broadcast %cst_358 : f32 to vector<4x1xf32>
    %939 = arith.divf %937, %938 : vector<4x1xf32>
    %cst_359 = arith.constant 9.99999974E-6 : f32
    %940 = vector.broadcast %cst_359 : f32 to vector<4x1xf32>
    %941 = arith.addf %939, %940 : vector<4x1xf32>
    %942 = math.rsqrt %941 : vector<4x1xf32>
    %943 = vector.broadcast %942 : vector<4x1xf32> to vector<4x32xf32>
    %944 = arith.mulf %934, %943 : vector<4x32xf32>
    %945 = vector.broadcast %926 : vector<1x32xf32> to vector<4x32xf32>
    %946 = arith.mulf %944, %945 : vector<4x32xf32>
    %947 = vector.broadcast %928 : vector<1x32xf32> to vector<4x32xf32>
    %948 = arith.addf %946, %947 : vector<4x32xf32>
    %c2_360 = arith.constant 2 : index
    %c0_361 = arith.constant 0 : index
    %c0_362 = arith.constant 0 : index
    %949 = vector.load %arg11[%c2_360, %c0_361, %c0_362] : memref<3x32x64xf32, #tpu.memory_space<vmem>>, vector<1x32x64xf32>
    %950 = vector.shape_cast %949 : vector<1x32x64xf32> to vector<32x64xf32>
    %cst_363 = arith.constant dense<0.000000e+00> : vector<4x64xf32>
    %951 = tpu.matmul %948, %950, %cst_363 {dimension_numbers = #tpu.dot_dimension_numbers<[1], [0], [0], [1], [0, 0, 1, 1], [], []>} : vector<4x32xf32>, vector<32x64xf32>, vector<4x64xf32> -> vector<4x64xf32>
    %c2_364 = arith.constant 2 : index
    %c0_365 = arith.constant 0 : index
    %c0_366 = arith.constant 0 : index
    %952 = vector.load %arg12[%c2_364, %c0_365, %c0_366] : memref<3x1x64xf32, #tpu.memory_space<vmem>>, vector<1x1x64xf32>
    %953 = vector.shape_cast %952 : vector<1x1x64xf32> to vector<1x64xf32>
    %954 = vector.broadcast %953 : vector<1x64xf32> to vector<4x64xf32>
    %955 = arith.addf %951, %954 : vector<4x64xf32>
    %cst_367 = arith.constant 5.000000e-01 : f32
    %956 = vector.broadcast %cst_367 : f32 to vector<4x64xf32>
    %957 = arith.mulf %956, %955 : vector<4x64xf32>
    %cst_368 = arith.constant 0.707106769 : f32
    %958 = vector.broadcast %cst_368 : f32 to vector<4x64xf32>
    %959 = arith.mulf %955, %958 : vector<4x64xf32>
    %960 = math.erf %959 : vector<4x64xf32>
    %cst_369 = arith.constant 1.000000e+00 : f32
    %961 = vector.broadcast %cst_369 : f32 to vector<4x64xf32>
    %962 = arith.addf %961, %960 : vector<4x64xf32>
    %963 = arith.mulf %957, %962 : vector<4x64xf32>
    %c2_370 = arith.constant 2 : index
    %c0_371 = arith.constant 0 : index
    %c0_372 = arith.constant 0 : index
    %964 = vector.load %arg13[%c2_370, %c0_371, %c0_372] : memref<3x64x32xf32, #tpu.memory_space<vmem>>, vector<1x64x32xf32>
    %965 = vector.shape_cast %964 : vector<1x64x32xf32> to vector<64x32xf32>
    %cst_373 = arith.constant dense<0.000000e+00> : vector<4x32xf32>
    %966 = tpu.matmul %963, %965, %cst_373 {dimension_numbers = #tpu.dot_dimension_numbers<[1], [0], [0], [1], [0, 0, 1, 1], [], []>} : vector<4x64xf32>, vector<64x32xf32>, vector<4x32xf32> -> vector<4x32xf32>
    %c2_374 = arith.constant 2 : index
    %c0_375 = arith.constant 0 : index
    %c0_376 = arith.constant 0 : index
    %967 = vector.load %arg14[%c2_374, %c0_375, %c0_376] : memref<3x1x32xf32, #tpu.memory_space<vmem>>, vector<1x1x32xf32>
    %968 = vector.shape_cast %967 : vector<1x1x32xf32> to vector<1x32xf32>
    %969 = vector.broadcast %968 : vector<1x32xf32> to vector<4x32xf32>
    %970 = arith.addf %966, %969 : vector<4x32xf32>
    %971 = arith.addf %948, %970 : vector<4x32xf32>
    %c2_377 = arith.constant 2 : index
    %c0_378 = arith.constant 0 : index
    %c0_379 = arith.constant 0 : index
    %972 = vector.load %arg17[%c2_377, %c0_378, %c0_379] : memref<3x1x32xf32, #tpu.memory_space<vmem>>, vector<1x1x32xf32>
    %973 = vector.shape_cast %972 : vector<1x1x32xf32> to vector<1x32xf32>
    %c2_380 = arith.constant 2 : index
    %c0_381 = arith.constant 0 : index
    %c0_382 = arith.constant 0 : index
    %974 = vector.load %arg18[%c2_380, %c0_381, %c0_382] : memref<3x1x32xf32, #tpu.memory_space<vmem>>, vector<1x1x32xf32>
    %975 = vector.shape_cast %974 : vector<1x1x32xf32> to vector<1x32xf32>
    %cst_383 = arith.constant dense<0.000000e+00> : vector<4xf32>
    %976 = vector.multi_reduction <add>, %971, %cst_383 [1] : vector<4x32xf32> to vector<4xf32>
    %977 = vector.shape_cast %976 : vector<4xf32> to vector<4x1xf32>
    %cst_384 = arith.constant 3.200000e+01 : f32
    %978 = vector.broadcast %cst_384 : f32 to vector<4x1xf32>
    %979 = arith.divf %977, %978 : vector<4x1xf32>
    %980 = vector.broadcast %979 : vector<4x1xf32> to vector<4x32xf32>
    %981 = arith.subf %971, %980 : vector<4x32xf32>
    %982 = arith.mulf %981, %981 : vector<4x32xf32>
    %cst_385 = arith.constant dense<0.000000e+00> : vector<4xf32>
    %983 = vector.multi_reduction <add>, %982, %cst_385 [1] : vector<4x32xf32> to vector<4xf32>
    %984 = vector.shape_cast %983 : vector<4xf32> to vector<4x1xf32>
    %cst_386 = arith.constant 3.200000e+01 : f32
    %985 = vector.broadcast %cst_386 : f32 to vector<4x1xf32>
    %986 = arith.divf %984, %985 : vector<4x1xf32>
    %cst_387 = arith.constant 9.99999974E-6 : f32
    %987 = vector.broadcast %cst_387 : f32 to vector<4x1xf32>
    %988 = arith.addf %986, %987 : vector<4x1xf32>
    %989 = math.rsqrt %988 : vector<4x1xf32>
    %990 = vector.broadcast %989 : vector<4x1xf32> to vector<4x32xf32>
    %991 = arith.mulf %981, %990 : vector<4x32xf32>
    %992 = vector.broadcast %973 : vector<1x32xf32> to vector<4x32xf32>
    %993 = arith.mulf %991, %992 : vector<4x32xf32>
    %994 = vector.broadcast %975 : vector<1x32xf32> to vector<4x32xf32>
    %995 = arith.addf %993, %994 : vector<4x32xf32>
    %c0_388 = arith.constant 0 : index
    %c0_389 = arith.constant 0 : index
    %996 = vector.load %arg23[%c0_388, %c0_389] : memref<1x32xf32, #tpu.memory_space<vmem>>, vector<1x32xf32>
    %c0_390 = arith.constant 0 : index
    %c0_391 = arith.constant 0 : index
    %997 = vector.load %arg24[%c0_390, %c0_391] : memref<1x32xf32, #tpu.memory_space<vmem>>, vector<1x32xf32>
    %cst_392 = arith.constant dense<0.000000e+00> : vector<4xf32>
    %998 = vector.multi_reduction <add>, %995, %cst_392 [1] : vector<4x32xf32> to vector<4xf32>
    %999 = vector.shape_cast %998 : vector<4xf32> to vector<4x1xf32>
    %cst_393 = arith.constant 3.200000e+01 : f32
    %1000 = vector.broadcast %cst_393 : f32 to vector<4x1xf32>
    %1001 = arith.divf %999, %1000 : vector<4x1xf32>
    %1002 = vector.broadcast %1001 : vector<4x1xf32> to vector<4x32xf32>
    %1003 = arith.subf %995, %1002 : vector<4x32xf32>
    %1004 = arith.mulf %1003, %1003 : vector<4x32xf32>
    %cst_394 = arith.constant dense<0.000000e+00> : vector<4xf32>
    %1005 = vector.multi_reduction <add>, %1004, %cst_394 [1] : vector<4x32xf32> to vector<4xf32>
    %1006 = vector.shape_cast %1005 : vector<4xf32> to vector<4x1xf32>
    %cst_395 = arith.constant 3.200000e+01 : f32
    %1007 = vector.broadcast %cst_395 : f32 to vector<4x1xf32>
    %1008 = arith.divf %1006, %1007 : vector<4x1xf32>
    %cst_396 = arith.constant 9.99999974E-6 : f32
    %1009 = vector.broadcast %cst_396 : f32 to vector<4x1xf32>
    %1010 = arith.addf %1008, %1009 : vector<4x1xf32>
    %1011 = math.rsqrt %1010 : vector<4x1xf32>
    %1012 = vector.broadcast %1011 : vector<4x1xf32> to vector<4x32xf32>
    %1013 = arith.mulf %1003, %1012 : vector<4x32xf32>
    %1014 = vector.broadcast %996 : vector<1x32xf32> to vector<4x32xf32>
    %1015 = arith.mulf %1013, %1014 : vector<4x32xf32>
    %1016 = vector.broadcast %997 : vector<1x32xf32> to vector<4x32xf32>
    %1017 = arith.addf %1015, %1016 : vector<4x32xf32>
    %c0_397 = arith.constant 0 : index
    %c0_398 = arith.constant 0 : index
    %1018 = vector.load %arg25[%c0_397, %c0_398] : memref<4x32xf32, #tpu.memory_space<vmem>>, vector<4x32xf32>
    tpu.vector_store %arg25[%c0_397, %c0_398], %1017 {strides = array<i32>} : memref<4x32xf32, #tpu.memory_space<vmem>>, vector<4x32xf32>,
    return
  }
}

</mosaic_0001>

<llo_original>
// kernel: informer_forward.1
$region0: #{informer_forward.1}
  #allocation0 [shape = 'u32[]', space=smem, size = 0x4, offset = 0x4, fixed_abs, tag = 'smem constant byte address 0x4 - core index']
  #allocation1 [shape = 'u32[144,128]{1,0:T(1,128)}', space=vmem, size = 0x12000, scoped, tag = 'internal scratch']
  %s0 = inlined_call_operand.vmem [shape: f32[16,4], index: 0, kind: input, shape index: {}]
  %s1 = inlined_call_operand.hbm [shape: f32[3,4,32], index: 1, kind: input, shape index: {}]
  %s2 = inlined_call_operand.hbm [shape: f32[8,32], index: 2, kind: input, shape index: {}]
  %s3 = inlined_call_operand.vmem [shape: f32[3,32,32], index: 3, kind: input, shape index: {}]
  %s4 = inlined_call_operand.vmem [shape: f32[3,1,32], index: 4, kind: input, shape index: {}]
  %s5 = inlined_call_operand.vmem [shape: f32[3,32,32], index: 5, kind: input, shape index: {}]
  %s6 = inlined_call_operand.vmem [shape: f32[3,1,32], index: 6, kind: input, shape index: {}]
  %s7 = inlined_call_operand.hbm [shape: f32[3,32,32], index: 7, kind: input, shape index: {}]
  %s8 = inlined_call_operand.hbm [shape: f32[3,1,32], index: 8, kind: input, shape index: {}]
  %s9 = inlined_call_operand.hbm [shape: f32[3,32,32], index: 9, kind: input, shape index: {}]
  %s10 = inlined_call_operand.hbm [shape: f32[3,1,32], index: 10, kind: input, shape index: {}]
  %s11 = inlined_call_operand.hbm [shape: f32[3,32,64], index: 11, kind: input, shape index: {}]
  %s12 = inlined_call_operand.hbm [shape: f32[3,1,64], index: 12, kind: input, shape index: {}]
  %s13 = inlined_call_operand.vmem [shape: f32[3,64,32], index: 13, kind: input, shape index: {}]
  %s14 = inlined_call_operand.hbm [shape: f32[3,1,32], index: 14, kind: input, shape index: {}]
  %s15 = inlined_call_operand.hbm [shape: f32[3,1,32], index: 15, kind: input, shape index: {}]
  %s16 = inlined_call_operand.hbm [shape: f32[3,1,32], index: 16, kind: input, shape index: {}]
  %s17 = inlined_call_operand.hbm [shape: f32[3,1,32], index: 17, kind: input, shape index: {}]
  %s18 = inlined_call_operand.hbm [shape: f32[3,1,32], index: 18, kind: input, shape index: {}]
  %s19 = inlined_call_operand.vmem [shape: f32[2,3,32,32], index: 19, kind: input, shape index: {}]
  %s20 = inlined_call_operand.hbm [shape: f32[2,1,32], index: 20, kind: input, shape index: {}]
  %s21 = inlined_call_operand.hbm [shape: f32[2,1,32], index: 21, kind: input, shape index: {}]
  %s22 = inlined_call_operand.hbm [shape: f32[2,1,32], index: 22, kind: input, shape index: {}]
  %s23 = inlined_call_operand.vmem [shape: f32[1,32], index: 23, kind: input, shape index: {}]
  %s24 = inlined_call_operand.hbm [shape: f32[1,32], index: 24, kind: input, shape index: {}]
  %s25 = inlined_call_operand.hbm [shape: f32[4,32], index: 25, kind: output, shape index: {}]
  %s26 = sld [smem:[#allocation0]]
  $region178: #{informer_forward.1} parent=0
    _
  %s28 = ssub.s32 1, %s26
  %s29 = scalar_select 0, %s28, %s26
  $region1: #{informer_forward.1} parent=0
    #allocation2 [shape = 'u8[6144]{0}', space=vmem, size = 0x1800, scoped, tag = 'input window, operand 1, single buffered']
    #allocation3 [shape = 's32[1]{0}', space=sflag, size = 0x4, scoped, tag = 'scoped memory for informer_forward.1']
    #allocation4 [shape = 's32[1]{0}', space=sflag, size = 0x4, scoped, tag = 'scoped memory for informer_forward.1']
    #allocation5 [shape = 'u8[4096]{0}', space=vmem, size = 0x1000, scoped, tag = 'input window, operand 2, single buffered']
    #allocation6 [shape = 's32[1]{0}', space=sflag, size = 0x4, scoped, tag = 'scoped memory for informer_forward.1']
    #allocation7 [shape = 'u8[49152]{0}', space=vmem, size = 0xc000, scoped, tag = 'input window, operand 7, single buffered']
    #allocation8 [shape = 'u8[1536]{0}', space=vmem, size = 0x800, scoped, tag = 'input window, operand 8, single buffered']
    #allocation9 [shape = 's32[1]{0}', space=sflag, size = 0x4, scoped, tag = 'scoped memory for informer_forward.1']
    #allocation10 [shape = 'u8[49152]{0}', space=vmem, size = 0xc000, scoped, tag = 'input window, operand 9, single buffered']
    #allocation11 [shape = 'u8[1536]{0}', space=vmem, size = 0x800, scoped, tag = 'input window, operand 10, single buffered']
    #allocation12 [shape = 's32[1]{0}', space=sflag, size = 0x4, scoped, tag = 'scoped memory for informer_forward.1']
    #allocation13 [shape = 'u8[49152]{0}', space=vmem, size = 0xc000, scoped, tag = 'input window, operand 11, single buffered']
    #allocation14 [shape = 'u8[1536]{0}', space=vmem, size = 0x800, scoped, tag = 'input window, operand 12, single buffered']
    #allocation15 [shape = 's32[1]{0}', space=sflag, size = 0x4, scoped, tag = 'scoped memory for informer_forward.1']
    #allocation16 [shape = 'u8[1536]{0}', space=vmem, size = 0x800, scoped, tag = 'input window, operand 14, single buffered']
    #allocation17 [shape = 'u8[1536]{0}', space=vmem, size = 0x800, scoped, tag = 'input window, operand 15, single buffered']
    #allocation18 [shape = 's32[1]{0}', space=sflag, size = 0x4, scoped, tag = 'scoped memory for informer_forward.1']
    #allocation19 [shape = 'u8[1536]{0}', space=vmem, size = 0x800, scoped, tag = 'input window, operand 16, single buffered']
    #allocation20 [shape = 'u8[1536]{0}', space=vmem, size = 0x800, scoped, tag = 'input window, operand 17, single buffered']
    #allocation21 [shape = 's32[1]{0}', space=sflag, size = 0x4, scoped, tag = 'scoped memory for informer_forward.1']
    #allocation22 [shape = 'u8[1536]{0}', space=vmem, size = 0x800, scoped, tag = 'input window, operand 18, single buffered']
    #allocation23 [shape = 'u8[1024]{0}', space=vmem, size = 0x400, scoped, tag = 'input window, operand 20, single buffered']
    #allocation24 [shape = 's32[1]{0}', space=sflag, size = 0x4, scoped, tag = 'scoped memory for informer_forward.1']
    #allocation25 [shape = 'u8[1024]{0}', space=vmem, size = 0x400, scoped, tag = 'input window, operand 21, single buffered']
    #allocation26 [shape = 'u8[1024]{0}', space=vmem, size = 0x400, scoped, tag = 'input window, operand 22, single buffered']
    #allocation27 [shape = 's32[1]{0}', space=sflag, size = 0x4, scoped, tag = 'scoped memory for informer_forward.1']
    #allocation28 [shape = 'u8[512]{0}', space=vmem, size = 0x400, scoped, tag = 'input window, operand 24, single buffered']
    #allocation29 [shape = 'u8[2048]{0}', space=vmem, size = 0x800, scoped, tag = 'output window, operand 0, single buffered']
    %30 = vsyncpa [#allocation3], 0
    %31 = vsyncpa [#allocation6], 0
    %32 = vsyncpa [#allocation9], 0
    %33 = vsyncpa [#allocation12], 0
    %34 = vsyncpa [#allocation15], 0
    %35 = vsyncpa [#allocation18], 0
    %36 = vsyncpa [#allocation21], 0
    %37 = vsyncpa [#allocation24], 0
    %38 = vsyncpa [#allocation27], 0
    %39 = vsyncpa [#allocation4], 0
    // Predicated region
    $region2: #{informer_forward.1} parent=1 // pred_check
      _
    $region3: #{informer_forward.1} parent=1 // pred_check_branch
      %41 = sbr.rel (0) target = $region5
    $region4: #{informer_forward.1} parent=1 // pred_region
      _
    $region5: #{informer_forward.1} parent=1 // pred_fallthru
      _
    // Predicated region
    $region6: #{informer_forward.1} parent=1 // pred_check
      _
    $region7: #{informer_forward.1} parent=1 // pred_check_branch
      %43 = sbr.rel (0) target = $region9
    $region8: #{informer_forward.1} parent=1 // pred_region
      %s45 = ssub.s32 192, 192
      %46 = vsyncadd [#allocation3], %s45
      %s47 = sshll.u32 [#allocation2], 4
      %s48 = int_to_ptr.vmem [resolvable:$true] %s47
      %53 = dma.hbm_to_vmem [thread:$0]  %s1, 192, %s48, [#allocation3], 64, 64, 4
    $region9: #{informer_forward.1} parent=1 // pred_fallthru
      _
    // Predicated region
    $region10: #{informer_forward.1} parent=1 // pred_check
      _
    $region11: #{informer_forward.1} parent=1 // pred_check_branch
      %55 = sbr.rel (0) target = $region13
    $region12: #{informer_forward.1} parent=1 // pred_region
      %s57 = ssub.s32 128, 128
      %58 = vsyncadd [#allocation6], %s57
      %s60 = sshll.u32 [#allocation5], 4
      %s61 = int_to_ptr.vmem [resolvable:$true] %s60
      %63 = dma.hbm_to_vmem [thread:$0]  %s2, 128, %s61, [#allocation6]
    $region13: #{informer_forward.1} parent=1 // pred_fallthru
      _
    // Predicated region
    $region14: #{informer_forward.1} parent=1 // pred_check
      _
    $region15: #{informer_forward.1} parent=1 // pred_check_branch
      %65 = sbr.rel (0) target = $region17
    $region16: #{informer_forward.1} parent=1 // pred_region
      _
    $region17: #{informer_forward.1} parent=1 // pred_fallthru
      _
    // Predicated region
    $region18: #{informer_forward.1} parent=1 // pred_check
      _
    $region19: #{informer_forward.1} parent=1 // pred_check_branch
      %67 = sbr.rel (0) target = $region21
    $region20: #{informer_forward.1} parent=1 // pred_region
      _
    $region21: #{informer_forward.1} parent=1 // pred_fallthru
      _
    // Predicated region
    $region22: #{informer_forward.1} parent=1 // pred_check
      _
    $region23: #{informer_forward.1} parent=1 // pred_check_branch
      %69 = sbr.rel (0) target = $region25
    $region24: #{informer_forward.1} parent=1 // pred_region
      _
    $region25: #{informer_forward.1} parent=1 // pred_fallthru
      _
    // Predicated region
    $region26: #{informer_forward.1} parent=1 // pred_check
      _
    $region27: #{informer_forward.1} parent=1 // pred_check_branch
      %71 = sbr.rel (0) target = $region29
    $region28: #{informer_forward.1} parent=1 // pred_region
      _
    $region29: #{informer_forward.1} parent=1 // pred_fallthru
      _
    // Predicated region
    $region30: #{informer_forward.1} parent=1 // pred_check
      _
    $region31: #{informer_forward.1} parent=1 // pred_check_branch
      %73 = sbr.rel (0) target = $region33
    $region32: #{informer_forward.1} parent=1 // pred_region
      %s75 = ssub.s32 1536, 1536
      %76 = vsyncadd [#allocation6], %s75
      %s77 = sshll.u32 [#allocation7], 4
      %s78 = int_to_ptr.vmem [resolvable:$true] %s77
      %83 = dma.hbm_to_vmem [thread:$0]  %s7, 1536, %s78, [#allocation6], 128, 128, 8
    $region33: #{informer_forward.1} parent=1 // pred_fallthru
      _
    // Predicated region
    $region34: #{informer_forward.1} parent=1 // pred_check
      _
    $region35: #{informer_forward.1} parent=1 // pred_check_branch
      %85 = sbr.rel (0) target = $region37
    $region36: #{informer_forward.1} parent=1 // pred_region
      %s87 = ssub.s32 48, 48
      %88 = vsyncadd [#allocation9], %s87
      %s89 = sshll.u32 [#allocation8], 4
      %s90 = int_to_ptr.vmem [resolvable:$true] %s89
      %95 = dma.hbm_to_vmem [thread:$0]  %s8, 48, %s90, [#allocation9], 16, 16, 1
    $region37: #{informer_forward.1} parent=1 // pred_fallthru
      _
    // Predicated region
    $region38: #{informer_forward.1} parent=1 // pred_check
      _
    $region39: #{informer_forward.1} parent=1 // pred_check_branch
      %97 = sbr.rel (0) target = $region41
    $region40: #{informer_forward.1} parent=1 // pred_region
      %s99 = ssub.s32 1536, 1536
      %100 = vsyncadd [#allocation9], %s99
      %s101 = sshll.u32 [#allocation10], 4
      %s102 = int_to_ptr.vmem [resolvable:$true] %s101
      %107 = dma.hbm_to_vmem [thread:$0]  %s9, 1536, %s102, [#allocation9], 128, 128, 8
    $region41: #{informer_forward.1} parent=1 // pred_fallthru
      _
    // Predicated region
    $region42: #{informer_forward.1} parent=1 // pred_check
      _
    $region43: #{informer_forward.1} parent=1 // pred_check_branch
      %109 = sbr.rel (0) target = $region45
    $region44: #{informer_forward.1} parent=1 // pred_region
      %s111 = ssub.s32 48, 48
      %112 = vsyncadd [#allocation12], %s111
      %s113 = sshll.u32 [#allocation11], 4
      %s114 = int_to_ptr.vmem [resolvable:$true] %s113
      %119 = dma.hbm_to_vmem [thread:$0]  %s10, 48, %s114, [#allocation12], 16, 16, 1
    $region45: #{informer_forward.1} parent=1 // pred_fallthru
      _
    // Predicated region
    $region46: #{informer_forward.1} parent=1 // pred_check
      _
    $region47: #{informer_forward.1} parent=1 // pred_check_branch
      %121 = sbr.rel (0) target = $region49
    $region48: #{informer_forward.1} parent=1 // pred_region
      %s123 = ssub.s32 1536, 1536
      %124 = vsyncadd [#allocation12], %s123
      %s125 = sshll.u32 [#allocation13], 4
      %s126 = int_to_ptr.vmem [resolvable:$true] %s125
      %131 = dma.hbm_to_vmem [thread:$0]  %s11, 1536, %s126, [#allocation12], 128, 128, 8
    $region49: #{informer_forward.1} parent=1 // pred_fallthru
      _
    // Predicated region
    $region50: #{informer_forward.1} parent=1 // pred_check
      _
    $region51: #{informer_forward.1} parent=1 // pred_check_branch
      %133 = sbr.rel (0) target = $region53
    $region52: #{informer_forward.1} parent=1 // pred_region
      %s135 = ssub.s32 48, 48
      %136 = vsyncadd [#allocation15], %s135
      %s137 = sshll.u32 [#allocation14], 4
      %s138 = int_to_ptr.vmem [resolvable:$true] %s137
      %143 = dma.hbm_to_vmem [thread:$0]  %s12, 48, %s138, [#allocation15], 16, 16, 1
    $region53: #{informer_forward.1} parent=1 // pred_fallthru
      _
    // Predicated region
    $region54: #{informer_forward.1} parent=1 // pred_check
      _
    $region55: #{informer_forward.1} parent=1 // pred_check_branch
      %145 = sbr.rel (0) target = $region57
    $region56: #{informer_forward.1} parent=1 // pred_region
      _
    $region57: #{informer_forward.1} parent=1 // pred_fallthru
      _
    // Predicated region
    $region58: #{informer_forward.1} parent=1 // pred_check
      _
    $region59: #{informer_forward.1} parent=1 // pred_check_branch
      %147 = sbr.rel (0) target = $region61
    $region60: #{informer_forward.1} parent=1 // pred_region
      %s149 = ssub.s32 48, 48
      %150 = vsyncadd [#allocation15], %s149
      %s151 = sshll.u32 [#allocation16], 4
      %s152 = int_to_ptr.vmem [resolvable:$true] %s151
      %157 = dma.hbm_to_vmem [thread:$0]  %s14, 48, %s152, [#allocation15], 16, 16, 1
    $region61: #{informer_forward.1} parent=1 // pred_fallthru
      _
    // Predicated region
    $region62: #{informer_forward.1} parent=1 // pred_check
      _
    $region63: #{informer_forward.1} parent=1 // pred_check_branch
      %159 = sbr.rel (0) target = $region65
    $region64: #{informer_forward.1} parent=1 // pred_region
      %s161 = ssub.s32 48, 48
      %162 = vsyncadd [#allocation18], %s161
      %s163 = sshll.u32 [#allocation17], 4
      %s164 = int_to_ptr.vmem [resolvable:$true] %s163
      %169 = dma.hbm_to_vmem [thread:$0]  %s15, 48, %s164, [#allocation18], 16, 16, 1
    $region65: #{informer_forward.1} parent=1 // pred_fallthru
      _
    // Predicated region
    $region66: #{informer_forward.1} parent=1 // pred_check
      _
    $region67: #{informer_forward.1} parent=1 // pred_check_branch
      %171 = sbr.rel (0) target = $region69
    $region68: #{informer_forward.1} parent=1 // pred_region
      %s173 = ssub.s32 48, 48
      %174 = vsyncadd [#allocation18], %s173
      %s175 = sshll.u32 [#allocation19], 4
      %s176 = int_to_ptr.vmem [resolvable:$true] %s175
      %181 = dma.hbm_to_vmem [thread:$0]  %s16, 48, %s176, [#allocation18], 16, 16, 1
    $region69: #{informer_forward.1} parent=1 // pred_fallthru
      _
    // Predicated region
    $region70: #{informer_forward.1} parent=1 // pred_check
      _
    $region71: #{informer_forward.1} parent=1 // pred_check_branch
      %183 = sbr.rel (0) target = $region73
    $region72: #{informer_forward.1} parent=1 // pred_region
      %s185 = ssub.s32 48, 48
      %186 = vsyncadd [#allocation21], %s185
      %s187 = sshll.u32 [#allocation20], 4
      %s188 = int_to_ptr.vmem [resolvable:$true] %s187
      %193 = dma.hbm_to_vmem [thread:$0]  %s17, 48, %s188, [#allocation21], 16, 16, 1
    $region73: #{informer_forward.1} parent=1 // pred_fallthru
      _
    // Predicated region
    $region74: #{informer_forward.1} parent=1 // pred_check
      _
    $region75: #{informer_forward.1} parent=1 // pred_check_branch
      %195 = sbr.rel (0) target = $region77
    $region76: #{informer_forward.1} parent=1 // pred_region
      %s197 = ssub.s32 48, 48
      %198 = vsyncadd [#allocation21], %s197
      %s199 = sshll.u32 [#allocation22], 4
      %s200 = int_to_ptr.vmem [resolvable:$true] %s199
      %205 = dma.hbm_to_vmem [thread:$0]  %s18, 48, %s200, [#allocation21], 16, 16, 1
    $region77: #{informer_forward.1} parent=1 // pred_fallthru
      _
    // Predicated region
    $region78: #{informer_forward.1} parent=1 // pred_check
      _
    $region79: #{informer_forward.1} parent=1 // pred_check_branch
      %207 = sbr.rel (0) target = $region81
    $region80: #{informer_forward.1} parent=1 // pred_region
      _
    $region81: #{informer_forward.1} parent=1 // pred_fallthru
      _
    // Predicated region
    $region82: #{informer_forward.1} parent=1 // pred_check
      _
    $region83: #{informer_forward.1} parent=1 // pred_check_branch
      %209 = sbr.rel (0) target = $region85
    $region84: #{informer_forward.1} parent=1 // pred_region
      %s211 = ssub.s32 32, 32
      %212 = vsyncadd [#allocation24], %s211
      %s213 = sshll.u32 [#allocation23], 4
      %s214 = int_to_ptr.vmem [resolvable:$true] %s213
      %219 = dma.hbm_to_vmem [thread:$0]  %s20, 32, %s214, [#allocation24], 16, 16, 1
    $region85: #{informer_forward.1} parent=1 // pred_fallthru
      _
    // Predicated region
    $region86: #{informer_forward.1} parent=1 // pred_check
      _
    $region87: #{informer_forward.1} parent=1 // pred_check_branch
      %221 = sbr.rel (0) target = $region89
    $region88: #{informer_forward.1} parent=1 // pred_region
      %s223 = ssub.s32 32, 32
      %224 = vsyncadd [#allocation24], %s223
      %s225 = sshll.u32 [#allocation25], 4
      %s226 = int_to_ptr.vmem [resolvable:$true] %s225
      %231 = dma.hbm_to_vmem [thread:$0]  %s21, 32, %s226, [#allocation24], 16, 16, 1
    $region89: #{informer_forward.1} parent=1 // pred_fallthru
      _
    // Predicated region
    $region90: #{informer_forward.1} parent=1 // pred_check
      _
    $region91: #{informer_forward.1} parent=1 // pred_check_branch
      %233 = sbr.rel (0) target = $region93
    $region92: #{informer_forward.1} parent=1 // pred_region
      %s235 = ssub.s32 32, 32
      %236 = vsyncadd [#allocation27], %s235
      %s237 = sshll.u32 [#allocation26], 4
      %s238 = int_to_ptr.vmem [resolvable:$true] %s237
      %243 = dma.hbm_to_vmem [thread:$0]  %s22, 32, %s238, [#allocation27], 16, 16, 1
    $region93: #{informer_forward.1} parent=1 // pred_fallthru
      _
    // Predicated region
    $region94: #{informer_forward.1} parent=1 // pred_check
      _
    $region95: #{informer_forward.1} parent=1 // pred_check_branch
      %245 = sbr.rel (0) target = $region97
    $region96: #{informer_forward.1} parent=1 // pred_region
      _
    $region97: #{informer_forward.1} parent=1 // pred_fallthru
      _
    // Predicated region
    $region98: #{informer_forward.1} parent=1 // pred_check
      _
    $region99: #{informer_forward.1} parent=1 // pred_check_branch
      %247 = sbr.rel (0) target = $region101
    $region100: #{informer_forward.1} parent=1 // pred_region
      %s249 = ssub.s32 16, 16
      %250 = vsyncadd [#allocation27], %s249
      %s252 = sshll.u32 [#allocation28], 4
      %s253 = int_to_ptr.vmem [resolvable:$true] %s252
      %255 = dma.hbm_to_vmem [thread:$0]  %s24, 16, %s253, [#allocation27]
    $region101: #{informer_forward.1} parent=1 // pred_fallthru
      _
    // Predicated region
    $region102: #{informer_forward.1} parent=1 // pred_check
      _
    $region103: #{informer_forward.1} parent=1 // pred_check_branch
      %257 = sbr.rel (0) target = $region105
    $region104: #{informer_forward.1} parent=1 // pred_region
      %258 = dma.done [#allocation3], 192
    $region105: #{informer_forward.1} parent=1 // pred_fallthru
      _
    // Predicated region
    $region106: #{informer_forward.1} parent=1 // pred_check
      _
    $region107: #{informer_forward.1} parent=1 // pred_check_branch
      %260 = sbr.rel (0) target = $region109
    $region108: #{informer_forward.1} parent=1 // pred_region
      %261 = dma.done [#allocation6], 128
    $region109: #{informer_forward.1} parent=1 // pred_fallthru
      _
    // Predicated region
    $region110: #{informer_forward.1} parent=1 // pred_check
      _
    $region111: #{informer_forward.1} parent=1 // pred_check_branch
      %263 = sbr.rel (0) target = $region113
    $region112: #{informer_forward.1} parent=1 // pred_region
      %264 = dma.done [#allocation6], 1536
    $region113: #{informer_forward.1} parent=1 // pred_fallthru
      _
    // Predicated region
    $region114: #{informer_forward.1} parent=1 // pred_check
      _
    $region115: #{informer_forward.1} parent=1 // pred_check_branch
      %266 = sbr.rel (0) target = $region117
    $region116: #{informer_forward.1} parent=1 // pred_region
      %267 = dma.done [#allocation9], 48
    $region117: #{informer_forward.1} parent=1 // pred_fallthru
      _
    // Predicated region
    $region118: #{informer_forward.1} parent=1 // pred_check
      _
    $region119: #{informer_forward.1} parent=1 // pred_check_branch
      %269 = sbr.rel (0) target = $region121
    $region120: #{informer_forward.1} parent=1 // pred_region
      %270 = dma.done [#allocation9], 1536
    $region121: #{informer_forward.1} parent=1 // pred_fallthru
      _
    // Predicated region
    $region122: #{informer_forward.1} parent=1 // pred_check
      _
    $region123: #{informer_forward.1} parent=1 // pred_check_branch
      %272 = sbr.rel (0) target = $region125
    $region124: #{informer_forward.1} parent=1 // pred_region
      %273 = dma.done [#allocation12], 48
    $region125: #{informer_forward.1} parent=1 // pred_fallthru
      _
    // Predicated region
    $region126: #{informer_forward.1} parent=1 // pred_check
      _
    $region127: #{informer_forward.1} parent=1 // pred_check_branch
      %275 = sbr.rel (0) target = $region129
    $region128: #{informer_forward.1} parent=1 // pred_region
      %276 = dma.done [#allocation12], 1536
    $region129: #{informer_forward.1} parent=1 // pred_fallthru
      _
    // Predicated region
    $region130: #{informer_forward.1} parent=1 // pred_check
      _
    $region131: #{informer_forward.1} parent=1 // pred_check_branch
      %278 = sbr.rel (0) target = $region133
    $region132: #{informer_forward.1} parent=1 // pred_region
      %279 = dma.done [#allocation15], 48
    $region133: #{informer_forward.1} parent=1 // pred_fallthru
      _
    // Predicated region
    $region134: #{informer_forward.1} parent=1 // pred_check
      _
    $region135: #{informer_forward.1} parent=1 // pred_check_branch
      %281 = sbr.rel (0) target = $region137
    $region136: #{informer_forward.1} parent=1 // pred_region
      %282 = dma.done [#allocation15], 48
    $region137: #{informer_forward.1} parent=1 // pred_fallthru
      _
    // Predicated region
    $region138: #{informer_forward.1} parent=1 // pred_check
      _
    $region139: #{informer_forward.1} parent=1 // pred_check_branch
      %284 = sbr.rel (0) target = $region141
    $region140: #{informer_forward.1} parent=1 // pred_region
      %285 = dma.done [#allocation18], 48
    $region141: #{informer_forward.1} parent=1 // pred_fallthru
      _
    // Predicated region
    $region142: #{informer_forward.1} parent=1 // pred_check
      _
    $region143: #{informer_forward.1} parent=1 // pred_check_branch
      %287 = sbr.rel (0) target = $region145
    $region144: #{informer_forward.1} parent=1 // pred_region
      %288 = dma.done [#allocation18], 48
    $region145: #{informer_forward.1} parent=1 // pred_fallthru
      _
    // Predicated region
    $region146: #{informer_forward.1} parent=1 // pred_check
      _
    $region147: #{informer_forward.1} parent=1 // pred_check_branch
      %290 = sbr.rel (0) target = $region149
    $region148: #{informer_forward.1} parent=1 // pred_region
      %291 = dma.done [#allocation21], 48
    $region149: #{informer_forward.1} parent=1 // pred_fallthru
      _
    // Predicated region
    $region150: #{informer_forward.1} parent=1 // pred_check
      _
    $region151: #{informer_forward.1} parent=1 // pred_check_branch
      %293 = sbr.rel (0) target = $region153
    $region152: #{informer_forward.1} parent=1 // pred_region
      %294 = dma.done [#allocation21], 48
    $region153: #{informer_forward.1} parent=1 // pred_fallthru
      _
    // Predicated region
    $region154: #{informer_forward.1} parent=1 // pred_check
      _
    $region155: #{informer_forward.1} parent=1 // pred_check_branch
      %296 = sbr.rel (0) target = $region157
    $region156: #{informer_forward.1} parent=1 // pred_region
      %297 = dma.done [#allocation24], 32
    $region157: #{informer_forward.1} parent=1 // pred_fallthru
      _
    // Predicated region
    $region158: #{informer_forward.1} parent=1 // pred_check
      _
    $region159: #{informer_forward.1} parent=1 // pred_check_branch
      %299 = sbr.rel (0) target = $region161
    $region160: #{informer_forward.1} parent=1 // pred_region
      %300 = dma.done [#allocation24], 32
    $region161: #{informer_forward.1} parent=1 // pred_fallthru
      _
    // Predicated region
    $region162: #{informer_forward.1} parent=1 // pred_check
      _
    $region163: #{informer_forward.1} parent=1 // pred_check_branch
      %302 = sbr.rel (0) target = $region165
    $region164: #{informer_forward.1} parent=1 // pred_region
      %303 = dma.done [#allocation27], 32
    $region165: #{informer_forward.1} parent=1 // pred_fallthru
      _
    // Predicated region
    $region166: #{informer_forward.1} parent=1 // pred_check
      _
    $region167: #{informer_forward.1} parent=1 // pred_check_branch
      %305 = sbr.rel (0) target = $region169
    $region168: #{informer_forward.1} parent=1 // pred_region
      %306 = dma.done [#allocation27], 16
    $region169: #{informer_forward.1} parent=1 // pred_fallthru
      _
    %v307 = vld [vmem:[%s0] sm:$0xff]
    %v308 = vld [vmem:[%s0 + $0x8] sm:$0xff]
    %v309 = vld [vmem:[#allocation2] sm:$0xf]
    %v310 = vld [vmem:[#allocation2 + $0x4] sm:$0xf]
    %v311 = vld [vmem:[#allocation2 + $0x8] sm:$0xf]
    %v312 = vld [vmem:[#allocation5] sm:$0xff]
    %v314 = vrot.slane %v307, 7
    %vm316 = vcmask 1040384
    %v317 = vsel %vm316, %v314, %v314
    %v318 = vrot.slane %v307, 1
    %vm320 = vcmask 1046528
    %v321 = vsel %vm320, %v318, %v318
    %vm322 = vcmask 31744
    %v323 = vsel %vm322, %v307, 0
    %vm325 = vcmask 1043456
    %v327 = vsel %vm325, %v310, 0
    %329 = vmatprep.subr.mxu0 0.0
    %330 = vmatpush1.msra.mxu0 %v327
    %331 = vmatprep.subr.mxu0 0.0
    %332 = vmatpush1.msra.mxu0 0.0
    %333 = vmatprep.subr.mxu0 0.0
    %334 = vmatpush1.msra.mxu0 0.0
    %335 = vmatprep.subr.mxu0 0.0
    %336 = vmatpush1.msra.mxu0 0.0
    %337 = vmatprep.subr.mxu0 0.0
    %338 = vmatpush1.msra.mxu0 0.0
    %339 = vmatprep.subr.mxu0 0.0
    %340 = vmatpush1.msra.mxu0 0.0
    %341 = vmatprep.subr.mxu0 0.0
    %342 = vmatpush1.msra.mxu0 0.0
    %343 = vmatprep.subr.mxu0 0.0
    %344 = vmatpush1.msra.mxu0 0.0
    %345 = vmatprep.subr.mxu0 0.0
    %346 = vmatpush1.msra.mxu0 0.0
    %347 = vmatprep.subr.mxu0 0.0
    %348 = vmatpush1.msra.mxu0 0.0
    %349 = vmatprep.subr.mxu0 0.0
    %350 = vmatpush1.msra.mxu0 0.0
    %351 = vmatprep.subr.mxu0 0.0
    %352 = vmatpush1.msra.mxu0 0.0
    %353 = vmatprep.subr.mxu0 0.0
    %354 = vmatpush1.msra.mxu0 0.0
    %355 = vmatprep.subr.mxu0 0.0
    %356 = vmatpush1.msra.mxu0 0.0
    %357 = vmatprep.subr.mxu0 0.0
    %358 = vmatpush1.msra.mxu0 0.0
    %359 = vmatprep.subr.mxu0 0.0
    %360 = vmatpush1.msra.mxu0 0.0
    %361 = vmatprep.subr.mxu0 0.0
    %362 = vmatpush1.msra.mxu0 0.0
    %363 = vmatprep.subr.mxu0 0.0
    %364 = vmatpush1.msra.mxu0 0.0
    %365 = vmatprep.subr.mxu0 0.0
    %366 = vmatpush1.msra.mxu0 0.0
    %367 = vmatprep.subr.mxu0 0.0
    %368 = vmatpush1.msra.mxu0 0.0
    %369 = vmatprep.subr.mxu0 0.0
    %370 = vmatpush1.msra.mxu0 0.0
    %371 = vmatprep.subr.mxu0 0.0
    %372 = vmatpush1.msra.mxu0 0.0
    %373 = vmatprep.subr.mxu0 0.0
    %374 = vmatpush1.msra.mxu0 0.0
    %375 = vmatprep.subr.mxu0 0.0
    %376 = vmatpush1.msra.mxu0 0.0
    %377 = vmatprep.subr.mxu0 0.0
    %378 = vmatpush1.msra.mxu0 0.0
    %379 = vmatprep.subr.mxu0 0.0
    %380 = vmatpush1.msra.mxu0 0.0
    %381 = vmatprep.subr.mxu0 0.0
    %382 = vmatpush1.msra.mxu0 0.0
    %383 = vmatprep.subr.mxu0 0.0
    %384 = vmatpush1.msra.mxu0 0.0
    %385 = vmatprep.subr.mxu0 0.0
    %386 = vmatpush1.msra.mxu0 0.0
    %387 = vmatprep.subr.mxu0 0.0
    %388 = vmatpush1.msra.mxu0 0.0
    %389 = vmatprep.subr.mxu0 0.0
    %390 = vmatpush1.msra.mxu0 0.0
    %391 = vmatprep.subr.mxu0 0.0
    %392 = vmatpush1.msra.mxu0 0.0
    %393 = vmatprep.mubr.f32.mxu0 0.0
    %394 = vmatmul.mubr.f32.gmra.mrb[0].mxu0 %v323
    %v395 = vpop.f32.mrb[0].mxu0
    %v396 = vadd.f32 0.0, %v395
    %v397 = vpop.f32.mrb[0].mxu0
    %398 = vdwg.mxu0
    %v400 = vsel %vm322, %v317, 0
    %v403 = vsel %vm325, %v309, 0
    %405 = vmatprep.subr.mxu0 0.0
    %406 = vmatpush1.msra.mxu0 %v403
    %407 = vmatprep.subr.mxu0 0.0
    %408 = vmatpush1.msra.mxu0 0.0
    %409 = vmatprep.subr.mxu0 0.0
    %410 = vmatpush1.msra.mxu0 0.0
    %411 = vmatprep.subr.mxu0 0.0
    %412 = vmatpush1.msra.mxu0 0.0
    %413 = vmatprep.subr.mxu0 0.0
    %414 = vmatpush1.msra.mxu0 0.0
    %415 = vmatprep.subr.mxu0 0.0
    %416 = vmatpush1.msra.mxu0 0.0
    %417 = vmatprep.subr.mxu0 0.0
    %418 = vmatpush1.msra.mxu0 0.0
    %419 = vmatprep.subr.mxu0 0.0
    %420 = vmatpush1.msra.mxu0 0.0
    %421 = vmatprep.subr.mxu0 0.0
    %422 = vmatpush1.msra.mxu0 0.0
    %423 = vmatprep.subr.mxu0 0.0
    %424 = vmatpush1.msra.mxu0 0.0
    %425 = vmatprep.subr.mxu0 0.0
    %426 = vmatpush1.msra.mxu0 0.0
    %427 = vmatprep.subr.mxu0 0.0
    %428 = vmatpush1.msra.mxu0 0.0
    %429 = vmatprep.subr.mxu0 0.0
    %430 = vmatpush1.msra.mxu0 0.0
    %431 = vmatprep.subr.mxu0 0.0
    %432 = vmatpush1.msra.mxu0 0.0
    %433 = vmatprep.subr.mxu0 0.0
    %434 = vmatpush1.msra.mxu0 0.0
    %435 = vmatprep.subr.mxu0 0.0
    %436 = vmatpush1.msra.mxu0 0.0
    %437 = vmatprep.subr.mxu0 0.0
    %438 = vmatpush1.msra.mxu0 0.0
    %439 = vmatprep.subr.mxu0 0.0
    %440 = vmatpush1.msra.mxu0 0.0
    %441 = vmatprep.subr.mxu0 0.0
    %442 = vmatpush1.msra.mxu0 0.0
    %443 = vmatprep.subr.mxu0 0.0
    %444 = vmatpush1.msra.mxu0 0.0
    %445 = vmatprep.subr.mxu0 0.0
    %446 = vmatpush1.msra.mxu0 0.0
    %447 = vmatprep.subr.mxu0 0.0
    %448 = vmatpush1.msra.mxu0 0.0
    %449 = vmatprep.subr.mxu0 0.0
    %450 = vmatpush1.msra.mxu0 0.0
    %451 = vmatprep.subr.mxu0 0.0
    %452 = vmatpush1.msra.mxu0 0.0
    %453 = vmatprep.subr.mxu0 0.0
    %454 = vmatpush1.msra.mxu0 0.0
    %455 = vmatprep.subr.mxu0 0.0
    %456 = vmatpush1.msra.mxu0 0.0
    %457 = vmatprep.subr.mxu0 0.0
    %458 = vmatpush1.msra.mxu0 0.0
    %459 = vmatprep.subr.mxu0 0.0
    %460 = vmatpush1.msra.mxu0 0.0
    %461 = vmatprep.subr.mxu0 0.0
    %462 = vmatpush1.msra.mxu0 0.0
    %463 = vmatprep.subr.mxu0 0.0
    %464 = vmatpush1.msra.mxu0 0.0
    %465 = vmatprep.subr.mxu0 0.0
    %466 = vmatpush1.msra.mxu0 0.0
    %467 = vmatprep.subr.mxu0 0.0
    %468 = vmatpush1.msra.mxu0 0.0
    %469 = vmatprep.mubr.f32.mxu0 0.0
    %470 = vmatmul.mubr.f32.gmra.mrb[0].mxu0 %v400
    %v471 = vpop.f32.mrb[0].mxu0
    %v472 = vadd.f32 %v396, %v471
    %v473 = vpop.f32.mrb[0].mxu0
    %474 = vdwg.mxu0
    %v476 = vsel %vm322, %v321, 0
    %v479 = vsel %vm325, %v311, 0
    %481 = vmatprep.subr.mxu0 0.0
    %482 = vmatpush1.msra.mxu0 %v479
    %483 = vmatprep.subr.mxu0 0.0
    %484 = vmatpush1.msra.mxu0 0.0
    %485 = vmatprep.subr.mxu0 0.0
    %486 = vmatpush1.msra.mxu0 0.0
    %487 = vmatprep.subr.mxu0 0.0
    %488 = vmatpush1.msra.mxu0 0.0
    %489 = vmatprep.subr.mxu0 0.0
    %490 = vmatpush1.msra.mxu0 0.0
    %491 = vmatprep.subr.mxu0 0.0
    %492 = vmatpush1.msra.mxu0 0.0
    %493 = vmatprep.subr.mxu0 0.0
    %494 = vmatpush1.msra.mxu0 0.0
    %495 = vmatprep.subr.mxu0 0.0
    %496 = vmatpush1.msra.mxu0 0.0
    %497 = vmatprep.subr.mxu0 0.0
    %498 = vmatpush1.msra.mxu0 0.0
    %499 = vmatprep.subr.mxu0 0.0
    %500 = vmatpush1.msra.mxu0 0.0
    %501 = vmatprep.subr.mxu0 0.0
    %502 = vmatpush1.msra.mxu0 0.0
    %503 = vmatprep.subr.mxu0 0.0
    %504 = vmatpush1.msra.mxu0 0.0
    %505 = vmatprep.subr.mxu0 0.0
    %506 = vmatpush1.msra.mxu0 0.0
    %507 = vmatprep.subr.mxu0 0.0
    %508 = vmatpush1.msra.mxu0 0.0
    %509 = vmatprep.subr.mxu0 0.0
    %510 = vmatpush1.msra.mxu0 0.0
    %511 = vmatprep.subr.mxu0 0.0
    %512 = vmatpush1.msra.mxu0 0.0
    %513 = vmatprep.subr.mxu0 0.0
    %514 = vmatpush1.msra.mxu0 0.0
    %515 = vmatprep.subr.mxu0 0.0
    %516 = vmatpush1.msra.mxu0 0.0
    %517 = vmatprep.subr.mxu0 0.0
    %518 = vmatpush1.msra.mxu0 0.0
    %519 = vmatprep.subr.mxu0 0.0
    %520 = vmatpush1.msra.mxu0 0.0
    %521 = vmatprep.subr.mxu0 0.0
    %522 = vmatpush1.msra.mxu0 0.0
    %523 = vmatprep.subr.mxu0 0.0
    %524 = vmatpush1.msra.mxu0 0.0
    %525 = vmatprep.subr.mxu0 0.0
    %526 = vmatpush1.msra.mxu0 0.0
    %527 = vmatprep.subr.mxu0 0.0
    %528 = vmatpush1.msra.mxu0 0.0
    %529 = vmatprep.subr.mxu0 0.0
    %530 = vmatpush1.msra.mxu0 0.0
    %531 = vmatprep.subr.mxu0 0.0
    %532 = vmatpush1.msra.mxu0 0.0
    %533 = vmatprep.subr.mxu0 0.0
    %534 = vmatpush1.msra.mxu0 0.0
    %535 = vmatprep.subr.mxu0 0.0
    %536 = vmatpush1.msra.mxu0 0.0
    %537 = vmatprep.subr.mxu0 0.0
    %538 = vmatpush1.msra.mxu0 0.0
    %539 = vmatprep.subr.mxu0 0.0
    %540 = vmatpush1.msra.mxu0 0.0
    %541 = vmatprep.subr.mxu0 0.0
    %542 = vmatpush1.msra.mxu0 0.0
    %543 = vmatprep.subr.mxu0 0.0
    %544 = vmatpush1.msra.mxu0 0.0
    %545 = vmatprep.mubr.f32.mxu0 0.0
    %546 = vmatmul.mubr.f32.gmra.mrb[0].mxu0 %v476
    %v547 = vpop.f32.mrb[0].mxu0
    %v548 = vadd.f32 0.0, %v547
    %v549 = vpop.f32.mrb[0].mxu0
    %550 = vdwg.mxu0
    %v551 = vadd.f32 %v472, %v548
    %v552 = vadd.f32 %v551, %v312
    %v554 = vrot.slane %v308, 7
    %v556 = vsel %vm316, %v554, %v554
    %v557 = vrot.slane %v308, 1
    %v559 = vsel %vm320, %v557, %v557
    %v560 = vsel %vm322, %v308, 0
    %562 = vmatprep.subr.mxu0 0.0
    %563 = vmatpush1.msra.mxu0 %v327
    %564 = vmatprep.subr.mxu0 0.0
    %565 = vmatpush1.msra.mxu0 0.0
    %566 = vmatprep.subr.mxu0 0.0
    %567 = vmatpush1.msra.mxu0 0.0
    %568 = vmatprep.subr.mxu0 0.0
    %569 = vmatpush1.msra.mxu0 0.0
    %570 = vmatprep.subr.mxu0 0.0
    %571 = vmatpush1.msra.mxu0 0.0
    %572 = vmatprep.subr.mxu0 0.0
    %573 = vmatpush1.msra.mxu0 0.0
    %574 = vmatprep.subr.mxu0 0.0
    %575 = vmatpush1.msra.mxu0 0.0
    %576 = vmatprep.subr.mxu0 0.0
    %577 = vmatpush1.msra.mxu0 0.0
    %578 = vmatprep.subr.mxu0 0.0
    %579 = vmatpush1.msra.mxu0 0.0
    %580 = vmatprep.subr.mxu0 0.0
    %581 = vmatpush1.msra.mxu0 0.0
    %582 = vmatprep.subr.mxu0 0.0
    %583 = vmatpush1.msra.mxu0 0.0
    %584 = vmatprep.subr.mxu0 0.0
    %585 = vmatpush1.msra.mxu0 0.0
    %586 = vmatprep.subr.mxu0 0.0
    %587 = vmatpush1.msra.mxu0 0.0
    %588 = vmatprep.subr.mxu0 0.0
    %589 = vmatpush1.msra.mxu0 0.0
    %590 = vmatprep.subr.mxu0 0.0
    %591 = vmatpush1.msra.mxu0 0.0
    %592 = vmatprep.subr.mxu0 0.0
    %593 = vmatpush1.msra.mxu0 0.0
    %594 = vmatprep.subr.mxu0 0.0
    %595 = vmatpush1.msra.mxu0 0.0
    %596 = vmatprep.subr.mxu0 0.0
    %597 = vmatpush1.msra.mxu0 0.0
    %598 = vmatprep.subr.mxu0 0.0
    %599 = vmatpush1.msra.mxu0 0.0
    %600 = vmatprep.subr.mxu0 0.0
    %601 = vmatpush1.msra.mxu0 0.0
    %602 = vmatprep.subr.mxu0 0.0
    %603 = vmatpush1.msra.mxu0 0.0
    %604 = vmatprep.subr.mxu0 0.0
    %605 = vmatpush1.msra.mxu0 0.0
    %606 = vmatprep.subr.mxu0 0.0
    %607 = vmatpush1.msra.mxu0 0.0
    %608 = vmatprep.subr.mxu0 0.0
    %609 = vmatpush1.msra.mxu0 0.0
    %610 = vmatprep.subr.mxu0 0.0
    %611 = vmatpush1.msra.mxu0 0.0
    %612 = vmatprep.subr.mxu0 0.0
    %613 = vmatpush1.msra.mxu0 0.0
    %614 = vmatprep.subr.mxu0 0.0
    %615 = vmatpush1.msra.mxu0 0.0
    %616 = vmatprep.subr.mxu0 0.0
    %617 = vmatpush1.msra.mxu0 0.0
    %618 = vmatprep.subr.mxu0 0.0
    %619 = vmatpush1.msra.mxu0 0.0
    %620 = vmatprep.subr.mxu0 0.0
    %621 = vmatpush1.msra.mxu0 0.0
    %622 = vmatprep.subr.mxu0 0.0
    %623 = vmatpush1.msra.mxu0 0.0
    %624 = vmatprep.subr.mxu0 0.0
    %625 = vmatpush1.msra.mxu0 0.0
    %626 = vmatprep.mubr.f32.mxu0 0.0
    %627 = vmatmul.mubr.f32.gmra.mrb[0].mxu0 %v560
    %v628 = vpop.f32.mrb[0].mxu0
    %v629 = vadd.f32 0.0, %v628
    %v630 = vpop.f32.mrb[0].mxu0
    %631 = vdwg.mxu0
    %v633 = vsel %vm322, %v556, 0
    %635 = vmatprep.subr.mxu0 0.0
    %636 = vmatpush1.msra.mxu0 %v403
    %637 = vmatprep.subr.mxu0 0.0
    %638 = vmatpush1.msra.mxu0 0.0
    %639 = vmatprep.subr.mxu0 0.0
    %640 = vmatpush1.msra.mxu0 0.0
    %641 = vmatprep.subr.mxu0 0.0
    %642 = vmatpush1.msra.mxu0 0.0
    %643 = vmatprep.subr.mxu0 0.0
    %644 = vmatpush1.msra.mxu0 0.0
    %645 = vmatprep.subr.mxu0 0.0
    %646 = vmatpush1.msra.mxu0 0.0
    %647 = vmatprep.subr.mxu0 0.0
    %648 = vmatpush1.msra.mxu0 0.0
    %649 = vmatprep.subr.mxu0 0.0
    %650 = vmatpush1.msra.mxu0 0.0
    %651 = vmatprep.subr.mxu0 0.0
    %652 = vmatpush1.msra.mxu0 0.0
    %653 = vmatprep.subr.mxu0 0.0
    %654 = vmatpush1.msra.mxu0 0.0
    %655 = vmatprep.subr.mxu0 0.0
    %656 = vmatpush1.msra.mxu0 0.0
    %657 = vmatprep.subr.mxu0 0.0
    %658 = vmatpush1.msra.mxu0 0.0
    %659 = vmatprep.subr.mxu0 0.0
    %660 = vmatpush1.msra.mxu0 0.0
    %661 = vmatprep.subr.mxu0 0.0
    %662 = vmatpush1.msra.mxu0 0.0
    %663 = vmatprep.subr.mxu0 0.0
    %664 = vmatpush1.msra.mxu0 0.0
    %665 = vmatprep.subr.mxu0 0.0
    %666 = vmatpush1.msra.mxu0 0.0
    %667 = vmatprep.subr.mxu0 0.0
    %668 = vmatpush1.msra.mxu0 0.0
    %669 = vmatprep.subr.mxu0 0.0
    %670 = vmatpush1.msra.mxu0 0.0
    %671 = vmatprep.subr.mxu0 0.0
    %672 = vmatpush1.msra.mxu0 0.0
    %673 = vmatprep.subr.mxu0 0.0
    %674 = vmatpush1.msra.mxu0 0.0
    %675 = vmatprep.subr.mxu0 0.0
    %676 = vmatpush1.msra.mxu0 0.0
    %677 = vmatprep.subr.mxu0 0.0
    %678 = vmatpush1.msra.mxu0 0.0
    %679 = vmatprep.subr.mxu0 0.0
    %680 = vmatpush1.msra.mxu0 0.0
    %681 = vmatprep.subr.mxu0 0.0
    %682 = vmatpush1.msra.mxu0 0.0
    %683 = vmatprep.subr.mxu0 0.0
    %684 = vmatpush1.msra.mxu0 0.0
    %685 = vmatprep.subr.mxu0 0.0
    %686 = vmatpush1.msra.mxu0 0.0
    %687 = vmatprep.subr.mxu0 0.0
    %688 = vmatpush1.msra.mxu0 0.0
    %689 = vmatprep.subr.mxu0 0.0
    %690 = vmatpush1.msra.mxu0 0.0
    %691 = vmatprep.subr.mxu0 0.0
    %692 = vmatpush1.msra.mxu0 0.0
    %693 = vmatprep.subr.mxu0 0.0
    %694 = vmatpush1.msra.mxu0 0.0
    %695 = vmatprep.subr.mxu0 0.0
    %696 = vmatpush1.msra.mxu0 0.0
    %697 = vmatprep.subr.mxu0 0.0
    %698 = vmatpush1.msra.mxu0 0.0
    %699 = vmatprep.mubr.f32.mxu0 0.0
    %700 = vmatmul.mubr.f32.gmra.mrb[0].mxu0 %v633
    %v701 = vpop.f32.mrb[0].mxu0
    %v702 = vadd.f32 %v629, %v701
    %v703 = vpop.f32.mrb[0].mxu0
    %704 = vdwg.mxu0
    %v706 = vsel %vm322, %v559, 0
    %708 = vmatprep.subr.mxu0 0.0
    %709 = vmatpush1.msra.mxu0 %v479
    %710 = vmatprep.subr.mxu0 0.0
    %711 = vmatpush1.msra.mxu0 0.0
    %712 = vmatprep.subr.mxu0 0.0
    %713 = vmatpush1.msra.mxu0 0.0
    %714 = vmatprep.subr.mxu0 0.0
    %715 = vmatpush1.msra.mxu0 0.0
    %716 = vmatprep.subr.mxu0 0.0
    %717 = vmatpush1.msra.mxu0 0.0
    %718 = vmatprep.subr.mxu0 0.0
    %719 = vmatpush1.msra.mxu0 0.0
    %720 = vmatprep.subr.mxu0 0.0
    %721 = vmatpush1.msra.mxu0 0.0
    %722 = vmatprep.subr.mxu0 0.0
    %723 = vmatpush1.msra.mxu0 0.0
    %724 = vmatprep.subr.mxu0 0.0
    %725 = vmatpush1.msra.mxu0 0.0
    %726 = vmatprep.subr.mxu0 0.0
    %727 = vmatpush1.msra.mxu0 0.0
    %728 = vmatprep.subr.mxu0 0.0
    %729 = vmatpush1.msra.mxu0 0.0
    %730 = vmatprep.subr.mxu0 0.0
    %731 = vmatpush1.msra.mxu0 0.0
    %732 = vmatprep.subr.mxu0 0.0
    %733 = vmatpush1.msra.mxu0 0.0
    %734 = vmatprep.subr.mxu0 0.0
    %735 = vmatpush1.msra.mxu0 0.0
    %736 = vmatprep.subr.mxu0 0.0
    %737 = vmatpush1.msra.mxu0 0.0
    %738 = vmatprep.subr.mxu0 0.0
    %739 = vmatpush1.msra.mxu0 0.0
    %740 = vmatprep.subr.mxu0 0.0
    %741 = vmatpush1.msra.mxu0 0.0
    %742 = vmatprep.subr.mxu0 0.0
    %743 = vmatpush1.msra.mxu0 0.0
    %744 = vmatprep.subr.mxu0 0.0
    %745 = vmatpush1.msra.mxu0 0.0
    %746 = vmatprep.subr.mxu0 0.0
    %747 = vmatpush1.msra.mxu0 0.0
    %748 = vmatprep.subr.mxu0 0.0
    %749 = vmatpush1.msra.mxu0 0.0
    %750 = vmatprep.subr.mxu0 0.0
    %751 = vmatpush1.msra.mxu0 0.0
    %752 = vmatprep.subr.mxu0 0.0
    %753 = vmatpush1.msra.mxu0 0.0
    %754 = vmatprep.subr.mxu0 0.0
    %755 = vmatpush1.msra.mxu0 0.0
    %756 = vmatprep.subr.mxu0 0.0
    %757 = vmatpush1.msra.mxu0 0.0
    %758 = vmatprep.subr.mxu0 0.0
    %759 = vmatpush1.msra.mxu0 0.0
    %760 = vmatprep.subr.mxu0 0.0
    %761 = vmatpush1.msra.mxu0 0.0
    %762 = vmatprep.subr.mxu0 0.0
    %763 = vmatpush1.msra.mxu0 0.0
    %764 = vmatprep.subr.mxu0 0.0
    %765 = vmatpush1.msra.mxu0 0.0
    %766 = vmatprep.subr.mxu0 0.0
    %767 = vmatpush1.msra.mxu0 0.0
    %768 = vmatprep.subr.mxu0 0.0
    %769 = vmatpush1.msra.mxu0 0.0
    %770 = vmatprep.subr.mxu0 0.0
    %771 = vmatpush1.msra.mxu0 0.0
    %772 = vmatprep.mubr.f32.mxu0 0.0
    %773 = vmatmul.mubr.f32.gmra.mrb[0].mxu0 %v706
    %v774 = vpop.f32.mrb[0].mxu0
    %v775 = vadd.f32 0.0, %v774
    %v776 = vpop.f32.mrb[0].mxu0
    %777 = vdwg.mxu0
    %v778 = vadd.f32 %v702, %v775
    %v779 = vadd.f32 %v778, %v312
    %v780 = vld [vmem:[%s3] sm:$0xff]
    %v781 = vld [vmem:[%s3 + $0x8] sm:$0xff]
    %v782 = vld [vmem:[%s3 + $0x10] sm:$0xff]
    %v783 = vld [vmem:[%s3 + $0x18] sm:$0xff]
    %v784 = vld [vmem:[%s5] sm:$0xff]
    %v785 = vld [vmem:[%s5 + $0x8] sm:$0xff]
    %v786 = vld [vmem:[%s5 + $0x10] sm:$0xff]
    %v787 = vld [vmem:[%s5 + $0x18] sm:$0xff]
    %v788 = vld [vmem:[#allocation7] sm:$0xff]
    %v789 = vld [vmem:[#allocation7 + $0x8] sm:$0xff]
    %v790 = vld [vmem:[#allocation7 + $0x10] sm:$0xff]
    %v791 = vld [vmem:[#allocation7 + $0x18] sm:$0xff]
    %v792 = vld [vmem:[#allocation10] sm:$0xff]
    %v793 = vld [vmem:[#allocation10 + $0x8] sm:$0xff]
    %v794 = vld [vmem:[#allocation10 + $0x10] sm:$0xff]
    %v795 = vld [vmem:[#allocation10 + $0x18] sm:$0xff]
    %v796 = vld [vmem:[%s4] sm:$0x1]
    %v798 = vlaneseq
    %v799 = vshrl.u32 %v798, 7
    %v800 = vsub.s32 0, %v799
    %v801 = vrot.slane %v796, %v800
    %vm803 = vcmask 261120
    %v805 = vsel %vm803, %v552, 0
    %v808 = vsel %vm803, %v779, 0
    %810 = vmatprep.subr.mxu0 0.0
    %811 = vmatpush1.msra.mxu0 %v780
    %812 = vmatprep.subr.mxu0 0.0
    %813 = vmatpush1.msra.mxu0 %v781
    %814 = vmatprep.subr.mxu0 0.0
    %815 = vmatpush1.msra.mxu0 %v782
    %816 = vmatprep.subr.mxu0 0.0
    %817 = vmatpush1.msra.mxu0 %v783
    %818 = vmatprep.subr.mxu0 0.0
    %819 = vmatpush1.msra.mxu0 0.0
    %820 = vmatprep.subr.mxu0 0.0
    %821 = vmatpush1.msra.mxu0 0.0
    %822 = vmatprep.subr.mxu0 0.0
    %823 = vmatpush1.msra.mxu0 0.0
    %824 = vmatprep.subr.mxu0 0.0
    %825 = vmatpush1.msra.mxu0 0.0
    %826 = vmatprep.subr.mxu0 0.0
    %827 = vmatpush1.msra.mxu0 0.0
    %828 = vmatprep.subr.mxu0 0.0
    %829 = vmatpush1.msra.mxu0 0.0
    %830 = vmatprep.subr.mxu0 0.0
    %831 = vmatpush1.msra.mxu0 0.0
    %832 = vmatprep.subr.mxu0 0.0
    %833 = vmatpush1.msra.mxu0 0.0
    %834 = vmatprep.subr.mxu0 0.0
    %835 = vmatpush1.msra.mxu0 0.0
    %836 = vmatprep.subr.mxu0 0.0
    %837 = vmatpush1.msra.mxu0 0.0
    %838 = vmatprep.subr.mxu0 0.0
    %839 = vmatpush1.msra.mxu0 0.0
    %840 = vmatprep.subr.mxu0 0.0
    %841 = vmatpush1.msra.mxu0 0.0
    %842 = vmatprep.subr.mxu0 0.0
    %843 = vmatpush1.msra.mxu0 0.0
    %844 = vmatprep.subr.mxu0 0.0
    %845 = vmatpush1.msra.mxu0 0.0
    %846 = vmatprep.subr.mxu0 0.0
    %847 = vmatpush1.msra.mxu0 0.0
    %848 = vmatprep.subr.mxu0 0.0
    %849 = vmatpush1.msra.mxu0 0.0
    %850 = vmatprep.subr.mxu0 0.0
    %851 = vmatpush1.msra.mxu0 0.0
    %852 = vmatprep.subr.mxu0 0.0
    %853 = vmatpush1.msra.mxu0 0.0
    %854 = vmatprep.subr.mxu0 0.0
    %855 = vmatpush1.msra.mxu0 0.0
    %856 = vmatprep.subr.mxu0 0.0
    %857 = vmatpush1.msra.mxu0 0.0
    %858 = vmatprep.subr.mxu0 0.0
    %859 = vmatpush1.msra.mxu0 0.0
    %860 = vmatprep.subr.mxu0 0.0
    %861 = vmatpush1.msra.mxu0 0.0
    %862 = vmatprep.subr.mxu0 0.0
    %863 = vmatpush1.msra.mxu0 0.0
    %864 = vmatprep.subr.mxu0 0.0
    %865 = vmatpush1.msra.mxu0 0.0
    %866 = vmatprep.subr.mxu0 0.0
    %867 = vmatpush1.msra.mxu0 0.0
    %868 = vmatprep.subr.mxu0 0.0
    %869 = vmatpush1.msra.mxu0 0.0
    %870 = vmatprep.subr.mxu0 0.0
    %871 = vmatpush1.msra.mxu0 0.0
    %872 = vmatprep.subr.mxu0 0.0
    %873 = vmatpush1.msra.mxu0 0.0
    %874 = vmatprep.mubr.f32.mxu0 0.0
    %875 = vmatmul.mubr.f32.gmra.mrb[0].mxu0 %v805
    %v876 = vpop.f32.mrb[0].mxu0
    %v877 = vadd.f32 %v801, %v876
    %v878 = vpop.f32.mrb[0].mxu0
    %879 = vmatprep.mubr.f32.mxu0 0.0
    %880 = vmatmul.mubr.f32.gmra.mrb[0].mxu0 %v808
    %v881 = vpop.f32.mrb[0].mxu0
    %v882 = vadd.f32 %v801, %v881
    %v883 = vpop.f32.mrb[0].mxu0
    %884 = vdwg.mxu0
    %v885 = vmul.f32 %v877, 0.35355338
    %v886 = vmul.f32 %v882, 0.35355338
    %v887 = vld [vmem:[%s6] sm:$0x1]
    %v889 = vlaneseq
    %v890 = vshrl.u32 %v889, 7
    %v891 = vsub.s32 0, %v890
    %v892 = vrot.slane %v887, %v891
    %894 = vmatprep.subr.mxu0 0.0
    %895 = vmatpush1.msra.mxu0 %v784
    %896 = vmatprep.subr.mxu0 0.0
    %897 = vmatpush1.msra.mxu0 %v785
    %898 = vmatprep.subr.mxu0 0.0
    %899 = vmatpush1.msra.mxu0 %v786
    %900 = vmatprep.subr.mxu0 0.0
    %901 = vmatpush1.msra.mxu0 %v787
    %902 = vmatprep.subr.mxu0 0.0
    %903 = vmatpush1.msra.mxu0 0.0
    %904 = vmatprep.subr.mxu0 0.0
    %905 = vmatpush1.msra.mxu0 0.0
    %906 = vmatprep.subr.mxu0 0.0
    %907 = vmatpush1.msra.mxu0 0.0
    %908 = vmatprep.subr.mxu0 0.0
    %909 = vmatpush1.msra.mxu0 0.0
    %910 = vmatprep.subr.mxu0 0.0
    %911 = vmatpush1.msra.mxu0 0.0
    %912 = vmatprep.subr.mxu0 0.0
    %913 = vmatpush1.msra.mxu0 0.0
    %914 = vmatprep.subr.mxu0 0.0
    %915 = vmatpush1.msra.mxu0 0.0
    %916 = vmatprep.subr.mxu0 0.0
    %917 = vmatpush1.msra.mxu0 0.0
    %918 = vmatprep.subr.mxu0 0.0
    %919 = vmatpush1.msra.mxu0 0.0
    %920 = vmatprep.subr.mxu0 0.0
    %921 = vmatpush1.msra.mxu0 0.0
    %922 = vmatprep.subr.mxu0 0.0
    %923 = vmatpush1.msra.mxu0 0.0
    %924 = vmatprep.subr.mxu0 0.0
    %925 = vmatpush1.msra.mxu0 0.0
    %926 = vmatprep.subr.mxu0 0.0
    %927 = vmatpush1.msra.mxu0 0.0
    %928 = vmatprep.subr.mxu0 0.0
    %929 = vmatpush1.msra.mxu0 0.0
    %930 = vmatprep.subr.mxu0 0.0
    %931 = vmatpush1.msra.mxu0 0.0
    %932 = vmatprep.subr.mxu0 0.0
    %933 = vmatpush1.msra.mxu0 0.0
    %934 = vmatprep.subr.mxu0 0.0
    %935 = vmatpush1.msra.mxu0 0.0
    %936 = vmatprep.subr.mxu0 0.0
    %937 = vmatpush1.msra.mxu0 0.0
    %938 = vmatprep.subr.mxu0 0.0
    %939 = vmatpush1.msra.mxu0 0.0
    %940 = vmatprep.subr.mxu0 0.0
    %941 = vmatpush1.msra.mxu0 0.0
    %942 = vmatprep.subr.mxu0 0.0
    %943 = vmatpush1.msra.mxu0 0.0
    %944 = vmatprep.subr.mxu0 0.0
    %945 = vmatpush1.msra.mxu0 0.0
    %946 = vmatprep.subr.mxu0 0.0
    %947 = vmatpush1.msra.mxu0 0.0
    %948 = vmatprep.subr.mxu0 0.0
    %949 = vmatpush1.msra.mxu0 0.0
    %950 = vmatprep.subr.mxu0 0.0
    %951 = vmatpush1.msra.mxu0 0.0
    %952 = vmatprep.subr.mxu0 0.0
    %953 = vmatpush1.msra.mxu0 0.0
    %954 = vmatprep.subr.mxu0 0.0
    %955 = vmatpush1.msra.mxu0 0.0
    %956 = vmatprep.subr.mxu0 0.0
    %957 = vmatpush1.msra.mxu0 0.0
    %958 = vmatprep.mubr.f32.mxu0 0.0
    %959 = vmatmul.mubr.f32.gmra.mrb[0].mxu0 %v805
    %v960 = vpop.f32.mrb[0].mxu0
    %v961 = vadd.f32 %v892, %v960
    %v962 = vpop.f32.mrb[0].mxu0
    %963 = vmatprep.mubr.f32.mxu0 0.0
    %964 = vmatmul.mubr.f32.gmra.mrb[0].mxu0 %v808
    %v965 = vpop.f32.mrb[0].mxu0
    %v966 = vadd.f32 %v892, %v965
    %v967 = vpop.f32.mrb[0].mxu0
    %968 = vdwg.mxu0
    %v969 = vld [vmem:[#allocation8] sm:$0x1]
    %v971 = vlaneseq
    %v972 = vshrl.u32 %v971, 7
    %v973 = vsub.s32 0, %v972
    %v974 = vrot.slane %v969, %v973
    %976 = vmatprep.subr.mxu0 0.0
    %977 = vmatpush1.msra.mxu0 %v788
    %978 = vmatprep.subr.mxu0 0.0
    %979 = vmatpush1.msra.mxu0 %v789
    %980 = vmatprep.subr.mxu0 0.0
    %981 = vmatpush1.msra.mxu0 %v790
    %982 = vmatprep.subr.mxu0 0.0
    %983 = vmatpush1.msra.mxu0 %v791
    %984 = vmatprep.subr.mxu0 0.0
    %985 = vmatpush1.msra.mxu0 0.0
    %986 = vmatprep.subr.mxu0 0.0
    %987 = vmatpush1.msra.mxu0 0.0
    %988 = vmatprep.subr.mxu0 0.0
    %989 = vmatpush1.msra.mxu0 0.0
    %990 = vmatprep.subr.mxu0 0.0
    %991 = vmatpush1.msra.mxu0 0.0
    %992 = vmatprep.subr.mxu0 0.0
    %993 = vmatpush1.msra.mxu0 0.0
    %994 = vmatprep.subr.mxu0 0.0
    %995 = vmatpush1.msra.mxu0 0.0
    %996 = vmatprep.subr.mxu0 0.0
    %997 = vmatpush1.msra.mxu0 0.0
    %998 = vmatprep.subr.mxu0 0.0
    %999 = vmatpush1.msra.mxu0 0.0
    %1000 = vmatprep.subr.mxu0 0.0
    %1001 = vmatpush1.msra.mxu0 0.0
    %1002 = vmatprep.subr.mxu0 0.0
    %1003 = vmatpush1.msra.mxu0 0.0
    %1004 = vmatprep.subr.mxu0 0.0
    %1005 = vmatpush1.msra.mxu0 0.0
    %1006 = vmatprep.subr.mxu0 0.0
    %1007 = vmatpush1.msra.mxu0 0.0
    %1008 = vmatprep.subr.mxu0 0.0
    %1009 = vmatpush1.msra.mxu0 0.0
    %1010 = vmatprep.subr.mxu0 0.0
    %1011 = vmatpush1.msra.mxu0 0.0
    %1012 = vmatprep.subr.mxu0 0.0
    %1013 = vmatpush1.msra.mxu0 0.0
    %1014 = vmatprep.subr.mxu0 0.0
    %1015 = vmatpush1.msra.mxu0 0.0
    %1016 = vmatprep.subr.mxu0 0.0
    %1017 = vmatpush1.msra.mxu0 0.0
    %1018 = vmatprep.subr.mxu0 0.0
    %1019 = vmatpush1.msra.mxu0 0.0
    %1020 = vmatprep.subr.mxu0 0.0
    %1021 = vmatpush1.msra.mxu0 0.0
    %1022 = vmatprep.subr.mxu0 0.0
    %1023 = vmatpush1.msra.mxu0 0.0
    %1024 = vmatprep.subr.mxu0 0.0
    %1025 = vmatpush1.msra.mxu0 0.0
    %1026 = vmatprep.subr.mxu0 0.0
    %1027 = vmatpush1.msra.mxu0 0.0
    %1028 = vmatprep.subr.mxu0 0.0
    %1029 = vmatpush1.msra.mxu0 0.0
    %1030 = vmatprep.subr.mxu0 0.0
    %1031 = vmatpush1.msra.mxu0 0.0
    %1032 = vmatprep.subr.mxu0 0.0
    %1033 = vmatpush1.msra.mxu0 0.0
    %1034 = vmatprep.subr.mxu0 0.0
    %1035 = vmatpush1.msra.mxu0 0.0
    %1036 = vmatprep.subr.mxu0 0.0
    %1037 = vmatpush1.msra.mxu0 0.0
    %1038 = vmatprep.subr.mxu0 0.0
    %1039 = vmatpush1.msra.mxu0 0.0
    %1040 = vmatprep.mubr.f32.mxu0 0.0
    %1041 = vmatmul.mubr.f32.gmra.mrb[0].mxu0 %v805
    %v1042 = vpop.f32.mrb[0].mxu0
    %v1043 = vadd.f32 %v974, %v1042
    %v1044 = vpop.f32.mrb[0].mxu0
    %1045 = vmatprep.mubr.f32.mxu0 0.0
    %1046 = vmatmul.mubr.f32.gmra.mrb[0].mxu0 %v808
    %v1047 = vpop.f32.mrb[0].mxu0
    %v1048 = vadd.f32 %v974, %v1047
    %v1049 = vpop.f32.mrb[0].mxu0
    %1050 = vdwg.mxu0
    %vm1051 = vcmask 64512
    %v1053 = vsel %vm1051, %v885, 0
    %v1056 = vsel %vm1051, %v961, 0
    %1058 = vmatprep.subr.mxu0 0.0
    %1059 = vmatpush1.xpose.msra.mxu0 %v1056
    %1060 = vmatprep.subr.mxu0 0.0
    %1061 = vmatpush1.xpose.msra.mxu0 0.0
    %1062 = vmatprep.subr.mxu0 0.0
    %1063 = vmatpush1.xpose.msra.mxu0 0.0
    %1064 = vmatprep.subr.mxu0 0.0
    %1065 = vmatpush1.xpose.msra.mxu0 0.0
    %1066 = vmatprep.subr.mxu0 0.0
    %1067 = vmatpush1.xpose.msra.mxu0 0.0
    %1068 = vmatprep.subr.mxu0 0.0
    %1069 = vmatpush1.xpose.msra.mxu0 0.0
    %1070 = vmatprep.subr.mxu0 0.0
    %1071 = vmatpush1.xpose.msra.mxu0 0.0
    %1072 = vmatprep.subr.mxu0 0.0
    %1073 = vmatpush1.xpose.msra.mxu0 0.0
    %1074 = vmatprep.subr.mxu0 0.0
    %1075 = vmatpush1.xpose.msra.mxu0 0.0
    %1076 = vmatprep.subr.mxu0 0.0
    %1077 = vmatpush1.xpose.msra.mxu0 0.0
    %1078 = vmatprep.subr.mxu0 0.0
    %1079 = vmatpush1.xpose.msra.mxu0 0.0
    %1080 = vmatprep.subr.mxu0 0.0
    %1081 = vmatpush1.xpose.msra.mxu0 0.0
    %1082 = vmatprep.subr.mxu0 0.0
    %1083 = vmatpush1.xpose.msra.mxu0 0.0
    %1084 = vmatprep.subr.mxu0 0.0
    %1085 = vmatpush1.xpose.msra.mxu0 0.0
    %1086 = vmatprep.subr.mxu0 0.0
    %1087 = vmatpush1.xpose.msra.mxu0 0.0
    %1088 = vmatprep.subr.mxu0 0.0
    %1089 = vmatpush1.xpose.msra.mxu0 0.0
    %1090 = vmatprep.subr.mxu0 0.0
    %1091 = vmatpush1.xpose.msra.mxu0 0.0
    %1092 = vmatprep.subr.mxu0 0.0
    %1093 = vmatpush1.xpose.msra.mxu0 0.0
    %1094 = vmatprep.subr.mxu0 0.0
    %1095 = vmatpush1.xpose.msra.mxu0 0.0
    %1096 = vmatprep.subr.mxu0 0.0
    %1097 = vmatpush1.xpose.msra.mxu0 0.0
    %1098 = vmatprep.subr.mxu0 0.0
    %1099 = vmatpush1.xpose.msra.mxu0 0.0
    %1100 = vmatprep.subr.mxu0 0.0
    %1101 = vmatpush1.xpose.msra.mxu0 0.0
    %1102 = vmatprep.subr.mxu0 0.0
    %1103 = vmatpush1.xpose.msra.mxu0 0.0
    %1104 = vmatprep.subr.mxu0 0.0
    %1105 = vmatpush1.xpose.msra.mxu0 0.0
    %1106 = vmatprep.subr.mxu0 0.0
    %1107 = vmatpush1.xpose.msra.mxu0 0.0
    %1108 = vmatprep.subr.mxu0 0.0
    %1109 = vmatpush1.xpose.msra.mxu0 0.0
    %1110 = vmatprep.subr.mxu0 0.0
    %1111 = vmatpush1.xpose.msra.mxu0 0.0
    %1112 = vmatprep.subr.mxu0 0.0
    %1113 = vmatpush1.xpose.msra.mxu0 0.0
    %1114 = vmatprep.subr.mxu0 0.0
    %1115 = vmatpush1.xpose.msra.mxu0 0.0
    %1116 = vmatprep.subr.mxu0 0.0
    %1117 = vmatpush1.xpose.msra.mxu0 0.0
    %1118 = vmatprep.subr.mxu0 0.0
    %1119 = vmatpush1.xpose.msra.mxu0 0.0
    %1120 = vmatprep.subr.mxu0 0.0
    %1121 = vmatpush1.xpose.msra.mxu0 0.0
    %1122 = vmatprep.mubr.f32.mxu0 0.0
    %1123 = vmatmul.mubr.f32.gmra.mrb[0].mxu0 %v1053
    %v1124 = vpop.f32.mrb[0].mxu0
    %v1125 = vadd.f32 0.0, %v1124
    %v1126 = vpop.f32.mrb[0].mxu0
    %1127 = vdwg.mxu0
    %v1128 = vsel %vm1051, %v1125, -inf
    %1129 = vmax.xlane.f32.xlu0 %v1128
    %v1130 = vpop.xlane.xlu0 %1129
    %v1131 = vsub.f32 %v1125, %v1130
    %v1132 = vmul.f32 %v1131, 1.442695
    %v1133 = vpow.pop %v1132
    %v1134 = vsel %vm1051, %v1133, 0.0
    %1135 = vadd.xlane.f32.xlu0 %v1134
    %v1136 = vpop.xlane.xlu0 %1135
    %v1137 = vrcp.pop %v1136
    %v1138 = vmul.f32 %v1133, %v1137
    %v1140 = vsel %vm1051, %v1138, 0
    %1142 = vmatprep.subr.mxu0 0.0
    %1143 = vmatpush1.msra.mxu0 %v1043
    %1144 = vmatprep.subr.mxu0 0.0
    %1145 = vmatpush1.msra.mxu0 0.0
    %1146 = vmatprep.subr.mxu0 0.0
    %1147 = vmatpush1.msra.mxu0 0.0
    %1148 = vmatprep.subr.mxu0 0.0
    %1149 = vmatpush1.msra.mxu0 0.0
    %1150 = vmatprep.subr.mxu0 0.0
    %1151 = vmatpush1.msra.mxu0 0.0
    %1152 = vmatprep.subr.mxu0 0.0
    %1153 = vmatpush1.msra.mxu0 0.0
    %1154 = vmatprep.subr.mxu0 0.0
    %1155 = vmatpush1.msra.mxu0 0.0
    %1156 = vmatprep.subr.mxu0 0.0
    %1157 = vmatpush1.msra.mxu0 0.0
    %1158 = vmatprep.subr.mxu0 0.0
    %1159 = vmatpush1.msra.mxu0 0.0
    %1160 = vmatprep.subr.mxu0 0.0
    %1161 = vmatpush1.msra.mxu0 0.0
    %1162 = vmatprep.subr.mxu0 0.0
    %1163 = vmatpush1.msra.mxu0 0.0
    %1164 = vmatprep.subr.mxu0 0.0
    %1165 = vmatpush1.msra.mxu0 0.0
    %1166 = vmatprep.subr.mxu0 0.0
    %1167 = vmatpush1.msra.mxu0 0.0
    %1168 = vmatprep.subr.mxu0 0.0
    %1169 = vmatpush1.msra.mxu0 0.0
    %1170 = vmatprep.subr.mxu0 0.0
    %1171 = vmatpush1.msra.mxu0 0.0
    %1172 = vmatprep.subr.mxu0 0.0
    %1173 = vmatpush1.msra.mxu0 0.0
    %1174 = vmatprep.subr.mxu0 0.0
    %1175 = vmatpush1.msra.mxu0 0.0
    %1176 = vmatprep.subr.mxu0 0.0
    %1177 = vmatpush1.msra.mxu0 0.0
    %1178 = vmatprep.subr.mxu0 0.0
    %1179 = vmatpush1.msra.mxu0 0.0
    %1180 = vmatprep.subr.mxu0 0.0
    %1181 = vmatpush1.msra.mxu0 0.0
    %1182 = vmatprep.subr.mxu0 0.0
    %1183 = vmatpush1.msra.mxu0 0.0
    %1184 = vmatprep.subr.mxu0 0.0
    %1185 = vmatpush1.msra.mxu0 0.0
    %1186 = vmatprep.subr.mxu0 0.0
    %1187 = vmatpush1.msra.mxu0 0.0
    %1188 = vmatprep.subr.mxu0 0.0
    %1189 = vmatpush1.msra.mxu0 0.0
    %1190 = vmatprep.subr.mxu0 0.0
    %1191 = vmatpush1.msra.mxu0 0.0
    %1192 = vmatprep.subr.mxu0 0.0
    %1193 = vmatpush1.msra.mxu0 0.0
    %1194 = vmatprep.subr.mxu0 0.0
    %1195 = vmatpush1.msra.mxu0 0.0
    %1196 = vmatprep.subr.mxu0 0.0
    %1197 = vmatpush1.msra.mxu0 0.0
    %1198 = vmatprep.subr.mxu0 0.0
    %1199 = vmatpush1.msra.mxu0 0.0
    %1200 = vmatprep.subr.mxu0 0.0
    %1201 = vmatpush1.msra.mxu0 0.0
    %1202 = vmatprep.subr.mxu0 0.0
    %1203 = vmatpush1.msra.mxu0 0.0
    %1204 = vmatprep.subr.mxu0 0.0
    %1205 = vmatpush1.msra.mxu0 0.0
    %1206 = vmatprep.mubr.f32.mxu0 0.0
    %1207 = vmatmul.mubr.f32.gmra.mrb[0].mxu0 %v1140
    %v1208 = vpop.f32.mrb[0].mxu0
    %v1209 = vadd.f32 0.0, %v1208
    %v1210 = vpop.f32.mrb[0].mxu0
    %1211 = vdwg.mxu0
    %1212 = vrot.lane.b32.xlu0 %v885, 120
    %v1213 = vpop.permute.xlu0 %1212
    %1214 = vrot.lane.b32.xlu0 %v961, 120
    %v1215 = vpop.permute.xlu0 %1214
    %v1216 = vsel %vm1051, %v1213, 0
    %v1218 = vsel %vm1051, %v1215, 0
    %1220 = vmatprep.subr.mxu0 0.0
    %1221 = vmatpush1.xpose.msra.mxu0 %v1218
    %1222 = vmatprep.subr.mxu0 0.0
    %1223 = vmatpush1.xpose.msra.mxu0 0.0
    %1224 = vmatprep.subr.mxu0 0.0
    %1225 = vmatpush1.xpose.msra.mxu0 0.0
    %1226 = vmatprep.subr.mxu0 0.0
    %1227 = vmatpush1.xpose.msra.mxu0 0.0
    %1228 = vmatprep.subr.mxu0 0.0
    %1229 = vmatpush1.xpose.msra.mxu0 0.0
    %1230 = vmatprep.subr.mxu0 0.0
    %1231 = vmatpush1.xpose.msra.mxu0 0.0
    %1232 = vmatprep.subr.mxu0 0.0
    %1233 = vmatpush1.xpose.msra.mxu0 0.0
    %1234 = vmatprep.subr.mxu0 0.0
    %1235 = vmatpush1.xpose.msra.mxu0 0.0
    %1236 = vmatprep.subr.mxu0 0.0
    %1237 = vmatpush1.xpose.msra.mxu0 0.0
    %1238 = vmatprep.subr.mxu0 0.0
    %1239 = vmatpush1.xpose.msra.mxu0 0.0
    %1240 = vmatprep.subr.mxu0 0.0
    %1241 = vmatpush1.xpose.msra.mxu0 0.0
    %1242 = vmatprep.subr.mxu0 0.0
    %1243 = vmatpush1.xpose.msra.mxu0 0.0
    %1244 = vmatprep.subr.mxu0 0.0
    %1245 = vmatpush1.xpose.msra.mxu0 0.0
    %1246 = vmatprep.subr.mxu0 0.0
    %1247 = vmatpush1.xpose.msra.mxu0 0.0
    %1248 = vmatprep.subr.mxu0 0.0
    %1249 = vmatpush1.xpose.msra.mxu0 0.0
    %1250 = vmatprep.subr.mxu0 0.0
    %1251 = vmatpush1.xpose.msra.mxu0 0.0
    %1252 = vmatprep.subr.mxu0 0.0
    %1253 = vmatpush1.xpose.msra.mxu0 0.0
    %1254 = vmatprep.subr.mxu0 0.0
    %1255 = vmatpush1.xpose.msra.mxu0 0.0
    %1256 = vmatprep.subr.mxu0 0.0
    %1257 = vmatpush1.xpose.msra.mxu0 0.0
    %1258 = vmatprep.subr.mxu0 0.0
    %1259 = vmatpush1.xpose.msra.mxu0 0.0
    %1260 = vmatprep.subr.mxu0 0.0
    %1261 = vmatpush1.xpose.msra.mxu0 0.0
    %1262 = vmatprep.subr.mxu0 0.0
    %1263 = vmatpush1.xpose.msra.mxu0 0.0
    %1264 = vmatprep.subr.mxu0 0.0
    %1265 = vmatpush1.xpose.msra.mxu0 0.0
    %1266 = vmatprep.subr.mxu0 0.0
    %1267 = vmatpush1.xpose.msra.mxu0 0.0
    %1268 = vmatprep.subr.mxu0 0.0
    %1269 = vmatpush1.xpose.msra.mxu0 0.0
    %1270 = vmatprep.subr.mxu0 0.0
    %1271 = vmatpush1.xpose.msra.mxu0 0.0
    %1272 = vmatprep.subr.mxu0 0.0
    %1273 = vmatpush1.xpose.msra.mxu0 0.0
    %1274 = vmatprep.subr.mxu0 0.0
    %1275 = vmatpush1.xpose.msra.mxu0 0.0
    %1276 = vmatprep.subr.mxu0 0.0
    %1277 = vmatpush1.xpose.msra.mxu0 0.0
    %1278 = vmatprep.subr.mxu0 0.0
    %1279 = vmatpush1.xpose.msra.mxu0 0.0
    %1280 = vmatprep.subr.mxu0 0.0
    %1281 = vmatpush1.xpose.msra.mxu0 0.0
    %1282 = vmatprep.subr.mxu0 0.0
    %1283 = vmatpush1.xpose.msra.mxu0 0.0
    %1284 = vmatprep.mubr.f32.mxu0 0.0
    %1285 = vmatmul.mubr.f32.gmra.mrb[0].mxu0 %v1216
    %v1286 = vpop.f32.mrb[0].mxu0
    %v1287 = vadd.f32 0.0, %v1286
    %v1288 = vpop.f32.mrb[0].mxu0
    %1289 = vdwg.mxu0
    %v1290 = vsel %vm1051, %v1287, -inf
    %1291 = vmax.xlane.f32.xlu0 %v1290
    %v1292 = vpop.xlane.xlu0 %1291
    %v1293 = vsub.f32 %v1287, %v1292
    %v1294 = vmul.f32 %v1293, 1.442695
    %v1295 = vpow.pop %v1294
    %v1296 = vsel %vm1051, %v1295, 0.0
    %1297 = vadd.xlane.f32.xlu0 %v1296
    %v1298 = vpop.xlane.xlu0 %1297
    %v1299 = vrcp.pop %v1298
    %v1300 = vmul.f32 %v1295, %v1299
    %1302 = vrot.lane.b32.xlu0 %v1043, 120
    %v1303 = vpop.permute.xlu0 %1302
    %v1306 = vsel %vm1051, %v1300, 0
    %1308 = vmatprep.subr.mxu0 0.0
    %1309 = vmatpush1.msra.mxu0 %v1303
    %1310 = vmatprep.subr.mxu0 0.0
    %1311 = vmatpush1.msra.mxu0 0.0
    %1312 = vmatprep.subr.mxu0 0.0
    %1313 = vmatpush1.msra.mxu0 0.0
    %1314 = vmatprep.subr.mxu0 0.0
    %1315 = vmatpush1.msra.mxu0 0.0
    %1316 = vmatprep.subr.mxu0 0.0
    %1317 = vmatpush1.msra.mxu0 0.0
    %1318 = vmatprep.subr.mxu0 0.0
    %1319 = vmatpush1.msra.mxu0 0.0
    %1320 = vmatprep.subr.mxu0 0.0
    %1321 = vmatpush1.msra.mxu0 0.0
    %1322 = vmatprep.subr.mxu0 0.0
    %1323 = vmatpush1.msra.mxu0 0.0
    %1324 = vmatprep.subr.mxu0 0.0
    %1325 = vmatpush1.msra.mxu0 0.0
    %1326 = vmatprep.subr.mxu0 0.0
    %1327 = vmatpush1.msra.mxu0 0.0
    %1328 = vmatprep.subr.mxu0 0.0
    %1329 = vmatpush1.msra.mxu0 0.0
    %1330 = vmatprep.subr.mxu0 0.0
    %1331 = vmatpush1.msra.mxu0 0.0
    %1332 = vmatprep.subr.mxu0 0.0
    %1333 = vmatpush1.msra.mxu0 0.0
    %1334 = vmatprep.subr.mxu0 0.0
    %1335 = vmatpush1.msra.mxu0 0.0
    %1336 = vmatprep.subr.mxu0 0.0
    %1337 = vmatpush1.msra.mxu0 0.0
    %1338 = vmatprep.subr.mxu0 0.0
    %1339 = vmatpush1.msra.mxu0 0.0
    %1340 = vmatprep.subr.mxu0 0.0
    %1341 = vmatpush1.msra.mxu0 0.0
    %1342 = vmatprep.subr.mxu0 0.0
    %1343 = vmatpush1.msra.mxu0 0.0
    %1344 = vmatprep.subr.mxu0 0.0
    %1345 = vmatpush1.msra.mxu0 0.0
    %1346 = vmatprep.subr.mxu0 0.0
    %1347 = vmatpush1.msra.mxu0 0.0
    %1348 = vmatprep.subr.mxu0 0.0
    %1349 = vmatpush1.msra.mxu0 0.0
    %1350 = vmatprep.subr.mxu0 0.0
    %1351 = vmatpush1.msra.mxu0 0.0
    %1352 = vmatprep.subr.mxu0 0.0
    %1353 = vmatpush1.msra.mxu0 0.0
    %1354 = vmatprep.subr.mxu0 0.0
    %1355 = vmatpush1.msra.mxu0 0.0
    %1356 = vmatprep.subr.mxu0 0.0
    %1357 = vmatpush1.msra.mxu0 0.0
    %1358 = vmatprep.subr.mxu0 0.0
    %1359 = vmatpush1.msra.mxu0 0.0
    %1360 = vmatprep.subr.mxu0 0.0
    %1361 = vmatpush1.msra.mxu0 0.0
    %1362 = vmatprep.subr.mxu0 0.0
    %1363 = vmatpush1.msra.mxu0 0.0
    %1364 = vmatprep.subr.mxu0 0.0
    %1365 = vmatpush1.msra.mxu0 0.0
    %1366 = vmatprep.subr.mxu0 0.0
    %1367 = vmatpush1.msra.mxu0 0.0
    %1368 = vmatprep.subr.mxu0 0.0
    %1369 = vmatpush1.msra.mxu0 0.0
    %1370 = vmatprep.subr.mxu0 0.0
    %1371 = vmatpush1.msra.mxu0 0.0
    %1372 = vmatprep.mubr.f32.mxu0 0.0
    %1373 = vmatmul.mubr.f32.gmra.mrb[0].mxu0 %v1306
    %v1374 = vpop.f32.mrb[0].mxu0
    %v1375 = vadd.f32 0.0, %v1374
    %v1376 = vpop.f32.mrb[0].mxu0
    %1377 = vdwg.mxu0
    %v1379 = vsel %vm1051, %v1375, 0
    %1381 = vmatprep.subr.mxu0 0.0
    %1382 = vmatpush1.msra.mxu0 %v793
    %1383 = vmatprep.subr.mxu0 0.0
    %1384 = vmatpush1.msra.mxu0 0.0
    %1385 = vmatprep.subr.mxu0 0.0
    %1386 = vmatpush1.msra.mxu0 0.0
    %1387 = vmatprep.subr.mxu0 0.0
    %1388 = vmatpush1.msra.mxu0 0.0
    %1389 = vmatprep.subr.mxu0 0.0
    %1390 = vmatpush1.msra.mxu0 0.0
    %1391 = vmatprep.subr.mxu0 0.0
    %1392 = vmatpush1.msra.mxu0 0.0
    %1393 = vmatprep.subr.mxu0 0.0
    %1394 = vmatpush1.msra.mxu0 0.0
    %1395 = vmatprep.subr.mxu0 0.0
    %1396 = vmatpush1.msra.mxu0 0.0
    %1397 = vmatprep.subr.mxu0 0.0
    %1398 = vmatpush1.msra.mxu0 0.0
    %1399 = vmatprep.subr.mxu0 0.0
    %1400 = vmatpush1.msra.mxu0 0.0
    %1401 = vmatprep.subr.mxu0 0.0
    %1402 = vmatpush1.msra.mxu0 0.0
    %1403 = vmatprep.subr.mxu0 0.0
    %1404 = vmatpush1.msra.mxu0 0.0
    %1405 = vmatprep.subr.mxu0 0.0
    %1406 = vmatpush1.msra.mxu0 0.0
    %1407 = vmatprep.subr.mxu0 0.0
    %1408 = vmatpush1.msra.mxu0 0.0
    %1409 = vmatprep.subr.mxu0 0.0
    %1410 = vmatpush1.msra.mxu0 0.0
    %1411 = vmatprep.subr.mxu0 0.0
    %1412 = vmatpush1.msra.mxu0 0.0
    %1413 = vmatprep.subr.mxu0 0.0
    %1414 = vmatpush1.msra.mxu0 0.0
    %1415 = vmatprep.subr.mxu0 0.0
    %1416 = vmatpush1.msra.mxu0 0.0
    %1417 = vmatprep.subr.mxu0 0.0
    %1418 = vmatpush1.msra.mxu0 0.0
    %1419 = vmatprep.subr.mxu0 0.0
    %1420 = vmatpush1.msra.mxu0 0.0
    %1421 = vmatprep.subr.mxu0 0.0
    %1422 = vmatpush1.msra.mxu0 0.0
    %1423 = vmatprep.subr.mxu0 0.0
    %1424 = vmatpush1.msra.mxu0 0.0
    %1425 = vmatprep.subr.mxu0 0.0
    %1426 = vmatpush1.msra.mxu0 0.0
    %1427 = vmatprep.subr.mxu0 0.0
    %1428 = vmatpush1.msra.mxu0 0.0
    %1429 = vmatprep.subr.mxu0 0.0
    %1430 = vmatpush1.msra.mxu0 0.0
    %1431 = vmatprep.subr.mxu0 0.0
    %1432 = vmatpush1.msra.mxu0 0.0
    %1433 = vmatprep.subr.mxu0 0.0
    %1434 = vmatpush1.msra.mxu0 0.0
    %1435 = vmatprep.subr.mxu0 0.0
    %1436 = vmatpush1.msra.mxu0 0.0
    %1437 = vmatprep.subr.mxu0 0.0
    %1438 = vmatpush1.msra.mxu0 0.0
    %1439 = vmatprep.subr.mxu0 0.0
    %1440 = vmatpush1.msra.mxu0 0.0
    %1441 = vmatprep.subr.mxu0 0.0
    %1442 = vmatpush1.msra.mxu0 0.0
    %1443 = vmatprep.subr.mxu0 0.0
    %1444 = vmatpush1.msra.mxu0 0.0
    %1445 = vmatprep.mubr.f32.mxu0 0.0
    %1446 = vmatmul.mubr.f32.gmra.mrb[0].mxu0 %v1379
    %v1447 = vpop.f32.mrb[0].mxu0
    %v1448 = vadd.f32 0.0, %v1447
    %v1449 = vpop.f32.mrb[0].mxu0
    %1450 = vdwg.mxu0
    %v1452 = vsel %vm1051, %v1209, 0
    %1454 = vmatprep.subr.mxu0 0.0
    %1455 = vmatpush1.msra.mxu0 %v792
    %1456 = vmatprep.subr.mxu0 0.0
    %1457 = vmatpush1.msra.mxu0 0.0
    %1458 = vmatprep.subr.mxu0 0.0
    %1459 = vmatpush1.msra.mxu0 0.0
    %1460 = vmatprep.subr.mxu0 0.0
    %1461 = vmatpush1.msra.mxu0 0.0
    %1462 = vmatprep.subr.mxu0 0.0
    %1463 = vmatpush1.msra.mxu0 0.0
    %1464 = vmatprep.subr.mxu0 0.0
    %1465 = vmatpush1.msra.mxu0 0.0
    %1466 = vmatprep.subr.mxu0 0.0
    %1467 = vmatpush1.msra.mxu0 0.0
    %1468 = vmatprep.subr.mxu0 0.0
    %1469 = vmatpush1.msra.mxu0 0.0
    %1470 = vmatprep.subr.mxu0 0.0
    %1471 = vmatpush1.msra.mxu0 0.0
    %1472 = vmatprep.subr.mxu0 0.0
    %1473 = vmatpush1.msra.mxu0 0.0
    %1474 = vmatprep.subr.mxu0 0.0
    %1475 = vmatpush1.msra.mxu0 0.0
    %1476 = vmatprep.subr.mxu0 0.0
    %1477 = vmatpush1.msra.mxu0 0.0
    %1478 = vmatprep.subr.mxu0 0.0
    %1479 = vmatpush1.msra.mxu0 0.0
    %1480 = vmatprep.subr.mxu0 0.0
    %1481 = vmatpush1.msra.mxu0 0.0
    %1482 = vmatprep.subr.mxu0 0.0
    %1483 = vmatpush1.msra.mxu0 0.0
    %1484 = vmatprep.subr.mxu0 0.0
    %1485 = vmatpush1.msra.mxu0 0.0
    %1486 = vmatprep.subr.mxu0 0.0
    %1487 = vmatpush1.msra.mxu0 0.0
    %1488 = vmatprep.subr.mxu0 0.0
    %1489 = vmatpush1.msra.mxu0 0.0
    %1490 = vmatprep.subr.mxu0 0.0
    %1491 = vmatpush1.msra.mxu0 0.0
    %1492 = vmatprep.subr.mxu0 0.0
    %1493 = vmatpush1.msra.mxu0 0.0
    %1494 = vmatprep.subr.mxu0 0.0
    %1495 = vmatpush1.msra.mxu0 0.0
    %1496 = vmatprep.subr.mxu0 0.0
    %1497 = vmatpush1.msra.mxu0 0.0
    %1498 = vmatprep.subr.mxu0 0.0
    %1499 = vmatpush1.msra.mxu0 0.0
    %1500 = vmatprep.subr.mxu0 0.0
    %1501 = vmatpush1.msra.mxu0 0.0
    %1502 = vmatprep.subr.mxu0 0.0
    %1503 = vmatpush1.msra.mxu0 0.0
    %1504 = vmatprep.subr.mxu0 0.0
    %1505 = vmatpush1.msra.mxu0 0.0
    %1506 = vmatprep.subr.mxu0 0.0
    %1507 = vmatpush1.msra.mxu0 0.0
    %1508 = vmatprep.subr.mxu0 0.0
    %1509 = vmatpush1.msra.mxu0 0.0
    %1510 = vmatprep.subr.mxu0 0.0
    %1511 = vmatpush1.msra.mxu0 0.0
    %1512 = vmatprep.subr.mxu0 0.0
    %1513 = vmatpush1.msra.mxu0 0.0
    %1514 = vmatprep.subr.mxu0 0.0
    %1515 = vmatpush1.msra.mxu0 0.0
    %1516 = vmatprep.subr.mxu0 0.0
    %1517 = vmatpush1.msra.mxu0 0.0
    %1518 = vmatprep.mubr.f32.mxu0 0.0
    %1519 = vmatmul.mubr.f32.gmra.mrb[0].mxu0 %v1452
    %v1520 = vpop.f32.mrb[0].mxu0
    %v1521 = vadd.f32 %v1448, %v1520
    %v1522 = vpop.f32.mrb[0].mxu0
    %1523 = vdwg.mxu0
    %1524 = vrot.lane.b32.xlu0 %v885, 112
    %v1525 = vpop.permute.xlu0 %1524
    %1526 = vrot.lane.b32.xlu0 %v961, 112
    %v1527 = vpop.permute.xlu0 %1526
    %v1528 = vsel %vm1051, %v1525, 0
    %v1530 = vsel %vm1051, %v1527, 0
    %1532 = vmatprep.subr.mxu0 0.0
    %1533 = vmatpush1.xpose.msra.mxu0 %v1530
    %1534 = vmatprep.subr.mxu0 0.0
    %1535 = vmatpush1.xpose.msra.mxu0 0.0
    %1536 = vmatprep.subr.mxu0 0.0
    %1537 = vmatpush1.xpose.msra.mxu0 0.0
    %1538 = vmatprep.subr.mxu0 0.0
    %1539 = vmatpush1.xpose.msra.mxu0 0.0
    %1540 = vmatprep.subr.mxu0 0.0
    %1541 = vmatpush1.xpose.msra.mxu0 0.0
    %1542 = vmatprep.subr.mxu0 0.0
    %1543 = vmatpush1.xpose.msra.mxu0 0.0
    %1544 = vmatprep.subr.mxu0 0.0
    %1545 = vmatpush1.xpose.msra.mxu0 0.0
    %1546 = vmatprep.subr.mxu0 0.0
    %1547 = vmatpush1.xpose.msra.mxu0 0.0
    %1548 = vmatprep.subr.mxu0 0.0
    %1549 = vmatpush1.xpose.msra.mxu0 0.0
    %1550 = vmatprep.subr.mxu0 0.0
    %1551 = vmatpush1.xpose.msra.mxu0 0.0
    %1552 = vmatprep.subr.mxu0 0.0
    %1553 = vmatpush1.xpose.msra.mxu0 0.0
    %1554 = vmatprep.subr.mxu0 0.0
    %1555 = vmatpush1.xpose.msra.mxu0 0.0
    %1556 = vmatprep.subr.mxu0 0.0
    %1557 = vmatpush1.xpose.msra.mxu0 0.0
    %1558 = vmatprep.subr.mxu0 0.0
    %1559 = vmatpush1.xpose.msra.mxu0 0.0
    %1560 = vmatprep.subr.mxu0 0.0
    %1561 = vmatpush1.xpose.msra.mxu0 0.0
    %1562 = vmatprep.subr.mxu0 0.0
    %1563 = vmatpush1.xpose.msra.mxu0 0.0
    %1564 = vmatprep.subr.mxu0 0.0
    %1565 = vmatpush1.xpose.msra.mxu0 0.0
    %1566 = vmatprep.subr.mxu0 0.0
    %1567 = vmatpush1.xpose.msra.mxu0 0.0
    %1568 = vmatprep.subr.mxu0 0.0
    %1569 = vmatpush1.xpose.msra.mxu0 0.0
    %1570 = vmatprep.subr.mxu0 0.0
    %1571 = vmatpush1.xpose.msra.mxu0 0.0
    %1572 = vmatprep.subr.mxu0 0.0
    %1573 = vmatpush1.xpose.msra.mxu0 0.0
    %1574 = vmatprep.subr.mxu0 0.0
    %1575 = vmatpush1.xpose.msra.mxu0 0.0
    %1576 = vmatprep.subr.mxu0 0.0
    %1577 = vmatpush1.xpose.msra.mxu0 0.0
    %1578 = vmatprep.subr.mxu0 0.0
    %1579 = vmatpush1.xpose.msra.mxu0 0.0
    %1580 = vmatprep.subr.mxu0 0.0
    %1581 = vmatpush1.xpose.msra.mxu0 0.0
    %1582 = vmatprep.subr.mxu0 0.0
    %1583 = vmatpush1.xpose.msra.mxu0 0.0
    %1584 = vmatprep.subr.mxu0 0.0
    %1585 = vmatpush1.xpose.msra.mxu0 0.0
    %1586 = vmatprep.subr.mxu0 0.0
    %1587 = vmatpush1.xpose.msra.mxu0 0.0
    %1588 = vmatprep.subr.mxu0 0.0
    %1589 = vmatpush1.xpose.msra.mxu0 0.0
    %1590 = vmatprep.subr.mxu0 0.0
    %1591 = vmatpush1.xpose.msra.mxu0 0.0
    %1592 = vmatprep.subr.mxu0 0.0
    %1593 = vmatpush1.xpose.msra.mxu0 0.0
    %1594 = vmatprep.subr.mxu0 0.0
    %1595 = vmatpush1.xpose.msra.mxu0 0.0
    %1596 = vmatprep.mubr.f32.mxu0 0.0
    %1597 = vmatmul.mubr.f32.gmra.mrb[0].mxu0 %v1528
    %v1598 = vpop.f32.mrb[0].mxu0
    %v1599 = vadd.f32 0.0, %v1598
    %v1600 = vpop.f32.mrb[0].mxu0
    %1601 = vdwg.mxu0
    %v1602 = vsel %vm1051, %v1599, -inf
    %1603 = vmax.xlane.f32.xlu0 %v1602
    %v1604 = vpop.xlane.xlu0 %1603
    %v1605 = vsub.f32 %v1599, %v1604
    %v1606 = vmul.f32 %v1605, 1.442695
    %v1607 = vpow.pop %v1606
    %v1608 = vsel %vm1051, %v1607, 0.0
    %1609 = vadd.xlane.f32.xlu0 %v1608
    %v1610 = vpop.xlane.xlu0 %1609
    %v1611 = vrcp.pop %v1610
    %v1612 = vmul.f32 %v1607, %v1611
    %1613 = vrot.lane.b32.xlu0 %v1043, 112
    %v1614 = vpop.permute.xlu0 %1613
    %v1617 = vsel %vm1051, %v1612, 0
    %1619 = vmatprep.subr.mxu0 0.0
    %1620 = vmatpush1.msra.mxu0 %v1614
    %1621 = vmatprep.subr.mxu0 0.0
    %1622 = vmatpush1.msra.mxu0 0.0
    %1623 = vmatprep.subr.mxu0 0.0
    %1624 = vmatpush1.msra.mxu0 0.0
    %1625 = vmatprep.subr.mxu0 0.0
    %1626 = vmatpush1.msra.mxu0 0.0
    %1627 = vmatprep.subr.mxu0 0.0
    %1628 = vmatpush1.msra.mxu0 0.0
    %1629 = vmatprep.subr.mxu0 0.0
    %1630 = vmatpush1.msra.mxu0 0.0
    %1631 = vmatprep.subr.mxu0 0.0
    %1632 = vmatpush1.msra.mxu0 0.0
    %1633 = vmatprep.subr.mxu0 0.0
    %1634 = vmatpush1.msra.mxu0 0.0
    %1635 = vmatprep.subr.mxu0 0.0
    %1636 = vmatpush1.msra.mxu0 0.0
    %1637 = vmatprep.subr.mxu0 0.0
    %1638 = vmatpush1.msra.mxu0 0.0
    %1639 = vmatprep.subr.mxu0 0.0
    %1640 = vmatpush1.msra.mxu0 0.0
    %1641 = vmatprep.subr.mxu0 0.0
    %1642 = vmatpush1.msra.mxu0 0.0
    %1643 = vmatprep.subr.mxu0 0.0
    %1644 = vmatpush1.msra.mxu0 0.0
    %1645 = vmatprep.subr.mxu0 0.0
    %1646 = vmatpush1.msra.mxu0 0.0
    %1647 = vmatprep.subr.mxu0 0.0
    %1648 = vmatpush1.msra.mxu0 0.0
    %1649 = vmatprep.subr.mxu0 0.0
    %1650 = vmatpush1.msra.mxu0 0.0
    %1651 = vmatprep.subr.mxu0 0.0
    %1652 = vmatpush1.msra.mxu0 0.0
    %1653 = vmatprep.subr.mxu0 0.0
    %1654 = vmatpush1.msra.mxu0 0.0
    %1655 = vmatprep.subr.mxu0 0.0
    %1656 = vmatpush1.msra.mxu0 0.0
    %1657 = vmatprep.subr.mxu0 0.0
    %1658 = vmatpush1.msra.mxu0 0.0
    %1659 = vmatprep.subr.mxu0 0.0
    %1660 = vmatpush1.msra.mxu0 0.0
    %1661 = vmatprep.subr.mxu0 0.0
    %1662 = vmatpush1.msra.mxu0 0.0
    %1663 = vmatprep.subr.mxu0 0.0
    %1664 = vmatpush1.msra.mxu0 0.0
    %1665 = vmatprep.subr.mxu0 0.0
    %1666 = vmatpush1.msra.mxu0 0.0
    %1667 = vmatprep.subr.mxu0 0.0
    %1668 = vmatpush1.msra.mxu0 0.0
    %1669 = vmatprep.subr.mxu0 0.0
    %1670 = vmatpush1.msra.mxu0 0.0
    %1671 = vmatprep.subr.mxu0 0.0
    %1672 = vmatpush1.msra.mxu0 0.0
    %1673 = vmatprep.subr.mxu0 0.0
    %1674 = vmatpush1.msra.mxu0 0.0
    %1675 = vmatprep.subr.mxu0 0.0
    %1676 = vmatpush1.msra.mxu0 0.0
    %1677 = vmatprep.subr.mxu0 0.0
    %1678 = vmatpush1.msra.mxu0 0.0
    %1679 = vmatprep.subr.mxu0 0.0
    %1680 = vmatpush1.msra.mxu0 0.0
    %1681 = vmatprep.subr.mxu0 0.0
    %1682 = vmatpush1.msra.mxu0 0.0
    %1683 = vmatprep.mubr.f32.mxu0 0.0
    %1684 = vmatmul.mubr.f32.gmra.mrb[0].mxu0 %v1617
    %v1685 = vpop.f32.mrb[0].mxu0
    %v1686 = vadd.f32 0.0, %v1685
    %v1687 = vpop.f32.mrb[0].mxu0
    %1688 = vdwg.mxu0
    %v1690 = vsel %vm1051, %v1686, 0
    %1692 = vmatprep.subr.mxu0 0.0
    %1693 = vmatpush1.msra.mxu0 %v794
    %1694 = vmatprep.subr.mxu0 0.0
    %1695 = vmatpush1.msra.mxu0 0.0
    %1696 = vmatprep.subr.mxu0 0.0
    %1697 = vmatpush1.msra.mxu0 0.0
    %1698 = vmatprep.subr.mxu0 0.0
    %1699 = vmatpush1.msra.mxu0 0.0
    %1700 = vmatprep.subr.mxu0 0.0
    %1701 = vmatpush1.msra.mxu0 0.0
    %1702 = vmatprep.subr.mxu0 0.0
    %1703 = vmatpush1.msra.mxu0 0.0
    %1704 = vmatprep.subr.mxu0 0.0
    %1705 = vmatpush1.msra.mxu0 0.0
    %1706 = vmatprep.subr.mxu0 0.0
    %1707 = vmatpush1.msra.mxu0 0.0
    %1708 = vmatprep.subr.mxu0 0.0
    %1709 = vmatpush1.msra.mxu0 0.0
    %1710 = vmatprep.subr.mxu0 0.0
    %1711 = vmatpush1.msra.mxu0 0.0
    %1712 = vmatprep.subr.mxu0 0.0
    %1713 = vmatpush1.msra.mxu0 0.0
    %1714 = vmatprep.subr.mxu0 0.0
    %1715 = vmatpush1.msra.mxu0 0.0
    %1716 = vmatprep.subr.mxu0 0.0
    %1717 = vmatpush1.msra.mxu0 0.0
    %1718 = vmatprep.subr.mxu0 0.0
    %1719 = vmatpush1.msra.mxu0 0.0
    %1720 = vmatprep.subr.mxu0 0.0
    %1721 = vmatpush1.msra.mxu0 0.0
    %1722 = vmatprep.subr.mxu0 0.0
    %1723 = vmatpush1.msra.mxu0 0.0
    %1724 = vmatprep.subr.mxu0 0.0
    %1725 = vmatpush1.msra.mxu0 0.0
    %1726 = vmatprep.subr.mxu0 0.0
    %1727 = vmatpush1.msra.mxu0 0.0
    %1728 = vmatprep.subr.mxu0 0.0
    %1729 = vmatpush1.msra.mxu0 0.0
    %1730 = vmatprep.subr.mxu0 0.0
    %1731 = vmatpush1.msra.mxu0 0.0
    %1732 = vmatprep.subr.mxu0 0.0
    %1733 = vmatpush1.msra.mxu0 0.0
    %1734 = vmatprep.subr.mxu0 0.0
    %1735 = vmatpush1.msra.mxu0 0.0
    %1736 = vmatprep.subr.mxu0 0.0
    %1737 = vmatpush1.msra.mxu0 0.0
    %1738 = vmatprep.subr.mxu0 0.0
    %1739 = vmatpush1.msra.mxu0 0.0
    %1740 = vmatprep.subr.mxu0 0.0
    %1741 = vmatpush1.msra.mxu0 0.0
    %1742 = vmatprep.subr.mxu0 0.0
    %1743 = vmatpush1.msra.mxu0 0.0
    %1744 = vmatprep.subr.mxu0 0.0
    %1745 = vmatpush1.msra.mxu0 0.0
    %1746 = vmatprep.subr.mxu0 0.0
    %1747 = vmatpush1.msra.mxu0 0.0
    %1748 = vmatprep.subr.mxu0 0.0
    %1749 = vmatpush1.msra.mxu0 0.0
    %1750 = vmatprep.subr.mxu0 0.0
    %1751 = vmatpush1.msra.mxu0 0.0
    %1752 = vmatprep.subr.mxu0 0.0
    %1753 = vmatpush1.msra.mxu0 0.0
    %1754 = vmatprep.subr.mxu0 0.0
    %1755 = vmatpush1.msra.mxu0 0.0
    %1756 = vmatprep.mubr.f32.mxu0 0.0
    %1757 = vmatmul.mubr.f32.gmra.mrb[0].mxu0 %v1690
    %v1758 = vpop.f32.mrb[0].mxu0
    %v1759 = vadd.f32 0.0, %v1758
    %v1760 = vpop.f32.mrb[0].mxu0
    %1761 = vdwg.mxu0
    %v1762 = vadd.f32 %v1521, %v1759
    %1763 = vrot.lane.b32.xlu0 %v885, 104
    %v1764 = vpop.permute.xlu0 %1763
    %1765 = vrot.lane.b32.xlu0 %v961, 104
    %v1766 = vpop.permute.xlu0 %1765
    %v1767 = vsel %vm1051, %v1764, 0
    %v1769 = vsel %vm1051, %v1766, 0
    %1771 = vmatprep.subr.mxu0 0.0
    %1772 = vmatpush1.xpose.msra.mxu0 %v1769
    %1773 = vmatprep.subr.mxu0 0.0
    %1774 = vmatpush1.xpose.msra.mxu0 0.0
    %1775 = vmatprep.subr.mxu0 0.0
    %1776 = vmatpush1.xpose.msra.mxu0 0.0
    %1777 = vmatprep.subr.mxu0 0.0
    %1778 = vmatpush1.xpose.msra.mxu0 0.0
    %1779 = vmatprep.subr.mxu0 0.0
    %1780 = vmatpush1.xpose.msra.mxu0 0.0
    %1781 = vmatprep.subr.mxu0 0.0
    %1782 = vmatpush1.xpose.msra.mxu0 0.0
    %1783 = vmatprep.subr.mxu0 0.0
    %1784 = vmatpush1.xpose.msra.mxu0 0.0
    %1785 = vmatprep.subr.mxu0 0.0
    %1786 = vmatpush1.xpose.msra.mxu0 0.0
    %1787 = vmatprep.subr.mxu0 0.0
    %1788 = vmatpush1.xpose.msra.mxu0 0.0
    %1789 = vmatprep.subr.mxu0 0.0
    %1790 = vmatpush1.xpose.msra.mxu0 0.0
    %1791 = vmatprep.subr.mxu0 0.0
    %1792 = vmatpush1.xpose.msra.mxu0 0.0
    %1793 = vmatprep.subr.mxu0 0.0
    %1794 = vmatpush1.xpose.msra.mxu0 0.0
    %1795 = vmatprep.subr.mxu0 0.0
    %1796 = vmatpush1.xpose.msra.mxu0 0.0
    %1797 = vmatprep.subr.mxu0 0.0
    %1798 = vmatpush1.xpose.msra.mxu0 0.0
    %1799 = vmatprep.subr.mxu0 0.0
    %1800 = vmatpush1.xpose.msra.mxu0 0.0
    %1801 = vmatprep.subr.mxu0 0.0
    %1802 = vmatpush1.xpose.msra.mxu0 0.0
    %1803 = vmatprep.subr.mxu0 0.0
    %1804 = vmatpush1.xpose.msra.mxu0 0.0
    %1805 = vmatprep.subr.mxu0 0.0
    %1806 = vmatpush1.xpose.msra.mxu0 0.0
    %1807 = vmatprep.subr.mxu0 0.0
    %1808 = vmatpush1.xpose.msra.mxu0 0.0
    %1809 = vmatprep.subr.mxu0 0.0
    %1810 = vmatpush1.xpose.msra.mxu0 0.0
    %1811 = vmatprep.subr.mxu0 0.0
    %1812 = vmatpush1.xpose.msra.mxu0 0.0
    %1813 = vmatprep.subr.mxu0 0.0
    %1814 = vmatpush1.xpose.msra.mxu0 0.0
    %1815 = vmatprep.subr.mxu0 0.0
    %1816 = vmatpush1.xpose.msra.mxu0 0.0
    %1817 = vmatprep.subr.mxu0 0.0
    %1818 = vmatpush1.xpose.msra.mxu0 0.0
    %1819 = vmatprep.subr.mxu0 0.0
    %1820 = vmatpush1.xpose.msra.mxu0 0.0
    %1821 = vmatprep.subr.mxu0 0.0
    %1822 = vmatpush1.xpose.msra.mxu0 0.0
    %1823 = vmatprep.subr.mxu0 0.0
    %1824 = vmatpush1.xpose.msra.mxu0 0.0
    %1825 = vmatprep.subr.mxu0 0.0
    %1826 = vmatpush1.xpose.msra.mxu0 0.0
    %1827 = vmatprep.subr.mxu0 0.0
    %1828 = vmatpush1.xpose.msra.mxu0 0.0
    %1829 = vmatprep.subr.mxu0 0.0
    %1830 = vmatpush1.xpose.msra.mxu0 0.0
    %1831 = vmatprep.subr.mxu0 0.0
    %1832 = vmatpush1.xpose.msra.mxu0 0.0
    %1833 = vmatprep.subr.mxu0 0.0
    %1834 = vmatpush1.xpose.msra.mxu0 0.0
    %1835 = vmatprep.mubr.f32.mxu0 0.0
    %1836 = vmatmul.mubr.f32.gmra.mrb[0].mxu0 %v1767
    %v1837 = vpop.f32.mrb[0].mxu0
    %v1838 = vadd.f32 0.0, %v1837
    %v1839 = vpop.f32.mrb[0].mxu0
    %1840 = vdwg.mxu0
    %v1841 = vsel %vm1051, %v1838, -inf
    %1842 = vmax.xlane.f32.xlu0 %v1841
    %v1843 = vpop.xlane.xlu0 %1842
    %v1844 = vsub.f32 %v1838, %v1843
    %v1845 = vmul.f32 %v1844, 1.442695
    %v1846 = vpow.pop %v1845
    %v1847 = vsel %vm1051, %v1846, 0.0
    %1848 = vadd.xlane.f32.xlu0 %v1847
    %v1849 = vpop.xlane.xlu0 %1848
    %v1850 = vrcp.pop %v1849
    %v1851 = vmul.f32 %v1846, %v1850
    %1852 = vrot.lane.b32.xlu0 %v1043, 104
    %v1853 = vpop.permute.xlu0 %1852
    %v1856 = vsel %vm1051, %v1851, 0
    %1858 = vmatprep.subr.mxu0 0.0
    %1859 = vmatpush1.msra.mxu0 %v1853
    %1860 = vmatprep.subr.mxu0 0.0
    %1861 = vmatpush1.msra.mxu0 0.0
    %1862 = vmatprep.subr.mxu0 0.0
    %1863 = vmatpush1.msra.mxu0 0.0
    %1864 = vmatprep.subr.mxu0 0.0
    %1865 = vmatpush1.msra.mxu0 0.0
    %1866 = vmatprep.subr.mxu0 0.0
    %1867 = vmatpush1.msra.mxu0 0.0
    %1868 = vmatprep.subr.mxu0 0.0
    %1869 = vmatpush1.msra.mxu0 0.0
    %1870 = vmatprep.subr.mxu0 0.0
    %1871 = vmatpush1.msra.mxu0 0.0
    %1872 = vmatprep.subr.mxu0 0.0
    %1873 = vmatpush1.msra.mxu0 0.0
    %1874 = vmatprep.subr.mxu0 0.0
    %1875 = vmatpush1.msra.mxu0 0.0
    %1876 = vmatprep.subr.mxu0 0.0
    %1877 = vmatpush1.msra.mxu0 0.0
    %1878 = vmatprep.subr.mxu0 0.0
    %1879 = vmatpush1.msra.mxu0 0.0
    %1880 = vmatprep.subr.mxu0 0.0
    %1881 = vmatpush1.msra.mxu0 0.0
    %1882 = vmatprep.subr.mxu0 0.0
    %1883 = vmatpush1.msra.mxu0 0.0
    %1884 = vmatprep.subr.mxu0 0.0
    %1885 = vmatpush1.msra.mxu0 0.0
    %1886 = vmatprep.subr.mxu0 0.0
    %1887 = vmatpush1.msra.mxu0 0.0
    %1888 = vmatprep.subr.mxu0 0.0
    %1889 = vmatpush1.msra.mxu0 0.0
    %1890 = vmatprep.subr.mxu0 0.0
    %1891 = vmatpush1.msra.mxu0 0.0
    %1892 = vmatprep.subr.mxu0 0.0
    %1893 = vmatpush1.msra.mxu0 0.0
    %1894 = vmatprep.subr.mxu0 0.0
    %1895 = vmatpush1.msra.mxu0 0.0
    %1896 = vmatprep.subr.mxu0 0.0
    %1897 = vmatpush1.msra.mxu0 0.0
    %1898 = vmatprep.subr.mxu0 0.0
    %1899 = vmatpush1.msra.mxu0 0.0
    %1900 = vmatprep.subr.mxu0 0.0
    %1901 = vmatpush1.msra.mxu0 0.0
    %1902 = vmatprep.subr.mxu0 0.0
    %1903 = vmatpush1.msra.mxu0 0.0
    %1904 = vmatprep.subr.mxu0 0.0
    %1905 = vmatpush1.msra.mxu0 0.0
    %1906 = vmatprep.subr.mxu0 0.0
    %1907 = vmatpush1.msra.mxu0 0.0
    %1908 = vmatprep.subr.mxu0 0.0
    %1909 = vmatpush1.msra.mxu0 0.0
    %1910 = vmatprep.subr.mxu0 0.0
    %1911 = vmatpush1.msra.mxu0 0.0
    %1912 = vmatprep.subr.mxu0 0.0
    %1913 = vmatpush1.msra.mxu0 0.0
    %1914 = vmatprep.subr.mxu0 0.0
    %1915 = vmatpush1.msra.mxu0 0.0
    %1916 = vmatprep.subr.mxu0 0.0
    %1917 = vmatpush1.msra.mxu0 0.0
    %1918 = vmatprep.subr.mxu0 0.0
    %1919 = vmatpush1.msra.mxu0 0.0
    %1920 = vmatprep.subr.mxu0 0.0
    %1921 = vmatpush1.msra.mxu0 0.0
    %1922 = vmatprep.mubr.f32.mxu0 0.0
    %1923 = vmatmul.mubr.f32.gmra.mrb[0].mxu0 %v1856
    %v1924 = vpop.f32.mrb[0].mxu0
    %v1925 = vadd.f32 0.0, %v1924
    %v1926 = vpop.f32.mrb[0].mxu0
    %1927 = vdwg.mxu0
    %v1929 = vsel %vm1051, %v1925, 0
    %1931 = vmatprep.subr.mxu0 0.0
    %1932 = vmatpush1.msra.mxu0 %v795
    %1933 = vmatprep.subr.mxu0 0.0
    %1934 = vmatpush1.msra.mxu0 0.0
    %1935 = vmatprep.subr.mxu0 0.0
    %1936 = vmatpush1.msra.mxu0 0.0
    %1937 = vmatprep.subr.mxu0 0.0
    %1938 = vmatpush1.msra.mxu0 0.0
    %1939 = vmatprep.subr.mxu0 0.0
    %1940 = vmatpush1.msra.mxu0 0.0
    %1941 = vmatprep.subr.mxu0 0.0
    %1942 = vmatpush1.msra.mxu0 0.0
    %1943 = vmatprep.subr.mxu0 0.0
    %1944 = vmatpush1.msra.mxu0 0.0
    %1945 = vmatprep.subr.mxu0 0.0
    %1946 = vmatpush1.msra.mxu0 0.0
    %1947 = vmatprep.subr.mxu0 0.0
    %1948 = vmatpush1.msra.mxu0 0.0
    %1949 = vmatprep.subr.mxu0 0.0
    %1950 = vmatpush1.msra.mxu0 0.0
    %1951 = vmatprep.subr.mxu0 0.0
    %1952 = vmatpush1.msra.mxu0 0.0
    %1953 = vmatprep.subr.mxu0 0.0
    %1954 = vmatpush1.msra.mxu0 0.0
    %1955 = vmatprep.subr.mxu0 0.0
    %1956 = vmatpush1.msra.mxu0 0.0
    %1957 = vmatprep.subr.mxu0 0.0
    %1958 = vmatpush1.msra.mxu0 0.0
    %1959 = vmatprep.subr.mxu0 0.0
    %1960 = vmatpush1.msra.mxu0 0.0
    %1961 = vmatprep.subr.mxu0 0.0
    %1962 = vmatpush1.msra.mxu0 0.0
    %1963 = vmatprep.subr.mxu0 0.0
    %1964 = vmatpush1.msra.mxu0 0.0
    %1965 = vmatprep.subr.mxu0 0.0
    %1966 = vmatpush1.msra.mxu0 0.0
    %1967 = vmatprep.subr.mxu0 0.0
    %1968 = vmatpush1.msra.mxu0 0.0
    %1969 = vmatprep.subr.mxu0 0.0
    %1970 = vmatpush1.msra.mxu0 0.0
    %1971 = vmatprep.subr.mxu0 0.0
    %1972 = vmatpush1.msra.mxu0 0.0
    %1973 = vmatprep.subr.mxu0 0.0
    %1974 = vmatpush1.msra.mxu0 0.0
    %1975 = vmatprep.subr.mxu0 0.0
    %1976 = vmatpush1.msra.mxu0 0.0
    %1977 = vmatprep.subr.mxu0 0.0
    %1978 = vmatpush1.msra.mxu0 0.0
    %1979 = vmatprep.subr.mxu0 0.0
    %1980 = vmatpush1.msra.mxu0 0.0
    %1981 = vmatprep.subr.mxu0 0.0
    %1982 = vmatpush1.msra.mxu0 0.0
    %1983 = vmatprep.subr.mxu0 0.0
    %1984 = vmatpush1.msra.mxu0 0.0
    %1985 = vmatprep.subr.mxu0 0.0
    %1986 = vmatpush1.msra.mxu0 0.0
    %1987 = vmatprep.subr.mxu0 0.0
    %1988 = vmatpush1.msra.mxu0 0.0
    %1989 = vmatprep.subr.mxu0 0.0
    %1990 = vmatpush1.msra.mxu0 0.0
    %1991 = vmatprep.subr.mxu0 0.0
    %1992 = vmatpush1.msra.mxu0 0.0
    %1993 = vmatprep.subr.mxu0 0.0
    %1994 = vmatpush1.msra.mxu0 0.0
    %1995 = vmatprep.mubr.f32.mxu0 0.0
    %1996 = vmatmul.mubr.f32.gmra.mrb[0].mxu0 %v1929
    %v1997 = vpop.f32.mrb[0].mxu0
    %v1998 = vadd.f32 0.0, %v1997
    %v1999 = vpop.f32.mrb[0].mxu0
    %2000 = vdwg.mxu0
    %v2001 = vadd.f32 %v1762, %v1998
    %v2003 = vsel %vm1051, %v886, 0
    %v2006 = vsel %vm1051, %v966, 0
    %2008 = vmatprep.subr.mxu0 0.0
    %2009 = vmatpush1.xpose.msra.mxu0 %v2006
    %2010 = vmatprep.subr.mxu0 0.0
    %2011 = vmatpush1.xpose.msra.mxu0 0.0
    %2012 = vmatprep.subr.mxu0 0.0
    %2013 = vmatpush1.xpose.msra.mxu0 0.0
    %2014 = vmatprep.subr.mxu0 0.0
    %2015 = vmatpush1.xpose.msra.mxu0 0.0
    %2016 = vmatprep.subr.mxu0 0.0
    %2017 = vmatpush1.xpose.msra.mxu0 0.0
    %2018 = vmatprep.subr.mxu0 0.0
    %2019 = vmatpush1.xpose.msra.mxu0 0.0
    %2020 = vmatprep.subr.mxu0 0.0
    %2021 = vmatpush1.xpose.msra.mxu0 0.0
    %2022 = vmatprep.subr.mxu0 0.0
    %2023 = vmatpush1.xpose.msra.mxu0 0.0
    %2024 = vmatprep.subr.mxu0 0.0
    %2025 = vmatpush1.xpose.msra.mxu0 0.0
    %2026 = vmatprep.subr.mxu0 0.0
    %2027 = vmatpush1.xpose.msra.mxu0 0.0
    %2028 = vmatprep.subr.mxu0 0.0
    %2029 = vmatpush1.xpose.msra.mxu0 0.0
    %2030 = vmatprep.subr.mxu0 0.0
    %2031 = vmatpush1.xpose.msra.mxu0 0.0
    %2032 = vmatprep.subr.mxu0 0.0
    %2033 = vmatpush1.xpose.msra.mxu0 0.0
    %2034 = vmatprep.subr.mxu0 0.0
    %2035 = vmatpush1.xpose.msra.mxu0 0.0
    %2036 = vmatprep.subr.mxu0 0.0
    %2037 = vmatpush1.xpose.msra.mxu0 0.0
    %2038 = vmatprep.subr.mxu0 0.0
    %2039 = vmatpush1.xpose.msra.mxu0 0.0
    %2040 = vmatprep.subr.mxu0 0.0
    %2041 = vmatpush1.xpose.msra.mxu0 0.0
    %2042 = vmatprep.subr.mxu0 0.0
    %2043 = vmatpush1.xpose.msra.mxu0 0.0
    %2044 = vmatprep.subr.mxu0 0.0
    %2045 = vmatpush1.xpose.msra.mxu0 0.0
    %2046 = vmatprep.subr.mxu0 0.0
    %2047 = vmatpush1.xpose.msra.mxu0 0.0
    %2048 = vmatprep.subr.mxu0 0.0
    %2049 = vmatpush1.xpose.msra.mxu0 0.0
    %2050 = vmatprep.subr.mxu0 0.0
    %2051 = vmatpush1.xpose.msra.mxu0 0.0
    %2052 = vmatprep.subr.mxu0 0.0
    %2053 = vmatpush1.xpose.msra.mxu0 0.0
    %2054 = vmatprep.subr.mxu0 0.0
    %2055 = vmatpush1.xpose.msra.mxu0 0.0
    %2056 = vmatprep.subr.mxu0 0.0
    %2057 = vmatpush1.xpose.msra.mxu0 0.0
    %2058 = vmatprep.subr.mxu0 0.0
    %2059 = vmatpush1.xpose.msra.mxu0 0.0
    %2060 = vmatprep.subr.mxu0 0.0
    %2061 = vmatpush1.xpose.msra.mxu0 0.0
    %2062 = vmatprep.subr.mxu0 0.0
    %2063 = vmatpush1.xpose.msra.mxu0 0.0
    %2064 = vmatprep.subr.mxu0 0.0
    %2065 = vmatpush1.xpose.msra.mxu0 0.0
    %2066 = vmatprep.subr.mxu0 0.0
    %2067 = vmatpush1.xpose.msra.mxu0 0.0
    %2068 = vmatprep.subr.mxu0 0.0
    %2069 = vmatpush1.xpose.msra.mxu0 0.0
    %2070 = vmatprep.subr.mxu0 0.0
    %2071 = vmatpush1.xpose.msra.mxu0 0.0
    %2072 = vmatprep.mubr.f32.mxu0 0.0
    %2073 = vmatmul.mubr.f32.gmra.mrb[0].mxu0 %v2003
    %v2074 = vpop.f32.mrb[0].mxu0
    %v2075 = vadd.f32 0.0, %v2074
    %v2076 = vpop.f32.mrb[0].mxu0
    %2077 = vdwg.mxu0
    %v2078 = vsel %vm1051, %v2075, -inf
    %2079 = vmax.xlane.f32.xlu0 %v2078
    %v2080 = vpop.xlane.xlu0 %2079
    %v2081 = vsub.f32 %v2075, %v2080
    %v2082 = vmul.f32 %v2081, 1.442695
    %v2083 = vpow.pop %v2082
    %v2084 = vsel %vm1051, %v2083, 0.0
    %2085 = vadd.xlane.f32.xlu0 %v2084
    %v2086 = vpop.xlane.xlu0 %2085
    %v2087 = vrcp.pop %v2086
    %v2088 = vmul.f32 %v2083, %v2087
    %v2090 = vsel %vm1051, %v2088, 0
    %2092 = vmatprep.subr.mxu0 0.0
    %2093 = vmatpush1.msra.mxu0 %v1048
    %2094 = vmatprep.subr.mxu0 0.0
    %2095 = vmatpush1.msra.mxu0 0.0
    %2096 = vmatprep.subr.mxu0 0.0
    %2097 = vmatpush1.msra.mxu0 0.0
    %2098 = vmatprep.subr.mxu0 0.0
    %2099 = vmatpush1.msra.mxu0 0.0
    %2100 = vmatprep.subr.mxu0 0.0
    %2101 = vmatpush1.msra.mxu0 0.0
    %2102 = vmatprep.subr.mxu0 0.0
    %2103 = vmatpush1.msra.mxu0 0.0
    %2104 = vmatprep.subr.mxu0 0.0
    %2105 = vmatpush1.msra.mxu0 0.0
    %2106 = vmatprep.subr.mxu0 0.0
    %2107 = vmatpush1.msra.mxu0 0.0
    %2108 = vmatprep.subr.mxu0 0.0
    %2109 = vmatpush1.msra.mxu0 0.0
    %2110 = vmatprep.subr.mxu0 0.0
    %2111 = vmatpush1.msra.mxu0 0.0
    %2112 = vmatprep.subr.mxu0 0.0
    %2113 = vmatpush1.msra.mxu0 0.0
    %2114 = vmatprep.subr.mxu0 0.0
    %2115 = vmatpush1.msra.mxu0 0.0
    %2116 = vmatprep.subr.mxu0 0.0
    %2117 = vmatpush1.msra.mxu0 0.0
    %2118 = vmatprep.subr.mxu0 0.0
    %2119 = vmatpush1.msra.mxu0 0.0
    %2120 = vmatprep.subr.mxu0 0.0
    %2121 = vmatpush1.msra.mxu0 0.0
    %2122 = vmatprep.subr.mxu0 0.0
    %2123 = vmatpush1.msra.mxu0 0.0
    %2124 = vmatprep.subr.mxu0 0.0
    %2125 = vmatpush1.msra.mxu0 0.0
    %2126 = vmatprep.subr.mxu0 0.0
    %2127 = vmatpush1.msra.mxu0 0.0
    %2128 = vmatprep.subr.mxu0 0.0
    %2129 = vmatpush1.msra.mxu0 0.0
    %2130 = vmatprep.subr.mxu0 0.0
    %2131 = vmatpush1.msra.mxu0 0.0
    %2132 = vmatprep.subr.mxu0 0.0
    %2133 = vmatpush1.msra.mxu0 0.0
    %2134 = vmatprep.subr.mxu0 0.0
    %2135 = vmatpush1.msra.mxu0 0.0
    %2136 = vmatprep.subr.mxu0 0.0
    %2137 = vmatpush1.msra.mxu0 0.0
    %2138 = vmatprep.subr.mxu0 0.0
    %2139 = vmatpush1.msra.mxu0 0.0
    %2140 = vmatprep.subr.mxu0 0.0
    %2141 = vmatpush1.msra.mxu0 0.0
    %2142 = vmatprep.subr.mxu0 0.0
    %2143 = vmatpush1.msra.mxu0 0.0
    %2144 = vmatprep.subr.mxu0 0.0
    %2145 = vmatpush1.msra.mxu0 0.0
    %2146 = vmatprep.subr.mxu0 0.0
    %2147 = vmatpush1.msra.mxu0 0.0
    %2148 = vmatprep.subr.mxu0 0.0
    %2149 = vmatpush1.msra.mxu0 0.0
    %2150 = vmatprep.subr.mxu0 0.0
    %2151 = vmatpush1.msra.mxu0 0.0
    %2152 = vmatprep.subr.mxu0 0.0
    %2153 = vmatpush1.msra.mxu0 0.0
    %2154 = vmatprep.subr.mxu0 0.0
    %2155 = vmatpush1.msra.mxu0 0.0
    %2156 = vmatprep.mubr.f32.mxu0 0.0
    %2157 = vmatmul.mubr.f32.gmra.mrb[0].mxu0 %v2090
    %v2158 = vpop.f32.mrb[0].mxu0
    %v2159 = vadd.f32 0.0, %v2158
    %v2160 = vpop.f32.mrb[0].mxu0
    %2161 = vdwg.mxu0
    %2162 = vrot.lane.b32.xlu0 %v886, 120
    %v2163 = vpop.permute.xlu0 %2162
    %2164 = vrot.lane.b32.xlu0 %v966, 120
    %v2165 = vpop.permute.xlu0 %2164
    %v2166 = vsel %vm1051, %v2163, 0
    %v2168 = vsel %vm1051, %v2165, 0
    %2170 = vmatprep.subr.mxu0 0.0
    %2171 = vmatpush1.xpose.msra.mxu0 %v2168
    %2172 = vmatprep.subr.mxu0 0.0
    %2173 = vmatpush1.xpose.msra.mxu0 0.0
    %2174 = vmatprep.subr.mxu0 0.0
    %2175 = vmatpush1.xpose.msra.mxu0 0.0
    %2176 = vmatprep.subr.mxu0 0.0
    %2177 = vmatpush1.xpose.msra.mxu0 0.0
    %2178 = vmatprep.subr.mxu0 0.0
    %2179 = vmatpush1.xpose.msra.mxu0 0.0
    %2180 = vmatprep.subr.mxu0 0.0
    %2181 = vmatpush1.xpose.msra.mxu0 0.0
    %2182 = vmatprep.subr.mxu0 0.0
    %2183 = vmatpush1.xpose.msra.mxu0 0.0
    %2184 = vmatprep.subr.mxu0 0.0
    %2185 = vmatpush1.xpose.msra.mxu0 0.0
    %2186 = vmatprep.subr.mxu0 0.0
    %2187 = vmatpush1.xpose.msra.mxu0 0.0
    %2188 = vmatprep.subr.mxu0 0.0
    %2189 = vmatpush1.xpose.msra.mxu0 0.0
    %2190 = vmatprep.subr.mxu0 0.0
    %2191 = vmatpush1.xpose.msra.mxu0 0.0
    %2192 = vmatprep.subr.mxu0 0.0
    %2193 = vmatpush1.xpose.msra.mxu0 0.0
    %2194 = vmatprep.subr.mxu0 0.0
    %2195 = vmatpush1.xpose.msra.mxu0 0.0
    %2196 = vmatprep.subr.mxu0 0.0
    %2197 = vmatpush1.xpose.msra.mxu0 0.0
    %2198 = vmatprep.subr.mxu0 0.0
    %2199 = vmatpush1.xpose.msra.mxu0 0.0
    %2200 = vmatprep.subr.mxu0 0.0
    %2201 = vmatpush1.xpose.msra.mxu0 0.0
    %2202 = vmatprep.subr.mxu0 0.0
    %2203 = vmatpush1.xpose.msra.mxu0 0.0
    %2204 = vmatprep.subr.mxu0 0.0
    %2205 = vmatpush1.xpose.msra.mxu0 0.0
    %2206 = vmatprep.subr.mxu0 0.0
    %2207 = vmatpush1.xpose.msra.mxu0 0.0
    %2208 = vmatprep.subr.mxu0 0.0
    %2209 = vmatpush1.xpose.msra.mxu0 0.0
    %2210 = vmatprep.subr.mxu0 0.0
    %2211 = vmatpush1.xpose.msra.mxu0 0.0
    %2212 = vmatprep.subr.mxu0 0.0
    %2213 = vmatpush1.xpose.msra.mxu0 0.0
    %2214 = vmatprep.subr.mxu0 0.0
    %2215 = vmatpush1.xpose.msra.mxu0 0.0
    %2216 = vmatprep.subr.mxu0 0.0
    %2217 = vmatpush1.xpose.msra.mxu0 0.0
    %2218 = vmatprep.subr.mxu0 0.0
    %2219 = vmatpush1.xpose.msra.mxu0 0.0
    %2220 = vmatprep.subr.mxu0 0.0
    %2221 = vmatpush1.xpose.msra.mxu0 0.0
    %2222 = vmatprep.subr.mxu0 0.0
    %2223 = vmatpush1.xpose.msra.mxu0 0.0
    %2224 = vmatprep.subr.mxu0 0.0
    %2225 = vmatpush1.xpose.msra.mxu0 0.0
    %2226 = vmatprep.subr.mxu0 0.0
    %2227 = vmatpush1.xpose.msra.mxu0 0.0
    %2228 = vmatprep.subr.mxu0 0.0
    %2229 = vmatpush1.xpose.msra.mxu0 0.0
    %2230 = vmatprep.subr.mxu0 0.0
    %2231 = vmatpush1.xpose.msra.mxu0 0.0
    %2232 = vmatprep.subr.mxu0 0.0
    %2233 = vmatpush1.xpose.msra.mxu0 0.0
    %2234 = vmatprep.mubr.f32.mxu0 0.0
    %2235 = vmatmul.mubr.f32.gmra.mrb[0].mxu0 %v2166
    %v2236 = vpop.f32.mrb[0].mxu0
    %v2237 = vadd.f32 0.0, %v2236
    %v2238 = vpop.f32.mrb[0].mxu0
    %2239 = vdwg.mxu0
    %v2240 = vsel %vm1051, %v2237, -inf
    %2241 = vmax.xlane.f32.xlu0 %v2240
    %v2242 = vpop.xlane.xlu0 %2241
    %v2243 = vsub.f32 %v2237, %v2242
    %v2244 = vmul.f32 %v2243, 1.442695
    %v2245 = vpow.pop %v2244
    %v2246 = vsel %vm1051, %v2245, 0.0
    %2247 = vadd.xlane.f32.xlu0 %v2246
    %v2248 = vpop.xlane.xlu0 %2247
    %v2249 = vrcp.pop %v2248
    %v2250 = vmul.f32 %v2245, %v2249
    %2252 = vrot.lane.b32.xlu0 %v1048, 120
    %v2253 = vpop.permute.xlu0 %2252
    %v2256 = vsel %vm1051, %v2250, 0
    %2258 = vmatprep.subr.mxu0 0.0
    %2259 = vmatpush1.msra.mxu0 %v2253
    %2260 = vmatprep.subr.mxu0 0.0
    %2261 = vmatpush1.msra.mxu0 0.0
    %2262 = vmatprep.subr.mxu0 0.0
    %2263 = vmatpush1.msra.mxu0 0.0
    %2264 = vmatprep.subr.mxu0 0.0
    %2265 = vmatpush1.msra.mxu0 0.0
    %2266 = vmatprep.subr.mxu0 0.0
    %2267 = vmatpush1.msra.mxu0 0.0
    %2268 = vmatprep.subr.mxu0 0.0
    %2269 = vmatpush1.msra.mxu0 0.0
    %2270 = vmatprep.subr.mxu0 0.0
    %2271 = vmatpush1.msra.mxu0 0.0
    %2272 = vmatprep.subr.mxu0 0.0
    %2273 = vmatpush1.msra.mxu0 0.0
    %2274 = vmatprep.subr.mxu0 0.0
    %2275 = vmatpush1.msra.mxu0 0.0
    %2276 = vmatprep.subr.mxu0 0.0
    %2277 = vmatpush1.msra.mxu0 0.0
    %2278 = vmatprep.subr.mxu0 0.0
    %2279 = vmatpush1.msra.mxu0 0.0
    %2280 = vmatprep.subr.mxu0 0.0
    %2281 = vmatpush1.msra.mxu0 0.0
    %2282 = vmatprep.subr.mxu0 0.0
    %2283 = vmatpush1.msra.mxu0 0.0
    %2284 = vmatprep.subr.mxu0 0.0
    %2285 = vmatpush1.msra.mxu0 0.0
    %2286 = vmatprep.subr.mxu0 0.0
    %2287 = vmatpush1.msra.mxu0 0.0
    %2288 = vmatprep.subr.mxu0 0.0
    %2289 = vmatpush1.msra.mxu0 0.0
    %2290 = vmatprep.subr.mxu0 0.0
    %2291 = vmatpush1.msra.mxu0 0.0
    %2292 = vmatprep.subr.mxu0 0.0
    %2293 = vmatpush1.msra.mxu0 0.0
    %2294 = vmatprep.subr.mxu0 0.0
    %2295 = vmatpush1.msra.mxu0 0.0
    %2296 = vmatprep.subr.mxu0 0.0
    %2297 = vmatpush1.msra.mxu0 0.0
    %2298 = vmatprep.subr.mxu0 0.0
    %2299 = vmatpush1.msra.mxu0 0.0
    %2300 = vmatprep.subr.mxu0 0.0
    %2301 = vmatpush1.msra.mxu0 0.0
    %2302 = vmatprep.subr.mxu0 0.0
    %2303 = vmatpush1.msra.mxu0 0.0
    %2304 = vmatprep.subr.mxu0 0.0
    %2305 = vmatpush1.msra.mxu0 0.0
    %2306 = vmatprep.subr.mxu0 0.0
    %2307 = vmatpush1.msra.mxu0 0.0
    %2308 = vmatprep.subr.mxu0 0.0
    %2309 = vmatpush1.msra.mxu0 0.0
    %2310 = vmatprep.subr.mxu0 0.0
    %2311 = vmatpush1.msra.mxu0 0.0
    %2312 = vmatprep.subr.mxu0 0.0
    %2313 = vmatpush1.msra.mxu0 0.0
    %2314 = vmatprep.subr.mxu0 0.0
    %2315 = vmatpush1.msra.mxu0 0.0
    %2316 = vmatprep.subr.mxu0 0.0
    %2317 = vmatpush1.msra.mxu0 0.0
    %2318 = vmatprep.subr.mxu0 0.0
    %2319 = vmatpush1.msra.mxu0 0.0
    %2320 = vmatprep.subr.mxu0 0.0
    %2321 = vmatpush1.msra.mxu0 0.0
    %2322 = vmatprep.mubr.f32.mxu0 0.0
    %2323 = vmatmul.mubr.f32.gmra.mrb[0].mxu0 %v2256
    %v2324 = vpop.f32.mrb[0].mxu0
    %v2325 = vadd.f32 0.0, %v2324
    %v2326 = vpop.f32.mrb[0].mxu0
    %2327 = vdwg.mxu0
    %v2329 = vsel %vm1051, %v2325, 0
    %2331 = vmatprep.subr.mxu0 0.0
    %2332 = vmatpush1.msra.mxu0 %v793
    %2333 = vmatprep.subr.mxu0 0.0
    %2334 = vmatpush1.msra.mxu0 0.0
    %2335 = vmatprep.subr.mxu0 0.0
    %2336 = vmatpush1.msra.mxu0 0.0
    %2337 = vmatprep.subr.mxu0 0.0
    %2338 = vmatpush1.msra.mxu0 0.0
    %2339 = vmatprep.subr.mxu0 0.0
    %2340 = vmatpush1.msra.mxu0 0.0
    %2341 = vmatprep.subr.mxu0 0.0
    %2342 = vmatpush1.msra.mxu0 0.0
    %2343 = vmatprep.subr.mxu0 0.0
    %2344 = vmatpush1.msra.mxu0 0.0
    %2345 = vmatprep.subr.mxu0 0.0
    %2346 = vmatpush1.msra.mxu0 0.0
    %2347 = vmatprep.subr.mxu0 0.0
    %2348 = vmatpush1.msra.mxu0 0.0
    %2349 = vmatprep.subr.mxu0 0.0
    %2350 = vmatpush1.msra.mxu0 0.0
    %2351 = vmatprep.subr.mxu0 0.0
    %2352 = vmatpush1.msra.mxu0 0.0
    %2353 = vmatprep.subr.mxu0 0.0
    %2354 = vmatpush1.msra.mxu0 0.0
    %2355 = vmatprep.subr.mxu0 0.0
    %2356 = vmatpush1.msra.mxu0 0.0
    %2357 = vmatprep.subr.mxu0 0.0
    %2358 = vmatpush1.msra.mxu0 0.0
    %2359 = vmatprep.subr.mxu0 0.0
    %2360 = vmatpush1.msra.mxu0 0.0
    %2361 = vmatprep.subr.mxu0 0.0
    %2362 = vmatpush1.msra.mxu0 0.0
    %2363 = vmatprep.subr.mxu0 0.0
    %2364 = vmatpush1.msra.mxu0 0.0
    %2365 = vmatprep.subr.mxu0 0.0
    %2366 = vmatpush1.msra.mxu0 0.0
    %2367 = vmatprep.subr.mxu0 0.0
    %2368 = vmatpush1.msra.mxu0 0.0
    %2369 = vmatprep.subr.mxu0 0.0
    %2370 = vmatpush1.msra.mxu0 0.0
    %2371 = vmatprep.subr.mxu0 0.0
    %2372 = vmatpush1.msra.mxu0 0.0
    %2373 = vmatprep.subr.mxu0 0.0
    %2374 = vmatpush1.msra.mxu0 0.0
    %2375 = vmatprep.subr.mxu0 0.0
    %2376 = vmatpush1.msra.mxu0 0.0
    %2377 = vmatprep.subr.mxu0 0.0
    %2378 = vmatpush1.msra.mxu0 0.0
    %2379 = vmatprep.subr.mxu0 0.0
    %2380 = vmatpush1.msra.mxu0 0.0
    %2381 = vmatprep.subr.mxu0 0.0
    %2382 = vmatpush1.msra.mxu0 0.0
    %2383 = vmatprep.subr.mxu0 0.0
    %2384 = vmatpush1.msra.mxu0 0.0
    %2385 = vmatprep.subr.mxu0 0.0
    %2386 = vmatpush1.msra.mxu0 0.0
    %2387 = vmatprep.subr.mxu0 0.0
    %2388 = vmatpush1.msra.mxu0 0.0
    %2389 = vmatprep.subr.mxu0 0.0
    %2390 = vmatpush1.msra.mxu0 0.0
    %2391 = vmatprep.subr.mxu0 0.0
    %2392 = vmatpush1.msra.mxu0 0.0
    %2393 = vmatprep.subr.mxu0 0.0
    %2394 = vmatpush1.msra.mxu0 0.0
    %2395 = vmatprep.mubr.f32.mxu0 0.0
    %2396 = vmatmul.mubr.f32.gmra.mrb[0].mxu0 %v2329
    %v2397 = vpop.f32.mrb[0].mxu0
    %v2398 = vadd.f32 0.0, %v2397
    %v2399 = vpop.f32.mrb[0].mxu0
    %2400 = vdwg.mxu0
    %v2402 = vsel %vm1051, %v2159, 0
    %2404 = vmatprep.subr.mxu0 0.0
    %2405 = vmatpush1.msra.mxu0 %v792
    %2406 = vmatprep.subr.mxu0 0.0
    %2407 = vmatpush1.msra.mxu0 0.0
    %2408 = vmatprep.subr.mxu0 0.0
    %2409 = vmatpush1.msra.mxu0 0.0
    %2410 = vmatprep.subr.mxu0 0.0
    %2411 = vmatpush1.msra.mxu0 0.0
    %2412 = vmatprep.subr.mxu0 0.0
    %2413 = vmatpush1.msra.mxu0 0.0
    %2414 = vmatprep.subr.mxu0 0.0
    %2415 = vmatpush1.msra.mxu0 0.0
    %2416 = vmatprep.subr.mxu0 0.0
    %2417 = vmatpush1.msra.mxu0 0.0
    %2418 = vmatprep.subr.mxu0 0.0
    %2419 = vmatpush1.msra.mxu0 0.0
    %2420 = vmatprep.subr.mxu0 0.0
    %2421 = vmatpush1.msra.mxu0 0.0
    %2422 = vmatprep.subr.mxu0 0.0
    %2423 = vmatpush1.msra.mxu0 0.0
    %2424 = vmatprep.subr.mxu0 0.0
    %2425 = vmatpush1.msra.mxu0 0.0
    %2426 = vmatprep.subr.mxu0 0.0
    %2427 = vmatpush1.msra.mxu0 0.0
    %2428 = vmatprep.subr.mxu0 0.0
    %2429 = vmatpush1.msra.mxu0 0.0
    %2430 = vmatprep.subr.mxu0 0.0
    %2431 = vmatpush1.msra.mxu0 0.0
    %2432 = vmatprep.subr.mxu0 0.0
    %2433 = vmatpush1.msra.mxu0 0.0
    %2434 = vmatprep.subr.mxu0 0.0
    %2435 = vmatpush1.msra.mxu0 0.0
    %2436 = vmatprep.subr.mxu0 0.0
    %2437 = vmatpush1.msra.mxu0 0.0
    %2438 = vmatprep.subr.mxu0 0.0
    %2439 = vmatpush1.msra.mxu0 0.0
    %2440 = vmatprep.subr.mxu0 0.0
    %2441 = vmatpush1.msra.mxu0 0.0
    %2442 = vmatprep.subr.mxu0 0.0
    %2443 = vmatpush1.msra.mxu0 0.0
    %2444 = vmatprep.subr.mxu0 0.0
    %2445 = vmatpush1.msra.mxu0 0.0
    %2446 = vmatprep.subr.mxu0 0.0
    %2447 = vmatpush1.msra.mxu0 0.0
    %2448 = vmatprep.subr.mxu0 0.0
    %2449 = vmatpush1.msra.mxu0 0.0
    %2450 = vmatprep.subr.mxu0 0.0
    %2451 = vmatpush1.msra.mxu0 0.0
    %2452 = vmatprep.subr.mxu0 0.0
    %2453 = vmatpush1.msra.mxu0 0.0
    %2454 = vmatprep.subr.mxu0 0.0
    %2455 = vmatpush1.msra.mxu0 0.0
    %2456 = vmatprep.subr.mxu0 0.0
    %2457 = vmatpush1.msra.mxu0 0.0
    %2458 = vmatprep.subr.mxu0 0.0
    %2459 = vmatpush1.msra.mxu0 0.0
    %2460 = vmatprep.subr.mxu0 0.0
    %2461 = vmatpush1.msra.mxu0 0.0
    %2462 = vmatprep.subr.mxu0 0.0
    %2463 = vmatpush1.msra.mxu0 0.0
    %2464 = vmatprep.subr.mxu0 0.0
    %2465 = vmatpush1.msra.mxu0 0.0
    %2466 = vmatprep.subr.mxu0 0.0
    %2467 = vmatpush1.msra.mxu0 0.0
    %2468 = vmatprep.mubr.f32.mxu0 0.0
    %2469 = vmatmul.mubr.f32.gmra.mrb[0].mxu0 %v2402
    %v2470 = vpop.f32.mrb[0].mxu0
    %v2471 = vadd.f32 %v2398, %v2470
    %v2472 = vpop.f32.mrb[0].mxu0
    %2473 = vdwg.mxu0
    %2474 = vrot.lane.b32.xlu0 %v886, 112
    %v2475 = vpop.permute.xlu0 %2474
    %2476 = vrot.lane.b32.xlu0 %v966, 112
    %v2477 = vpop.permute.xlu0 %2476
    %v2478 = vsel %vm1051, %v2475, 0
    %v2480 = vsel %vm1051, %v2477, 0
    %2482 = vmatprep.subr.mxu0 0.0
    %2483 = vmatpush1.xpose.msra.mxu0 %v2480
    %2484 = vmatprep.subr.mxu0 0.0
    %2485 = vmatpush1.xpose.msra.mxu0 0.0
    %2486 = vmatprep.subr.mxu0 0.0
    %2487 = vmatpush1.xpose.msra.mxu0 0.0
    %2488 = vmatprep.subr.mxu0 0.0
    %2489 = vmatpush1.xpose.msra.mxu0 0.0
    %2490 = vmatprep.subr.mxu0 0.0
    %2491 = vmatpush1.xpose.msra.mxu0 0.0
    %2492 = vmatprep.subr.mxu0 0.0
    %2493 = vmatpush1.xpose.msra.mxu0 0.0
    %2494 = vmatprep.subr.mxu0 0.0
    %2495 = vmatpush1.xpose.msra.mxu0 0.0
    %2496 = vmatprep.subr.mxu0 0.0
    %2497 = vmatpush1.xpose.msra.mxu0 0.0
    %2498 = vmatprep.subr.mxu0 0.0
    %2499 = vmatpush1.xpose.msra.mxu0 0.0
    %2500 = vmatprep.subr.mxu0 0.0
    %2501 = vmatpush1.xpose.msra.mxu0 0.0
    %2502 = vmatprep.subr.mxu0 0.0
    %2503 = vmatpush1.xpose.msra.mxu0 0.0
    %2504 = vmatprep.subr.mxu0 0.0
    %2505 = vmatpush1.xpose.msra.mxu0 0.0
    %2506 = vmatprep.subr.mxu0 0.0
    %2507 = vmatpush1.xpose.msra.mxu0 0.0
    %2508 = vmatprep.subr.mxu0 0.0
    %2509 = vmatpush1.xpose.msra.mxu0 0.0
    %2510 = vmatprep.subr.mxu0 0.0
    %2511 = vmatpush1.xpose.msra.mxu0 0.0
    %2512 = vmatprep.subr.mxu0 0.0
    %2513 = vmatpush1.xpose.msra.mxu0 0.0
    %2514 = vmatprep.subr.mxu0 0.0
    %2515 = vmatpush1.xpose.msra.mxu0 0.0
    %2516 = vmatprep.subr.mxu0 0.0
    %2517 = vmatpush1.xpose.msra.mxu0 0.0
    %2518 = vmatprep.subr.mxu0 0.0
    %2519 = vmatpush1.xpose.msra.mxu0 0.0
    %2520 = vmatprep.subr.mxu0 0.0
    %2521 = vmatpush1.xpose.msra.mxu0 0.0
    %2522 = vmatprep.subr.mxu0 0.0
    %2523 = vmatpush1.xpose.msra.mxu0 0.0
    %2524 = vmatprep.subr.mxu0 0.0
    %2525 = vmatpush1.xpose.msra.mxu0 0.0
    %2526 = vmatprep.subr.mxu0 0.0
    %2527 = vmatpush1.xpose.msra.mxu0 0.0
    %2528 = vmatprep.subr.mxu0 0.0
    %2529 = vmatpush1.xpose.msra.mxu0 0.0
    %2530 = vmatprep.subr.mxu0 0.0
    %2531 = vmatpush1.xpose.msra.mxu0 0.0
    %2532 = vmatprep.subr.mxu0 0.0
    %2533 = vmatpush1.xpose.msra.mxu0 0.0
    %2534 = vmatprep.subr.mxu0 0.0
    %2535 = vmatpush1.xpose.msra.mxu0 0.0
    %2536 = vmatprep.subr.mxu0 0.0
    %2537 = vmatpush1.xpose.msra.mxu0 0.0
    %2538 = vmatprep.subr.mxu0 0.0
    %2539 = vmatpush1.xpose.msra.mxu0 0.0
    %2540 = vmatprep.subr.mxu0 0.0
    %2541 = vmatpush1.xpose.msra.mxu0 0.0
    %2542 = vmatprep.subr.mxu0 0.0
    %2543 = vmatpush1.xpose.msra.mxu0 0.0
    %2544 = vmatprep.subr.mxu0 0.0
    %2545 = vmatpush1.xpose.msra.mxu0 0.0
    %2546 = vmatprep.mubr.f32.mxu0 0.0
    %2547 = vmatmul.mubr.f32.gmra.mrb[0].mxu0 %v2478
    %v2548 = vpop.f32.mrb[0].mxu0
    %v2549 = vadd.f32 0.0, %v2548
    %v2550 = vpop.f32.mrb[0].mxu0
    %2551 = vdwg.mxu0
    %v2552 = vsel %vm1051, %v2549, -inf
    %2553 = vmax.xlane.f32.xlu0 %v2552
    %v2554 = vpop.xlane.xlu0 %2553
    %v2555 = vsub.f32 %v2549, %v2554
    %v2556 = vmul.f32 %v2555, 1.442695
    %v2557 = vpow.pop %v2556
    %v2558 = vsel %vm1051, %v2557, 0.0
    %2559 = vadd.xlane.f32.xlu0 %v2558
    %v2560 = vpop.xlane.xlu0 %2559
    %v2561 = vrcp.pop %v2560
    %v2562 = vmul.f32 %v2557, %v2561
    %2563 = vrot.lane.b32.xlu0 %v1048, 112
    %v2564 = vpop.permute.xlu0 %2563
    %v2567 = vsel %vm1051, %v2562, 0
    %2569 = vmatprep.subr.mxu0 0.0
    %2570 = vmatpush1.msra.mxu0 %v2564
    %2571 = vmatprep.subr.mxu0 0.0
    %2572 = vmatpush1.msra.mxu0 0.0
    %2573 = vmatprep.subr.mxu0 0.0
    %2574 = vmatpush1.msra.mxu0 0.0
    %2575 = vmatprep.subr.mxu0 0.0
    %2576 = vmatpush1.msra.mxu0 0.0
    %2577 = vmatprep.subr.mxu0 0.0
    %2578 = vmatpush1.msra.mxu0 0.0
    %2579 = vmatprep.subr.mxu0 0.0
    %2580 = vmatpush1.msra.mxu0 0.0
    %2581 = vmatprep.subr.mxu0 0.0
    %2582 = vmatpush1.msra.mxu0 0.0
    %2583 = vmatprep.subr.mxu0 0.0
    %2584 = vmatpush1.msra.mxu0 0.0
    %2585 = vmatprep.subr.mxu0 0.0
    %2586 = vmatpush1.msra.mxu0 0.0
    %2587 = vmatprep.subr.mxu0 0.0
    %2588 = vmatpush1.msra.mxu0 0.0
    %2589 = vmatprep.subr.mxu0 0.0
    %2590 = vmatpush1.msra.mxu0 0.0
    %2591 = vmatprep.subr.mxu0 0.0
    %2592 = vmatpush1.msra.mxu0 0.0
    %2593 = vmatprep.subr.mxu0 0.0
    %2594 = vmatpush1.msra.mxu0 0.0
    %2595 = vmatprep.subr.mxu0 0.0
    %2596 = vmatpush1.msra.mxu0 0.0
    %2597 = vmatprep.subr.mxu0 0.0
    %2598 = vmatpush1.msra.mxu0 0.0
    %2599 = vmatprep.subr.mxu0 0.0
    %2600 = vmatpush1.msra.mxu0 0.0
    %2601 = vmatprep.subr.mxu0 0.0
    %2602 = vmatpush1.msra.mxu0 0.0
    %2603 = vmatprep.subr.mxu0 0.0
    %2604 = vmatpush1.msra.mxu0 0.0
    %2605 = vmatprep.subr.mxu0 0.0
    %2606 = vmatpush1.msra.mxu0 0.0
    %2607 = vmatprep.subr.mxu0 0.0
    %2608 = vmatpush1.msra.mxu0 0.0
    %2609 = vmatprep.subr.mxu0 0.0
    %2610 = vmatpush1.msra.mxu0 0.0
    %2611 = vmatprep.subr.mxu0 0.0
    %2612 = vmatpush1.msra.mxu0 0.0
    %2613 = vmatprep.subr.mxu0 0.0
    %2614 = vmatpush1.msra.mxu0 0.0
    %2615 = vmatprep.subr.mxu0 0.0
    %2616 = vmatpush1.msra.mxu0 0.0
    %2617 = vmatprep.subr.mxu0 0.0
    %2618 = vmatpush1.msra.mxu0 0.0
    %2619 = vmatprep.subr.mxu0 0.0
    %2620 = vmatpush1.msra.mxu0 0.0
    %2621 = vmatprep.subr.mxu0 0.0
    %2622 = vmatpush1.msra.mxu0 0.0
    %2623 = vmatprep.subr.mxu0 0.0
    %2624 = vmatpush1.msra.mxu0 0.0
    %2625 = vmatprep.subr.mxu0 0.0
    %2626 = vmatpush1.msra.mxu0 0.0
    %2627 = vmatprep.subr.mxu0 0.0
    %2628 = vmatpush1.msra.mxu0 0.0
    %2629 = vmatprep.subr.mxu0 0.0
    %2630 = vmatpush1.msra.mxu0 0.0
    %2631 = vmatprep.subr.mxu0 0.0
    %2632 = vmatpush1.msra.mxu0 0.0
    %2633 = vmatprep.mubr.f32.mxu0 0.0
    %2634 = vmatmul.mubr.f32.gmra.mrb[0].mxu0 %v2567
    %v2635 = vpop.f32.mrb[0].mxu0
    %v2636 = vadd.f32 0.0, %v2635
    %v2637 = vpop.f32.mrb[0].mxu0
    %2638 = vdwg.mxu0
    %v2640 = vsel %vm1051, %v2636, 0
    %2642 = vmatprep.subr.mxu0 0.0
    %2643 = vmatpush1.msra.mxu0 %v794
    %2644 = vmatprep.subr.mxu0 0.0
    %2645 = vmatpush1.msra.mxu0 0.0
    %2646 = vmatprep.subr.mxu0 0.0
    %2647 = vmatpush1.msra.mxu0 0.0
    %2648 = vmatprep.subr.mxu0 0.0
    %2649 = vmatpush1.msra.mxu0 0.0
    %2650 = vmatprep.subr.mxu0 0.0
    %2651 = vmatpush1.msra.mxu0 0.0
    %2652 = vmatprep.subr.mxu0 0.0
    %2653 = vmatpush1.msra.mxu0 0.0
    %2654 = vmatprep.subr.mxu0 0.0
    %2655 = vmatpush1.msra.mxu0 0.0
    %2656 = vmatprep.subr.mxu0 0.0
    %2657 = vmatpush1.msra.mxu0 0.0
    %2658 = vmatprep.subr.mxu0 0.0
    %2659 = vmatpush1.msra.mxu0 0.0
    %2660 = vmatprep.subr.mxu0 0.0
    %2661 = vmatpush1.msra.mxu0 0.0
    %2662 = vmatprep.subr.mxu0 0.0
    %2663 = vmatpush1.msra.mxu0 0.0
    %2664 = vmatprep.subr.mxu0 0.0
    %2665 = vmatpush1.msra.mxu0 0.0
    %2666 = vmatprep.subr.mxu0 0.0
    %2667 = vmatpush1.msra.mxu0 0.0
    %2668 = vmatprep.subr.mxu0 0.0
    %2669 = vmatpush1.msra.mxu0 0.0
    %2670 = vmatprep.subr.mxu0 0.0
    %2671 = vmatpush1.msra.mxu0 0.0
    %2672 = vmatprep.subr.mxu0 0.0
    %2673 = vmatpush1.msra.mxu0 0.0
    %2674 = vmatprep.subr.mxu0 0.0
    %2675 = vmatpush1.msra.mxu0 0.0
    %2676 = vmatprep.subr.mxu0 0.0
    %2677 = vmatpush1.msra.mxu0 0.0
    %2678 = vmatprep.subr.mxu0 0.0
    %2679 = vmatpush1.msra.mxu0 0.0
    %2680 = vmatprep.subr.mxu0 0.0
    %2681 = vmatpush1.msra.mxu0 0.0
    %2682 = vmatprep.subr.mxu0 0.0
    %2683 = vmatpush1.msra.mxu0 0.0
    %2684 = vmatprep.subr.mxu0 0.0
    %2685 = vmatpush1.msra.mxu0 0.0
    %2686 = vmatprep.subr.mxu0 0.0
    %2687 = vmatpush1.msra.mxu0 0.0
    %2688 = vmatprep.subr.mxu0 0.0
    %2689 = vmatpush1.msra.mxu0 0.0
    %2690 = vmatprep.subr.mxu0 0.0
    %2691 = vmatpush1.msra.mxu0 0.0
    %2692 = vmatprep.subr.mxu0 0.0
    %2693 = vmatpush1.msra.mxu0 0.0
    %2694 = vmatprep.subr.mxu0 0.0
    %2695 = vmatpush1.msra.mxu0 0.0
    %2696 = vmatprep.subr.mxu0 0.0
    %2697 = vmatpush1.msra.mxu0 0.0
    %2698 = vmatprep.subr.mxu0 0.0
    %2699 = vmatpush1.msra.mxu0 0.0
    %2700 = vmatprep.subr.mxu0 0.0
    %2701 = vmatpush1.msra.mxu0 0.0
    %2702 = vmatprep.subr.mxu0 0.0
    %2703 = vmatpush1.msra.mxu0 0.0
    %2704 = vmatprep.subr.mxu0 0.0
    %2705 = vmatpush1.msra.mxu0 0.0
    %2706 = vmatprep.mubr.f32.mxu0 0.0
    %2707 = vmatmul.mubr.f32.gmra.mrb[0].mxu0 %v2640
    %v2708 = vpop.f32.mrb[0].mxu0
    %v2709 = vadd.f32 0.0, %v2708
    %v2710 = vpop.f32.mrb[0].mxu0
    %2711 = vdwg.mxu0
    %v2712 = vadd.f32 %v2471, %v2709
    %2713 = vrot.lane.b32.xlu0 %v886, 104
    %v2714 = vpop.permute.xlu0 %2713
    %2715 = vrot.lane.b32.xlu0 %v966, 104
    %v2716 = vpop.permute.xlu0 %2715
    %v2717 = vsel %vm1051, %v2714, 0
    %v2719 = vsel %vm1051, %v2716, 0
    %2721 = vmatprep.subr.mxu0 0.0
    %2722 = vmatpush1.xpose.msra.mxu0 %v2719
    %2723 = vmatprep.subr.mxu0 0.0
    %2724 = vmatpush1.xpose.msra.mxu0 0.0
    %2725 = vmatprep.subr.mxu0 0.0
    %2726 = vmatpush1.xpose.msra.mxu0 0.0
    %2727 = vmatprep.subr.mxu0 0.0
    %2728 = vmatpush1.xpose.msra.mxu0 0.0
    %2729 = vmatprep.subr.mxu0 0.0
    %2730 = vmatpush1.xpose.msra.mxu0 0.0
    %2731 = vmatprep.subr.mxu0 0.0
    %2732 = vmatpush1.xpose.msra.mxu0 0.0
    %2733 = vmatprep.subr.mxu0 0.0
    %2734 = vmatpush1.xpose.msra.mxu0 0.0
    %2735 = vmatprep.subr.mxu0 0.0
    %2736 = vmatpush1.xpose.msra.mxu0 0.0
    %2737 = vmatprep.subr.mxu0 0.0
    %2738 = vmatpush1.xpose.msra.mxu0 0.0
    %2739 = vmatprep.subr.mxu0 0.0
    %2740 = vmatpush1.xpose.msra.mxu0 0.0
    %2741 = vmatprep.subr.mxu0 0.0
    %2742 = vmatpush1.xpose.msra.mxu0 0.0
    %2743 = vmatprep.subr.mxu0 0.0
    %2744 = vmatpush1.xpose.msra.mxu0 0.0
    %2745 = vmatprep.subr.mxu0 0.0
    %2746 = vmatpush1.xpose.msra.mxu0 0.0
    %2747 = vmatprep.subr.mxu0 0.0
    %2748 = vmatpush1.xpose.msra.mxu0 0.0
    %2749 = vmatprep.subr.mxu0 0.0
    %2750 = vmatpush1.xpose.msra.mxu0 0.0
    %2751 = vmatprep.subr.mxu0 0.0
    %2752 = vmatpush1.xpose.msra.mxu0 0.0
    %2753 = vmatprep.subr.mxu0 0.0
    %2754 = vmatpush1.xpose.msra.mxu0 0.0
    %2755 = vmatprep.subr.mxu0 0.0
    %2756 = vmatpush1.xpose.msra.mxu0 0.0
    %2757 = vmatprep.subr.mxu0 0.0
    %2758 = vmatpush1.xpose.msra.mxu0 0.0
    %2759 = vmatprep.subr.mxu0 0.0
    %2760 = vmatpush1.xpose.msra.mxu0 0.0
    %2761 = vmatprep.subr.mxu0 0.0
    %2762 = vmatpush1.xpose.msra.mxu0 0.0
    %2763 = vmatprep.subr.mxu0 0.0
    %2764 = vmatpush1.xpose.msra.mxu0 0.0
    %2765 = vmatprep.subr.mxu0 0.0
    %2766 = vmatpush1.xpose.msra.mxu0 0.0
    %2767 = vmatprep.subr.mxu0 0.0
    %2768 = vmatpush1.xpose.msra.mxu0 0.0
    %2769 = vmatprep.subr.mxu0 0.0
    %2770 = vmatpush1.xpose.msra.mxu0 0.0
    %2771 = vmatprep.subr.mxu0 0.0
    %2772 = vmatpush1.xpose.msra.mxu0 0.0
    %2773 = vmatprep.subr.mxu0 0.0
    %2774 = vmatpush1.xpose.msra.mxu0 0.0
    %2775 = vmatprep.subr.mxu0 0.0
    %2776 = vmatpush1.xpose.msra.mxu0 0.0
    %2777 = vmatprep.subr.mxu0 0.0
    %2778 = vmatpush1.xpose.msra.mxu0 0.0
    %2779 = vmatprep.subr.mxu0 0.0
    %2780 = vmatpush1.xpose.msra.mxu0 0.0
    %2781 = vmatprep.subr.mxu0 0.0
    %2782 = vmatpush1.xpose.msra.mxu0 0.0
    %2783 = vmatprep.subr.mxu0 0.0
    %2784 = vmatpush1.xpose.msra.mxu0 0.0
    %2785 = vmatprep.mubr.f32.mxu0 0.0
    %2786 = vmatmul.mubr.f32.gmra.mrb[0].mxu0 %v2717
    %v2787 = vpop.f32.mrb[0].mxu0
    %v2788 = vadd.f32 0.0, %v2787
    %v2789 = vpop.f32.mrb[0].mxu0
    %2790 = vdwg.mxu0
    %v2791 = vsel %vm1051, %v2788, -inf
    %2792 = vmax.xlane.f32.xlu0 %v2791
    %v2793 = vpop.xlane.xlu0 %2792
    %v2794 = vsub.f32 %v2788, %v2793
    %v2795 = vmul.f32 %v2794, 1.442695
    %v2796 = vpow.pop %v2795
    %v2797 = vsel %vm1051, %v2796, 0.0
    %2798 = vadd.xlane.f32.xlu0 %v2797
    %v2799 = vpop.xlane.xlu0 %2798
    %v2800 = vrcp.pop %v2799
    %v2801 = vmul.f32 %v2796, %v2800
    %2802 = vrot.lane.b32.xlu0 %v1048, 104
    %v2803 = vpop.permute.xlu0 %2802
    %v2806 = vsel %vm1051, %v2801, 0
    %2808 = vmatprep.subr.mxu0 0.0
    %2809 = vmatpush1.msra.mxu0 %v2803
    %2810 = vmatprep.subr.mxu0 0.0
    %2811 = vmatpush1.msra.mxu0 0.0
    %2812 = vmatprep.subr.mxu0 0.0
    %2813 = vmatpush1.msra.mxu0 0.0
    %2814 = vmatprep.subr.mxu0 0.0
    %2815 = vmatpush1.msra.mxu0 0.0
    %2816 = vmatprep.subr.mxu0 0.0
    %2817 = vmatpush1.msra.mxu0 0.0
    %2818 = vmatprep.subr.mxu0 0.0
    %2819 = vmatpush1.msra.mxu0 0.0
    %2820 = vmatprep.subr.mxu0 0.0
    %2821 = vmatpush1.msra.mxu0 0.0
    %2822 = vmatprep.subr.mxu0 0.0
    %2823 = vmatpush1.msra.mxu0 0.0
    %2824 = vmatprep.subr.mxu0 0.0
    %2825 = vmatpush1.msra.mxu0 0.0
    %2826 = vmatprep.subr.mxu0 0.0
    %2827 = vmatpush1.msra.mxu0 0.0
    %2828 = vmatprep.subr.mxu0 0.0
    %2829 = vmatpush1.msra.mxu0 0.0
    %2830 = vmatprep.subr.mxu0 0.0
    %2831 = vmatpush1.msra.mxu0 0.0
    %2832 = vmatprep.subr.mxu0 0.0
    %2833 = vmatpush1.msra.mxu0 0.0
    %2834 = vmatprep.subr.mxu0 0.0
    %2835 = vmatpush1.msra.mxu0 0.0
    %2836 = vmatprep.subr.mxu0 0.0
    %2837 = vmatpush1.msra.mxu0 0.0
    %2838 = vmatprep.subr.mxu0 0.0
    %2839 = vmatpush1.msra.mxu0 0.0
    %2840 = vmatprep.subr.mxu0 0.0
    %2841 = vmatpush1.msra.mxu0 0.0
    %2842 = vmatprep.subr.mxu0 0.0
    %2843 = vmatpush1.msra.mxu0 0.0
    %2844 = vmatprep.subr.mxu0 0.0
    %2845 = vmatpush1.msra.mxu0 0.0
    %2846 = vmatprep.subr.mxu0 0.0
    %2847 = vmatpush1.msra.mxu0 0.0
    %2848 = vmatprep.subr.mxu0 0.0
    %2849 = vmatpush1.msra.mxu0 0.0
    %2850 = vmatprep.subr.mxu0 0.0
    %2851 = vmatpush1.msra.mxu0 0.0
    %2852 = vmatprep.subr.mxu0 0.0
    %2853 = vmatpush1.msra.mxu0 0.0
    %2854 = vmatprep.subr.mxu0 0.0
    %2855 = vmatpush1.msra.mxu0 0.0
    %2856 = vmatprep.subr.mxu0 0.0
    %2857 = vmatpush1.msra.mxu0 0.0
    %2858 = vmatprep.subr.mxu0 0.0
    %2859 = vmatpush1.msra.mxu0 0.0
    %2860 = vmatprep.subr.mxu0 0.0
    %2861 = vmatpush1.msra.mxu0 0.0
    %2862 = vmatprep.subr.mxu0 0.0
    %2863 = vmatpush1.msra.mxu0 0.0
    %2864 = vmatprep.subr.mxu0 0.0
    %2865 = vmatpush1.msra.mxu0 0.0
    %2866 = vmatprep.subr.mxu0 0.0
    %2867 = vmatpush1.msra.mxu0 0.0
    %2868 = vmatprep.subr.mxu0 0.0
    %2869 = vmatpush1.msra.mxu0 0.0
    %2870 = vmatprep.subr.mxu0 0.0
    %2871 = vmatpush1.msra.mxu0 0.0
    %2872 = vmatprep.mubr.f32.mxu0 0.0
    %2873 = vmatmul.mubr.f32.gmra.mrb[0].mxu0 %v2806
    %v2874 = vpop.f32.mrb[0].mxu0
    %v2875 = vadd.f32 0.0, %v2874
    %v2876 = vpop.f32.mrb[0].mxu0
    %2877 = vdwg.mxu0
    %v2879 = vsel %vm1051, %v2875, 0
    %2881 = vmatprep.subr.mxu0 0.0
    %2882 = vmatpush1.msra.mxu0 %v795
    %2883 = vmatprep.subr.mxu0 0.0
    %2884 = vmatpush1.msra.mxu0 0.0
    %2885 = vmatprep.subr.mxu0 0.0
    %2886 = vmatpush1.msra.mxu0 0.0
    %2887 = vmatprep.subr.mxu0 0.0
    %2888 = vmatpush1.msra.mxu0 0.0
    %2889 = vmatprep.subr.mxu0 0.0
    %2890 = vmatpush1.msra.mxu0 0.0
    %2891 = vmatprep.subr.mxu0 0.0
    %2892 = vmatpush1.msra.mxu0 0.0
    %2893 = vmatprep.subr.mxu0 0.0
    %2894 = vmatpush1.msra.mxu0 0.0
    %2895 = vmatprep.subr.mxu0 0.0
    %2896 = vmatpush1.msra.mxu0 0.0
    %2897 = vmatprep.subr.mxu0 0.0
    %2898 = vmatpush1.msra.mxu0 0.0
    %2899 = vmatprep.subr.mxu0 0.0
    %2900 = vmatpush1.msra.mxu0 0.0
    %2901 = vmatprep.subr.mxu0 0.0
    %2902 = vmatpush1.msra.mxu0 0.0
    %2903 = vmatprep.subr.mxu0 0.0
    %2904 = vmatpush1.msra.mxu0 0.0
    %2905 = vmatprep.subr.mxu0 0.0
    %2906 = vmatpush1.msra.mxu0 0.0
    %2907 = vmatprep.subr.mxu0 0.0
    %2908 = vmatpush1.msra.mxu0 0.0
    %2909 = vmatprep.subr.mxu0 0.0
    %2910 = vmatpush1.msra.mxu0 0.0
    %2911 = vmatprep.subr.mxu0 0.0
    %2912 = vmatpush1.msra.mxu0 0.0
    %2913 = vmatprep.subr.mxu0 0.0
    %2914 = vmatpush1.msra.mxu0 0.0
    %2915 = vmatprep.subr.mxu0 0.0
    %2916 = vmatpush1.msra.mxu0 0.0
    %2917 = vmatprep.subr.mxu0 0.0
    %2918 = vmatpush1.msra.mxu0 0.0
    %2919 = vmatprep.subr.mxu0 0.0
    %2920 = vmatpush1.msra.mxu0 0.0
    %2921 = vmatprep.subr.mxu0 0.0
    %2922 = vmatpush1.msra.mxu0 0.0
    %2923 = vmatprep.subr.mxu0 0.0
    %2924 = vmatpush1.msra.mxu0 0.0
    %2925 = vmatprep.subr.mxu0 0.0
    %2926 = vmatpush1.msra.mxu0 0.0
    %2927 = vmatprep.subr.mxu0 0.0
    %2928 = vmatpush1.msra.mxu0 0.0
    %2929 = vmatprep.subr.mxu0 0.0
    %2930 = vmatpush1.msra.mxu0 0.0
    %2931 = vmatprep.subr.mxu0 0.0
    %2932 = vmatpush1.msra.mxu0 0.0
    %2933 = vmatprep.subr.mxu0 0.0
    %2934 = vmatpush1.msra.mxu0 0.0
    %2935 = vmatprep.subr.mxu0 0.0
    %2936 = vmatpush1.msra.mxu0 0.0
    %2937 = vmatprep.subr.mxu0 0.0
    %2938 = vmatpush1.msra.mxu0 0.0
    %2939 = vmatprep.subr.mxu0 0.0
    %2940 = vmatpush1.msra.mxu0 0.0
    %2941 = vmatprep.subr.mxu0 0.0
    %2942 = vmatpush1.msra.mxu0 0.0
    %2943 = vmatprep.subr.mxu0 0.0
    %2944 = vmatpush1.msra.mxu0 0.0
    %2945 = vmatprep.mubr.f32.mxu0 0.0
    %2946 = vmatmul.mubr.f32.gmra.mrb[0].mxu0 %v2879
    %v2947 = vpop.f32.mrb[0].mxu0
    %v2948 = vadd.f32 0.0, %v2947
    %v2949 = vpop.f32.mrb[0].mxu0
    %2950 = vdwg.mxu0
    %v2951 = vadd.f32 %v2712, %v2948
    %v2952 = vld [vmem:[#allocation11] sm:$0x1]
    %v2954 = vlaneseq
    %v2955 = vshrl.u32 %v2954, 7
    %v2956 = vsub.s32 0, %v2955
    %v2957 = vrot.slane %v2952, %v2956
    %v2959 = vadd.f32 %v2001, %v2957
    %v2960 = vadd.f32 %v2951, %v2957
    %v2961 = vadd.f32 %v552, %v2959
    %v2962 = vadd.f32 %v779, %v2960
    %v2963 = vld [vmem:[#allocation17] sm:$0x1]
    %v2964 = vld [vmem:[#allocation19] sm:$0x1]
    %v2965 = vsel %vm803, %v2961, 0.0
    %2966 = vadd.xlane.f32.xlu0 %v2965
    %v2967 = vpop.xlane.xlu0 %2966
    %v2968 = vsel %vm803, %v2962, 0.0
    %2969 = vadd.xlane.f32.xlu0 %v2968
    %v2970 = vpop.xlane.xlu0 %2969
    %v2971 = vrcp.pop 32.0
    %v2972 = vmul.f32 %v2967, %v2971
    %v2973 = vmul.f32 %v2970, %v2971
    %v2974 = vsub.f32 %v2961, %v2972
    %v2975 = vsub.f32 %v2962, %v2973
    %v2976 = vmul.f32 %v2974, %v2974
    %v2977 = vmul.f32 %v2975, %v2975
    %v2978 = vsel %vm803, %v2976, 0.0
    %2979 = vadd.xlane.f32.xlu0 %v2978
    %v2980 = vpop.xlane.xlu0 %2979
    %v2981 = vsel %vm803, %v2977, 0.0
    %2982 = vadd.xlane.f32.xlu0 %v2981
    %v2983 = vpop.xlane.xlu0 %2982
    %v2984 = vmul.f32 %v2980, %v2971
    %v2985 = vmul.f32 %v2983, %v2971
    %v2986 = vadd.f32 %v2984, 1e-05
    %v2987 = vadd.f32 %v2985, 1e-05
    %v2988 = vrsqrt.pop %v2986
    %v2989 = vrsqrt.pop %v2987
    %v2990 = vmul.f32 %v2974, %v2988
    %v2991 = vmul.f32 %v2975, %v2989
    %v2993 = vlaneseq
    %v2994 = vshrl.u32 %v2993, 7
    %v2995 = vsub.s32 0, %v2994
    %v2996 = vrot.slane %v2963, %v2995
    %v2998 = vmul.f32 %v2990, %v2996
    %v2999 = vmul.f32 %v2991, %v2996
    %v3001 = vlaneseq
    %v3002 = vshrl.u32 %v3001, 7
    %v3003 = vsub.s32 0, %v3002
    %v3004 = vrot.slane %v2964, %v3003
    %v3006 = vadd.f32 %v2998, %v3004
    %v3007 = vadd.f32 %v2999, %v3004
    %v3008 = vld [vmem:[#allocation13] sm:$0xff]
    %v3009 = vld [vmem:[#allocation13 + $0x8] sm:$0xff]
    %v3010 = vld [vmem:[#allocation13 + $0x10] sm:$0xff]
    %v3011 = vld [vmem:[#allocation13 + $0x18] sm:$0xff]
    %v3012 = vld [vmem:[#allocation14] sm:$0x1]
    %v3014 = vlaneseq
    %v3015 = vshrl.u32 %v3014, 7
    %v3016 = vsub.s32 0, %v3015
    %v3017 = vrot.slane %v3012, %v3016
    %v3020 = vsel %vm803, %v3006, 0
    %v3023 = vsel %vm803, %v3007, 0
    %3025 = vmatprep.subr.mxu0 0.0
    %3026 = vmatpush1.msra.mxu0 %v3008
    %3027 = vmatprep.subr.mxu0 0.0
    %3028 = vmatpush1.msra.mxu0 %v3009
    %3029 = vmatprep.subr.mxu0 0.0
    %3030 = vmatpush1.msra.mxu0 %v3010
    %3031 = vmatprep.subr.mxu0 0.0
    %3032 = vmatpush1.msra.mxu0 %v3011
    %3033 = vmatprep.subr.mxu0 0.0
    %3034 = vmatpush1.msra.mxu0 0.0
    %3035 = vmatprep.subr.mxu0 0.0
    %3036 = vmatpush1.msra.mxu0 0.0
    %3037 = vmatprep.subr.mxu0 0.0
    %3038 = vmatpush1.msra.mxu0 0.0
    %3039 = vmatprep.subr.mxu0 0.0
    %3040 = vmatpush1.msra.mxu0 0.0
    %3041 = vmatprep.subr.mxu0 0.0
    %3042 = vmatpush1.msra.mxu0 0.0
    %3043 = vmatprep.subr.mxu0 0.0
    %3044 = vmatpush1.msra.mxu0 0.0
    %3045 = vmatprep.subr.mxu0 0.0
    %3046 = vmatpush1.msra.mxu0 0.0
    %3047 = vmatprep.subr.mxu0 0.0
    %3048 = vmatpush1.msra.mxu0 0.0
    %3049 = vmatprep.subr.mxu0 0.0
    %3050 = vmatpush1.msra.mxu0 0.0
    %3051 = vmatprep.subr.mxu0 0.0
    %3052 = vmatpush1.msra.mxu0 0.0
    %3053 = vmatprep.subr.mxu0 0.0
    %3054 = vmatpush1.msra.mxu0 0.0
    %3055 = vmatprep.subr.mxu0 0.0
    %3056 = vmatpush1.msra.mxu0 0.0
    %3057 = vmatprep.subr.mxu0 0.0
    %3058 = vmatpush1.msra.mxu0 0.0
    %3059 = vmatprep.subr.mxu0 0.0
    %3060 = vmatpush1.msra.mxu0 0.0
    %3061 = vmatprep.subr.mxu0 0.0
    %3062 = vmatpush1.msra.mxu0 0.0
    %3063 = vmatprep.subr.mxu0 0.0
    %3064 = vmatpush1.msra.mxu0 0.0
    %3065 = vmatprep.subr.mxu0 0.0
    %3066 = vmatpush1.msra.mxu0 0.0
    %3067 = vmatprep.subr.mxu0 0.0
    %3068 = vmatpush1.msra.mxu0 0.0
    %3069 = vmatprep.subr.mxu0 0.0
    %3070 = vmatpush1.msra.mxu0 0.0
    %3071 = vmatprep.subr.mxu0 0.0
    %3072 = vmatpush1.msra.mxu0 0.0
    %3073 = vmatprep.subr.mxu0 0.0
    %3074 = vmatpush1.msra.mxu0 0.0
    %3075 = vmatprep.subr.mxu0 0.0
    %3076 = vmatpush1.msra.mxu0 0.0
    %3077 = vmatprep.subr.mxu0 0.0
    %3078 = vmatpush1.msra.mxu0 0.0
    %3079 = vmatprep.subr.mxu0 0.0
    %3080 = vmatpush1.msra.mxu0 0.0
    %3081 = vmatprep.subr.mxu0 0.0
    %3082 = vmatpush1.msra.mxu0 0.0
    %3083 = vmatprep.subr.mxu0 0.0
    %3084 = vmatpush1.msra.mxu0 0.0
    %3085 = vmatprep.subr.mxu0 0.0
    %3086 = vmatpush1.msra.mxu0 0.0
    %3087 = vmatprep.subr.mxu0 0.0
    %3088 = vmatpush1.msra.mxu0 0.0
    %3089 = vmatprep.mubr.f32.mxu0 0.0
    %3090 = vmatmul.mubr.f32.gmra.mrb[0].mxu0 %v3020
    %v3091 = vpop.f32.mrb[0].mxu0
    %v3092 = vadd.f32 %v3017, %v3091
    %v3093 = vpop.f32.mrb[0].mxu0
    %3094 = vmatprep.mubr.f32.mxu0 0.0
    %3095 = vmatmul.mubr.f32.gmra.mrb[0].mxu0 %v3023
    %v3096 = vpop.f32.mrb[0].mxu0
    %v3097 = vadd.f32 %v3017, %v3096
    %v3098 = vpop.f32.mrb[0].mxu0
    %3099 = vdwg.mxu0
    %v3100 = vmul.f32 %v3092, 0.5
    %v3101 = vmul.f32 %v3097, 0.5
    %v3102 = vmul.f32 %v3092, 0.70710677
    %v3103 = vmul.f32 %v3097, 0.70710677
    %v3104 = verf.f32.pop %v3102
    %v3105 = verf.f32.pop %v3103
    %v3106 = vadd.f32 %v3104, 1.0
    %v3107 = vadd.f32 %v3105, 1.0
    %v3108 = vmul.f32 %v3100, %v3106
    %v3109 = vmul.f32 %v3101, %v3107
    %v3110 = vld [vmem:[%s13] sm:$0xff]
    %v3111 = vld [vmem:[%s13 + $0x8] sm:$0xff]
    %v3112 = vld [vmem:[%s13 + $0x10] sm:$0xff]
    %v3113 = vld [vmem:[%s13 + $0x18] sm:$0xff]
    %v3114 = vld [vmem:[%s13 + $0x20] sm:$0xff]
    %v3115 = vld [vmem:[%s13 + $0x28] sm:$0xff]
    %v3116 = vld [vmem:[%s13 + $0x30] sm:$0xff]
    %v3117 = vld [vmem:[%s13 + $0x38] sm:$0xff]
    %v3118 = vld [vmem:[#allocation16] sm:$0x1]
    %v3120 = vlaneseq
    %v3121 = vshrl.u32 %v3120, 7
    %v3122 = vsub.s32 0, %v3121
    %v3123 = vrot.slane %v3118, %v3122
    %vm3125 = vcmask 523264
    %v3127 = vsel %vm3125, %v3108, 0
    %v3130 = vsel %vm3125, %v3109, 0
    %3132 = vmatprep.subr.mxu0 0.0
    %3133 = vmatpush1.msra.mxu0 %v3110
    %3134 = vmatprep.subr.mxu0 0.0
    %3135 = vmatpush1.msra.mxu0 %v3111
    %3136 = vmatprep.subr.mxu0 0.0
    %3137 = vmatpush1.msra.mxu0 %v3112
    %3138 = vmatprep.subr.mxu0 0.0
    %3139 = vmatpush1.msra.mxu0 %v3113
    %3140 = vmatprep.subr.mxu0 0.0
    %3141 = vmatpush1.msra.mxu0 %v3114
    %3142 = vmatprep.subr.mxu0 0.0
    %3143 = vmatpush1.msra.mxu0 %v3115
    %3144 = vmatprep.subr.mxu0 0.0
    %3145 = vmatpush1.msra.mxu0 %v3116
    %3146 = vmatprep.subr.mxu0 0.0
    %3147 = vmatpush1.msra.mxu0 %v3117
    %3148 = vmatprep.subr.mxu0 0.0
    %3149 = vmatpush1.msra.mxu0 0.0
    %3150 = vmatprep.subr.mxu0 0.0
    %3151 = vmatpush1.msra.mxu0 0.0
    %3152 = vmatprep.subr.mxu0 0.0
    %3153 = vmatpush1.msra.mxu0 0.0
    %3154 = vmatprep.subr.mxu0 0.0
    %3155 = vmatpush1.msra.mxu0 0.0
    %3156 = vmatprep.subr.mxu0 0.0
    %3157 = vmatpush1.msra.mxu0 0.0
    %3158 = vmatprep.subr.mxu0 0.0
    %3159 = vmatpush1.msra.mxu0 0.0
    %3160 = vmatprep.subr.mxu0 0.0
    %3161 = vmatpush1.msra.mxu0 0.0
    %3162 = vmatprep.subr.mxu0 0.0
    %3163 = vmatpush1.msra.mxu0 0.0
    %3164 = vmatprep.subr.mxu0 0.0
    %3165 = vmatpush1.msra.mxu0 0.0
    %3166 = vmatprep.subr.mxu0 0.0
    %3167 = vmatpush1.msra.mxu0 0.0
    %3168 = vmatprep.subr.mxu0 0.0
    %3169 = vmatpush1.msra.mxu0 0.0
    %3170 = vmatprep.subr.mxu0 0.0
    %3171 = vmatpush1.msra.mxu0 0.0
    %3172 = vmatprep.subr.mxu0 0.0
    %3173 = vmatpush1.msra.mxu0 0.0
    %3174 = vmatprep.subr.mxu0 0.0
    %3175 = vmatpush1.msra.mxu0 0.0
    %3176 = vmatprep.subr.mxu0 0.0
    %3177 = vmatpush1.msra.mxu0 0.0
    %3178 = vmatprep.subr.mxu0 0.0
    %3179 = vmatpush1.msra.mxu0 0.0
    %3180 = vmatprep.subr.mxu0 0.0
    %3181 = vmatpush1.msra.mxu0 0.0
    %3182 = vmatprep.subr.mxu0 0.0
    %3183 = vmatpush1.msra.mxu0 0.0
    %3184 = vmatprep.subr.mxu0 0.0
    %3185 = vmatpush1.msra.mxu0 0.0
    %3186 = vmatprep.subr.mxu0 0.0
    %3187 = vmatpush1.msra.mxu0 0.0
    %3188 = vmatprep.subr.mxu0 0.0
    %3189 = vmatpush1.msra.mxu0 0.0
    %3190 = vmatprep.subr.mxu0 0.0
    %3191 = vmatpush1.msra.mxu0 0.0
    %3192 = vmatprep.subr.mxu0 0.0
    %3193 = vmatpush1.msra.mxu0 0.0
    %3194 = vmatprep.subr.mxu0 0.0
    %3195 = vmatpush1.msra.mxu0 0.0
    %3196 = vmatprep.mubr.f32.mxu0 0.0
    %3197 = vmatmul.mubr.f32.gmra.mrb[0].mxu0 %v3127
    %v3198 = vpop.f32.mrb[0].mxu0
    %v3199 = vadd.f32 %v3123, %v3198
    %v3200 = vpop.f32.mrb[0].mxu0
    %3201 = vmatprep.mubr.f32.mxu0 0.0
    %3202 = vmatmul.mubr.f32.gmra.mrb[0].mxu0 %v3130
    %v3203 = vpop.f32.mrb[0].mxu0
    %v3204 = vadd.f32 %v3123, %v3203
    %v3205 = vpop.f32.mrb[0].mxu0
    %3206 = vdwg.mxu0
    %v3207 = vadd.f32 %v3006, %v3199
    %v3208 = vadd.f32 %v3007, %v3204
    %v3209 = vld [vmem:[#allocation20] sm:$0x1]
    %v3210 = vld [vmem:[#allocation22] sm:$0x1]
    %v3211 = vsel %vm803, %v3207, 0.0
    %3212 = vadd.xlane.f32.xlu0 %v3211
    %v3213 = vpop.xlane.xlu0 %3212
    %v3214 = vsel %vm803, %v3208, 0.0
    %3215 = vadd.xlane.f32.xlu0 %v3214
    %v3216 = vpop.xlane.xlu0 %3215
    %v3217 = vmul.f32 %v3213, %v2971
    %v3218 = vmul.f32 %v3216, %v2971
    %v3219 = vsub.f32 %v3207, %v3217
    %v3220 = vsub.f32 %v3208, %v3218
    %v3221 = vmul.f32 %v3219, %v3219
    %v3222 = vmul.f32 %v3220, %v3220
    %v3223 = vsel %vm803, %v3221, 0.0
    %3224 = vadd.xlane.f32.xlu0 %v3223
    %v3225 = vpop.xlane.xlu0 %3224
    %v3226 = vsel %vm803, %v3222, 0.0
    %3227 = vadd.xlane.f32.xlu0 %v3226
    %v3228 = vpop.xlane.xlu0 %3227
    %v3229 = vmul.f32 %v3225, %v2971
    %v3230 = vmul.f32 %v3228, %v2971
    %v3231 = vadd.f32 %v3229, 1e-05
    %v3232 = vadd.f32 %v3230, 1e-05
    %v3233 = vrsqrt.pop %v3231
    %v3234 = vrsqrt.pop %v3232
    %v3235 = vmul.f32 %v3219, %v3233
    %v3236 = vmul.f32 %v3220, %v3234
    %v3238 = vlaneseq
    %v3239 = vshrl.u32 %v3238, 7
    %v3240 = vsub.s32 0, %v3239
    %v3241 = vrot.slane %v3209, %v3240
    %v3243 = vmul.f32 %v3235, %v3241
    %v3244 = vmul.f32 %v3236, %v3241
    %v3246 = vlaneseq
    %v3247 = vshrl.u32 %v3246, 7
    %v3248 = vsub.s32 0, %v3247
    %v3249 = vrot.slane %v3210, %v3248
    %v3251 = vadd.f32 %v3243, %v3249
    %v3252 = vadd.f32 %v3244, %v3249
    %v3253 = vld [vmem:[%s19] sm:$0xff]
    %v3254 = vld [vmem:[%s19 + $0x8] sm:$0xff]
    %v3255 = vld [vmem:[%s19 + $0x10] sm:$0xff]
    %v3256 = vld [vmem:[%s19 + $0x18] sm:$0xff]
    %v3257 = vld [vmem:[%s19 + $0x20] sm:$0xff]
    %v3258 = vld [vmem:[%s19 + $0x28] sm:$0xff]
    %v3259 = vld [vmem:[%s19 + $0x30] sm:$0xff]
    %v3260 = vld [vmem:[%s19 + $0x38] sm:$0xff]
    %v3261 = vld [vmem:[%s19 + $0x40] sm:$0xff]
    %v3262 = vld [vmem:[%s19 + $0x48] sm:$0xff]
    %v3263 = vld [vmem:[%s19 + $0x50] sm:$0xff]
    %v3264 = vld [vmem:[%s19 + $0x58] sm:$0xff]
    %v3265 = vld [vmem:[#allocation23] sm:$0x1]
    %v3266 = vld [vmem:[#allocation25] sm:$0x1]
    %v3267 = vld [vmem:[#allocation26] sm:$0x1]
    %v3269 = vrot.slane %v3251, 7
    %v3271 = vsel %vm316, %v3269, %v3269
    %v3272 = vrot.slane %v3251, 1
    %v3274 = vsel %vm320, %v3272, %v3272
    %v3275 = vsel %vm803, %v3251, 0
    %3277 = vmatprep.subr.mxu0 0.0
    %3278 = vmatpush1.msra.mxu0 %v3257
    %3279 = vmatprep.subr.mxu0 0.0
    %3280 = vmatpush1.msra.mxu0 %v3258
    %3281 = vmatprep.subr.mxu0 0.0
    %3282 = vmatpush1.msra.mxu0 %v3259
    %3283 = vmatprep.subr.mxu0 0.0
    %3284 = vmatpush1.msra.mxu0 %v3260
    %3285 = vmatprep.subr.mxu0 0.0
    %3286 = vmatpush1.msra.mxu0 0.0
    %3287 = vmatprep.subr.mxu0 0.0
    %3288 = vmatpush1.msra.mxu0 0.0
    %3289 = vmatprep.subr.mxu0 0.0
    %3290 = vmatpush1.msra.mxu0 0.0
    %3291 = vmatprep.subr.mxu0 0.0
    %3292 = vmatpush1.msra.mxu0 0.0
    %3293 = vmatprep.subr.mxu0 0.0
    %3294 = vmatpush1.msra.mxu0 0.0
    %3295 = vmatprep.subr.mxu0 0.0
    %3296 = vmatpush1.msra.mxu0 0.0
    %3297 = vmatprep.subr.mxu0 0.0
    %3298 = vmatpush1.msra.mxu0 0.0
    %3299 = vmatprep.subr.mxu0 0.0
    %3300 = vmatpush1.msra.mxu0 0.0
    %3301 = vmatprep.subr.mxu0 0.0
    %3302 = vmatpush1.msra.mxu0 0.0
    %3303 = vmatprep.subr.mxu0 0.0
    %3304 = vmatpush1.msra.mxu0 0.0
    %3305 = vmatprep.subr.mxu0 0.0
    %3306 = vmatpush1.msra.mxu0 0.0
    %3307 = vmatprep.subr.mxu0 0.0
    %3308 = vmatpush1.msra.mxu0 0.0
    %3309 = vmatprep.subr.mxu0 0.0
    %3310 = vmatpush1.msra.mxu0 0.0
    %3311 = vmatprep.subr.mxu0 0.0
    %3312 = vmatpush1.msra.mxu0 0.0
    %3313 = vmatprep.subr.mxu0 0.0
    %3314 = vmatpush1.msra.mxu0 0.0
    %3315 = vmatprep.subr.mxu0 0.0
    %3316 = vmatpush1.msra.mxu0 0.0
    %3317 = vmatprep.subr.mxu0 0.0
    %3318 = vmatpush1.msra.mxu0 0.0
    %3319 = vmatprep.subr.mxu0 0.0
    %3320 = vmatpush1.msra.mxu0 0.0
    %3321 = vmatprep.subr.mxu0 0.0
    %3322 = vmatpush1.msra.mxu0 0.0
    %3323 = vmatprep.subr.mxu0 0.0
    %3324 = vmatpush1.msra.mxu0 0.0
    %3325 = vmatprep.subr.mxu0 0.0
    %3326 = vmatpush1.msra.mxu0 0.0
    %3327 = vmatprep.subr.mxu0 0.0
    %3328 = vmatpush1.msra.mxu0 0.0
    %3329 = vmatprep.subr.mxu0 0.0
    %3330 = vmatpush1.msra.mxu0 0.0
    %3331 = vmatprep.subr.mxu0 0.0
    %3332 = vmatpush1.msra.mxu0 0.0
    %3333 = vmatprep.subr.mxu0 0.0
    %3334 = vmatpush1.msra.mxu0 0.0
    %3335 = vmatprep.subr.mxu0 0.0
    %3336 = vmatpush1.msra.mxu0 0.0
    %3337 = vmatprep.subr.mxu0 0.0
    %3338 = vmatpush1.msra.mxu0 0.0
    %3339 = vmatprep.subr.mxu0 0.0
    %3340 = vmatpush1.msra.mxu0 0.0
    %3341 = vmatprep.mubr.f32.mxu0 0.0
    %3342 = vmatmul.mubr.f32.gmra.mrb[0].mxu0 %v3275
    %v3343 = vpop.f32.mrb[0].mxu0
    %v3344 = vadd.f32 0.0, %v3343
    %v3345 = vpop.f32.mrb[0].mxu0
    %3346 = vdwg.mxu0
    %v3348 = vsel %vm803, %v3271, 0
    %3350 = vmatprep.subr.mxu0 0.0
    %3351 = vmatpush1.msra.mxu0 %v3253
    %3352 = vmatprep.subr.mxu0 0.0
    %3353 = vmatpush1.msra.mxu0 %v3254
    %3354 = vmatprep.subr.mxu0 0.0
    %3355 = vmatpush1.msra.mxu0 %v3255
    %3356 = vmatprep.subr.mxu0 0.0
    %3357 = vmatpush1.msra.mxu0 %v3256
    %3358 = vmatprep.subr.mxu0 0.0
    %3359 = vmatpush1.msra.mxu0 0.0
    %3360 = vmatprep.subr.mxu0 0.0
    %3361 = vmatpush1.msra.mxu0 0.0
    %3362 = vmatprep.subr.mxu0 0.0
    %3363 = vmatpush1.msra.mxu0 0.0
    %3364 = vmatprep.subr.mxu0 0.0
    %3365 = vmatpush1.msra.mxu0 0.0
    %3366 = vmatprep.subr.mxu0 0.0
    %3367 = vmatpush1.msra.mxu0 0.0
    %3368 = vmatprep.subr.mxu0 0.0
    %3369 = vmatpush1.msra.mxu0 0.0
    %3370 = vmatprep.subr.mxu0 0.0
    %3371 = vmatpush1.msra.mxu0 0.0
    %3372 = vmatprep.subr.mxu0 0.0
    %3373 = vmatpush1.msra.mxu0 0.0
    %3374 = vmatprep.subr.mxu0 0.0
    %3375 = vmatpush1.msra.mxu0 0.0
    %3376 = vmatprep.subr.mxu0 0.0
    %3377 = vmatpush1.msra.mxu0 0.0
    %3378 = vmatprep.subr.mxu0 0.0
    %3379 = vmatpush1.msra.mxu0 0.0
    %3380 = vmatprep.subr.mxu0 0.0
    %3381 = vmatpush1.msra.mxu0 0.0
    %3382 = vmatprep.subr.mxu0 0.0
    %3383 = vmatpush1.msra.mxu0 0.0
    %3384 = vmatprep.subr.mxu0 0.0
    %3385 = vmatpush1.msra.mxu0 0.0
    %3386 = vmatprep.subr.mxu0 0.0
    %3387 = vmatpush1.msra.mxu0 0.0
    %3388 = vmatprep.subr.mxu0 0.0
    %3389 = vmatpush1.msra.mxu0 0.0
    %3390 = vmatprep.subr.mxu0 0.0
    %3391 = vmatpush1.msra.mxu0 0.0
    %3392 = vmatprep.subr.mxu0 0.0
    %3393 = vmatpush1.msra.mxu0 0.0
    %3394 = vmatprep.subr.mxu0 0.0
    %3395 = vmatpush1.msra.mxu0 0.0
    %3396 = vmatprep.subr.mxu0 0.0
    %3397 = vmatpush1.msra.mxu0 0.0
    %3398 = vmatprep.subr.mxu0 0.0
    %3399 = vmatpush1.msra.mxu0 0.0
    %3400 = vmatprep.subr.mxu0 0.0
    %3401 = vmatpush1.msra.mxu0 0.0
    %3402 = vmatprep.subr.mxu0 0.0
    %3403 = vmatpush1.msra.mxu0 0.0
    %3404 = vmatprep.subr.mxu0 0.0
    %3405 = vmatpush1.msra.mxu0 0.0
    %3406 = vmatprep.subr.mxu0 0.0
    %3407 = vmatpush1.msra.mxu0 0.0
    %3408 = vmatprep.subr.mxu0 0.0
    %3409 = vmatpush1.msra.mxu0 0.0
    %3410 = vmatprep.subr.mxu0 0.0
    %3411 = vmatpush1.msra.mxu0 0.0
    %3412 = vmatprep.subr.mxu0 0.0
    %3413 = vmatpush1.msra.mxu0 0.0
    %3414 = vmatprep.mubr.f32.mxu0 0.0
    %3415 = vmatmul.mubr.f32.gmra.mrb[0].mxu0 %v3348
    %v3416 = vpop.f32.mrb[0].mxu0
    %v3417 = vadd.f32 %v3344, %v3416
    %v3418 = vpop.f32.mrb[0].mxu0
    %3419 = vdwg.mxu0
    %v3421 = vsel %vm803, %v3274, 0
    %3423 = vmatprep.subr.mxu0 0.0
    %3424 = vmatpush1.msra.mxu0 %v3261
    %3425 = vmatprep.subr.mxu0 0.0
    %3426 = vmatpush1.msra.mxu0 %v3262
    %3427 = vmatprep.subr.mxu0 0.0
    %3428 = vmatpush1.msra.mxu0 %v3263
    %3429 = vmatprep.subr.mxu0 0.0
    %3430 = vmatpush1.msra.mxu0 %v3264
    %3431 = vmatprep.subr.mxu0 0.0
    %3432 = vmatpush1.msra.mxu0 0.0
    %3433 = vmatprep.subr.mxu0 0.0
    %3434 = vmatpush1.msra.mxu0 0.0
    %3435 = vmatprep.subr.mxu0 0.0
    %3436 = vmatpush1.msra.mxu0 0.0
    %3437 = vmatprep.subr.mxu0 0.0
    %3438 = vmatpush1.msra.mxu0 0.0
    %3439 = vmatprep.subr.mxu0 0.0
    %3440 = vmatpush1.msra.mxu0 0.0
    %3441 = vmatprep.subr.mxu0 0.0
    %3442 = vmatpush1.msra.mxu0 0.0
    %3443 = vmatprep.subr.mxu0 0.0
    %3444 = vmatpush1.msra.mxu0 0.0
    %3445 = vmatprep.subr.mxu0 0.0
    %3446 = vmatpush1.msra.mxu0 0.0
    %3447 = vmatprep.subr.mxu0 0.0
    %3448 = vmatpush1.msra.mxu0 0.0
    %3449 = vmatprep.subr.mxu0 0.0
    %3450 = vmatpush1.msra.mxu0 0.0
    %3451 = vmatprep.subr.mxu0 0.0
    %3452 = vmatpush1.msra.mxu0 0.0
    %3453 = vmatprep.subr.mxu0 0.0
    %3454 = vmatpush1.msra.mxu0 0.0
    %3455 = vmatprep.subr.mxu0 0.0
    %3456 = vmatpush1.msra.mxu0 0.0
    %3457 = vmatprep.subr.mxu0 0.0
    %3458 = vmatpush1.msra.mxu0 0.0
    %3459 = vmatprep.subr.mxu0 0.0
    %3460 = vmatpush1.msra.mxu0 0.0
    %3461 = vmatprep.subr.mxu0 0.0
    %3462 = vmatpush1.msra.mxu0 0.0
    %3463 = vmatprep.subr.mxu0 0.0
    %3464 = vmatpush1.msra.mxu0 0.0
    %3465 = vmatprep.subr.mxu0 0.0
    %3466 = vmatpush1.msra.mxu0 0.0
    %3467 = vmatprep.subr.mxu0 0.0
    %3468 = vmatpush1.msra.mxu0 0.0
    %3469 = vmatprep.subr.mxu0 0.0
    %3470 = vmatpush1.msra.mxu0 0.0
    %3471 = vmatprep.subr.mxu0 0.0
    %3472 = vmatpush1.msra.mxu0 0.0
    %3473 = vmatprep.subr.mxu0 0.0
    %3474 = vmatpush1.msra.mxu0 0.0
    %3475 = vmatprep.subr.mxu0 0.0
    %3476 = vmatpush1.msra.mxu0 0.0
    %3477 = vmatprep.subr.mxu0 0.0
    %3478 = vmatpush1.msra.mxu0 0.0
    %3479 = vmatprep.subr.mxu0 0.0
    %3480 = vmatpush1.msra.mxu0 0.0
    %3481 = vmatprep.subr.mxu0 0.0
    %3482 = vmatpush1.msra.mxu0 0.0
    %3483 = vmatprep.subr.mxu0 0.0
    %3484 = vmatpush1.msra.mxu0 0.0
    %3485 = vmatprep.subr.mxu0 0.0
    %3486 = vmatpush1.msra.mxu0 0.0
    %3487 = vmatprep.mubr.f32.mxu0 0.0
    %3488 = vmatmul.mubr.f32.gmra.mrb[0].mxu0 %v3421
    %v3489 = vpop.f32.mrb[0].mxu0
    %v3490 = vadd.f32 0.0, %v3489
    %v3491 = vpop.f32.mrb[0].mxu0
    %3492 = vdwg.mxu0
    %v3493 = vadd.f32 %v3417, %v3490
    %v3495 = vlaneseq
    %v3496 = vshrl.u32 %v3495, 7
    %v3497 = vsub.s32 0, %v3496
    %v3498 = vrot.slane %v3265, %v3497
    %v3500 = vadd.f32 %v3493, %v3498
    %v3502 = vrot.slane %v3252, 7
    %v3504 = vsel %vm316, %v3502, %v3502
    %v3505 = vrot.slane %v3252, 1
    %v3507 = vsel %vm320, %v3505, %v3505
    %v3508 = vsel %vm803, %v3252, 0
    %3510 = vmatprep.subr.mxu0 0.0
    %3511 = vmatpush1.msra.mxu0 %v3257
    %3512 = vmatprep.subr.mxu0 0.0
    %3513 = vmatpush1.msra.mxu0 %v3258
    %3514 = vmatprep.subr.mxu0 0.0
    %3515 = vmatpush1.msra.mxu0 %v3259
    %3516 = vmatprep.subr.mxu0 0.0
    %3517 = vmatpush1.msra.mxu0 %v3260
    %3518 = vmatprep.subr.mxu0 0.0
    %3519 = vmatpush1.msra.mxu0 0.0
    %3520 = vmatprep.subr.mxu0 0.0
    %3521 = vmatpush1.msra.mxu0 0.0
    %3522 = vmatprep.subr.mxu0 0.0
    %3523 = vmatpush1.msra.mxu0 0.0
    %3524 = vmatprep.subr.mxu0 0.0
    %3525 = vmatpush1.msra.mxu0 0.0
    %3526 = vmatprep.subr.mxu0 0.0
    %3527 = vmatpush1.msra.mxu0 0.0
    %3528 = vmatprep.subr.mxu0 0.0
    %3529 = vmatpush1.msra.mxu0 0.0
    %3530 = vmatprep.subr.mxu0 0.0
    %3531 = vmatpush1.msra.mxu0 0.0
    %3532 = vmatprep.subr.mxu0 0.0
    %3533 = vmatpush1.msra.mxu0 0.0
    %3534 = vmatprep.subr.mxu0 0.0
    %3535 = vmatpush1.msra.mxu0 0.0
    %3536 = vmatprep.subr.mxu0 0.0
    %3537 = vmatpush1.msra.mxu0 0.0
    %3538 = vmatprep.subr.mxu0 0.0
    %3539 = vmatpush1.msra.mxu0 0.0
    %3540 = vmatprep.subr.mxu0 0.0
    %3541 = vmatpush1.msra.mxu0 0.0
    %3542 = vmatprep.subr.mxu0 0.0
    %3543 = vmatpush1.msra.mxu0 0.0
    %3544 = vmatprep.subr.mxu0 0.0
    %3545 = vmatpush1.msra.mxu0 0.0
    %3546 = vmatprep.subr.mxu0 0.0
    %3547 = vmatpush1.msra.mxu0 0.0
    %3548 = vmatprep.subr.mxu0 0.0
    %3549 = vmatpush1.msra.mxu0 0.0
    %3550 = vmatprep.subr.mxu0 0.0
    %3551 = vmatpush1.msra.mxu0 0.0
    %3552 = vmatprep.subr.mxu0 0.0
    %3553 = vmatpush1.msra.mxu0 0.0
    %3554 = vmatprep.subr.mxu0 0.0
    %3555 = vmatpush1.msra.mxu0 0.0
    %3556 = vmatprep.subr.mxu0 0.0
    %3557 = vmatpush1.msra.mxu0 0.0
    %3558 = vmatprep.subr.mxu0 0.0
    %3559 = vmatpush1.msra.mxu0 0.0
    %3560 = vmatprep.subr.mxu0 0.0
    %3561 = vmatpush1.msra.mxu0 0.0
    %3562 = vmatprep.subr.mxu0 0.0
    %3563 = vmatpush1.msra.mxu0 0.0
    %3564 = vmatprep.subr.mxu0 0.0
    %3565 = vmatpush1.msra.mxu0 0.0
    %3566 = vmatprep.subr.mxu0 0.0
    %3567 = vmatpush1.msra.mxu0 0.0
    %3568 = vmatprep.subr.mxu0 0.0
    %3569 = vmatpush1.msra.mxu0 0.0
    %3570 = vmatprep.subr.mxu0 0.0
    %3571 = vmatpush1.msra.mxu0 0.0
    %3572 = vmatprep.subr.mxu0 0.0
    %3573 = vmatpush1.msra.mxu0 0.0
    %3574 = vmatprep.mubr.f32.mxu0 0.0
    %3575 = vmatmul.mubr.f32.gmra.mrb[0].mxu0 %v3508
    %v3576 = vpop.f32.mrb[0].mxu0
    %v3577 = vadd.f32 0.0, %v3576
    %v3578 = vpop.f32.mrb[0].mxu0
    %3579 = vdwg.mxu0
    %v3581 = vsel %vm803, %v3504, 0
    %3583 = vmatprep.subr.mxu0 0.0
    %3584 = vmatpush1.msra.mxu0 %v3253
    %3585 = vmatprep.subr.mxu0 0.0
    %3586 = vmatpush1.msra.mxu0 %v3254
    %3587 = vmatprep.subr.mxu0 0.0
    %3588 = vmatpush1.msra.mxu0 %v3255
    %3589 = vmatprep.subr.mxu0 0.0
    %3590 = vmatpush1.msra.mxu0 %v3256
    %3591 = vmatprep.subr.mxu0 0.0
    %3592 = vmatpush1.msra.mxu0 0.0
    %3593 = vmatprep.subr.mxu0 0.0
    %3594 = vmatpush1.msra.mxu0 0.0
    %3595 = vmatprep.subr.mxu0 0.0
    %3596 = vmatpush1.msra.mxu0 0.0
    %3597 = vmatprep.subr.mxu0 0.0
    %3598 = vmatpush1.msra.mxu0 0.0
    %3599 = vmatprep.subr.mxu0 0.0
    %3600 = vmatpush1.msra.mxu0 0.0
    %3601 = vmatprep.subr.mxu0 0.0
    %3602 = vmatpush1.msra.mxu0 0.0
    %3603 = vmatprep.subr.mxu0 0.0
    %3604 = vmatpush1.msra.mxu0 0.0
    %3605 = vmatprep.subr.mxu0 0.0
    %3606 = vmatpush1.msra.mxu0 0.0
    %3607 = vmatprep.subr.mxu0 0.0
    %3608 = vmatpush1.msra.mxu0 0.0
    %3609 = vmatprep.subr.mxu0 0.0
    %3610 = vmatpush1.msra.mxu0 0.0
    %3611 = vmatprep.subr.mxu0 0.0
    %3612 = vmatpush1.msra.mxu0 0.0
    %3613 = vmatprep.subr.mxu0 0.0
    %3614 = vmatpush1.msra.mxu0 0.0
    %3615 = vmatprep.subr.mxu0 0.0
    %3616 = vmatpush1.msra.mxu0 0.0
    %3617 = vmatprep.subr.mxu0 0.0
    %3618 = vmatpush1.msra.mxu0 0.0
    %3619 = vmatprep.subr.mxu0 0.0
    %3620 = vmatpush1.msra.mxu0 0.0
    %3621 = vmatprep.subr.mxu0 0.0
    %3622 = vmatpush1.msra.mxu0 0.0
    %3623 = vmatprep.subr.mxu0 0.0
    %3624 = vmatpush1.msra.mxu0 0.0
    %3625 = vmatprep.subr.mxu0 0.0
    %3626 = vmatpush1.msra.mxu0 0.0
    %3627 = vmatprep.subr.mxu0 0.0
    %3628 = vmatpush1.msra.mxu0 0.0
    %3629 = vmatprep.subr.mxu0 0.0
    %3630 = vmatpush1.msra.mxu0 0.0
    %3631 = vmatprep.subr.mxu0 0.0
    %3632 = vmatpush1.msra.mxu0 0.0
    %3633 = vmatprep.subr.mxu0 0.0
    %3634 = vmatpush1.msra.mxu0 0.0
    %3635 = vmatprep.subr.mxu0 0.0
    %3636 = vmatpush1.msra.mxu0 0.0
    %3637 = vmatprep.subr.mxu0 0.0
    %3638 = vmatpush1.msra.mxu0 0.0
    %3639 = vmatprep.subr.mxu0 0.0
    %3640 = vmatpush1.msra.mxu0 0.0
    %3641 = vmatprep.subr.mxu0 0.0
    %3642 = vmatpush1.msra.mxu0 0.0
    %3643 = vmatprep.subr.mxu0 0.0
    %3644 = vmatpush1.msra.mxu0 0.0
    %3645 = vmatprep.subr.mxu0 0.0
    %3646 = vmatpush1.msra.mxu0 0.0
    %3647 = vmatprep.mubr.f32.mxu0 0.0
    %3648 = vmatmul.mubr.f32.gmra.mrb[0].mxu0 %v3581
    %v3649 = vpop.f32.mrb[0].mxu0
    %v3650 = vadd.f32 %v3577, %v3649
    %v3651 = vpop.f32.mrb[0].mxu0
    %3652 = vdwg.mxu0
    %v3654 = vsel %vm803, %v3507, 0
    %3656 = vmatprep.subr.mxu0 0.0
    %3657 = vmatpush1.msra.mxu0 %v3261
    %3658 = vmatprep.subr.mxu0 0.0
    %3659 = vmatpush1.msra.mxu0 %v3262
    %3660 = vmatprep.subr.mxu0 0.0
    %3661 = vmatpush1.msra.mxu0 %v3263
    %3662 = vmatprep.subr.mxu0 0.0
    %3663 = vmatpush1.msra.mxu0 %v3264
    %3664 = vmatprep.subr.mxu0 0.0
    %3665 = vmatpush1.msra.mxu0 0.0
    %3666 = vmatprep.subr.mxu0 0.0
    %3667 = vmatpush1.msra.mxu0 0.0
    %3668 = vmatprep.subr.mxu0 0.0
    %3669 = vmatpush1.msra.mxu0 0.0
    %3670 = vmatprep.subr.mxu0 0.0
    %3671 = vmatpush1.msra.mxu0 0.0
    %3672 = vmatprep.subr.mxu0 0.0
    %3673 = vmatpush1.msra.mxu0 0.0
    %3674 = vmatprep.subr.mxu0 0.0
    %3675 = vmatpush1.msra.mxu0 0.0
    %3676 = vmatprep.subr.mxu0 0.0
    %3677 = vmatpush1.msra.mxu0 0.0
    %3678 = vmatprep.subr.mxu0 0.0
    %3679 = vmatpush1.msra.mxu0 0.0
    %3680 = vmatprep.subr.mxu0 0.0
    %3681 = vmatpush1.msra.mxu0 0.0
    %3682 = vmatprep.subr.mxu0 0.0
    %3683 = vmatpush1.msra.mxu0 0.0
    %3684 = vmatprep.subr.mxu0 0.0
    %3685 = vmatpush1.msra.mxu0 0.0
    %3686 = vmatprep.subr.mxu0 0.0
    %3687 = vmatpush1.msra.mxu0 0.0
    %3688 = vmatprep.subr.mxu0 0.0
    %3689 = vmatpush1.msra.mxu0 0.0
    %3690 = vmatprep.subr.mxu0 0.0
    %3691 = vmatpush1.msra.mxu0 0.0
    %3692 = vmatprep.subr.mxu0 0.0
    %3693 = vmatpush1.msra.mxu0 0.0
    %3694 = vmatprep.subr.mxu0 0.0
    %3695 = vmatpush1.msra.mxu0 0.0
    %3696 = vmatprep.subr.mxu0 0.0
    %3697 = vmatpush1.msra.mxu0 0.0
    %3698 = vmatprep.subr.mxu0 0.0
    %3699 = vmatpush1.msra.mxu0 0.0
    %3700 = vmatprep.subr.mxu0 0.0
    %3701 = vmatpush1.msra.mxu0 0.0
    %3702 = vmatprep.subr.mxu0 0.0
    %3703 = vmatpush1.msra.mxu0 0.0
    %3704 = vmatprep.subr.mxu0 0.0
    %3705 = vmatpush1.msra.mxu0 0.0
    %3706 = vmatprep.subr.mxu0 0.0
    %3707 = vmatpush1.msra.mxu0 0.0
    %3708 = vmatprep.subr.mxu0 0.0
    %3709 = vmatpush1.msra.mxu0 0.0
    %3710 = vmatprep.subr.mxu0 0.0
    %3711 = vmatpush1.msra.mxu0 0.0
    %3712 = vmatprep.subr.mxu0 0.0
    %3713 = vmatpush1.msra.mxu0 0.0
    %3714 = vmatprep.subr.mxu0 0.0
    %3715 = vmatpush1.msra.mxu0 0.0
    %3716 = vmatprep.subr.mxu0 0.0
    %3717 = vmatpush1.msra.mxu0 0.0
    %3718 = vmatprep.subr.mxu0 0.0
    %3719 = vmatpush1.msra.mxu0 0.0
    %3720 = vmatprep.mubr.f32.mxu0 0.0
    %3721 = vmatmul.mubr.f32.gmra.mrb[0].mxu0 %v3654
    %v3722 = vpop.f32.mrb[0].mxu0
    %v3723 = vadd.f32 0.0, %v3722
    %v3724 = vpop.f32.mrb[0].mxu0
    %3725 = vdwg.mxu0
    %v3726 = vadd.f32 %v3650, %v3723
    %v3727 = vadd.f32 %v3726, %v3498
    %v3728 = vsel %vm803, %v3500, 0.0
    %v3729 = vsel %vm803, %v3727, 0.0
    %v3730 = vadd.f32 %v3728, %v3729
    %v3731 = vrot.slane %v3730, 4
    %v3732 = vadd.f32 %v3730, %v3731
    %v3733 = vrot.slane %v3732, 2
    %v3734 = vadd.f32 %v3732, %v3733
    %v3735 = vrot.slane %v3734, 1
    %v3736 = vadd.f32 %v3734, %v3735
    %v3737 = vrcp.pop 16.0
    %v3738 = vmul.f32 %v3736, %v3737
    %v3739 = vsub.f32 %v3500, %v3738
    %v3740 = vsub.f32 %v3727, %v3738
    %v3741 = vmul.f32 %v3739, %v3739
    %v3742 = vmul.f32 %v3740, %v3740
    %v3743 = vsel %vm803, %v3741, 0.0
    %v3744 = vsel %vm803, %v3742, 0.0
    %v3745 = vadd.f32 %v3743, %v3744
    %v3746 = vrot.slane %v3745, 4
    %v3747 = vadd.f32 %v3745, %v3746
    %v3748 = vrot.slane %v3747, 2
    %v3749 = vadd.f32 %v3747, %v3748
    %v3750 = vrot.slane %v3749, 1
    %v3751 = vadd.f32 %v3749, %v3750
    %v3752 = vmul.f32 %v3751, %v3737
    %v3753 = vadd.f32 %v3752, 1e-05
    %v3754 = vrsqrt.pop %v3753
    %v3755 = vmul.f32 %v3739, %v3754
    %v3756 = vmul.f32 %v3740, %v3754
    %v3758 = vlaneseq
    %v3759 = vshrl.u32 %v3758, 7
    %v3760 = vsub.s32 0, %v3759
    %v3761 = vrot.slane %v3266, %v3760
    %v3763 = vmul.f32 %v3755, %v3761
    %v3764 = vmul.f32 %v3756, %v3761
    %v3766 = vlaneseq
    %v3767 = vshrl.u32 %v3766, 7
    %v3768 = vsub.s32 0, %v3767
    %v3769 = vrot.slane %v3267, %v3768
    %v3771 = vadd.f32 %v3763, %v3769
    %v3772 = vadd.f32 %v3764, %v3769
    %vm3773 = vcmp.gt.f32.partialorder %v3771, 0.0
    %vm3774 = vcmp.gt.f32.partialorder %v3772, 0.0
    %v3775 = vmin.f32 %v3771, 0.0
    %v3776 = vmin.f32 %v3772, 0.0
    %v3777 = vmul.f32 %v3775, 1.442695
    %v3778 = vpow.pop %v3777
    %v3779 = vmul.f32 %v3776, 1.442695
    %v3780 = vpow.pop %v3779
    %v3781 = vsub.f32 %v3778, 1.0
    %v3782 = vsub.f32 %v3780, 1.0
    %v3783 = vsel %vm3773, %v3771, %v3781
    %v3784 = vsel %vm3774, %v3772, %v3782
    %v3786 = vrot.slane %v3783, 7
    %v3788 = vsel %vm316, -1e+30, %v3786
    %v3789 = vrot.slane %v3783, 1
    %v3791 = vsel %vm320, %v3789, -1e+30
    %v3792 = vmax.f32 %v3788, %v3783
    %v3793 = vmax.f32 %v3792, %v3791
    %v3795 = vrot.slane %v3793, 1
    %v3797 = vrot.slane %v3793, 2
    %v3799 = vrot.slane %v3793, 3
    %v3801 = vsel %vm316, %v3793, %v3795
    %vm3802 = vcmask 1041408
    %v3803 = vsel %vm3802, %v3801, %v3797
    %vm3804 = vcmask 1042432
    %v3805 = vsel %vm3804, %v3803, %v3799
    %v3807 = vrot.slane %v3784, 7
    %v3809 = vsel %vm316, -1e+30, %v3807
    %v3810 = vrot.slane %v3784, 1
    %v3812 = vsel %vm320, %v3810, -1e+30
    %v3813 = vmax.f32 %v3809, %v3784
    %v3814 = vmax.f32 %v3813, %v3812
    %v3816 = vrot.slane %v3814, 1
    %v3818 = vrot.slane %v3814, 2
    %v3820 = vrot.slane %v3814, 3
    %v3822 = vsel %vm316, %v3814, %v3816
    %v3823 = vsel %vm3802, %v3822, %v3818
    %v3824 = vsel %vm3804, %v3823, %v3820
    %v3826 = vrot.slane %v3824, 4
    %v3828 = vsel %vm325, %v3805, %v3826
    %s3829 = scalar_lea.vmem %s3, 32
    %v3830 = vld [vmem:[%s3829] sm:$0xff]
    %v3831 = vld [vmem:[%s3829 + $0x8] sm:$0xff]
    %v3832 = vld [vmem:[%s3829 + $0x10] sm:$0xff]
    %v3833 = vld [vmem:[%s3829 + $0x18] sm:$0xff]
    %s3834 = scalar_lea.vmem %s5, 32
    %v3835 = vld [vmem:[%s3834] sm:$0xff]
    %v3836 = vld [vmem:[%s3834 + $0x8] sm:$0xff]
    %v3837 = vld [vmem:[%s3834 + $0x10] sm:$0xff]
    %v3838 = vld [vmem:[%s3834 + $0x18] sm:$0xff]
    %s3839 = scalar_lea.vmem [#allocation7], 32
    %v3840 = vld [vmem:[%s3839] sm:$0xff]
    %v3841 = vld [vmem:[%s3839 + $0x8] sm:$0xff]
    %v3842 = vld [vmem:[%s3839 + $0x10] sm:$0xff]
    %v3843 = vld [vmem:[%s3839 + $0x18] sm:$0xff]
    %s3844 = scalar_lea.vmem [#allocation10], 32
    %v3845 = vld [vmem:[%s3844] sm:$0xff]
    %v3846 = vld [vmem:[%s3844 + $0x8] sm:$0xff]
    %v3847 = vld [vmem:[%s3844 + $0x10] sm:$0xff]
    %v3848 = vld [vmem:[%s3844 + $0x18] sm:$0xff]
    %s3849 = scalar_lea.vmem %s4, 1
    %v3850 = vld [vmem:[%s3849] sm:$0x1]
    %v3852 = vlaneseq
    %v3853 = vshrl.u32 %v3852, 7
    %v3854 = vsub.s32 0, %v3853
    %v3855 = vrot.slane %v3850, %v3854
    %v3858 = vsel %vm803, %v3828, 0
    %3860 = vmatprep.subr.mxu0 0.0
    %3861 = vmatpush1.msra.mxu0 %v3830
    %3862 = vmatprep.subr.mxu0 0.0
    %3863 = vmatpush1.msra.mxu0 %v3831
    %3864 = vmatprep.subr.mxu0 0.0
    %3865 = vmatpush1.msra.mxu0 %v3832
    %3866 = vmatprep.subr.mxu0 0.0
    %3867 = vmatpush1.msra.mxu0 %v3833
    %3868 = vmatprep.subr.mxu0 0.0
    %3869 = vmatpush1.msra.mxu0 0.0
    %3870 = vmatprep.subr.mxu0 0.0
    %3871 = vmatpush1.msra.mxu0 0.0
    %3872 = vmatprep.subr.mxu0 0.0
    %3873 = vmatpush1.msra.mxu0 0.0
    %3874 = vmatprep.subr.mxu0 0.0
    %3875 = vmatpush1.msra.mxu0 0.0
    %3876 = vmatprep.subr.mxu0 0.0
    %3877 = vmatpush1.msra.mxu0 0.0
    %3878 = vmatprep.subr.mxu0 0.0
    %3879 = vmatpush1.msra.mxu0 0.0
    %3880 = vmatprep.subr.mxu0 0.0
    %3881 = vmatpush1.msra.mxu0 0.0
    %3882 = vmatprep.subr.mxu0 0.0
    %3883 = vmatpush1.msra.mxu0 0.0
    %3884 = vmatprep.subr.mxu0 0.0
    %3885 = vmatpush1.msra.mxu0 0.0
    %3886 = vmatprep.subr.mxu0 0.0
    %3887 = vmatpush1.msra.mxu0 0.0
    %3888 = vmatprep.subr.mxu0 0.0
    %3889 = vmatpush1.msra.mxu0 0.0
    %3890 = vmatprep.subr.mxu0 0.0
    %3891 = vmatpush1.msra.mxu0 0.0
    %3892 = vmatprep.subr.mxu0 0.0
    %3893 = vmatpush1.msra.mxu0 0.0
    %3894 = vmatprep.subr.mxu0 0.0
    %3895 = vmatpush1.msra.mxu0 0.0
    %3896 = vmatprep.subr.mxu0 0.0
    %3897 = vmatpush1.msra.mxu0 0.0
    %3898 = vmatprep.subr.mxu0 0.0
    %3899 = vmatpush1.msra.mxu0 0.0
    %3900 = vmatprep.subr.mxu0 0.0
    %3901 = vmatpush1.msra.mxu0 0.0
    %3902 = vmatprep.subr.mxu0 0.0
    %3903 = vmatpush1.msra.mxu0 0.0
    %3904 = vmatprep.subr.mxu0 0.0
    %3905 = vmatpush1.msra.mxu0 0.0
    %3906 = vmatprep.subr.mxu0 0.0
    %3907 = vmatpush1.msra.mxu0 0.0
    %3908 = vmatprep.subr.mxu0 0.0
    %3909 = vmatpush1.msra.mxu0 0.0
    %3910 = vmatprep.subr.mxu0 0.0
    %3911 = vmatpush1.msra.mxu0 0.0
    %3912 = vmatprep.subr.mxu0 0.0
    %3913 = vmatpush1.msra.mxu0 0.0
    %3914 = vmatprep.subr.mxu0 0.0
    %3915 = vmatpush1.msra.mxu0 0.0
    %3916 = vmatprep.subr.mxu0 0.0
    %3917 = vmatpush1.msra.mxu0 0.0
    %3918 = vmatprep.subr.mxu0 0.0
    %3919 = vmatpush1.msra.mxu0 0.0
    %3920 = vmatprep.subr.mxu0 0.0
    %3921 = vmatpush1.msra.mxu0 0.0
    %3922 = vmatprep.subr.mxu0 0.0
    %3923 = vmatpush1.msra.mxu0 0.0
    %3924 = vmatprep.mubr.f32.mxu0 0.0
    %3925 = vmatmul.mubr.f32.gmra.mrb[0].mxu0 %v3858
    %v3926 = vpop.f32.mrb[0].mxu0
    %v3927 = vadd.f32 %v3855, %v3926
    %v3928 = vpop.f32.mrb[0].mxu0
    %3929 = vdwg.mxu0
    %v3930 = vmul.f32 %v3927, 0.35355338
    %s3931 = scalar_lea.vmem %s6, 1
    %v3932 = vld [vmem:[%s3931] sm:$0x1]
    %v3934 = vlaneseq
    %v3935 = vshrl.u32 %v3934, 7
    %v3936 = vsub.s32 0, %v3935
    %v3937 = vrot.slane %v3932, %v3936
    %3939 = vmatprep.subr.mxu0 0.0
    %3940 = vmatpush1.msra.mxu0 %v3835
    %3941 = vmatprep.subr.mxu0 0.0
    %3942 = vmatpush1.msra.mxu0 %v3836
    %3943 = vmatprep.subr.mxu0 0.0
    %3944 = vmatpush1.msra.mxu0 %v3837
    %3945 = vmatprep.subr.mxu0 0.0
    %3946 = vmatpush1.msra.mxu0 %v3838
    %3947 = vmatprep.subr.mxu0 0.0
    %3948 = vmatpush1.msra.mxu0 0.0
    %3949 = vmatprep.subr.mxu0 0.0
    %3950 = vmatpush1.msra.mxu0 0.0
    %3951 = vmatprep.subr.mxu0 0.0
    %3952 = vmatpush1.msra.mxu0 0.0
    %3953 = vmatprep.subr.mxu0 0.0
    %3954 = vmatpush1.msra.mxu0 0.0
    %3955 = vmatprep.subr.mxu0 0.0
    %3956 = vmatpush1.msra.mxu0 0.0
    %3957 = vmatprep.subr.mxu0 0.0
    %3958 = vmatpush1.msra.mxu0 0.0
    %3959 = vmatprep.subr.mxu0 0.0
    %3960 = vmatpush1.msra.mxu0 0.0
    %3961 = vmatprep.subr.mxu0 0.0
    %3962 = vmatpush1.msra.mxu0 0.0
    %3963 = vmatprep.subr.mxu0 0.0
    %3964 = vmatpush1.msra.mxu0 0.0
    %3965 = vmatprep.subr.mxu0 0.0
    %3966 = vmatpush1.msra.mxu0 0.0
    %3967 = vmatprep.subr.mxu0 0.0
    %3968 = vmatpush1.msra.mxu0 0.0
    %3969 = vmatprep.subr.mxu0 0.0
    %3970 = vmatpush1.msra.mxu0 0.0
    %3971 = vmatprep.subr.mxu0 0.0
    %3972 = vmatpush1.msra.mxu0 0.0
    %3973 = vmatprep.subr.mxu0 0.0
    %3974 = vmatpush1.msra.mxu0 0.0
    %3975 = vmatprep.subr.mxu0 0.0
    %3976 = vmatpush1.msra.mxu0 0.0
    %3977 = vmatprep.subr.mxu0 0.0
    %3978 = vmatpush1.msra.mxu0 0.0
    %3979 = vmatprep.subr.mxu0 0.0
    %3980 = vmatpush1.msra.mxu0 0.0
    %3981 = vmatprep.subr.mxu0 0.0
    %3982 = vmatpush1.msra.mxu0 0.0
    %3983 = vmatprep.subr.mxu0 0.0
    %3984 = vmatpush1.msra.mxu0 0.0
    %3985 = vmatprep.subr.mxu0 0.0
    %3986 = vmatpush1.msra.mxu0 0.0
    %3987 = vmatprep.subr.mxu0 0.0
    %3988 = vmatpush1.msra.mxu0 0.0
    %3989 = vmatprep.subr.mxu0 0.0
    %3990 = vmatpush1.msra.mxu0 0.0
    %3991 = vmatprep.subr.mxu0 0.0
    %3992 = vmatpush1.msra.mxu0 0.0
    %3993 = vmatprep.subr.mxu0 0.0
    %3994 = vmatpush1.msra.mxu0 0.0
    %3995 = vmatprep.subr.mxu0 0.0
    %3996 = vmatpush1.msra.mxu0 0.0
    %3997 = vmatprep.subr.mxu0 0.0
    %3998 = vmatpush1.msra.mxu0 0.0
    %3999 = vmatprep.subr.mxu0 0.0
    %4000 = vmatpush1.msra.mxu0 0.0
    %4001 = vmatprep.subr.mxu0 0.0
    %4002 = vmatpush1.msra.mxu0 0.0
    %4003 = vmatprep.mubr.f32.mxu0 0.0
    %4004 = vmatmul.mubr.f32.gmra.mrb[0].mxu0 %v3858
    %v4005 = vpop.f32.mrb[0].mxu0
    %v4006 = vadd.f32 %v3937, %v4005
    %v4007 = vpop.f32.mrb[0].mxu0
    %4008 = vdwg.mxu0
    %s4009 = scalar_lea.vmem [#allocation8], 1
    %v4010 = vld [vmem:[%s4009] sm:$0x1]
    %v4012 = vlaneseq
    %v4013 = vshrl.u32 %v4012, 7
    %v4014 = vsub.s32 0, %v4013
    %v4015 = vrot.slane %v4010, %v4014
    %4017 = vmatprep.subr.mxu0 0.0
    %4018 = vmatpush1.msra.mxu0 %v3840
    %4019 = vmatprep.subr.mxu0 0.0
    %4020 = vmatpush1.msra.mxu0 %v3841
    %4021 = vmatprep.subr.mxu0 0.0
    %4022 = vmatpush1.msra.mxu0 %v3842
    %4023 = vmatprep.subr.mxu0 0.0
    %4024 = vmatpush1.msra.mxu0 %v3843
    %4025 = vmatprep.subr.mxu0 0.0
    %4026 = vmatpush1.msra.mxu0 0.0
    %4027 = vmatprep.subr.mxu0 0.0
    %4028 = vmatpush1.msra.mxu0 0.0
    %4029 = vmatprep.subr.mxu0 0.0
    %4030 = vmatpush1.msra.mxu0 0.0
    %4031 = vmatprep.subr.mxu0 0.0
    %4032 = vmatpush1.msra.mxu0 0.0
    %4033 = vmatprep.subr.mxu0 0.0
    %4034 = vmatpush1.msra.mxu0 0.0
    %4035 = vmatprep.subr.mxu0 0.0
    %4036 = vmatpush1.msra.mxu0 0.0
    %4037 = vmatprep.subr.mxu0 0.0
    %4038 = vmatpush1.msra.mxu0 0.0
    %4039 = vmatprep.subr.mxu0 0.0
    %4040 = vmatpush1.msra.mxu0 0.0
    %4041 = vmatprep.subr.mxu0 0.0
    %4042 = vmatpush1.msra.mxu0 0.0
    %4043 = vmatprep.subr.mxu0 0.0
    %4044 = vmatpush1.msra.mxu0 0.0
    %4045 = vmatprep.subr.mxu0 0.0
    %4046 = vmatpush1.msra.mxu0 0.0
    %4047 = vmatprep.subr.mxu0 0.0
    %4048 = vmatpush1.msra.mxu0 0.0
    %4049 = vmatprep.subr.mxu0 0.0
    %4050 = vmatpush1.msra.mxu0 0.0
    %4051 = vmatprep.subr.mxu0 0.0
    %4052 = vmatpush1.msra.mxu0 0.0
    %4053 = vmatprep.subr.mxu0 0.0
    %4054 = vmatpush1.msra.mxu0 0.0
    %4055 = vmatprep.subr.mxu0 0.0
    %4056 = vmatpush1.msra.mxu0 0.0
    %4057 = vmatprep.subr.mxu0 0.0
    %4058 = vmatpush1.msra.mxu0 0.0
    %4059 = vmatprep.subr.mxu0 0.0
    %4060 = vmatpush1.msra.mxu0 0.0
    %4061 = vmatprep.subr.mxu0 0.0
    %4062 = vmatpush1.msra.mxu0 0.0
    %4063 = vmatprep.subr.mxu0 0.0
    %4064 = vmatpush1.msra.mxu0 0.0
    %4065 = vmatprep.subr.mxu0 0.0
    %4066 = vmatpush1.msra.mxu0 0.0
    %4067 = vmatprep.subr.mxu0 0.0
    %4068 = vmatpush1.msra.mxu0 0.0
    %4069 = vmatprep.subr.mxu0 0.0
    %4070 = vmatpush1.msra.mxu0 0.0
    %4071 = vmatprep.subr.mxu0 0.0
    %4072 = vmatpush1.msra.mxu0 0.0
    %4073 = vmatprep.subr.mxu0 0.0
    %4074 = vmatpush1.msra.mxu0 0.0
    %4075 = vmatprep.subr.mxu0 0.0
    %4076 = vmatpush1.msra.mxu0 0.0
    %4077 = vmatprep.subr.mxu0 0.0
    %4078 = vmatpush1.msra.mxu0 0.0
    %4079 = vmatprep.subr.mxu0 0.0
    %4080 = vmatpush1.msra.mxu0 0.0
    %4081 = vmatprep.mubr.f32.mxu0 0.0
    %4082 = vmatmul.mubr.f32.gmra.mrb[0].mxu0 %v3858
    %v4083 = vpop.f32.mrb[0].mxu0
    %v4084 = vadd.f32 %v4015, %v4083
    %v4085 = vpop.f32.mrb[0].mxu0
    %4086 = vdwg.mxu0
    %v4088 = vsel %vm1051, %v3930, 0
    %v4091 = vsel %vm1051, %v4006, 0
    %4093 = vmatprep.subr.mxu0 0.0
    %4094 = vmatpush1.xpose.msra.mxu0 %v4091
    %4095 = vmatprep.subr.mxu0 0.0
    %4096 = vmatpush1.xpose.msra.mxu0 0.0
    %4097 = vmatprep.subr.mxu0 0.0
    %4098 = vmatpush1.xpose.msra.mxu0 0.0
    %4099 = vmatprep.subr.mxu0 0.0
    %4100 = vmatpush1.xpose.msra.mxu0 0.0
    %4101 = vmatprep.subr.mxu0 0.0
    %4102 = vmatpush1.xpose.msra.mxu0 0.0
    %4103 = vmatprep.subr.mxu0 0.0
    %4104 = vmatpush1.xpose.msra.mxu0 0.0
    %4105 = vmatprep.subr.mxu0 0.0
    %4106 = vmatpush1.xpose.msra.mxu0 0.0
    %4107 = vmatprep.subr.mxu0 0.0
    %4108 = vmatpush1.xpose.msra.mxu0 0.0
    %4109 = vmatprep.subr.mxu0 0.0
    %4110 = vmatpush1.xpose.msra.mxu0 0.0
    %4111 = vmatprep.subr.mxu0 0.0
    %4112 = vmatpush1.xpose.msra.mxu0 0.0
    %4113 = vmatprep.subr.mxu0 0.0
    %4114 = vmatpush1.xpose.msra.mxu0 0.0
    %4115 = vmatprep.subr.mxu0 0.0
    %4116 = vmatpush1.xpose.msra.mxu0 0.0
    %4117 = vmatprep.subr.mxu0 0.0
    %4118 = vmatpush1.xpose.msra.mxu0 0.0
    %4119 = vmatprep.subr.mxu0 0.0
    %4120 = vmatpush1.xpose.msra.mxu0 0.0
    %4121 = vmatprep.subr.mxu0 0.0
    %4122 = vmatpush1.xpose.msra.mxu0 0.0
    %4123 = vmatprep.subr.mxu0 0.0
    %4124 = vmatpush1.xpose.msra.mxu0 0.0
    %4125 = vmatprep.subr.mxu0 0.0
    %4126 = vmatpush1.xpose.msra.mxu0 0.0
    %4127 = vmatprep.subr.mxu0 0.0
    %4128 = vmatpush1.xpose.msra.mxu0 0.0
    %4129 = vmatprep.subr.mxu0 0.0
    %4130 = vmatpush1.xpose.msra.mxu0 0.0
    %4131 = vmatprep.subr.mxu0 0.0
    %4132 = vmatpush1.xpose.msra.mxu0 0.0
    %4133 = vmatprep.subr.mxu0 0.0
    %4134 = vmatpush1.xpose.msra.mxu0 0.0
    %4135 = vmatprep.subr.mxu0 0.0
    %4136 = vmatpush1.xpose.msra.mxu0 0.0
    %4137 = vmatprep.subr.mxu0 0.0
    %4138 = vmatpush1.xpose.msra.mxu0 0.0
    %4139 = vmatprep.subr.mxu0 0.0
    %4140 = vmatpush1.xpose.msra.mxu0 0.0
    %4141 = vmatprep.subr.mxu0 0.0
    %4142 = vmatpush1.xpose.msra.mxu0 0.0
    %4143 = vmatprep.subr.mxu0 0.0
    %4144 = vmatpush1.xpose.msra.mxu0 0.0
    %4145 = vmatprep.subr.mxu0 0.0
    %4146 = vmatpush1.xpose.msra.mxu0 0.0
    %4147 = vmatprep.subr.mxu0 0.0
    %4148 = vmatpush1.xpose.msra.mxu0 0.0
    %4149 = vmatprep.subr.mxu0 0.0
    %4150 = vmatpush1.xpose.msra.mxu0 0.0
    %4151 = vmatprep.subr.mxu0 0.0
    %4152 = vmatpush1.xpose.msra.mxu0 0.0
    %4153 = vmatprep.subr.mxu0 0.0
    %4154 = vmatpush1.xpose.msra.mxu0 0.0
    %4155 = vmatprep.subr.mxu0 0.0
    %4156 = vmatpush1.xpose.msra.mxu0 0.0
    %4157 = vmatprep.mubr.f32.mxu0 0.0
    %4158 = vmatmul.mubr.f32.gmra.mrb[0].mxu0 %v4088
    %v4159 = vpop.f32.mrb[0].mxu0
    %v4160 = vadd.f32 0.0, %v4159
    %v4161 = vpop.f32.mrb[0].mxu0
    %4162 = vdwg.mxu0
    %vm4163 = vcmask 27648
    %v4164 = vsel %vm4163, %v4160, -inf
    %4165 = vmax.xlane.f32.xlu0 %v4164
    %v4166 = vpop.xlane.xlu0 %4165
    %v4167 = vsub.f32 %v4160, %v4166
    %v4168 = vmul.f32 %v4167, 1.442695
    %v4169 = vpow.pop %v4168
    %v4170 = vsel %vm4163, %v4169, 0.0
    %4171 = vadd.xlane.f32.xlu0 %v4170
    %v4172 = vpop.xlane.xlu0 %4171
    %v4173 = vrcp.pop %v4172
    %v4174 = vmul.f32 %v4169, %v4173
    %v4176 = vsel %vm322, %v4174, 0
    %v4179 = vsel %vm325, %v4084, 0
    %4181 = vmatprep.subr.mxu0 0.0
    %4182 = vmatpush1.msra.mxu0 %v4179
    %4183 = vmatprep.subr.mxu0 0.0
    %4184 = vmatpush1.msra.mxu0 0.0
    %4185 = vmatprep.subr.mxu0 0.0
    %4186 = vmatpush1.msra.mxu0 0.0
    %4187 = vmatprep.subr.mxu0 0.0
    %4188 = vmatpush1.msra.mxu0 0.0
    %4189 = vmatprep.subr.mxu0 0.0
    %4190 = vmatpush1.msra.mxu0 0.0
    %4191 = vmatprep.subr.mxu0 0.0
    %4192 = vmatpush1.msra.mxu0 0.0
    %4193 = vmatprep.subr.mxu0 0.0
    %4194 = vmatpush1.msra.mxu0 0.0
    %4195 = vmatprep.subr.mxu0 0.0
    %4196 = vmatpush1.msra.mxu0 0.0
    %4197 = vmatprep.subr.mxu0 0.0
    %4198 = vmatpush1.msra.mxu0 0.0
    %4199 = vmatprep.subr.mxu0 0.0
    %4200 = vmatpush1.msra.mxu0 0.0
    %4201 = vmatprep.subr.mxu0 0.0
    %4202 = vmatpush1.msra.mxu0 0.0
    %4203 = vmatprep.subr.mxu0 0.0
    %4204 = vmatpush1.msra.mxu0 0.0
    %4205 = vmatprep.subr.mxu0 0.0
    %4206 = vmatpush1.msra.mxu0 0.0
    %4207 = vmatprep.subr.mxu0 0.0
    %4208 = vmatpush1.msra.mxu0 0.0
    %4209 = vmatprep.subr.mxu0 0.0
    %4210 = vmatpush1.msra.mxu0 0.0
    %4211 = vmatprep.subr.mxu0 0.0
    %4212 = vmatpush1.msra.mxu0 0.0
    %4213 = vmatprep.subr.mxu0 0.0
    %4214 = vmatpush1.msra.mxu0 0.0
    %4215 = vmatprep.subr.mxu0 0.0
    %4216 = vmatpush1.msra.mxu0 0.0
    %4217 = vmatprep.subr.mxu0 0.0
    %4218 = vmatpush1.msra.mxu0 0.0
    %4219 = vmatprep.subr.mxu0 0.0
    %4220 = vmatpush1.msra.mxu0 0.0
    %4221 = vmatprep.subr.mxu0 0.0
    %4222 = vmatpush1.msra.mxu0 0.0
    %4223 = vmatprep.subr.mxu0 0.0
    %4224 = vmatpush1.msra.mxu0 0.0
    %4225 = vmatprep.subr.mxu0 0.0
    %4226 = vmatpush1.msra.mxu0 0.0
    %4227 = vmatprep.subr.mxu0 0.0
    %4228 = vmatpush1.msra.mxu0 0.0
    %4229 = vmatprep.subr.mxu0 0.0
    %4230 = vmatpush1.msra.mxu0 0.0
    %4231 = vmatprep.subr.mxu0 0.0
    %4232 = vmatpush1.msra.mxu0 0.0
    %4233 = vmatprep.subr.mxu0 0.0
    %4234 = vmatpush1.msra.mxu0 0.0
    %4235 = vmatprep.subr.mxu0 0.0
    %4236 = vmatpush1.msra.mxu0 0.0
    %4237 = vmatprep.subr.mxu0 0.0
    %4238 = vmatpush1.msra.mxu0 0.0
    %4239 = vmatprep.subr.mxu0 0.0
    %4240 = vmatpush1.msra.mxu0 0.0
    %4241 = vmatprep.subr.mxu0 0.0
    %4242 = vmatpush1.msra.mxu0 0.0
    %4243 = vmatprep.subr.mxu0 0.0
    %4244 = vmatpush1.msra.mxu0 0.0
    %4245 = vmatprep.mubr.f32.mxu0 0.0
    %4246 = vmatmul.mubr.f32.gmra.mrb[0].mxu0 %v4176
    %v4247 = vpop.f32.mrb[0].mxu0
    %v4248 = vadd.f32 0.0, %v4247
    %v4249 = vpop.f32.mrb[0].mxu0
    %4250 = vdwg.mxu0
    %4251 = vrot.lane.b32.xlu0 %v3930, 120
    %v4252 = vpop.permute.xlu0 %4251
    %4253 = vrot.lane.b32.xlu0 %v4006, 120
    %v4254 = vpop.permute.xlu0 %4253
    %v4255 = vsel %vm1051, %v4252, 0
    %v4257 = vsel %vm1051, %v4254, 0
    %4259 = vmatprep.subr.mxu0 0.0
    %4260 = vmatpush1.xpose.msra.mxu0 %v4257
    %4261 = vmatprep.subr.mxu0 0.0
    %4262 = vmatpush1.xpose.msra.mxu0 0.0
    %4263 = vmatprep.subr.mxu0 0.0
    %4264 = vmatpush1.xpose.msra.mxu0 0.0
    %4265 = vmatprep.subr.mxu0 0.0
    %4266 = vmatpush1.xpose.msra.mxu0 0.0
    %4267 = vmatprep.subr.mxu0 0.0
    %4268 = vmatpush1.xpose.msra.mxu0 0.0
    %4269 = vmatprep.subr.mxu0 0.0
    %4270 = vmatpush1.xpose.msra.mxu0 0.0
    %4271 = vmatprep.subr.mxu0 0.0
    %4272 = vmatpush1.xpose.msra.mxu0 0.0
    %4273 = vmatprep.subr.mxu0 0.0
    %4274 = vmatpush1.xpose.msra.mxu0 0.0
    %4275 = vmatprep.subr.mxu0 0.0
    %4276 = vmatpush1.xpose.msra.mxu0 0.0
    %4277 = vmatprep.subr.mxu0 0.0
    %4278 = vmatpush1.xpose.msra.mxu0 0.0
    %4279 = vmatprep.subr.mxu0 0.0
    %4280 = vmatpush1.xpose.msra.mxu0 0.0
    %4281 = vmatprep.subr.mxu0 0.0
    %4282 = vmatpush1.xpose.msra.mxu0 0.0
    %4283 = vmatprep.subr.mxu0 0.0
    %4284 = vmatpush1.xpose.msra.mxu0 0.0
    %4285 = vmatprep.subr.mxu0 0.0
    %4286 = vmatpush1.xpose.msra.mxu0 0.0
    %4287 = vmatprep.subr.mxu0 0.0
    %4288 = vmatpush1.xpose.msra.mxu0 0.0
    %4289 = vmatprep.subr.mxu0 0.0
    %4290 = vmatpush1.xpose.msra.mxu0 0.0
    %4291 = vmatprep.subr.mxu0 0.0
    %4292 = vmatpush1.xpose.msra.mxu0 0.0
    %4293 = vmatprep.subr.mxu0 0.0
    %4294 = vmatpush1.xpose.msra.mxu0 0.0
    %4295 = vmatprep.subr.mxu0 0.0
    %4296 = vmatpush1.xpose.msra.mxu0 0.0
    %4297 = vmatprep.subr.mxu0 0.0
    %4298 = vmatpush1.xpose.msra.mxu0 0.0
    %4299 = vmatprep.subr.mxu0 0.0
    %4300 = vmatpush1.xpose.msra.mxu0 0.0
    %4301 = vmatprep.subr.mxu0 0.0
    %4302 = vmatpush1.xpose.msra.mxu0 0.0
    %4303 = vmatprep.subr.mxu0 0.0
    %4304 = vmatpush1.xpose.msra.mxu0 0.0
    %4305 = vmatprep.subr.mxu0 0.0
    %4306 = vmatpush1.xpose.msra.mxu0 0.0
    %4307 = vmatprep.subr.mxu0 0.0
    %4308 = vmatpush1.xpose.msra.mxu0 0.0
    %4309 = vmatprep.subr.mxu0 0.0
    %4310 = vmatpush1.xpose.msra.mxu0 0.0
    %4311 = vmatprep.subr.mxu0 0.0
    %4312 = vmatpush1.xpose.msra.mxu0 0.0
    %4313 = vmatprep.subr.mxu0 0.0
    %4314 = vmatpush1.xpose.msra.mxu0 0.0
    %4315 = vmatprep.subr.mxu0 0.0
    %4316 = vmatpush1.xpose.msra.mxu0 0.0
    %4317 = vmatprep.subr.mxu0 0.0
    %4318 = vmatpush1.xpose.msra.mxu0 0.0
    %4319 = vmatprep.subr.mxu0 0.0
    %4320 = vmatpush1.xpose.msra.mxu0 0.0
    %4321 = vmatprep.subr.mxu0 0.0
    %4322 = vmatpush1.xpose.msra.mxu0 0.0
    %4323 = vmatprep.mubr.f32.mxu0 0.0
    %4324 = vmatmul.mubr.f32.gmra.mrb[0].mxu0 %v4255
    %v4325 = vpop.f32.mrb[0].mxu0
    %v4326 = vadd.f32 0.0, %v4325
    %v4327 = vpop.f32.mrb[0].mxu0
    %4328 = vdwg.mxu0
    %v4329 = vsel %vm4163, %v4326, -inf
    %4330 = vmax.xlane.f32.xlu0 %v4329
    %v4331 = vpop.xlane.xlu0 %4330
    %v4332 = vsub.f32 %v4326, %v4331
    %v4333 = vmul.f32 %v4332, 1.442695
    %v4334 = vpow.pop %v4333
    %v4335 = vsel %vm4163, %v4334, 0.0
    %4336 = vadd.xlane.f32.xlu0 %v4335
    %v4337 = vpop.xlane.xlu0 %4336
    %v4338 = vrcp.pop %v4337
    %v4339 = vmul.f32 %v4334, %v4338
    %4340 = vrot.lane.b32.xlu0 %v4084, 120
    %v4341 = vpop.permute.xlu0 %4340
    %v4343 = vsel %vm322, %v4339, 0
    %v4345 = vsel %vm325, %v4341, 0
    %4347 = vmatprep.subr.mxu0 0.0
    %4348 = vmatpush1.msra.mxu0 %v4345
    %4349 = vmatprep.subr.mxu0 0.0
    %4350 = vmatpush1.msra.mxu0 0.0
    %4351 = vmatprep.subr.mxu0 0.0
    %4352 = vmatpush1.msra.mxu0 0.0
    %4353 = vmatprep.subr.mxu0 0.0
    %4354 = vmatpush1.msra.mxu0 0.0
    %4355 = vmatprep.subr.mxu0 0.0
    %4356 = vmatpush1.msra.mxu0 0.0
    %4357 = vmatprep.subr.mxu0 0.0
    %4358 = vmatpush1.msra.mxu0 0.0
    %4359 = vmatprep.subr.mxu0 0.0
    %4360 = vmatpush1.msra.mxu0 0.0
    %4361 = vmatprep.subr.mxu0 0.0
    %4362 = vmatpush1.msra.mxu0 0.0
    %4363 = vmatprep.subr.mxu0 0.0
    %4364 = vmatpush1.msra.mxu0 0.0
    %4365 = vmatprep.subr.mxu0 0.0
    %4366 = vmatpush1.msra.mxu0 0.0
    %4367 = vmatprep.subr.mxu0 0.0
    %4368 = vmatpush1.msra.mxu0 0.0
    %4369 = vmatprep.subr.mxu0 0.0
    %4370 = vmatpush1.msra.mxu0 0.0
    %4371 = vmatprep.subr.mxu0 0.0
    %4372 = vmatpush1.msra.mxu0 0.0
    %4373 = vmatprep.subr.mxu0 0.0
    %4374 = vmatpush1.msra.mxu0 0.0
    %4375 = vmatprep.subr.mxu0 0.0
    %4376 = vmatpush1.msra.mxu0 0.0
    %4377 = vmatprep.subr.mxu0 0.0
    %4378 = vmatpush1.msra.mxu0 0.0
    %4379 = vmatprep.subr.mxu0 0.0
    %4380 = vmatpush1.msra.mxu0 0.0
    %4381 = vmatprep.subr.mxu0 0.0
    %4382 = vmatpush1.msra.mxu0 0.0
    %4383 = vmatprep.subr.mxu0 0.0
    %4384 = vmatpush1.msra.mxu0 0.0
    %4385 = vmatprep.subr.mxu0 0.0
    %4386 = vmatpush1.msra.mxu0 0.0
    %4387 = vmatprep.subr.mxu0 0.0
    %4388 = vmatpush1.msra.mxu0 0.0
    %4389 = vmatprep.subr.mxu0 0.0
    %4390 = vmatpush1.msra.mxu0 0.0
    %4391 = vmatprep.subr.mxu0 0.0
    %4392 = vmatpush1.msra.mxu0 0.0
    %4393 = vmatprep.subr.mxu0 0.0
    %4394 = vmatpush1.msra.mxu0 0.0
    %4395 = vmatprep.subr.mxu0 0.0
    %4396 = vmatpush1.msra.mxu0 0.0
    %4397 = vmatprep.subr.mxu0 0.0
    %4398 = vmatpush1.msra.mxu0 0.0
    %4399 = vmatprep.subr.mxu0 0.0
    %4400 = vmatpush1.msra.mxu0 0.0
    %4401 = vmatprep.subr.mxu0 0.0
    %4402 = vmatpush1.msra.mxu0 0.0
    %4403 = vmatprep.subr.mxu0 0.0
    %4404 = vmatpush1.msra.mxu0 0.0
    %4405 = vmatprep.subr.mxu0 0.0
    %4406 = vmatpush1.msra.mxu0 0.0
    %4407 = vmatprep.subr.mxu0 0.0
    %4408 = vmatpush1.msra.mxu0 0.0
    %4409 = vmatprep.subr.mxu0 0.0
    %4410 = vmatpush1.msra.mxu0 0.0
    %4411 = vmatprep.mubr.f32.mxu0 0.0
    %4412 = vmatmul.mubr.f32.gmra.mrb[0].mxu0 %v4343
    %v4413 = vpop.f32.mrb[0].mxu0
    %v4414 = vadd.f32 0.0, %v4413
    %v4415 = vpop.f32.mrb[0].mxu0
    %4416 = vdwg.mxu0
    %v4418 = vsel %vm1051, %v4414, 0
    %4420 = vmatprep.subr.mxu0 0.0
    %4421 = vmatpush1.msra.mxu0 %v3846
    %4422 = vmatprep.subr.mxu0 0.0
    %4423 = vmatpush1.msra.mxu0 0.0
    %4424 = vmatprep.subr.mxu0 0.0
    %4425 = vmatpush1.msra.mxu0 0.0
    %4426 = vmatprep.subr.mxu0 0.0
    %4427 = vmatpush1.msra.mxu0 0.0
    %4428 = vmatprep.subr.mxu0 0.0
    %4429 = vmatpush1.msra.mxu0 0.0
    %4430 = vmatprep.subr.mxu0 0.0
    %4431 = vmatpush1.msra.mxu0 0.0
    %4432 = vmatprep.subr.mxu0 0.0
    %4433 = vmatpush1.msra.mxu0 0.0
    %4434 = vmatprep.subr.mxu0 0.0
    %4435 = vmatpush1.msra.mxu0 0.0
    %4436 = vmatprep.subr.mxu0 0.0
    %4437 = vmatpush1.msra.mxu0 0.0
    %4438 = vmatprep.subr.mxu0 0.0
    %4439 = vmatpush1.msra.mxu0 0.0
    %4440 = vmatprep.subr.mxu0 0.0
    %4441 = vmatpush1.msra.mxu0 0.0
    %4442 = vmatprep.subr.mxu0 0.0
    %4443 = vmatpush1.msra.mxu0 0.0
    %4444 = vmatprep.subr.mxu0 0.0
    %4445 = vmatpush1.msra.mxu0 0.0
    %4446 = vmatprep.subr.mxu0 0.0
    %4447 = vmatpush1.msra.mxu0 0.0
    %4448 = vmatprep.subr.mxu0 0.0
    %4449 = vmatpush1.msra.mxu0 0.0
    %4450 = vmatprep.subr.mxu0 0.0
    %4451 = vmatpush1.msra.mxu0 0.0
    %4452 = vmatprep.subr.mxu0 0.0
    %4453 = vmatpush1.msra.mxu0 0.0
    %4454 = vmatprep.subr.mxu0 0.0
    %4455 = vmatpush1.msra.mxu0 0.0
    %4456 = vmatprep.subr.mxu0 0.0
    %4457 = vmatpush1.msra.mxu0 0.0
    %4458 = vmatprep.subr.mxu0 0.0
    %4459 = vmatpush1.msra.mxu0 0.0
    %4460 = vmatprep.subr.mxu0 0.0
    %4461 = vmatpush1.msra.mxu0 0.0
    %4462 = vmatprep.subr.mxu0 0.0
    %4463 = vmatpush1.msra.mxu0 0.0
    %4464 = vmatprep.subr.mxu0 0.0
    %4465 = vmatpush1.msra.mxu0 0.0
    %4466 = vmatprep.subr.mxu0 0.0
    %4467 = vmatpush1.msra.mxu0 0.0
    %4468 = vmatprep.subr.mxu0 0.0
    %4469 = vmatpush1.msra.mxu0 0.0
    %4470 = vmatprep.subr.mxu0 0.0
    %4471 = vmatpush1.msra.mxu0 0.0
    %4472 = vmatprep.subr.mxu0 0.0
    %4473 = vmatpush1.msra.mxu0 0.0
    %4474 = vmatprep.subr.mxu0 0.0
    %4475 = vmatpush1.msra.mxu0 0.0
    %4476 = vmatprep.subr.mxu0 0.0
    %4477 = vmatpush1.msra.mxu0 0.0
    %4478 = vmatprep.subr.mxu0 0.0
    %4479 = vmatpush1.msra.mxu0 0.0
    %4480 = vmatprep.subr.mxu0 0.0
    %4481 = vmatpush1.msra.mxu0 0.0
    %4482 = vmatprep.subr.mxu0 0.0
    %4483 = vmatpush1.msra.mxu0 0.0
    %4484 = vmatprep.mubr.f32.mxu0 0.0
    %4485 = vmatmul.mubr.f32.gmra.mrb[0].mxu0 %v4418
    %v4486 = vpop.f32.mrb[0].mxu0
    %v4487 = vadd.f32 0.0, %v4486
    %v4488 = vpop.f32.mrb[0].mxu0
    %4489 = vdwg.mxu0
    %v4491 = vsel %vm1051, %v4248, 0
    %4493 = vmatprep.subr.mxu0 0.0
    %4494 = vmatpush1.msra.mxu0 %v3845
    %4495 = vmatprep.subr.mxu0 0.0
    %4496 = vmatpush1.msra.mxu0 0.0
    %4497 = vmatprep.subr.mxu0 0.0
    %4498 = vmatpush1.msra.mxu0 0.0
    %4499 = vmatprep.subr.mxu0 0.0
    %4500 = vmatpush1.msra.mxu0 0.0
    %4501 = vmatprep.subr.mxu0 0.0
    %4502 = vmatpush1.msra.mxu0 0.0
    %4503 = vmatprep.subr.mxu0 0.0
    %4504 = vmatpush1.msra.mxu0 0.0
    %4505 = vmatprep.subr.mxu0 0.0
    %4506 = vmatpush1.msra.mxu0 0.0
    %4507 = vmatprep.subr.mxu0 0.0
    %4508 = vmatpush1.msra.mxu0 0.0
    %4509 = vmatprep.subr.mxu0 0.0
    %4510 = vmatpush1.msra.mxu0 0.0
    %4511 = vmatprep.subr.mxu0 0.0
    %4512 = vmatpush1.msra.mxu0 0.0
    %4513 = vmatprep.subr.mxu0 0.0
    %4514 = vmatpush1.msra.mxu0 0.0
    %4515 = vmatprep.subr.mxu0 0.0
    %4516 = vmatpush1.msra.mxu0 0.0
    %4517 = vmatprep.subr.mxu0 0.0
    %4518 = vmatpush1.msra.mxu0 0.0
    %4519 = vmatprep.subr.mxu0 0.0
    %4520 = vmatpush1.msra.mxu0 0.0
    %4521 = vmatprep.subr.mxu0 0.0
    %4522 = vmatpush1.msra.mxu0 0.0
    %4523 = vmatprep.subr.mxu0 0.0
    %4524 = vmatpush1.msra.mxu0 0.0
    %4525 = vmatprep.subr.mxu0 0.0
    %4526 = vmatpush1.msra.mxu0 0.0
    %4527 = vmatprep.subr.mxu0 0.0
    %4528 = vmatpush1.msra.mxu0 0.0
    %4529 = vmatprep.subr.mxu0 0.0
    %4530 = vmatpush1.msra.mxu0 0.0
    %4531 = vmatprep.subr.mxu0 0.0
    %4532 = vmatpush1.msra.mxu0 0.0
    %4533 = vmatprep.subr.mxu0 0.0
    %4534 = vmatpush1.msra.mxu0 0.0
    %4535 = vmatprep.subr.mxu0 0.0
    %4536 = vmatpush1.msra.mxu0 0.0
    %4537 = vmatprep.subr.mxu0 0.0
    %4538 = vmatpush1.msra.mxu0 0.0
    %4539 = vmatprep.subr.mxu0 0.0
    %4540 = vmatpush1.msra.mxu0 0.0
    %4541 = vmatprep.subr.mxu0 0.0
    %4542 = vmatpush1.msra.mxu0 0.0
    %4543 = vmatprep.subr.mxu0 0.0
    %4544 = vmatpush1.msra.mxu0 0.0
    %4545 = vmatprep.subr.mxu0 0.0
    %4546 = vmatpush1.msra.mxu0 0.0
    %4547 = vmatprep.subr.mxu0 0.0
    %4548 = vmatpush1.msra.mxu0 0.0
    %4549 = vmatprep.subr.mxu0 0.0
    %4550 = vmatpush1.msra.mxu0 0.0
    %4551 = vmatprep.subr.mxu0 0.0
    %4552 = vmatpush1.msra.mxu0 0.0
    %4553 = vmatprep.subr.mxu0 0.0
    %4554 = vmatpush1.msra.mxu0 0.0
    %4555 = vmatprep.subr.mxu0 0.0
    %4556 = vmatpush1.msra.mxu0 0.0
    %4557 = vmatprep.mubr.f32.mxu0 0.0
    %4558 = vmatmul.mubr.f32.gmra.mrb[0].mxu0 %v4491
    %v4559 = vpop.f32.mrb[0].mxu0
    %v4560 = vadd.f32 %v4487, %v4559
    %v4561 = vpop.f32.mrb[0].mxu0
    %4562 = vdwg.mxu0
    %4563 = vrot.lane.b32.xlu0 %v3930, 112
    %v4564 = vpop.permute.xlu0 %4563
    %4565 = vrot.lane.b32.xlu0 %v4006, 112
    %v4566 = vpop.permute.xlu0 %4565
    %v4567 = vsel %vm1051, %v4564, 0
    %v4569 = vsel %vm1051, %v4566, 0
    %4571 = vmatprep.subr.mxu0 0.0
    %4572 = vmatpush1.xpose.msra.mxu0 %v4569
    %4573 = vmatprep.subr.mxu0 0.0
    %4574 = vmatpush1.xpose.msra.mxu0 0.0
    %4575 = vmatprep.subr.mxu0 0.0
    %4576 = vmatpush1.xpose.msra.mxu0 0.0
    %4577 = vmatprep.subr.mxu0 0.0
    %4578 = vmatpush1.xpose.msra.mxu0 0.0
    %4579 = vmatprep.subr.mxu0 0.0
    %4580 = vmatpush1.xpose.msra.mxu0 0.0
    %4581 = vmatprep.subr.mxu0 0.0
    %4582 = vmatpush1.xpose.msra.mxu0 0.0
    %4583 = vmatprep.subr.mxu0 0.0
    %4584 = vmatpush1.xpose.msra.mxu0 0.0
    %4585 = vmatprep.subr.mxu0 0.0
    %4586 = vmatpush1.xpose.msra.mxu0 0.0
    %4587 = vmatprep.subr.mxu0 0.0
    %4588 = vmatpush1.xpose.msra.mxu0 0.0
    %4589 = vmatprep.subr.mxu0 0.0
    %4590 = vmatpush1.xpose.msra.mxu0 0.0
    %4591 = vmatprep.subr.mxu0 0.0
    %4592 = vmatpush1.xpose.msra.mxu0 0.0
    %4593 = vmatprep.subr.mxu0 0.0
    %4594 = vmatpush1.xpose.msra.mxu0 0.0
    %4595 = vmatprep.subr.mxu0 0.0
    %4596 = vmatpush1.xpose.msra.mxu0 0.0
    %4597 = vmatprep.subr.mxu0 0.0
    %4598 = vmatpush1.xpose.msra.mxu0 0.0
    %4599 = vmatprep.subr.mxu0 0.0
    %4600 = vmatpush1.xpose.msra.mxu0 0.0
    %4601 = vmatprep.subr.mxu0 0.0
    %4602 = vmatpush1.xpose.msra.mxu0 0.0
    %4603 = vmatprep.subr.mxu0 0.0
    %4604 = vmatpush1.xpose.msra.mxu0 0.0
    %4605 = vmatprep.subr.mxu0 0.0
    %4606 = vmatpush1.xpose.msra.mxu0 0.0
    %4607 = vmatprep.subr.mxu0 0.0
    %4608 = vmatpush1.xpose.msra.mxu0 0.0
    %4609 = vmatprep.subr.mxu0 0.0
    %4610 = vmatpush1.xpose.msra.mxu0 0.0
    %4611 = vmatprep.subr.mxu0 0.0
    %4612 = vmatpush1.xpose.msra.mxu0 0.0
    %4613 = vmatprep.subr.mxu0 0.0
    %4614 = vmatpush1.xpose.msra.mxu0 0.0
    %4615 = vmatprep.subr.mxu0 0.0
    %4616 = vmatpush1.xpose.msra.mxu0 0.0
    %4617 = vmatprep.subr.mxu0 0.0
    %4618 = vmatpush1.xpose.msra.mxu0 0.0
    %4619 = vmatprep.subr.mxu0 0.0
    %4620 = vmatpush1.xpose.msra.mxu0 0.0
    %4621 = vmatprep.subr.mxu0 0.0
    %4622 = vmatpush1.xpose.msra.mxu0 0.0
    %4623 = vmatprep.subr.mxu0 0.0
    %4624 = vmatpush1.xpose.msra.mxu0 0.0
    %4625 = vmatprep.subr.mxu0 0.0
    %4626 = vmatpush1.xpose.msra.mxu0 0.0
    %4627 = vmatprep.subr.mxu0 0.0
    %4628 = vmatpush1.xpose.msra.mxu0 0.0
    %4629 = vmatprep.subr.mxu0 0.0
    %4630 = vmatpush1.xpose.msra.mxu0 0.0
    %4631 = vmatprep.subr.mxu0 0.0
    %4632 = vmatpush1.xpose.msra.mxu0 0.0
    %4633 = vmatprep.subr.mxu0 0.0
    %4634 = vmatpush1.xpose.msra.mxu0 0.0
    %4635 = vmatprep.mubr.f32.mxu0 0.0
    %4636 = vmatmul.mubr.f32.gmra.mrb[0].mxu0 %v4567
    %v4637 = vpop.f32.mrb[0].mxu0
    %v4638 = vadd.f32 0.0, %v4637
    %v4639 = vpop.f32.mrb[0].mxu0
    %4640 = vdwg.mxu0
    %v4641 = vsel %vm4163, %v4638, -inf
    %4642 = vmax.xlane.f32.xlu0 %v4641
    %v4643 = vpop.xlane.xlu0 %4642
    %v4644 = vsub.f32 %v4638, %v4643
    %v4645 = vmul.f32 %v4644, 1.442695
    %v4646 = vpow.pop %v4645
    %v4647 = vsel %vm4163, %v4646, 0.0
    %4648 = vadd.xlane.f32.xlu0 %v4647
    %v4649 = vpop.xlane.xlu0 %4648
    %v4650 = vrcp.pop %v4649
    %v4651 = vmul.f32 %v4646, %v4650
    %4652 = vrot.lane.b32.xlu0 %v4084, 112
    %v4653 = vpop.permute.xlu0 %4652
    %v4655 = vsel %vm322, %v4651, 0
    %v4657 = vsel %vm325, %v4653, 0
    %4659 = vmatprep.subr.mxu0 0.0
    %4660 = vmatpush1.msra.mxu0 %v4657
    %4661 = vmatprep.subr.mxu0 0.0
    %4662 = vmatpush1.msra.mxu0 0.0
    %4663 = vmatprep.subr.mxu0 0.0
    %4664 = vmatpush1.msra.mxu0 0.0
    %4665 = vmatprep.subr.mxu0 0.0
    %4666 = vmatpush1.msra.mxu0 0.0
    %4667 = vmatprep.subr.mxu0 0.0
    %4668 = vmatpush1.msra.mxu0 0.0
    %4669 = vmatprep.subr.mxu0 0.0
    %4670 = vmatpush1.msra.mxu0 0.0
    %4671 = vmatprep.subr.mxu0 0.0
    %4672 = vmatpush1.msra.mxu0 0.0
    %4673 = vmatprep.subr.mxu0 0.0
    %4674 = vmatpush1.msra.mxu0 0.0
    %4675 = vmatprep.subr.mxu0 0.0
    %4676 = vmatpush1.msra.mxu0 0.0
    %4677 = vmatprep.subr.mxu0 0.0
    %4678 = vmatpush1.msra.mxu0 0.0
    %4679 = vmatprep.subr.mxu0 0.0
    %4680 = vmatpush1.msra.mxu0 0.0
    %4681 = vmatprep.subr.mxu0 0.0
    %4682 = vmatpush1.msra.mxu0 0.0
    %4683 = vmatprep.subr.mxu0 0.0
    %4684 = vmatpush1.msra.mxu0 0.0
    %4685 = vmatprep.subr.mxu0 0.0
    %4686 = vmatpush1.msra.mxu0 0.0
    %4687 = vmatprep.subr.mxu0 0.0
    %4688 = vmatpush1.msra.mxu0 0.0
    %4689 = vmatprep.subr.mxu0 0.0
    %4690 = vmatpush1.msra.mxu0 0.0
    %4691 = vmatprep.subr.mxu0 0.0
    %4692 = vmatpush1.msra.mxu0 0.0
    %4693 = vmatprep.subr.mxu0 0.0
    %4694 = vmatpush1.msra.mxu0 0.0
    %4695 = vmatprep.subr.mxu0 0.0
    %4696 = vmatpush1.msra.mxu0 0.0
    %4697 = vmatprep.subr.mxu0 0.0
    %4698 = vmatpush1.msra.mxu0 0.0
    %4699 = vmatprep.subr.mxu0 0.0
    %4700 = vmatpush1.msra.mxu0 0.0
    %4701 = vmatprep.subr.mxu0 0.0
    %4702 = vmatpush1.msra.mxu0 0.0
    %4703 = vmatprep.subr.mxu0 0.0
    %4704 = vmatpush1.msra.mxu0 0.0
    %4705 = vmatprep.subr.mxu0 0.0
    %4706 = vmatpush1.msra.mxu0 0.0
    %4707 = vmatprep.subr.mxu0 0.0
    %4708 = vmatpush1.msra.mxu0 0.0
    %4709 = vmatprep.subr.mxu0 0.0
    %4710 = vmatpush1.msra.mxu0 0.0
    %4711 = vmatprep.subr.mxu0 0.0
    %4712 = vmatpush1.msra.mxu0 0.0
    %4713 = vmatprep.subr.mxu0 0.0
    %4714 = vmatpush1.msra.mxu0 0.0
    %4715 = vmatprep.subr.mxu0 0.0
    %4716 = vmatpush1.msra.mxu0 0.0
    %4717 = vmatprep.subr.mxu0 0.0
    %4718 = vmatpush1.msra.mxu0 0.0
    %4719 = vmatprep.subr.mxu0 0.0
    %4720 = vmatpush1.msra.mxu0 0.0
    %4721 = vmatprep.subr.mxu0 0.0
    %4722 = vmatpush1.msra.mxu0 0.0
    %4723 = vmatprep.mubr.f32.mxu0 0.0
    %4724 = vmatmul.mubr.f32.gmra.mrb[0].mxu0 %v4655
    %v4725 = vpop.f32.mrb[0].mxu0
    %v4726 = vadd.f32 0.0, %v4725
    %v4727 = vpop.f32.mrb[0].mxu0
    %4728 = vdwg.mxu0
    %v4730 = vsel %vm1051, %v4726, 0
    %4732 = vmatprep.subr.mxu0 0.0
    %4733 = vmatpush1.msra.mxu0 %v3847
    %4734 = vmatprep.subr.mxu0 0.0
    %4735 = vmatpush1.msra.mxu0 0.0
    %4736 = vmatprep.subr.mxu0 0.0
    %4737 = vmatpush1.msra.mxu0 0.0
    %4738 = vmatprep.subr.mxu0 0.0
    %4739 = vmatpush1.msra.mxu0 0.0
    %4740 = vmatprep.subr.mxu0 0.0
    %4741 = vmatpush1.msra.mxu0 0.0
    %4742 = vmatprep.subr.mxu0 0.0
    %4743 = vmatpush1.msra.mxu0 0.0
    %4744 = vmatprep.subr.mxu0 0.0
    %4745 = vmatpush1.msra.mxu0 0.0
    %4746 = vmatprep.subr.mxu0 0.0
    %4747 = vmatpush1.msra.mxu0 0.0
    %4748 = vmatprep.subr.mxu0 0.0
    %4749 = vmatpush1.msra.mxu0 0.0
    %4750 = vmatprep.subr.mxu0 0.0
    %4751 = vmatpush1.msra.mxu0 0.0
    %4752 = vmatprep.subr.mxu0 0.0
    %4753 = vmatpush1.msra.mxu0 0.0
    %4754 = vmatprep.subr.mxu0 0.0
    %4755 = vmatpush1.msra.mxu0 0.0
    %4756 = vmatprep.subr.mxu0 0.0
    %4757 = vmatpush1.msra.mxu0 0.0
    %4758 = vmatprep.subr.mxu0 0.0
    %4759 = vmatpush1.msra.mxu0 0.0
    %4760 = vmatprep.subr.mxu0 0.0
    %4761 = vmatpush1.msra.mxu0 0.0
    %4762 = vmatprep.subr.mxu0 0.0
    %4763 = vmatpush1.msra.mxu0 0.0
    %4764 = vmatprep.subr.mxu0 0.0
    %4765 = vmatpush1.msra.mxu0 0.0
    %4766 = vmatprep.subr.mxu0 0.0
    %4767 = vmatpush1.msra.mxu0 0.0
    %4768 = vmatprep.subr.mxu0 0.0
    %4769 = vmatpush1.msra.mxu0 0.0
    %4770 = vmatprep.subr.mxu0 0.0
    %4771 = vmatpush1.msra.mxu0 0.0
    %4772 = vmatprep.subr.mxu0 0.0
    %4773 = vmatpush1.msra.mxu0 0.0
    %4774 = vmatprep.subr.mxu0 0.0
    %4775 = vmatpush1.msra.mxu0 0.0
    %4776 = vmatprep.subr.mxu0 0.0
    %4777 = vmatpush1.msra.mxu0 0.0
    %4778 = vmatprep.subr.mxu0 0.0
    %4779 = vmatpush1.msra.mxu0 0.0
    %4780 = vmatprep.subr.mxu0 0.0
    %4781 = vmatpush1.msra.mxu0 0.0
    %4782 = vmatprep.subr.mxu0 0.0
    %4783 = vmatpush1.msra.mxu0 0.0
    %4784 = vmatprep.subr.mxu0 0.0
    %4785 = vmatpush1.msra.mxu0 0.0
    %4786 = vmatprep.subr.mxu0 0.0
    %4787 = vmatpush1.msra.mxu0 0.0
    %4788 = vmatprep.subr.mxu0 0.0
    %4789 = vmatpush1.msra.mxu0 0.0
    %4790 = vmatprep.subr.mxu0 0.0
    %4791 = vmatpush1.msra.mxu0 0.0
    %4792 = vmatprep.subr.mxu0 0.0
    %4793 = vmatpush1.msra.mxu0 0.0
    %4794 = vmatprep.subr.mxu0 0.0
    %4795 = vmatpush1.msra.mxu0 0.0
    %4796 = vmatprep.mubr.f32.mxu0 0.0
    %4797 = vmatmul.mubr.f32.gmra.mrb[0].mxu0 %v4730
    %v4798 = vpop.f32.mrb[0].mxu0
    %v4799 = vadd.f32 0.0, %v4798
    %v4800 = vpop.f32.mrb[0].mxu0
    %4801 = vdwg.mxu0
    %v4802 = vadd.f32 %v4560, %v4799
    %4803 = vrot.lane.b32.xlu0 %v3930, 104
    %v4804 = vpop.permute.xlu0 %4803
    %4805 = vrot.lane.b32.xlu0 %v4006, 104
    %v4806 = vpop.permute.xlu0 %4805
    %v4807 = vsel %vm1051, %v4804, 0
    %v4809 = vsel %vm1051, %v4806, 0
    %4811 = vmatprep.subr.mxu0 0.0
    %4812 = vmatpush1.xpose.msra.mxu0 %v4809
    %4813 = vmatprep.subr.mxu0 0.0
    %4814 = vmatpush1.xpose.msra.mxu0 0.0
    %4815 = vmatprep.subr.mxu0 0.0
    %4816 = vmatpush1.xpose.msra.mxu0 0.0
    %4817 = vmatprep.subr.mxu0 0.0
    %4818 = vmatpush1.xpose.msra.mxu0 0.0
    %4819 = vmatprep.subr.mxu0 0.0
    %4820 = vmatpush1.xpose.msra.mxu0 0.0
    %4821 = vmatprep.subr.mxu0 0.0
    %4822 = vmatpush1.xpose.msra.mxu0 0.0
    %4823 = vmatprep.subr.mxu0 0.0
    %4824 = vmatpush1.xpose.msra.mxu0 0.0
    %4825 = vmatprep.subr.mxu0 0.0
    %4826 = vmatpush1.xpose.msra.mxu0 0.0
    %4827 = vmatprep.subr.mxu0 0.0
    %4828 = vmatpush1.xpose.msra.mxu0 0.0
    %4829 = vmatprep.subr.mxu0 0.0
    %4830 = vmatpush1.xpose.msra.mxu0 0.0
    %4831 = vmatprep.subr.mxu0 0.0
    %4832 = vmatpush1.xpose.msra.mxu0 0.0
    %4833 = vmatprep.subr.mxu0 0.0
    %4834 = vmatpush1.xpose.msra.mxu0 0.0
    %4835 = vmatprep.subr.mxu0 0.0
    %4836 = vmatpush1.xpose.msra.mxu0 0.0
    %4837 = vmatprep.subr.mxu0 0.0
    %4838 = vmatpush1.xpose.msra.mxu0 0.0
    %4839 = vmatprep.subr.mxu0 0.0
    %4840 = vmatpush1.xpose.msra.mxu0 0.0
    %4841 = vmatprep.subr.mxu0 0.0
    %4842 = vmatpush1.xpose.msra.mxu0 0.0
    %4843 = vmatprep.subr.mxu0 0.0
    %4844 = vmatpush1.xpose.msra.mxu0 0.0
    %4845 = vmatprep.subr.mxu0 0.0
    %4846 = vmatpush1.xpose.msra.mxu0 0.0
    %4847 = vmatprep.subr.mxu0 0.0
    %4848 = vmatpush1.xpose.msra.mxu0 0.0
    %4849 = vmatprep.subr.mxu0 0.0
    %4850 = vmatpush1.xpose.msra.mxu0 0.0
    %4851 = vmatprep.subr.mxu0 0.0
    %4852 = vmatpush1.xpose.msra.mxu0 0.0
    %4853 = vmatprep.subr.mxu0 0.0
    %4854 = vmatpush1.xpose.msra.mxu0 0.0
    %4855 = vmatprep.subr.mxu0 0.0
    %4856 = vmatpush1.xpose.msra.mxu0 0.0
    %4857 = vmatprep.subr.mxu0 0.0
    %4858 = vmatpush1.xpose.msra.mxu0 0.0
    %4859 = vmatprep.subr.mxu0 0.0
    %4860 = vmatpush1.xpose.msra.mxu0 0.0
    %4861 = vmatprep.subr.mxu0 0.0
    %4862 = vmatpush1.xpose.msra.mxu0 0.0
    %4863 = vmatprep.subr.mxu0 0.0
    %4864 = vmatpush1.xpose.msra.mxu0 0.0
    %4865 = vmatprep.subr.mxu0 0.0
    %4866 = vmatpush1.xpose.msra.mxu0 0.0
    %4867 = vmatprep.subr.mxu0 0.0
    %4868 = vmatpush1.xpose.msra.mxu0 0.0
    %4869 = vmatprep.subr.mxu0 0.0
    %4870 = vmatpush1.xpose.msra.mxu0 0.0
    %4871 = vmatprep.subr.mxu0 0.0
    %4872 = vmatpush1.xpose.msra.mxu0 0.0
    %4873 = vmatprep.subr.mxu0 0.0
    %4874 = vmatpush1.xpose.msra.mxu0 0.0
    %4875 = vmatprep.mubr.f32.mxu0 0.0
    %4876 = vmatmul.mubr.f32.gmra.mrb[0].mxu0 %v4807
    %v4877 = vpop.f32.mrb[0].mxu0
    %v4878 = vadd.f32 0.0, %v4877
    %v4879 = vpop.f32.mrb[0].mxu0
    %4880 = vdwg.mxu0
    %v4881 = vsel %vm4163, %v4878, -inf
    %4882 = vmax.xlane.f32.xlu0 %v4881
    %v4883 = vpop.xlane.xlu0 %4882
    %v4884 = vsub.f32 %v4878, %v4883
    %v4885 = vmul.f32 %v4884, 1.442695
    %v4886 = vpow.pop %v4885
    %v4887 = vsel %vm4163, %v4886, 0.0
    %4888 = vadd.xlane.f32.xlu0 %v4887
    %v4889 = vpop.xlane.xlu0 %4888
    %v4890 = vrcp.pop %v4889
    %v4891 = vmul.f32 %v4886, %v4890
    %4892 = vrot.lane.b32.xlu0 %v4084, 104
    %v4893 = vpop.permute.xlu0 %4892
    %v4895 = vsel %vm322, %v4891, 0
    %v4897 = vsel %vm325, %v4893, 0
    %4899 = vmatprep.subr.mxu0 0.0
    %4900 = vmatpush1.msra.mxu0 %v4897
    %4901 = vmatprep.subr.mxu0 0.0
    %4902 = vmatpush1.msra.mxu0 0.0
    %4903 = vmatprep.subr.mxu0 0.0
    %4904 = vmatpush1.msra.mxu0 0.0
    %4905 = vmatprep.subr.mxu0 0.0
    %4906 = vmatpush1.msra.mxu0 0.0
    %4907 = vmatprep.subr.mxu0 0.0
    %4908 = vmatpush1.msra.mxu0 0.0
    %4909 = vmatprep.subr.mxu0 0.0
    %4910 = vmatpush1.msra.mxu0 0.0
    %4911 = vmatprep.subr.mxu0 0.0
    %4912 = vmatpush1.msra.mxu0 0.0
    %4913 = vmatprep.subr.mxu0 0.0
    %4914 = vmatpush1.msra.mxu0 0.0
    %4915 = vmatprep.subr.mxu0 0.0
    %4916 = vmatpush1.msra.mxu0 0.0
    %4917 = vmatprep.subr.mxu0 0.0
    %4918 = vmatpush1.msra.mxu0 0.0
    %4919 = vmatprep.subr.mxu0 0.0
    %4920 = vmatpush1.msra.mxu0 0.0
    %4921 = vmatprep.subr.mxu0 0.0
    %4922 = vmatpush1.msra.mxu0 0.0
    %4923 = vmatprep.subr.mxu0 0.0
    %4924 = vmatpush1.msra.mxu0 0.0
    %4925 = vmatprep.subr.mxu0 0.0
    %4926 = vmatpush1.msra.mxu0 0.0
    %4927 = vmatprep.subr.mxu0 0.0
    %4928 = vmatpush1.msra.mxu0 0.0
    %4929 = vmatprep.subr.mxu0 0.0
    %4930 = vmatpush1.msra.mxu0 0.0
    %4931 = vmatprep.subr.mxu0 0.0
    %4932 = vmatpush1.msra.mxu0 0.0
    %4933 = vmatprep.subr.mxu0 0.0
    %4934 = vmatpush1.msra.mxu0 0.0
    %4935 = vmatprep.subr.mxu0 0.0
    %4936 = vmatpush1.msra.mxu0 0.0
    %4937 = vmatprep.subr.mxu0 0.0
    %4938 = vmatpush1.msra.mxu0 0.0
    %4939 = vmatprep.subr.mxu0 0.0
    %4940 = vmatpush1.msra.mxu0 0.0
    %4941 = vmatprep.subr.mxu0 0.0
    %4942 = vmatpush1.msra.mxu0 0.0
    %4943 = vmatprep.subr.mxu0 0.0
    %4944 = vmatpush1.msra.mxu0 0.0
    %4945 = vmatprep.subr.mxu0 0.0
    %4946 = vmatpush1.msra.mxu0 0.0
    %4947 = vmatprep.subr.mxu0 0.0
    %4948 = vmatpush1.msra.mxu0 0.0
    %4949 = vmatprep.subr.mxu0 0.0
    %4950 = vmatpush1.msra.mxu0 0.0
    %4951 = vmatprep.subr.mxu0 0.0
    %4952 = vmatpush1.msra.mxu0 0.0
    %4953 = vmatprep.subr.mxu0 0.0
    %4954 = vmatpush1.msra.mxu0 0.0
    %4955 = vmatprep.subr.mxu0 0.0
    %4956 = vmatpush1.msra.mxu0 0.0
    %4957 = vmatprep.subr.mxu0 0.0
    %4958 = vmatpush1.msra.mxu0 0.0
    %4959 = vmatprep.subr.mxu0 0.0
    %4960 = vmatpush1.msra.mxu0 0.0
    %4961 = vmatprep.subr.mxu0 0.0
    %4962 = vmatpush1.msra.mxu0 0.0
    %4963 = vmatprep.mubr.f32.mxu0 0.0
    %4964 = vmatmul.mubr.f32.gmra.mrb[0].mxu0 %v4895
    %v4965 = vpop.f32.mrb[0].mxu0
    %v4966 = vadd.f32 0.0, %v4965
    %v4967 = vpop.f32.mrb[0].mxu0
    %4968 = vdwg.mxu0
    %v4970 = vsel %vm1051, %v4966, 0
    %4972 = vmatprep.subr.mxu0 0.0
    %4973 = vmatpush1.msra.mxu0 %v3848
    %4974 = vmatprep.subr.mxu0 0.0
    %4975 = vmatpush1.msra.mxu0 0.0
    %4976 = vmatprep.subr.mxu0 0.0
    %4977 = vmatpush1.msra.mxu0 0.0
    %4978 = vmatprep.subr.mxu0 0.0
    %4979 = vmatpush1.msra.mxu0 0.0
    %4980 = vmatprep.subr.mxu0 0.0
    %4981 = vmatpush1.msra.mxu0 0.0
    %4982 = vmatprep.subr.mxu0 0.0
    %4983 = vmatpush1.msra.mxu0 0.0
    %4984 = vmatprep.subr.mxu0 0.0
    %4985 = vmatpush1.msra.mxu0 0.0
    %4986 = vmatprep.subr.mxu0 0.0
    %4987 = vmatpush1.msra.mxu0 0.0
    %4988 = vmatprep.subr.mxu0 0.0
    %4989 = vmatpush1.msra.mxu0 0.0
    %4990 = vmatprep.subr.mxu0 0.0
    %4991 = vmatpush1.msra.mxu0 0.0
    %4992 = vmatprep.subr.mxu0 0.0
    %4993 = vmatpush1.msra.mxu0 0.0
    %4994 = vmatprep.subr.mxu0 0.0
    %4995 = vmatpush1.msra.mxu0 0.0
    %4996 = vmatprep.subr.mxu0 0.0
    %4997 = vmatpush1.msra.mxu0 0.0
    %4998 = vmatprep.subr.mxu0 0.0
    %4999 = vmatpush1.msra.mxu0 0.0
    %5000 = vmatprep.subr.mxu0 0.0
    %5001 = vmatpush1.msra.mxu0 0.0
    %5002 = vmatprep.subr.mxu0 0.0
    %5003 = vmatpush1.msra.mxu0 0.0
    %5004 = vmatprep.subr.mxu0 0.0
    %5005 = vmatpush1.msra.mxu0 0.0
    %5006 = vmatprep.subr.mxu0 0.0
    %5007 = vmatpush1.msra.mxu0 0.0
    %5008 = vmatprep.subr.mxu0 0.0
    %5009 = vmatpush1.msra.mxu0 0.0
    %5010 = vmatprep.subr.mxu0 0.0
    %5011 = vmatpush1.msra.mxu0 0.0
    %5012 = vmatprep.subr.mxu0 0.0
    %5013 = vmatpush1.msra.mxu0 0.0
    %5014 = vmatprep.subr.mxu0 0.0
    %5015 = vmatpush1.msra.mxu0 0.0
    %5016 = vmatprep.subr.mxu0 0.0
    %5017 = vmatpush1.msra.mxu0 0.0
    %5018 = vmatprep.subr.mxu0 0.0
    %5019 = vmatpush1.msra.mxu0 0.0
    %5020 = vmatprep.subr.mxu0 0.0
    %5021 = vmatpush1.msra.mxu0 0.0
    %5022 = vmatprep.subr.mxu0 0.0
    %5023 = vmatpush1.msra.mxu0 0.0
    %5024 = vmatprep.subr.mxu0 0.0
    %5025 = vmatpush1.msra.mxu0 0.0
    %5026 = vmatprep.subr.mxu0 0.0
    %5027 = vmatpush1.msra.mxu0 0.0
    %5028 = vmatprep.subr.mxu0 0.0
    %5029 = vmatpush1.msra.mxu0 0.0
    %5030 = vmatprep.subr.mxu0 0.0
    %5031 = vmatpush1.msra.mxu0 0.0
    %5032 = vmatprep.subr.mxu0 0.0
    %5033 = vmatpush1.msra.mxu0 0.0
    %5034 = vmatprep.subr.mxu0 0.0
    %5035 = vmatpush1.msra.mxu0 0.0
    %5036 = vmatprep.mubr.f32.mxu0 0.0
    %5037 = vmatmul.mubr.f32.gmra.mrb[0].mxu0 %v4970
    %v5038 = vpop.f32.mrb[0].mxu0
    %v5039 = vadd.f32 0.0, %v5038
    %v5040 = vpop.f32.mrb[0].mxu0
    %5041 = vdwg.mxu0
    %v5042 = vadd.f32 %v4802, %v5039
    %v5043 = vrot.slane %v3930, 4
    %v5044 = vrot.slane %v4006, 4
    %v5045 = vsel %vm1051, %v5043, 0
    %v5047 = vsel %vm1051, %v5044, 0
    %5049 = vmatprep.subr.mxu0 0.0
    %5050 = vmatpush1.xpose.msra.mxu0 %v5047
    %5051 = vmatprep.subr.mxu0 0.0
    %5052 = vmatpush1.xpose.msra.mxu0 0.0
    %5053 = vmatprep.subr.mxu0 0.0
    %5054 = vmatpush1.xpose.msra.mxu0 0.0
    %5055 = vmatprep.subr.mxu0 0.0
    %5056 = vmatpush1.xpose.msra.mxu0 0.0
    %5057 = vmatprep.subr.mxu0 0.0
    %5058 = vmatpush1.xpose.msra.mxu0 0.0
    %5059 = vmatprep.subr.mxu0 0.0
    %5060 = vmatpush1.xpose.msra.mxu0 0.0
    %5061 = vmatprep.subr.mxu0 0.0
    %5062 = vmatpush1.xpose.msra.mxu0 0.0
    %5063 = vmatprep.subr.mxu0 0.0
    %5064 = vmatpush1.xpose.msra.mxu0 0.0
    %5065 = vmatprep.subr.mxu0 0.0
    %5066 = vmatpush1.xpose.msra.mxu0 0.0
    %5067 = vmatprep.subr.mxu0 0.0
    %5068 = vmatpush1.xpose.msra.mxu0 0.0
    %5069 = vmatprep.subr.mxu0 0.0
    %5070 = vmatpush1.xpose.msra.mxu0 0.0
    %5071 = vmatprep.subr.mxu0 0.0
    %5072 = vmatpush1.xpose.msra.mxu0 0.0
    %5073 = vmatprep.subr.mxu0 0.0
    %5074 = vmatpush1.xpose.msra.mxu0 0.0
    %5075 = vmatprep.subr.mxu0 0.0
    %5076 = vmatpush1.xpose.msra.mxu0 0.0
    %5077 = vmatprep.subr.mxu0 0.0
    %5078 = vmatpush1.xpose.msra.mxu0 0.0
    %5079 = vmatprep.subr.mxu0 0.0
    %5080 = vmatpush1.xpose.msra.mxu0 0.0
    %5081 = vmatprep.subr.mxu0 0.0
    %5082 = vmatpush1.xpose.msra.mxu0 0.0
    %5083 = vmatprep.subr.mxu0 0.0
    %5084 = vmatpush1.xpose.msra.mxu0 0.0
    %5085 = vmatprep.subr.mxu0 0.0
    %5086 = vmatpush1.xpose.msra.mxu0 0.0
    %5087 = vmatprep.subr.mxu0 0.0
    %5088 = vmatpush1.xpose.msra.mxu0 0.0
    %5089 = vmatprep.subr.mxu0 0.0
    %5090 = vmatpush1.xpose.msra.mxu0 0.0
    %5091 = vmatprep.subr.mxu0 0.0
    %5092 = vmatpush1.xpose.msra.mxu0 0.0
    %5093 = vmatprep.subr.mxu0 0.0
    %5094 = vmatpush1.xpose.msra.mxu0 0.0
    %5095 = vmatprep.subr.mxu0 0.0
    %5096 = vmatpush1.xpose.msra.mxu0 0.0
    %5097 = vmatprep.subr.mxu0 0.0
    %5098 = vmatpush1.xpose.msra.mxu0 0.0
    %5099 = vmatprep.subr.mxu0 0.0
    %5100 = vmatpush1.xpose.msra.mxu0 0.0
    %5101 = vmatprep.subr.mxu0 0.0
    %5102 = vmatpush1.xpose.msra.mxu0 0.0
    %5103 = vmatprep.subr.mxu0 0.0
    %5104 = vmatpush1.xpose.msra.mxu0 0.0
    %5105 = vmatprep.subr.mxu0 0.0
    %5106 = vmatpush1.xpose.msra.mxu0 0.0
    %5107 = vmatprep.subr.mxu0 0.0
    %5108 = vmatpush1.xpose.msra.mxu0 0.0
    %5109 = vmatprep.subr.mxu0 0.0
    %5110 = vmatpush1.xpose.msra.mxu0 0.0
    %5111 = vmatprep.subr.mxu0 0.0
    %5112 = vmatpush1.xpose.msra.mxu0 0.0
    %5113 = vmatprep.mubr.f32.mxu0 0.0
    %5114 = vmatmul.mubr.f32.gmra.mrb[0].mxu0 %v5045
    %v5115 = vpop.f32.mrb[0].mxu0
    %v5116 = vadd.f32 0.0, %v5115
    %v5117 = vpop.f32.mrb[0].mxu0
    %5118 = vdwg.mxu0
    %v5119 = vsel %vm4163, %v5116, -inf
    %5120 = vmax.xlane.f32.xlu0 %v5119
    %v5121 = vpop.xlane.xlu0 %5120
    %v5122 = vsub.f32 %v5116, %v5121
    %v5123 = vmul.f32 %v5122, 1.442695
    %v5124 = vpow.pop %v5123
    %v5125 = vsel %vm4163, %v5124, 0.0
    %5126 = vadd.xlane.f32.xlu0 %v5125
    %v5127 = vpop.xlane.xlu0 %5126
    %v5128 = vrcp.pop %v5127
    %v5129 = vmul.f32 %v5124, %v5128
    %v5130 = vrot.slane %v4084, 4
    %v5132 = vsel %vm322, %v5129, 0
    %v5134 = vsel %vm325, %v5130, 0
    %5136 = vmatprep.subr.mxu0 0.0
    %5137 = vmatpush1.msra.mxu0 %v5134
    %5138 = vmatprep.subr.mxu0 0.0
    %5139 = vmatpush1.msra.mxu0 0.0
    %5140 = vmatprep.subr.mxu0 0.0
    %5141 = vmatpush1.msra.mxu0 0.0
    %5142 = vmatprep.subr.mxu0 0.0
    %5143 = vmatpush1.msra.mxu0 0.0
    %5144 = vmatprep.subr.mxu0 0.0
    %5145 = vmatpush1.msra.mxu0 0.0
    %5146 = vmatprep.subr.mxu0 0.0
    %5147 = vmatpush1.msra.mxu0 0.0
    %5148 = vmatprep.subr.mxu0 0.0
    %5149 = vmatpush1.msra.mxu0 0.0
    %5150 = vmatprep.subr.mxu0 0.0
    %5151 = vmatpush1.msra.mxu0 0.0
    %5152 = vmatprep.subr.mxu0 0.0
    %5153 = vmatpush1.msra.mxu0 0.0
    %5154 = vmatprep.subr.mxu0 0.0
    %5155 = vmatpush1.msra.mxu0 0.0
    %5156 = vmatprep.subr.mxu0 0.0
    %5157 = vmatpush1.msra.mxu0 0.0
    %5158 = vmatprep.subr.mxu0 0.0
    %5159 = vmatpush1.msra.mxu0 0.0
    %5160 = vmatprep.subr.mxu0 0.0
    %5161 = vmatpush1.msra.mxu0 0.0
    %5162 = vmatprep.subr.mxu0 0.0
    %5163 = vmatpush1.msra.mxu0 0.0
    %5164 = vmatprep.subr.mxu0 0.0
    %5165 = vmatpush1.msra.mxu0 0.0
    %5166 = vmatprep.subr.mxu0 0.0
    %5167 = vmatpush1.msra.mxu0 0.0
    %5168 = vmatprep.subr.mxu0 0.0
    %5169 = vmatpush1.msra.mxu0 0.0
    %5170 = vmatprep.subr.mxu0 0.0
    %5171 = vmatpush1.msra.mxu0 0.0
    %5172 = vmatprep.subr.mxu0 0.0
    %5173 = vmatpush1.msra.mxu0 0.0
    %5174 = vmatprep.subr.mxu0 0.0
    %5175 = vmatpush1.msra.mxu0 0.0
    %5176 = vmatprep.subr.mxu0 0.0
    %5177 = vmatpush1.msra.mxu0 0.0
    %5178 = vmatprep.subr.mxu0 0.0
    %5179 = vmatpush1.msra.mxu0 0.0
    %5180 = vmatprep.subr.mxu0 0.0
    %5181 = vmatpush1.msra.mxu0 0.0
    %5182 = vmatprep.subr.mxu0 0.0
    %5183 = vmatpush1.msra.mxu0 0.0
    %5184 = vmatprep.subr.mxu0 0.0
    %5185 = vmatpush1.msra.mxu0 0.0
    %5186 = vmatprep.subr.mxu0 0.0
    %5187 = vmatpush1.msra.mxu0 0.0
    %5188 = vmatprep.subr.mxu0 0.0
    %5189 = vmatpush1.msra.mxu0 0.0
    %5190 = vmatprep.subr.mxu0 0.0
    %5191 = vmatpush1.msra.mxu0 0.0
    %5192 = vmatprep.subr.mxu0 0.0
    %5193 = vmatpush1.msra.mxu0 0.0
    %5194 = vmatprep.subr.mxu0 0.0
    %5195 = vmatpush1.msra.mxu0 0.0
    %5196 = vmatprep.subr.mxu0 0.0
    %5197 = vmatpush1.msra.mxu0 0.0
    %5198 = vmatprep.subr.mxu0 0.0
    %5199 = vmatpush1.msra.mxu0 0.0
    %5200 = vmatprep.mubr.f32.mxu0 0.0
    %5201 = vmatmul.mubr.f32.gmra.mrb[0].mxu0 %v5132
    %v5202 = vpop.f32.mrb[0].mxu0
    %v5203 = vadd.f32 0.0, %v5202
    %v5204 = vpop.f32.mrb[0].mxu0
    %5205 = vdwg.mxu0
    %5206 = vrot.lane.b32.xlu0 %v5043, 120
    %v5207 = vpop.permute.xlu0 %5206
    %5208 = vrot.lane.b32.xlu0 %v5044, 120
    %v5209 = vpop.permute.xlu0 %5208
    %v5210 = vsel %vm1051, %v5207, 0
    %v5212 = vsel %vm1051, %v5209, 0
    %5214 = vmatprep.subr.mxu0 0.0
    %5215 = vmatpush1.xpose.msra.mxu0 %v5212
    %5216 = vmatprep.subr.mxu0 0.0
    %5217 = vmatpush1.xpose.msra.mxu0 0.0
    %5218 = vmatprep.subr.mxu0 0.0
    %5219 = vmatpush1.xpose.msra.mxu0 0.0
    %5220 = vmatprep.subr.mxu0 0.0
    %5221 = vmatpush1.xpose.msra.mxu0 0.0
    %5222 = vmatprep.subr.mxu0 0.0
    %5223 = vmatpush1.xpose.msra.mxu0 0.0
    %5224 = vmatprep.subr.mxu0 0.0
    %5225 = vmatpush1.xpose.msra.mxu0 0.0
    %5226 = vmatprep.subr.mxu0 0.0
    %5227 = vmatpush1.xpose.msra.mxu0 0.0
    %5228 = vmatprep.subr.mxu0 0.0
    %5229 = vmatpush1.xpose.msra.mxu0 0.0
    %5230 = vmatprep.subr.mxu0 0.0
    %5231 = vmatpush1.xpose.msra.mxu0 0.0
    %5232 = vmatprep.subr.mxu0 0.0
    %5233 = vmatpush1.xpose.msra.mxu0 0.0
    %5234 = vmatprep.subr.mxu0 0.0
    %5235 = vmatpush1.xpose.msra.mxu0 0.0
    %5236 = vmatprep.subr.mxu0 0.0
    %5237 = vmatpush1.xpose.msra.mxu0 0.0
    %5238 = vmatprep.subr.mxu0 0.0
    %5239 = vmatpush1.xpose.msra.mxu0 0.0
    %5240 = vmatprep.subr.mxu0 0.0
    %5241 = vmatpush1.xpose.msra.mxu0 0.0
    %5242 = vmatprep.subr.mxu0 0.0
    %5243 = vmatpush1.xpose.msra.mxu0 0.0
    %5244 = vmatprep.subr.mxu0 0.0
    %5245 = vmatpush1.xpose.msra.mxu0 0.0
    %5246 = vmatprep.subr.mxu0 0.0
    %5247 = vmatpush1.xpose.msra.mxu0 0.0
    %5248 = vmatprep.subr.mxu0 0.0
    %5249 = vmatpush1.xpose.msra.mxu0 0.0
    %5250 = vmatprep.subr.mxu0 0.0
    %5251 = vmatpush1.xpose.msra.mxu0 0.0
    %5252 = vmatprep.subr.mxu0 0.0
    %5253 = vmatpush1.xpose.msra.mxu0 0.0
    %5254 = vmatprep.subr.mxu0 0.0
    %5255 = vmatpush1.xpose.msra.mxu0 0.0
    %5256 = vmatprep.subr.mxu0 0.0
    %5257 = vmatpush1.xpose.msra.mxu0 0.0
    %5258 = vmatprep.subr.mxu0 0.0
    %5259 = vmatpush1.xpose.msra.mxu0 0.0
    %5260 = vmatprep.subr.mxu0 0.0
    %5261 = vmatpush1.xpose.msra.mxu0 0.0
    %5262 = vmatprep.subr.mxu0 0.0
    %5263 = vmatpush1.xpose.msra.mxu0 0.0
    %5264 = vmatprep.subr.mxu0 0.0
    %5265 = vmatpush1.xpose.msra.mxu0 0.0
    %5266 = vmatprep.subr.mxu0 0.0
    %5267 = vmatpush1.xpose.msra.mxu0 0.0
    %5268 = vmatprep.subr.mxu0 0.0
    %5269 = vmatpush1.xpose.msra.mxu0 0.0
    %5270 = vmatprep.subr.mxu0 0.0
    %5271 = vmatpush1.xpose.msra.mxu0 0.0
    %5272 = vmatprep.subr.mxu0 0.0
    %5273 = vmatpush1.xpose.msra.mxu0 0.0
    %5274 = vmatprep.subr.mxu0 0.0
    %5275 = vmatpush1.xpose.msra.mxu0 0.0
    %5276 = vmatprep.subr.mxu0 0.0
    %5277 = vmatpush1.xpose.msra.mxu0 0.0
    %5278 = vmatprep.mubr.f32.mxu0 0.0
    %5279 = vmatmul.mubr.f32.gmra.mrb[0].mxu0 %v5210
    %v5280 = vpop.f32.mrb[0].mxu0
    %v5281 = vadd.f32 0.0, %v5280
    %v5282 = vpop.f32.mrb[0].mxu0
    %5283 = vdwg.mxu0
    %v5284 = vsel %vm4163, %v5281, -inf
    %5285 = vmax.xlane.f32.xlu0 %v5284
    %v5286 = vpop.xlane.xlu0 %5285
    %v5287 = vsub.f32 %v5281, %v5286
    %v5288 = vmul.f32 %v5287, 1.442695
    %v5289 = vpow.pop %v5288
    %v5290 = vsel %vm4163, %v5289, 0.0
    %5291 = vadd.xlane.f32.xlu0 %v5290
    %v5292 = vpop.xlane.xlu0 %5291
    %v5293 = vrcp.pop %v5292
    %v5294 = vmul.f32 %v5289, %v5293
    %5295 = vrot.lane.b32.xlu0 %v5130, 120
    %v5296 = vpop.permute.xlu0 %5295
    %v5298 = vsel %vm322, %v5294, 0
    %v5300 = vsel %vm325, %v5296, 0
    %5302 = vmatprep.subr.mxu0 0.0
    %5303 = vmatpush1.msra.mxu0 %v5300
    %5304 = vmatprep.subr.mxu0 0.0
    %5305 = vmatpush1.msra.mxu0 0.0
    %5306 = vmatprep.subr.mxu0 0.0
    %5307 = vmatpush1.msra.mxu0 0.0
    %5308 = vmatprep.subr.mxu0 0.0
    %5309 = vmatpush1.msra.mxu0 0.0
    %5310 = vmatprep.subr.mxu0 0.0
    %5311 = vmatpush1.msra.mxu0 0.0
    %5312 = vmatprep.subr.mxu0 0.0
    %5313 = vmatpush1.msra.mxu0 0.0
    %5314 = vmatprep.subr.mxu0 0.0
    %5315 = vmatpush1.msra.mxu0 0.0
    %5316 = vmatprep.subr.mxu0 0.0
    %5317 = vmatpush1.msra.mxu0 0.0
    %5318 = vmatprep.subr.mxu0 0.0
    %5319 = vmatpush1.msra.mxu0 0.0
    %5320 = vmatprep.subr.mxu0 0.0
    %5321 = vmatpush1.msra.mxu0 0.0
    %5322 = vmatprep.subr.mxu0 0.0
    %5323 = vmatpush1.msra.mxu0 0.0
    %5324 = vmatprep.subr.mxu0 0.0
    %5325 = vmatpush1.msra.mxu0 0.0
    %5326 = vmatprep.subr.mxu0 0.0
    %5327 = vmatpush1.msra.mxu0 0.0
    %5328 = vmatprep.subr.mxu0 0.0
    %5329 = vmatpush1.msra.mxu0 0.0
    %5330 = vmatprep.subr.mxu0 0.0
    %5331 = vmatpush1.msra.mxu0 0.0
    %5332 = vmatprep.subr.mxu0 0.0
    %5333 = vmatpush1.msra.mxu0 0.0
    %5334 = vmatprep.subr.mxu0 0.0
    %5335 = vmatpush1.msra.mxu0 0.0
    %5336 = vmatprep.subr.mxu0 0.0
    %5337 = vmatpush1.msra.mxu0 0.0
    %5338 = vmatprep.subr.mxu0 0.0
    %5339 = vmatpush1.msra.mxu0 0.0
    %5340 = vmatprep.subr.mxu0 0.0
    %5341 = vmatpush1.msra.mxu0 0.0
    %5342 = vmatprep.subr.mxu0 0.0
    %5343 = vmatpush1.msra.mxu0 0.0
    %5344 = vmatprep.subr.mxu0 0.0
    %5345 = vmatpush1.msra.mxu0 0.0
    %5346 = vmatprep.subr.mxu0 0.0
    %5347 = vmatpush1.msra.mxu0 0.0
    %5348 = vmatprep.subr.mxu0 0.0
    %5349 = vmatpush1.msra.mxu0 0.0
    %5350 = vmatprep.subr.mxu0 0.0
    %5351 = vmatpush1.msra.mxu0 0.0
    %5352 = vmatprep.subr.mxu0 0.0
    %5353 = vmatpush1.msra.mxu0 0.0
    %5354 = vmatprep.subr.mxu0 0.0
    %5355 = vmatpush1.msra.mxu0 0.0
    %5356 = vmatprep.subr.mxu0 0.0
    %5357 = vmatpush1.msra.mxu0 0.0
    %5358 = vmatprep.subr.mxu0 0.0
    %5359 = vmatpush1.msra.mxu0 0.0
    %5360 = vmatprep.subr.mxu0 0.0
    %5361 = vmatpush1.msra.mxu0 0.0
    %5362 = vmatprep.subr.mxu0 0.0
    %5363 = vmatpush1.msra.mxu0 0.0
    %5364 = vmatprep.subr.mxu0 0.0
    %5365 = vmatpush1.msra.mxu0 0.0
    %5366 = vmatprep.mubr.f32.mxu0 0.0
    %5367 = vmatmul.mubr.f32.gmra.mrb[0].mxu0 %v5298
    %v5368 = vpop.f32.mrb[0].mxu0
    %v5369 = vadd.f32 0.0, %v5368
    %v5370 = vpop.f32.mrb[0].mxu0
    %5371 = vdwg.mxu0
    %v5373 = vsel %vm1051, %v5369, 0
    %5375 = vmatprep.subr.mxu0 0.0
    %5376 = vmatpush1.msra.mxu0 %v3846
    %5377 = vmatprep.subr.mxu0 0.0
    %5378 = vmatpush1.msra.mxu0 0.0
    %5379 = vmatprep.subr.mxu0 0.0
    %5380 = vmatpush1.msra.mxu0 0.0
    %5381 = vmatprep.subr.mxu0 0.0
    %5382 = vmatpush1.msra.mxu0 0.0
    %5383 = vmatprep.subr.mxu0 0.0
    %5384 = vmatpush1.msra.mxu0 0.0
    %5385 = vmatprep.subr.mxu0 0.0
    %5386 = vmatpush1.msra.mxu0 0.0
    %5387 = vmatprep.subr.mxu0 0.0
    %5388 = vmatpush1.msra.mxu0 0.0
    %5389 = vmatprep.subr.mxu0 0.0
    %5390 = vmatpush1.msra.mxu0 0.0
    %5391 = vmatprep.subr.mxu0 0.0
    %5392 = vmatpush1.msra.mxu0 0.0
    %5393 = vmatprep.subr.mxu0 0.0
    %5394 = vmatpush1.msra.mxu0 0.0
    %5395 = vmatprep.subr.mxu0 0.0
    %5396 = vmatpush1.msra.mxu0 0.0
    %5397 = vmatprep.subr.mxu0 0.0
    %5398 = vmatpush1.msra.mxu0 0.0
    %5399 = vmatprep.subr.mxu0 0.0
    %5400 = vmatpush1.msra.mxu0 0.0
    %5401 = vmatprep.subr.mxu0 0.0
    %5402 = vmatpush1.msra.mxu0 0.0
    %5403 = vmatprep.subr.mxu0 0.0
    %5404 = vmatpush1.msra.mxu0 0.0
    %5405 = vmatprep.subr.mxu0 0.0
    %5406 = vmatpush1.msra.mxu0 0.0
    %5407 = vmatprep.subr.mxu0 0.0
    %5408 = vmatpush1.msra.mxu0 0.0
    %5409 = vmatprep.subr.mxu0 0.0
    %5410 = vmatpush1.msra.mxu0 0.0
    %5411 = vmatprep.subr.mxu0 0.0
    %5412 = vmatpush1.msra.mxu0 0.0
    %5413 = vmatprep.subr.mxu0 0.0
    %5414 = vmatpush1.msra.mxu0 0.0
    %5415 = vmatprep.subr.mxu0 0.0
    %5416 = vmatpush1.msra.mxu0 0.0
    %5417 = vmatprep.subr.mxu0 0.0
    %5418 = vmatpush1.msra.mxu0 0.0
    %5419 = vmatprep.subr.mxu0 0.0
    %5420 = vmatpush1.msra.mxu0 0.0
    %5421 = vmatprep.subr.mxu0 0.0
    %5422 = vmatpush1.msra.mxu0 0.0
    %5423 = vmatprep.subr.mxu0 0.0
    %5424 = vmatpush1.msra.mxu0 0.0
    %5425 = vmatprep.subr.mxu0 0.0
    %5426 = vmatpush1.msra.mxu0 0.0
    %5427 = vmatprep.subr.mxu0 0.0
    %5428 = vmatpush1.msra.mxu0 0.0
    %5429 = vmatprep.subr.mxu0 0.0
    %5430 = vmatpush1.msra.mxu0 0.0
    %5431 = vmatprep.subr.mxu0 0.0
    %5432 = vmatpush1.msra.mxu0 0.0
    %5433 = vmatprep.subr.mxu0 0.0
    %5434 = vmatpush1.msra.mxu0 0.0
    %5435 = vmatprep.subr.mxu0 0.0
    %5436 = vmatpush1.msra.mxu0 0.0
    %5437 = vmatprep.subr.mxu0 0.0
    %5438 = vmatpush1.msra.mxu0 0.0
    %5439 = vmatprep.mubr.f32.mxu0 0.0
    %5440 = vmatmul.mubr.f32.gmra.mrb[0].mxu0 %v5373
    %v5441 = vpop.f32.mrb[0].mxu0
    %v5442 = vadd.f32 0.0, %v5441
    %v5443 = vpop.f32.mrb[0].mxu0
    %5444 = vdwg.mxu0
    %v5446 = vsel %vm1051, %v5203, 0
    %5448 = vmatprep.subr.mxu0 0.0
    %5449 = vmatpush1.msra.mxu0 %v3845
    %5450 = vmatprep.subr.mxu0 0.0
    %5451 = vmatpush1.msra.mxu0 0.0
    %5452 = vmatprep.subr.mxu0 0.0
    %5453 = vmatpush1.msra.mxu0 0.0
    %5454 = vmatprep.subr.mxu0 0.0
    %5455 = vmatpush1.msra.mxu0 0.0
    %5456 = vmatprep.subr.mxu0 0.0
    %5457 = vmatpush1.msra.mxu0 0.0
    %5458 = vmatprep.subr.mxu0 0.0
    %5459 = vmatpush1.msra.mxu0 0.0
    %5460 = vmatprep.subr.mxu0 0.0
    %5461 = vmatpush1.msra.mxu0 0.0
    %5462 = vmatprep.subr.mxu0 0.0
    %5463 = vmatpush1.msra.mxu0 0.0
    %5464 = vmatprep.subr.mxu0 0.0
    %5465 = vmatpush1.msra.mxu0 0.0
    %5466 = vmatprep.subr.mxu0 0.0
    %5467 = vmatpush1.msra.mxu0 0.0
    %5468 = vmatprep.subr.mxu0 0.0
    %5469 = vmatpush1.msra.mxu0 0.0
    %5470 = vmatprep.subr.mxu0 0.0
    %5471 = vmatpush1.msra.mxu0 0.0
    %5472 = vmatprep.subr.mxu0 0.0
    %5473 = vmatpush1.msra.mxu0 0.0
    %5474 = vmatprep.subr.mxu0 0.0
    %5475 = vmatpush1.msra.mxu0 0.0
    %5476 = vmatprep.subr.mxu0 0.0
    %5477 = vmatpush1.msra.mxu0 0.0
    %5478 = vmatprep.subr.mxu0 0.0
    %5479 = vmatpush1.msra.mxu0 0.0
    %5480 = vmatprep.subr.mxu0 0.0
    %5481 = vmatpush1.msra.mxu0 0.0
    %5482 = vmatprep.subr.mxu0 0.0
    %5483 = vmatpush1.msra.mxu0 0.0
    %5484 = vmatprep.subr.mxu0 0.0
    %5485 = vmatpush1.msra.mxu0 0.0
    %5486 = vmatprep.subr.mxu0 0.0
    %5487 = vmatpush1.msra.mxu0 0.0
    %5488 = vmatprep.subr.mxu0 0.0
    %5489 = vmatpush1.msra.mxu0 0.0
    %5490 = vmatprep.subr.mxu0 0.0
    %5491 = vmatpush1.msra.mxu0 0.0
    %5492 = vmatprep.subr.mxu0 0.0
    %5493 = vmatpush1.msra.mxu0 0.0
    %5494 = vmatprep.subr.mxu0 0.0
    %5495 = vmatpush1.msra.mxu0 0.0
    %5496 = vmatprep.subr.mxu0 0.0
    %5497 = vmatpush1.msra.mxu0 0.0
    %5498 = vmatprep.subr.mxu0 0.0
    %5499 = vmatpush1.msra.mxu0 0.0
    %5500 = vmatprep.subr.mxu0 0.0
    %5501 = vmatpush1.msra.mxu0 0.0
    %5502 = vmatprep.subr.mxu0 0.0
    %5503 = vmatpush1.msra.mxu0 0.0
    %5504 = vmatprep.subr.mxu0 0.0
    %5505 = vmatpush1.msra.mxu0 0.0
    %5506 = vmatprep.subr.mxu0 0.0
    %5507 = vmatpush1.msra.mxu0 0.0
    %5508 = vmatprep.subr.mxu0 0.0
    %5509 = vmatpush1.msra.mxu0 0.0
    %5510 = vmatprep.subr.mxu0 0.0
    %5511 = vmatpush1.msra.mxu0 0.0
    %5512 = vmatprep.mubr.f32.mxu0 0.0
    %5513 = vmatmul.mubr.f32.gmra.mrb[0].mxu0 %v5446
    %v5514 = vpop.f32.mrb[0].mxu0
    %v5515 = vadd.f32 %v5442, %v5514
    %v5516 = vpop.f32.mrb[0].mxu0
    %5517 = vdwg.mxu0
    %5518 = vrot.lane.b32.xlu0 %v5043, 112
    %v5519 = vpop.permute.xlu0 %5518
    %5520 = vrot.lane.b32.xlu0 %v5044, 112
    %v5521 = vpop.permute.xlu0 %5520
    %v5522 = vsel %vm1051, %v5519, 0
    %v5524 = vsel %vm1051, %v5521, 0
    %5526 = vmatprep.subr.mxu0 0.0
    %5527 = vmatpush1.xpose.msra.mxu0 %v5524
    %5528 = vmatprep.subr.mxu0 0.0
    %5529 = vmatpush1.xpose.msra.mxu0 0.0
    %5530 = vmatprep.subr.mxu0 0.0
    %5531 = vmatpush1.xpose.msra.mxu0 0.0
    %5532 = vmatprep.subr.mxu0 0.0
    %5533 = vmatpush1.xpose.msra.mxu0 0.0
    %5534 = vmatprep.subr.mxu0 0.0
    %5535 = vmatpush1.xpose.msra.mxu0 0.0
    %5536 = vmatprep.subr.mxu0 0.0
    %5537 = vmatpush1.xpose.msra.mxu0 0.0
    %5538 = vmatprep.subr.mxu0 0.0
    %5539 = vmatpush1.xpose.msra.mxu0 0.0
    %5540 = vmatprep.subr.mxu0 0.0
    %5541 = vmatpush1.xpose.msra.mxu0 0.0
    %5542 = vmatprep.subr.mxu0 0.0
    %5543 = vmatpush1.xpose.msra.mxu0 0.0
    %5544 = vmatprep.subr.mxu0 0.0
    %5545 = vmatpush1.xpose.msra.mxu0 0.0
    %5546 = vmatprep.subr.mxu0 0.0
    %5547 = vmatpush1.xpose.msra.mxu0 0.0
    %5548 = vmatprep.subr.mxu0 0.0
    %5549 = vmatpush1.xpose.msra.mxu0 0.0
    %5550 = vmatprep.subr.mxu0 0.0
    %5551 = vmatpush1.xpose.msra.mxu0 0.0
    %5552 = vmatprep.subr.mxu0 0.0
    %5553 = vmatpush1.xpose.msra.mxu0 0.0
    %5554 = vmatprep.subr.mxu0 0.0
    %5555 = vmatpush1.xpose.msra.mxu0 0.0
    %5556 = vmatprep.subr.mxu0 0.0
    %5557 = vmatpush1.xpose.msra.mxu0 0.0
    %5558 = vmatprep.subr.mxu0 0.0
    %5559 = vmatpush1.xpose.msra.mxu0 0.0
    %5560 = vmatprep.subr.mxu0 0.0
    %5561 = vmatpush1.xpose.msra.mxu0 0.0
    %5562 = vmatprep.subr.mxu0 0.0
    %5563 = vmatpush1.xpose.msra.mxu0 0.0
    %5564 = vmatprep.subr.mxu0 0.0
    %5565 = vmatpush1.xpose.msra.mxu0 0.0
    %5566 = vmatprep.subr.mxu0 0.0
    %5567 = vmatpush1.xpose.msra.mxu0 0.0
    %5568 = vmatprep.subr.mxu0 0.0
    %5569 = vmatpush1.xpose.msra.mxu0 0.0
    %5570 = vmatprep.subr.mxu0 0.0
    %5571 = vmatpush1.xpose.msra.mxu0 0.0
    %5572 = vmatprep.subr.mxu0 0.0
    %5573 = vmatpush1.xpose.msra.mxu0 0.0
    %5574 = vmatprep.subr.mxu0 0.0
    %5575 = vmatpush1.xpose.msra.mxu0 0.0
    %5576 = vmatprep.subr.mxu0 0.0
    %5577 = vmatpush1.xpose.msra.mxu0 0.0
    %5578 = vmatprep.subr.mxu0 0.0
    %5579 = vmatpush1.xpose.msra.mxu0 0.0
    %5580 = vmatprep.subr.mxu0 0.0
    %5581 = vmatpush1.xpose.msra.mxu0 0.0
    %5582 = vmatprep.subr.mxu0 0.0
    %5583 = vmatpush1.xpose.msra.mxu0 0.0
    %5584 = vmatprep.subr.mxu0 0.0
    %5585 = vmatpush1.xpose.msra.mxu0 0.0
    %5586 = vmatprep.subr.mxu0 0.0
    %5587 = vmatpush1.xpose.msra.mxu0 0.0
    %5588 = vmatprep.subr.mxu0 0.0
    %5589 = vmatpush1.xpose.msra.mxu0 0.0
    %5590 = vmatprep.mubr.f32.mxu0 0.0
    %5591 = vmatmul.mubr.f32.gmra.mrb[0].mxu0 %v5522
    %v5592 = vpop.f32.mrb[0].mxu0
    %v5593 = vadd.f32 0.0, %v5592
    %v5594 = vpop.f32.mrb[0].mxu0
    %5595 = vdwg.mxu0
    %v5596 = vsel %vm4163, %v5593, -inf
    %5597 = vmax.xlane.f32.xlu0 %v5596
    %v5598 = vpop.xlane.xlu0 %5597
    %v5599 = vsub.f32 %v5593, %v5598
    %v5600 = vmul.f32 %v5599, 1.442695
    %v5601 = vpow.pop %v5600
    %v5602 = vsel %vm4163, %v5601, 0.0
    %5603 = vadd.xlane.f32.xlu0 %v5602
    %v5604 = vpop.xlane.xlu0 %5603
    %v5605 = vrcp.pop %v5604
    %v5606 = vmul.f32 %v5601, %v5605
    %5607 = vrot.lane.b32.xlu0 %v5130, 112
    %v5608 = vpop.permute.xlu0 %5607
    %v5610 = vsel %vm322, %v5606, 0
    %v5612 = vsel %vm325, %v5608, 0
    %5614 = vmatprep.subr.mxu0 0.0
    %5615 = vmatpush1.msra.mxu0 %v5612
    %5616 = vmatprep.subr.mxu0 0.0
    %5617 = vmatpush1.msra.mxu0 0.0
    %5618 = vmatprep.subr.mxu0 0.0
    %5619 = vmatpush1.msra.mxu0 0.0
    %5620 = vmatprep.subr.mxu0 0.0
    %5621 = vmatpush1.msra.mxu0 0.0
    %5622 = vmatprep.subr.mxu0 0.0
    %5623 = vmatpush1.msra.mxu0 0.0
    %5624 = vmatprep.subr.mxu0 0.0
    %5625 = vmatpush1.msra.mxu0 0.0
    %5626 = vmatprep.subr.mxu0 0.0
    %5627 = vmatpush1.msra.mxu0 0.0
    %5628 = vmatprep.subr.mxu0 0.0
    %5629 = vmatpush1.msra.mxu0 0.0
    %5630 = vmatprep.subr.mxu0 0.0
    %5631 = vmatpush1.msra.mxu0 0.0
    %5632 = vmatprep.subr.mxu0 0.0
    %5633 = vmatpush1.msra.mxu0 0.0
    %5634 = vmatprep.subr.mxu0 0.0
    %5635 = vmatpush1.msra.mxu0 0.0
    %5636 = vmatprep.subr.mxu0 0.0
    %5637 = vmatpush1.msra.mxu0 0.0
    %5638 = vmatprep.subr.mxu0 0.0
    %5639 = vmatpush1.msra.mxu0 0.0
    %5640 = vmatprep.subr.mxu0 0.0
    %5641 = vmatpush1.msra.mxu0 0.0
    %5642 = vmatprep.subr.mxu0 0.0
    %5643 = vmatpush1.msra.mxu0 0.0
    %5644 = vmatprep.subr.mxu0 0.0
    %5645 = vmatpush1.msra.mxu0 0.0
    %5646 = vmatprep.subr.mxu0 0.0
    %5647 = vmatpush1.msra.mxu0 0.0
    %5648 = vmatprep.subr.mxu0 0.0
    %5649 = vmatpush1.msra.mxu0 0.0
    %5650 = vmatprep.subr.mxu0 0.0
    %5651 = vmatpush1.msra.mxu0 0.0
    %5652 = vmatprep.subr.mxu0 0.0
    %5653 = vmatpush1.msra.mxu0 0.0
    %5654 = vmatprep.subr.mxu0 0.0
    %5655 = vmatpush1.msra.mxu0 0.0
    %5656 = vmatprep.subr.mxu0 0.0
    %5657 = vmatpush1.msra.mxu0 0.0
    %5658 = vmatprep.subr.mxu0 0.0
    %5659 = vmatpush1.msra.mxu0 0.0
    %5660 = vmatprep.subr.mxu0 0.0
    %5661 = vmatpush1.msra.mxu0 0.0
    %5662 = vmatprep.subr.mxu0 0.0
    %5663 = vmatpush1.msra.mxu0 0.0
    %5664 = vmatprep.subr.mxu0 0.0
    %5665 = vmatpush1.msra.mxu0 0.0
    %5666 = vmatprep.subr.mxu0 0.0
    %5667 = vmatpush1.msra.mxu0 0.0
    %5668 = vmatprep.subr.mxu0 0.0
    %5669 = vmatpush1.msra.mxu0 0.0
    %5670 = vmatprep.subr.mxu0 0.0
    %5671 = vmatpush1.msra.mxu0 0.0
    %5672 = vmatprep.subr.mxu0 0.0
    %5673 = vmatpush1.msra.mxu0 0.0
    %5674 = vmatprep.subr.mxu0 0.0
    %5675 = vmatpush1.msra.mxu0 0.0
    %5676 = vmatprep.subr.mxu0 0.0
    %5677 = vmatpush1.msra.mxu0 0.0
    %5678 = vmatprep.mubr.f32.mxu0 0.0
    %5679 = vmatmul.mubr.f32.gmra.mrb[0].mxu0 %v5610
    %v5680 = vpop.f32.mrb[0].mxu0
    %v5681 = vadd.f32 0.0, %v5680
    %v5682 = vpop.f32.mrb[0].mxu0
    %5683 = vdwg.mxu0
    %v5685 = vsel %vm1051, %v5681, 0
    %5687 = vmatprep.subr.mxu0 0.0
    %5688 = vmatpush1.msra.mxu0 %v3847
    %5689 = vmatprep.subr.mxu0 0.0
    %5690 = vmatpush1.msra.mxu0 0.0
    %5691 = vmatprep.subr.mxu0 0.0
    %5692 = vmatpush1.msra.mxu0 0.0
    %5693 = vmatprep.subr.mxu0 0.0
    %5694 = vmatpush1.msra.mxu0 0.0
    %5695 = vmatprep.subr.mxu0 0.0
    %5696 = vmatpush1.msra.mxu0 0.0
    %5697 = vmatprep.subr.mxu0 0.0
    %5698 = vmatpush1.msra.mxu0 0.0
    %5699 = vmatprep.subr.mxu0 0.0
    %5700 = vmatpush1.msra.mxu0 0.0
    %5701 = vmatprep.subr.mxu0 0.0
    %5702 = vmatpush1.msra.mxu0 0.0
    %5703 = vmatprep.subr.mxu0 0.0
    %5704 = vmatpush1.msra.mxu0 0.0
    %5705 = vmatprep.subr.mxu0 0.0
    %5706 = vmatpush1.msra.mxu0 0.0
    %5707 = vmatprep.subr.mxu0 0.0
    %5708 = vmatpush1.msra.mxu0 0.0
    %5709 = vmatprep.subr.mxu0 0.0
    %5710 = vmatpush1.msra.mxu0 0.0
    %5711 = vmatprep.subr.mxu0 0.0
    %5712 = vmatpush1.msra.mxu0 0.0
    %5713 = vmatprep.subr.mxu0 0.0
    %5714 = vmatpush1.msra.mxu0 0.0
    %5715 = vmatprep.subr.mxu0 0.0
    %5716 = vmatpush1.msra.mxu0 0.0
    %5717 = vmatprep.subr.mxu0 0.0
    %5718 = vmatpush1.msra.mxu0 0.0
    %5719 = vmatprep.subr.mxu0 0.0
    %5720 = vmatpush1.msra.mxu0 0.0
    %5721 = vmatprep.subr.mxu0 0.0
    %5722 = vmatpush1.msra.mxu0 0.0
    %5723 = vmatprep.subr.mxu0 0.0
    %5724 = vmatpush1.msra.mxu0 0.0
    %5725 = vmatprep.subr.mxu0 0.0
    %5726 = vmatpush1.msra.mxu0 0.0
    %5727 = vmatprep.subr.mxu0 0.0
    %5728 = vmatpush1.msra.mxu0 0.0
    %5729 = vmatprep.subr.mxu0 0.0
    %5730 = vmatpush1.msra.mxu0 0.0
    %5731 = vmatprep.subr.mxu0 0.0
    %5732 = vmatpush1.msra.mxu0 0.0
    %5733 = vmatprep.subr.mxu0 0.0
    %5734 = vmatpush1.msra.mxu0 0.0
    %5735 = vmatprep.subr.mxu0 0.0
    %5736 = vmatpush1.msra.mxu0 0.0
    %5737 = vmatprep.subr.mxu0 0.0
    %5738 = vmatpush1.msra.mxu0 0.0
    %5739 = vmatprep.subr.mxu0 0.0
    %5740 = vmatpush1.msra.mxu0 0.0
    %5741 = vmatprep.subr.mxu0 0.0
    %5742 = vmatpush1.msra.mxu0 0.0
    %5743 = vmatprep.subr.mxu0 0.0
    %5744 = vmatpush1.msra.mxu0 0.0
    %5745 = vmatprep.subr.mxu0 0.0
    %5746 = vmatpush1.msra.mxu0 0.0
    %5747 = vmatprep.subr.mxu0 0.0
    %5748 = vmatpush1.msra.mxu0 0.0
    %5749 = vmatprep.subr.mxu0 0.0
    %5750 = vmatpush1.msra.mxu0 0.0
    %5751 = vmatprep.mubr.f32.mxu0 0.0
    %5752 = vmatmul.mubr.f32.gmra.mrb[0].mxu0 %v5685
    %v5753 = vpop.f32.mrb[0].mxu0
    %v5754 = vadd.f32 0.0, %v5753
    %v5755 = vpop.f32.mrb[0].mxu0
    %5756 = vdwg.mxu0
    %v5757 = vadd.f32 %v5515, %v5754
    %5758 = vrot.lane.b32.xlu0 %v5043, 104
    %v5759 = vpop.permute.xlu0 %5758
    %5760 = vrot.lane.b32.xlu0 %v5044, 104
    %v5761 = vpop.permute.xlu0 %5760
    %v5762 = vsel %vm1051, %v5759, 0
    %v5764 = vsel %vm1051, %v5761, 0
    %5766 = vmatprep.subr.mxu0 0.0
    %5767 = vmatpush1.xpose.msra.mxu0 %v5764
    %5768 = vmatprep.subr.mxu0 0.0
    %5769 = vmatpush1.xpose.msra.mxu0 0.0
    %5770 = vmatprep.subr.mxu0 0.0
    %5771 = vmatpush1.xpose.msra.mxu0 0.0
    %5772 = vmatprep.subr.mxu0 0.0
    %5773 = vmatpush1.xpose.msra.mxu0 0.0
    %5774 = vmatprep.subr.mxu0 0.0
    %5775 = vmatpush1.xpose.msra.mxu0 0.0
    %5776 = vmatprep.subr.mxu0 0.0
    %5777 = vmatpush1.xpose.msra.mxu0 0.0
    %5778 = vmatprep.subr.mxu0 0.0
    %5779 = vmatpush1.xpose.msra.mxu0 0.0
    %5780 = vmatprep.subr.mxu0 0.0
    %5781 = vmatpush1.xpose.msra.mxu0 0.0
    %5782 = vmatprep.subr.mxu0 0.0
    %5783 = vmatpush1.xpose.msra.mxu0 0.0
    %5784 = vmatprep.subr.mxu0 0.0
    %5785 = vmatpush1.xpose.msra.mxu0 0.0
    %5786 = vmatprep.subr.mxu0 0.0
    %5787 = vmatpush1.xpose.msra.mxu0 0.0
    %5788 = vmatprep.subr.mxu0 0.0
    %5789 = vmatpush1.xpose.msra.mxu0 0.0
    %5790 = vmatprep.subr.mxu0 0.0
    %5791 = vmatpush1.xpose.msra.mxu0 0.0
    %5792 = vmatprep.subr.mxu0 0.0
    %5793 = vmatpush1.xpose.msra.mxu0 0.0
    %5794 = vmatprep.subr.mxu0 0.0
    %5795 = vmatpush1.xpose.msra.mxu0 0.0
    %5796 = vmatprep.subr.mxu0 0.0
    %5797 = vmatpush1.xpose.msra.mxu0 0.0
    %5798 = vmatprep.subr.mxu0 0.0
    %5799 = vmatpush1.xpose.msra.mxu0 0.0
    %5800 = vmatprep.subr.mxu0 0.0
    %5801 = vmatpush1.xpose.msra.mxu0 0.0
    %5802 = vmatprep.subr.mxu0 0.0
    %5803 = vmatpush1.xpose.msra.mxu0 0.0
    %5804 = vmatprep.subr.mxu0 0.0
    %5805 = vmatpush1.xpose.msra.mxu0 0.0
    %5806 = vmatprep.subr.mxu0 0.0
    %5807 = vmatpush1.xpose.msra.mxu0 0.0
    %5808 = vmatprep.subr.mxu0 0.0
    %5809 = vmatpush1.xpose.msra.mxu0 0.0
    %5810 = vmatprep.subr.mxu0 0.0
    %5811 = vmatpush1.xpose.msra.mxu0 0.0
    %5812 = vmatprep.subr.mxu0 0.0
    %5813 = vmatpush1.xpose.msra.mxu0 0.0
    %5814 = vmatprep.subr.mxu0 0.0
    %5815 = vmatpush1.xpose.msra.mxu0 0.0
    %5816 = vmatprep.subr.mxu0 0.0
    %5817 = vmatpush1.xpose.msra.mxu0 0.0
    %5818 = vmatprep.subr.mxu0 0.0
    %5819 = vmatpush1.xpose.msra.mxu0 0.0
    %5820 = vmatprep.subr.mxu0 0.0
    %5821 = vmatpush1.xpose.msra.mxu0 0.0
    %5822 = vmatprep.subr.mxu0 0.0
    %5823 = vmatpush1.xpose.msra.mxu0 0.0
    %5824 = vmatprep.subr.mxu0 0.0
    %5825 = vmatpush1.xpose.msra.mxu0 0.0
    %5826 = vmatprep.subr.mxu0 0.0
    %5827 = vmatpush1.xpose.msra.mxu0 0.0
    %5828 = vmatprep.subr.mxu0 0.0
    %5829 = vmatpush1.xpose.msra.mxu0 0.0
    %5830 = vmatprep.mubr.f32.mxu0 0.0
    %5831 = vmatmul.mubr.f32.gmra.mrb[0].mxu0 %v5762
    %v5832 = vpop.f32.mrb[0].mxu0
    %v5833 = vadd.f32 0.0, %v5832
    %v5834 = vpop.f32.mrb[0].mxu0
    %5835 = vdwg.mxu0
    %v5836 = vsel %vm4163, %v5833, -inf
    %5837 = vmax.xlane.f32.xlu0 %v5836
    %v5838 = vpop.xlane.xlu0 %5837
    %v5839 = vsub.f32 %v5833, %v5838
    %v5840 = vmul.f32 %v5839, 1.442695
    %v5841 = vpow.pop %v5840
    %v5842 = vsel %vm4163, %v5841, 0.0
    %5843 = vadd.xlane.f32.xlu0 %v5842
    %v5844 = vpop.xlane.xlu0 %5843
    %v5845 = vrcp.pop %v5844
    %v5846 = vmul.f32 %v5841, %v5845
    %5847 = vrot.lane.b32.xlu0 %v5130, 104
    %v5848 = vpop.permute.xlu0 %5847
    %v5850 = vsel %vm322, %v5846, 0
    %v5852 = vsel %vm325, %v5848, 0
    %5854 = vmatprep.subr.mxu0 0.0
    %5855 = vmatpush1.msra.mxu0 %v5852
    %5856 = vmatprep.subr.mxu0 0.0
    %5857 = vmatpush1.msra.mxu0 0.0
    %5858 = vmatprep.subr.mxu0 0.0
    %5859 = vmatpush1.msra.mxu0 0.0
    %5860 = vmatprep.subr.mxu0 0.0
    %5861 = vmatpush1.msra.mxu0 0.0
    %5862 = vmatprep.subr.mxu0 0.0
    %5863 = vmatpush1.msra.mxu0 0.0
    %5864 = vmatprep.subr.mxu0 0.0
    %5865 = vmatpush1.msra.mxu0 0.0
    %5866 = vmatprep.subr.mxu0 0.0
    %5867 = vmatpush1.msra.mxu0 0.0
    %5868 = vmatprep.subr.mxu0 0.0
    %5869 = vmatpush1.msra.mxu0 0.0
    %5870 = vmatprep.subr.mxu0 0.0
    %5871 = vmatpush1.msra.mxu0 0.0
    %5872 = vmatprep.subr.mxu0 0.0
    %5873 = vmatpush1.msra.mxu0 0.0
    %5874 = vmatprep.subr.mxu0 0.0
    %5875 = vmatpush1.msra.mxu0 0.0
    %5876 = vmatprep.subr.mxu0 0.0
    %5877 = vmatpush1.msra.mxu0 0.0
    %5878 = vmatprep.subr.mxu0 0.0
    %5879 = vmatpush1.msra.mxu0 0.0
    %5880 = vmatprep.subr.mxu0 0.0
    %5881 = vmatpush1.msra.mxu0 0.0
    %5882 = vmatprep.subr.mxu0 0.0
    %5883 = vmatpush1.msra.mxu0 0.0
    %5884 = vmatprep.subr.mxu0 0.0
    %5885 = vmatpush1.msra.mxu0 0.0
    %5886 = vmatprep.subr.mxu0 0.0
    %5887 = vmatpush1.msra.mxu0 0.0
    %5888 = vmatprep.subr.mxu0 0.0
    %5889 = vmatpush1.msra.mxu0 0.0
    %5890 = vmatprep.subr.mxu0 0.0
    %5891 = vmatpush1.msra.mxu0 0.0
    %5892 = vmatprep.subr.mxu0 0.0
    %5893 = vmatpush1.msra.mxu0 0.0
    %5894 = vmatprep.subr.mxu0 0.0
    %5895 = vmatpush1.msra.mxu0 0.0
    %5896 = vmatprep.subr.mxu0 0.0
    %5897 = vmatpush1.msra.mxu0 0.0
    %5898 = vmatprep.subr.mxu0 0.0
    %5899 = vmatpush1.msra.mxu0 0.0
    %5900 = vmatprep.subr.mxu0 0.0
    %5901 = vmatpush1.msra.mxu0 0.0
    %5902 = vmatprep.subr.mxu0 0.0
    %5903 = vmatpush1.msra.mxu0 0.0
    %5904 = vmatprep.subr.mxu0 0.0
    %5905 = vmatpush1.msra.mxu0 0.0
    %5906 = vmatprep.subr.mxu0 0.0
    %5907 = vmatpush1.msra.mxu0 0.0
    %5908 = vmatprep.subr.mxu0 0.0
    %5909 = vmatpush1.msra.mxu0 0.0
    %5910 = vmatprep.subr.mxu0 0.0
    %5911 = vmatpush1.msra.mxu0 0.0
    %5912 = vmatprep.subr.mxu0 0.0
    %5913 = vmatpush1.msra.mxu0 0.0
    %5914 = vmatprep.subr.mxu0 0.0
    %5915 = vmatpush1.msra.mxu0 0.0
    %5916 = vmatprep.subr.mxu0 0.0
    %5917 = vmatpush1.msra.mxu0 0.0
    %5918 = vmatprep.mubr.f32.mxu0 0.0
    %5919 = vmatmul.mubr.f32.gmra.mrb[0].mxu0 %v5850
    %v5920 = vpop.f32.mrb[0].mxu0
    %v5921 = vadd.f32 0.0, %v5920
    %v5922 = vpop.f32.mrb[0].mxu0
    %5923 = vdwg.mxu0
    %v5925 = vsel %vm1051, %v5921, 0
    %5927 = vmatprep.subr.mxu0 0.0
    %5928 = vmatpush1.msra.mxu0 %v3848
    %5929 = vmatprep.subr.mxu0 0.0
    %5930 = vmatpush1.msra.mxu0 0.0
    %5931 = vmatprep.subr.mxu0 0.0
    %5932 = vmatpush1.msra.mxu0 0.0
    %5933 = vmatprep.subr.mxu0 0.0
    %5934 = vmatpush1.msra.mxu0 0.0
    %5935 = vmatprep.subr.mxu0 0.0
    %5936 = vmatpush1.msra.mxu0 0.0
    %5937 = vmatprep.subr.mxu0 0.0
    %5938 = vmatpush1.msra.mxu0 0.0
    %5939 = vmatprep.subr.mxu0 0.0
    %5940 = vmatpush1.msra.mxu0 0.0
    %5941 = vmatprep.subr.mxu0 0.0
    %5942 = vmatpush1.msra.mxu0 0.0
    %5943 = vmatprep.subr.mxu0 0.0
    %5944 = vmatpush1.msra.mxu0 0.0
    %5945 = vmatprep.subr.mxu0 0.0
    %5946 = vmatpush1.msra.mxu0 0.0
    %5947 = vmatprep.subr.mxu0 0.0
    %5948 = vmatpush1.msra.mxu0 0.0
    %5949 = vmatprep.subr.mxu0 0.0
    %5950 = vmatpush1.msra.mxu0 0.0
    %5951 = vmatprep.subr.mxu0 0.0
    %5952 = vmatpush1.msra.mxu0 0.0
    %5953 = vmatprep.subr.mxu0 0.0
    %5954 = vmatpush1.msra.mxu0 0.0
    %5955 = vmatprep.subr.mxu0 0.0
    %5956 = vmatpush1.msra.mxu0 0.0
    %5957 = vmatprep.subr.mxu0 0.0
    %5958 = vmatpush1.msra.mxu0 0.0
    %5959 = vmatprep.subr.mxu0 0.0
    %5960 = vmatpush1.msra.mxu0 0.0
    %5961 = vmatprep.subr.mxu0 0.0
    %5962 = vmatpush1.msra.mxu0 0.0
    %5963 = vmatprep.subr.mxu0 0.0
    %5964 = vmatpush1.msra.mxu0 0.0
    %5965 = vmatprep.subr.mxu0 0.0
    %5966 = vmatpush1.msra.mxu0 0.0
    %5967 = vmatprep.subr.mxu0 0.0
    %5968 = vmatpush1.msra.mxu0 0.0
    %5969 = vmatprep.subr.mxu0 0.0
    %5970 = vmatpush1.msra.mxu0 0.0
    %5971 = vmatprep.subr.mxu0 0.0
    %5972 = vmatpush1.msra.mxu0 0.0
    %5973 = vmatprep.subr.mxu0 0.0
    %5974 = vmatpush1.msra.mxu0 0.0
    %5975 = vmatprep.subr.mxu0 0.0
    %5976 = vmatpush1.msra.mxu0 0.0
    %5977 = vmatprep.subr.mxu0 0.0
    %5978 = vmatpush1.msra.mxu0 0.0
    %5979 = vmatprep.subr.mxu0 0.0
    %5980 = vmatpush1.msra.mxu0 0.0
    %5981 = vmatprep.subr.mxu0 0.0
    %5982 = vmatpush1.msra.mxu0 0.0
    %5983 = vmatprep.subr.mxu0 0.0
    %5984 = vmatpush1.msra.mxu0 0.0
    %5985 = vmatprep.subr.mxu0 0.0
    %5986 = vmatpush1.msra.mxu0 0.0
    %5987 = vmatprep.subr.mxu0 0.0
    %5988 = vmatpush1.msra.mxu0 0.0
    %5989 = vmatprep.subr.mxu0 0.0
    %5990 = vmatpush1.msra.mxu0 0.0
    %5991 = vmatprep.mubr.f32.mxu0 0.0
    %5992 = vmatmul.mubr.f32.gmra.mrb[0].mxu0 %v5925
    %v5993 = vpop.f32.mrb[0].mxu0
    %v5994 = vadd.f32 0.0, %v5993
    %v5995 = vpop.f32.mrb[0].mxu0
    %5996 = vdwg.mxu0
    %v5997 = vadd.f32 %v5757, %v5994
    %v5999 = vrot.slane %v5997, 4
    %v6001 = vsel %vm325, %v5042, %v5999
    %s6002 = scalar_lea.vmem [#allocation11], 1
    %v6003 = vld [vmem:[%s6002] sm:$0x1]
    %v6005 = vlaneseq
    %v6006 = vshrl.u32 %v6005, 7
    %v6007 = vsub.s32 0, %v6006
    %v6008 = vrot.slane %v6003, %v6007
    %v6010 = vadd.f32 %v6001, %v6008
    %v6011 = vadd.f32 %v3828, %v6010
    %s6012 = scalar_lea.vmem [#allocation17], 1
    %v6013 = vld [vmem:[%s6012] sm:$0x1]
    %s6014 = scalar_lea.vmem [#allocation19], 1
    %v6015 = vld [vmem:[%s6014] sm:$0x1]
    %v6016 = vsel %vm803, %v6011, 0.0
    %6017 = vadd.xlane.f32.xlu0 %v6016
    %v6018 = vpop.xlane.xlu0 %6017
    %v6019 = vmul.f32 %v6018, %v2971
    %v6020 = vsub.f32 %v6011, %v6019
    %v6021 = vmul.f32 %v6020, %v6020
    %v6022 = vsel %vm803, %v6021, 0.0
    %6023 = vadd.xlane.f32.xlu0 %v6022
    %v6024 = vpop.xlane.xlu0 %6023
    %v6025 = vmul.f32 %v6024, %v2971
    %v6026 = vadd.f32 %v6025, 1e-05
    %v6027 = vrsqrt.pop %v6026
    %v6028 = vmul.f32 %v6020, %v6027
    %v6030 = vlaneseq
    %v6031 = vshrl.u32 %v6030, 7
    %v6032 = vsub.s32 0, %v6031
    %v6033 = vrot.slane %v6013, %v6032
    %v6035 = vmul.f32 %v6028, %v6033
    %v6037 = vlaneseq
    %v6038 = vshrl.u32 %v6037, 7
    %v6039 = vsub.s32 0, %v6038
    %v6040 = vrot.slane %v6015, %v6039
    %v6042 = vadd.f32 %v6035, %v6040
    %s6043 = scalar_lea.vmem [#allocation13], 32
    %v6044 = vld [vmem:[%s6043] sm:$0xff]
    %v6045 = vld [vmem:[%s6043 + $0x8] sm:$0xff]
    %v6046 = vld [vmem:[%s6043 + $0x10] sm:$0xff]
    %v6047 = vld [vmem:[%s6043 + $0x18] sm:$0xff]
    %s6048 = scalar_lea.vmem [#allocation14], 1
    %v6049 = vld [vmem:[%s6048] sm:$0x1]
    %v6051 = vlaneseq
    %v6052 = vshrl.u32 %v6051, 7
    %v6053 = vsub.s32 0, %v6052
    %v6054 = vrot.slane %v6049, %v6053
    %v6057 = vsel %vm803, %v6042, 0
    %6059 = vmatprep.subr.mxu0 0.0
    %6060 = vmatpush1.msra.mxu0 %v6044
    %6061 = vmatprep.subr.mxu0 0.0
    %6062 = vmatpush1.msra.mxu0 %v6045
    %6063 = vmatprep.subr.mxu0 0.0
    %6064 = vmatpush1.msra.mxu0 %v6046
    %6065 = vmatprep.subr.mxu0 0.0
    %6066 = vmatpush1.msra.mxu0 %v6047
    %6067 = vmatprep.subr.mxu0 0.0
    %6068 = vmatpush1.msra.mxu0 0.0
    %6069 = vmatprep.subr.mxu0 0.0
    %6070 = vmatpush1.msra.mxu0 0.0
    %6071 = vmatprep.subr.mxu0 0.0
    %6072 = vmatpush1.msra.mxu0 0.0
    %6073 = vmatprep.subr.mxu0 0.0
    %6074 = vmatpush1.msra.mxu0 0.0
    %6075 = vmatprep.subr.mxu0 0.0
    %6076 = vmatpush1.msra.mxu0 0.0
    %6077 = vmatprep.subr.mxu0 0.0
    %6078 = vmatpush1.msra.mxu0 0.0
    %6079 = vmatprep.subr.mxu0 0.0
    %6080 = vmatpush1.msra.mxu0 0.0
    %6081 = vmatprep.subr.mxu0 0.0
    %6082 = vmatpush1.msra.mxu0 0.0
    %6083 = vmatprep.subr.mxu0 0.0
    %6084 = vmatpush1.msra.mxu0 0.0
    %6085 = vmatprep.subr.mxu0 0.0
    %6086 = vmatpush1.msra.mxu0 0.0
    %6087 = vmatprep.subr.mxu0 0.0
    %6088 = vmatpush1.msra.mxu0 0.0
    %6089 = vmatprep.subr.mxu0 0.0
    %6090 = vmatpush1.msra.mxu0 0.0
    %6091 = vmatprep.subr.mxu0 0.0
    %6092 = vmatpush1.msra.mxu0 0.0
    %6093 = vmatprep.subr.mxu0 0.0
    %6094 = vmatpush1.msra.mxu0 0.0
    %6095 = vmatprep.subr.mxu0 0.0
    %6096 = vmatpush1.msra.mxu0 0.0
    %6097 = vmatprep.subr.mxu0 0.0
    %6098 = vmatpush1.msra.mxu0 0.0
    %6099 = vmatprep.subr.mxu0 0.0
    %6100 = vmatpush1.msra.mxu0 0.0
    %6101 = vmatprep.subr.mxu0 0.0
    %6102 = vmatpush1.msra.mxu0 0.0
    %6103 = vmatprep.subr.mxu0 0.0
    %6104 = vmatpush1.msra.mxu0 0.0
    %6105 = vmatprep.subr.mxu0 0.0
    %6106 = vmatpush1.msra.mxu0 0.0
    %6107 = vmatprep.subr.mxu0 0.0
    %6108 = vmatpush1.msra.mxu0 0.0
    %6109 = vmatprep.subr.mxu0 0.0
    %6110 = vmatpush1.msra.mxu0 0.0
    %6111 = vmatprep.subr.mxu0 0.0
    %6112 = vmatpush1.msra.mxu0 0.0
    %6113 = vmatprep.subr.mxu0 0.0
    %6114 = vmatpush1.msra.mxu0 0.0
    %6115 = vmatprep.subr.mxu0 0.0
    %6116 = vmatpush1.msra.mxu0 0.0
    %6117 = vmatprep.subr.mxu0 0.0
    %6118 = vmatpush1.msra.mxu0 0.0
    %6119 = vmatprep.subr.mxu0 0.0
    %6120 = vmatpush1.msra.mxu0 0.0
    %6121 = vmatprep.subr.mxu0 0.0
    %6122 = vmatpush1.msra.mxu0 0.0
    %6123 = vmatprep.mubr.f32.mxu0 0.0
    %6124 = vmatmul.mubr.f32.gmra.mrb[0].mxu0 %v6057
    %v6125 = vpop.f32.mrb[0].mxu0
    %v6126 = vadd.f32 %v6054, %v6125
    %v6127 = vpop.f32.mrb[0].mxu0
    %6128 = vdwg.mxu0
    %v6129 = vmul.f32 %v6126, 0.5
    %v6130 = vmul.f32 %v6126, 0.70710677
    %v6131 = verf.f32.pop %v6130
    %v6132 = vadd.f32 %v6131, 1.0
    %v6133 = vmul.f32 %v6129, %v6132
    %s6134 = scalar_lea.vmem %s13, 64
    %v6135 = vld [vmem:[%s6134] sm:$0xff]
    %v6136 = vld [vmem:[%s6134 + $0x8] sm:$0xff]
    %v6137 = vld [vmem:[%s6134 + $0x10] sm:$0xff]
    %v6138 = vld [vmem:[%s6134 + $0x18] sm:$0xff]
    %v6139 = vld [vmem:[%s6134 + $0x20] sm:$0xff]
    %v6140 = vld [vmem:[%s6134 + $0x28] sm:$0xff]
    %v6141 = vld [vmem:[%s6134 + $0x30] sm:$0xff]
    %v6142 = vld [vmem:[%s6134 + $0x38] sm:$0xff]
    %s6143 = scalar_lea.vmem [#allocation16], 1
    %v6144 = vld [vmem:[%s6143] sm:$0x1]
    %v6146 = vlaneseq
    %v6147 = vshrl.u32 %v6146, 7
    %v6148 = vsub.s32 0, %v6147
    %v6149 = vrot.slane %v6144, %v6148
    %v6152 = vsel %vm3125, %v6133, 0
    %6154 = vmatprep.subr.mxu0 0.0
    %6155 = vmatpush1.msra.mxu0 %v6135
    %6156 = vmatprep.subr.mxu0 0.0
    %6157 = vmatpush1.msra.mxu0 %v6136
    %6158 = vmatprep.subr.mxu0 0.0
    %6159 = vmatpush1.msra.mxu0 %v6137
    %6160 = vmatprep.subr.mxu0 0.0
    %6161 = vmatpush1.msra.mxu0 %v6138
    %6162 = vmatprep.subr.mxu0 0.0
    %6163 = vmatpush1.msra.mxu0 %v6139
    %6164 = vmatprep.subr.mxu0 0.0
    %6165 = vmatpush1.msra.mxu0 %v6140
    %6166 = vmatprep.subr.mxu0 0.0
    %6167 = vmatpush1.msra.mxu0 %v6141
    %6168 = vmatprep.subr.mxu0 0.0
    %6169 = vmatpush1.msra.mxu0 %v6142
    %6170 = vmatprep.subr.mxu0 0.0
    %6171 = vmatpush1.msra.mxu0 0.0
    %6172 = vmatprep.subr.mxu0 0.0
    %6173 = vmatpush1.msra.mxu0 0.0
    %6174 = vmatprep.subr.mxu0 0.0
    %6175 = vmatpush1.msra.mxu0 0.0
    %6176 = vmatprep.subr.mxu0 0.0
    %6177 = vmatpush1.msra.mxu0 0.0
    %6178 = vmatprep.subr.mxu0 0.0
    %6179 = vmatpush1.msra.mxu0 0.0
    %6180 = vmatprep.subr.mxu0 0.0
    %6181 = vmatpush1.msra.mxu0 0.0
    %6182 = vmatprep.subr.mxu0 0.0
    %6183 = vmatpush1.msra.mxu0 0.0
    %6184 = vmatprep.subr.mxu0 0.0
    %6185 = vmatpush1.msra.mxu0 0.0
    %6186 = vmatprep.subr.mxu0 0.0
    %6187 = vmatpush1.msra.mxu0 0.0
    %6188 = vmatprep.subr.mxu0 0.0
    %6189 = vmatpush1.msra.mxu0 0.0
    %6190 = vmatprep.subr.mxu0 0.0
    %6191 = vmatpush1.msra.mxu0 0.0
    %6192 = vmatprep.subr.mxu0 0.0
    %6193 = vmatpush1.msra.mxu0 0.0
    %6194 = vmatprep.subr.mxu0 0.0
    %6195 = vmatpush1.msra.mxu0 0.0
    %6196 = vmatprep.subr.mxu0 0.0
    %6197 = vmatpush1.msra.mxu0 0.0
    %6198 = vmatprep.subr.mxu0 0.0
    %6199 = vmatpush1.msra.mxu0 0.0
    %6200 = vmatprep.subr.mxu0 0.0
    %6201 = vmatpush1.msra.mxu0 0.0
    %6202 = vmatprep.subr.mxu0 0.0
    %6203 = vmatpush1.msra.mxu0 0.0
    %6204 = vmatprep.subr.mxu0 0.0
    %6205 = vmatpush1.msra.mxu0 0.0
    %6206 = vmatprep.subr.mxu0 0.0
    %6207 = vmatpush1.msra.mxu0 0.0
    %6208 = vmatprep.subr.mxu0 0.0
    %6209 = vmatpush1.msra.mxu0 0.0
    %6210 = vmatprep.subr.mxu0 0.0
    %6211 = vmatpush1.msra.mxu0 0.0
    %6212 = vmatprep.subr.mxu0 0.0
    %6213 = vmatpush1.msra.mxu0 0.0
    %6214 = vmatprep.subr.mxu0 0.0
    %6215 = vmatpush1.msra.mxu0 0.0
    %6216 = vmatprep.subr.mxu0 0.0
    %6217 = vmatpush1.msra.mxu0 0.0
    %6218 = vmatprep.mubr.f32.mxu0 0.0
    %6219 = vmatmul.mubr.f32.gmra.mrb[0].mxu0 %v6152
    %v6220 = vpop.f32.mrb[0].mxu0
    %v6221 = vadd.f32 %v6149, %v6220
    %v6222 = vpop.f32.mrb[0].mxu0
    %6223 = vdwg.mxu0
    %v6224 = vadd.f32 %v6042, %v6221
    %s6225 = scalar_lea.vmem [#allocation20], 1
    %v6226 = vld [vmem:[%s6225] sm:$0x1]
    %s6227 = scalar_lea.vmem [#allocation22], 1
    %v6228 = vld [vmem:[%s6227] sm:$0x1]
    %v6229 = vsel %vm803, %v6224, 0.0
    %6230 = vadd.xlane.f32.xlu0 %v6229
    %v6231 = vpop.xlane.xlu0 %6230
    %v6232 = vmul.f32 %v6231, %v2971
    %v6233 = vsub.f32 %v6224, %v6232
    %v6234 = vmul.f32 %v6233, %v6233
    %v6235 = vsel %vm803, %v6234, 0.0
    %6236 = vadd.xlane.f32.xlu0 %v6235
    %v6237 = vpop.xlane.xlu0 %6236
    %v6238 = vmul.f32 %v6237, %v2971
    %v6239 = vadd.f32 %v6238, 1e-05
    %v6240 = vrsqrt.pop %v6239
    %v6241 = vmul.f32 %v6233, %v6240
    %v6243 = vlaneseq
    %v6244 = vshrl.u32 %v6243, 7
    %v6245 = vsub.s32 0, %v6244
    %v6246 = vrot.slane %v6226, %v6245
    %v6248 = vmul.f32 %v6241, %v6246
    %v6250 = vlaneseq
    %v6251 = vshrl.u32 %v6250, 7
    %v6252 = vsub.s32 0, %v6251
    %v6253 = vrot.slane %v6228, %v6252
    %v6255 = vadd.f32 %v6248, %v6253
    %s6256 = scalar_lea.vmem %s19, 96
    %v6257 = vld [vmem:[%s6256] sm:$0xff]
    %v6258 = vld [vmem:[%s6256 + $0x8] sm:$0xff]
    %v6259 = vld [vmem:[%s6256 + $0x10] sm:$0xff]
    %v6260 = vld [vmem:[%s6256 + $0x18] sm:$0xff]
    %v6261 = vld [vmem:[%s6256 + $0x20] sm:$0xff]
    %v6262 = vld [vmem:[%s6256 + $0x28] sm:$0xff]
    %v6263 = vld [vmem:[%s6256 + $0x30] sm:$0xff]
    %v6264 = vld [vmem:[%s6256 + $0x38] sm:$0xff]
    %v6265 = vld [vmem:[%s6256 + $0x40] sm:$0xff]
    %v6266 = vld [vmem:[%s6256 + $0x48] sm:$0xff]
    %v6267 = vld [vmem:[%s6256 + $0x50] sm:$0xff]
    %v6268 = vld [vmem:[%s6256 + $0x58] sm:$0xff]
    %s6269 = scalar_lea.vmem [#allocation23], 1
    %v6270 = vld [vmem:[%s6269] sm:$0x1]
    %s6271 = scalar_lea.vmem [#allocation25], 1
    %v6272 = vld [vmem:[%s6271] sm:$0x1]
    %s6273 = scalar_lea.vmem [#allocation26], 1
    %v6274 = vld [vmem:[%s6273] sm:$0x1]
    %v6276 = vrot.slane %v6255, 3
    %v6278 = vrot.slane %v6255, 7
    %v6280 = vsel %vm316, %v6276, %v6278
    %v6281 = vrot.slane %v6255, 1
    %v6283 = vrot.slane %v6255, 5
    %v6285 = vsel %vm3804, %v6281, %v6283
    %v6286 = vsel %vm803, %v6255, 0
    %6288 = vmatprep.subr.mxu0 0.0
    %6289 = vmatpush1.msra.mxu0 %v6261
    %6290 = vmatprep.subr.mxu0 0.0
    %6291 = vmatpush1.msra.mxu0 %v6262
    %6292 = vmatprep.subr.mxu0 0.0
    %6293 = vmatpush1.msra.mxu0 %v6263
    %6294 = vmatprep.subr.mxu0 0.0
    %6295 = vmatpush1.msra.mxu0 %v6264
    %6296 = vmatprep.subr.mxu0 0.0
    %6297 = vmatpush1.msra.mxu0 0.0
    %6298 = vmatprep.subr.mxu0 0.0
    %6299 = vmatpush1.msra.mxu0 0.0
    %6300 = vmatprep.subr.mxu0 0.0
    %6301 = vmatpush1.msra.mxu0 0.0
    %6302 = vmatprep.subr.mxu0 0.0
    %6303 = vmatpush1.msra.mxu0 0.0
    %6304 = vmatprep.subr.mxu0 0.0
    %6305 = vmatpush1.msra.mxu0 0.0
    %6306 = vmatprep.subr.mxu0 0.0
    %6307 = vmatpush1.msra.mxu0 0.0
    %6308 = vmatprep.subr.mxu0 0.0
    %6309 = vmatpush1.msra.mxu0 0.0
    %6310 = vmatprep.subr.mxu0 0.0
    %6311 = vmatpush1.msra.mxu0 0.0
    %6312 = vmatprep.subr.mxu0 0.0
    %6313 = vmatpush1.msra.mxu0 0.0
    %6314 = vmatprep.subr.mxu0 0.0
    %6315 = vmatpush1.msra.mxu0 0.0
    %6316 = vmatprep.subr.mxu0 0.0
    %6317 = vmatpush1.msra.mxu0 0.0
    %6318 = vmatprep.subr.mxu0 0.0
    %6319 = vmatpush1.msra.mxu0 0.0
    %6320 = vmatprep.subr.mxu0 0.0
    %6321 = vmatpush1.msra.mxu0 0.0
    %6322 = vmatprep.subr.mxu0 0.0
    %6323 = vmatpush1.msra.mxu0 0.0
    %6324 = vmatprep.subr.mxu0 0.0
    %6325 = vmatpush1.msra.mxu0 0.0
    %6326 = vmatprep.subr.mxu0 0.0
    %6327 = vmatpush1.msra.mxu0 0.0
    %6328 = vmatprep.subr.mxu0 0.0
    %6329 = vmatpush1.msra.mxu0 0.0
    %6330 = vmatprep.subr.mxu0 0.0
    %6331 = vmatpush1.msra.mxu0 0.0
    %6332 = vmatprep.subr.mxu0 0.0
    %6333 = vmatpush1.msra.mxu0 0.0
    %6334 = vmatprep.subr.mxu0 0.0
    %6335 = vmatpush1.msra.mxu0 0.0
    %6336 = vmatprep.subr.mxu0 0.0
    %6337 = vmatpush1.msra.mxu0 0.0
    %6338 = vmatprep.subr.mxu0 0.0
    %6339 = vmatpush1.msra.mxu0 0.0
    %6340 = vmatprep.subr.mxu0 0.0
    %6341 = vmatpush1.msra.mxu0 0.0
    %6342 = vmatprep.subr.mxu0 0.0
    %6343 = vmatpush1.msra.mxu0 0.0
    %6344 = vmatprep.subr.mxu0 0.0
    %6345 = vmatpush1.msra.mxu0 0.0
    %6346 = vmatprep.subr.mxu0 0.0
    %6347 = vmatpush1.msra.mxu0 0.0
    %6348 = vmatprep.subr.mxu0 0.0
    %6349 = vmatpush1.msra.mxu0 0.0
    %6350 = vmatprep.subr.mxu0 0.0
    %6351 = vmatpush1.msra.mxu0 0.0
    %6352 = vmatprep.mubr.f32.mxu0 0.0
    %6353 = vmatmul.mubr.f32.gmra.mrb[0].mxu0 %v6286
    %v6354 = vpop.f32.mrb[0].mxu0
    %v6355 = vadd.f32 0.0, %v6354
    %v6356 = vpop.f32.mrb[0].mxu0
    %6357 = vdwg.mxu0
    %v6359 = vsel %vm803, %v6280, 0
    %6361 = vmatprep.subr.mxu0 0.0
    %6362 = vmatpush1.msra.mxu0 %v6257
    %6363 = vmatprep.subr.mxu0 0.0
    %6364 = vmatpush1.msra.mxu0 %v6258
    %6365 = vmatprep.subr.mxu0 0.0
    %6366 = vmatpush1.msra.mxu0 %v6259
    %6367 = vmatprep.subr.mxu0 0.0
    %6368 = vmatpush1.msra.mxu0 %v6260
    %6369 = vmatprep.subr.mxu0 0.0
    %6370 = vmatpush1.msra.mxu0 0.0
    %6371 = vmatprep.subr.mxu0 0.0
    %6372 = vmatpush1.msra.mxu0 0.0
    %6373 = vmatprep.subr.mxu0 0.0
    %6374 = vmatpush1.msra.mxu0 0.0
    %6375 = vmatprep.subr.mxu0 0.0
    %6376 = vmatpush1.msra.mxu0 0.0
    %6377 = vmatprep.subr.mxu0 0.0
    %6378 = vmatpush1.msra.mxu0 0.0
    %6379 = vmatprep.subr.mxu0 0.0
    %6380 = vmatpush1.msra.mxu0 0.0
    %6381 = vmatprep.subr.mxu0 0.0
    %6382 = vmatpush1.msra.mxu0 0.0
    %6383 = vmatprep.subr.mxu0 0.0
    %6384 = vmatpush1.msra.mxu0 0.0
    %6385 = vmatprep.subr.mxu0 0.0
    %6386 = vmatpush1.msra.mxu0 0.0
    %6387 = vmatprep.subr.mxu0 0.0
    %6388 = vmatpush1.msra.mxu0 0.0
    %6389 = vmatprep.subr.mxu0 0.0
    %6390 = vmatpush1.msra.mxu0 0.0
    %6391 = vmatprep.subr.mxu0 0.0
    %6392 = vmatpush1.msra.mxu0 0.0
    %6393 = vmatprep.subr.mxu0 0.0
    %6394 = vmatpush1.msra.mxu0 0.0
    %6395 = vmatprep.subr.mxu0 0.0
    %6396 = vmatpush1.msra.mxu0 0.0
    %6397 = vmatprep.subr.mxu0 0.0
    %6398 = vmatpush1.msra.mxu0 0.0
    %6399 = vmatprep.subr.mxu0 0.0
    %6400 = vmatpush1.msra.mxu0 0.0
    %6401 = vmatprep.subr.mxu0 0.0
    %6402 = vmatpush1.msra.mxu0 0.0
    %6403 = vmatprep.subr.mxu0 0.0
    %6404 = vmatpush1.msra.mxu0 0.0
    %6405 = vmatprep.subr.mxu0 0.0
    %6406 = vmatpush1.msra.mxu0 0.0
    %6407 = vmatprep.subr.mxu0 0.0
    %6408 = vmatpush1.msra.mxu0 0.0
    %6409 = vmatprep.subr.mxu0 0.0
    %6410 = vmatpush1.msra.mxu0 0.0
    %6411 = vmatprep.subr.mxu0 0.0
    %6412 = vmatpush1.msra.mxu0 0.0
    %6413 = vmatprep.subr.mxu0 0.0
    %6414 = vmatpush1.msra.mxu0 0.0
    %6415 = vmatprep.subr.mxu0 0.0
    %6416 = vmatpush1.msra.mxu0 0.0
    %6417 = vmatprep.subr.mxu0 0.0
    %6418 = vmatpush1.msra.mxu0 0.0
    %6419 = vmatprep.subr.mxu0 0.0
    %6420 = vmatpush1.msra.mxu0 0.0
    %6421 = vmatprep.subr.mxu0 0.0
    %6422 = vmatpush1.msra.mxu0 0.0
    %6423 = vmatprep.subr.mxu0 0.0
    %6424 = vmatpush1.msra.mxu0 0.0
    %6425 = vmatprep.mubr.f32.mxu0 0.0
    %6426 = vmatmul.mubr.f32.gmra.mrb[0].mxu0 %v6359
    %v6427 = vpop.f32.mrb[0].mxu0
    %v6428 = vadd.f32 %v6355, %v6427
    %v6429 = vpop.f32.mrb[0].mxu0
    %6430 = vdwg.mxu0
    %v6432 = vsel %vm803, %v6285, 0
    %6434 = vmatprep.subr.mxu0 0.0
    %6435 = vmatpush1.msra.mxu0 %v6265
    %6436 = vmatprep.subr.mxu0 0.0
    %6437 = vmatpush1.msra.mxu0 %v6266
    %6438 = vmatprep.subr.mxu0 0.0
    %6439 = vmatpush1.msra.mxu0 %v6267
    %6440 = vmatprep.subr.mxu0 0.0
    %6441 = vmatpush1.msra.mxu0 %v6268
    %6442 = vmatprep.subr.mxu0 0.0
    %6443 = vmatpush1.msra.mxu0 0.0
    %6444 = vmatprep.subr.mxu0 0.0
    %6445 = vmatpush1.msra.mxu0 0.0
    %6446 = vmatprep.subr.mxu0 0.0
    %6447 = vmatpush1.msra.mxu0 0.0
    %6448 = vmatprep.subr.mxu0 0.0
    %6449 = vmatpush1.msra.mxu0 0.0
    %6450 = vmatprep.subr.mxu0 0.0
    %6451 = vmatpush1.msra.mxu0 0.0
    %6452 = vmatprep.subr.mxu0 0.0
    %6453 = vmatpush1.msra.mxu0 0.0
    %6454 = vmatprep.subr.mxu0 0.0
    %6455 = vmatpush1.msra.mxu0 0.0
    %6456 = vmatprep.subr.mxu0 0.0
    %6457 = vmatpush1.msra.mxu0 0.0
    %6458 = vmatprep.subr.mxu0 0.0
    %6459 = vmatpush1.msra.mxu0 0.0
    %6460 = vmatprep.subr.mxu0 0.0
    %6461 = vmatpush1.msra.mxu0 0.0
    %6462 = vmatprep.subr.mxu0 0.0
    %6463 = vmatpush1.msra.mxu0 0.0
    %6464 = vmatprep.subr.mxu0 0.0
    %6465 = vmatpush1.msra.mxu0 0.0
    %6466 = vmatprep.subr.mxu0 0.0
    %6467 = vmatpush1.msra.mxu0 0.0
    %6468 = vmatprep.subr.mxu0 0.0
    %6469 = vmatpush1.msra.mxu0 0.0
    %6470 = vmatprep.subr.mxu0 0.0
    %6471 = vmatpush1.msra.mxu0 0.0
    %6472 = vmatprep.subr.mxu0 0.0
    %6473 = vmatpush1.msra.mxu0 0.0
    %6474 = vmatprep.subr.mxu0 0.0
    %6475 = vmatpush1.msra.mxu0 0.0
    %6476 = vmatprep.subr.mxu0 0.0
    %6477 = vmatpush1.msra.mxu0 0.0
    %6478 = vmatprep.subr.mxu0 0.0
    %6479 = vmatpush1.msra.mxu0 0.0
    %6480 = vmatprep.subr.mxu0 0.0
    %6481 = vmatpush1.msra.mxu0 0.0
    %6482 = vmatprep.subr.mxu0 0.0
    %6483 = vmatpush1.msra.mxu0 0.0
    %6484 = vmatprep.subr.mxu0 0.0
    %6485 = vmatpush1.msra.mxu0 0.0
    %6486 = vmatprep.subr.mxu0 0.0
    %6487 = vmatpush1.msra.mxu0 0.0
    %6488 = vmatprep.subr.mxu0 0.0
    %6489 = vmatpush1.msra.mxu0 0.0
    %6490 = vmatprep.subr.mxu0 0.0
    %6491 = vmatpush1.msra.mxu0 0.0
    %6492 = vmatprep.subr.mxu0 0.0
    %6493 = vmatpush1.msra.mxu0 0.0
    %6494 = vmatprep.subr.mxu0 0.0
    %6495 = vmatpush1.msra.mxu0 0.0
    %6496 = vmatprep.subr.mxu0 0.0
    %6497 = vmatpush1.msra.mxu0 0.0
    %6498 = vmatprep.mubr.f32.mxu0 0.0
    %6499 = vmatmul.mubr.f32.gmra.mrb[0].mxu0 %v6432
    %v6500 = vpop.f32.mrb[0].mxu0
    %v6501 = vadd.f32 0.0, %v6500
    %v6502 = vpop.f32.mrb[0].mxu0
    %6503 = vdwg.mxu0
    %v6504 = vadd.f32 %v6428, %v6501
    %v6506 = vlaneseq
    %v6507 = vshrl.u32 %v6506, 7
    %v6508 = vsub.s32 0, %v6507
    %v6509 = vrot.slane %v6270, %v6508
    %v6511 = vadd.f32 %v6504, %v6509
    %v6512 = vsel %vm316, %v6278, %v6276
    %v6513 = vsel %vm3804, %v6283, %v6281
    %v6514 = vrot.slane %v6255, 4
    %v6515 = vsel %vm803, %v6514, 0
    %6517 = vmatprep.subr.mxu0 0.0
    %6518 = vmatpush1.msra.mxu0 %v6261
    %6519 = vmatprep.subr.mxu0 0.0
    %6520 = vmatpush1.msra.mxu0 %v6262
    %6521 = vmatprep.subr.mxu0 0.0
    %6522 = vmatpush1.msra.mxu0 %v6263
    %6523 = vmatprep.subr.mxu0 0.0
    %6524 = vmatpush1.msra.mxu0 %v6264
    %6525 = vmatprep.subr.mxu0 0.0
    %6526 = vmatpush1.msra.mxu0 0.0
    %6527 = vmatprep.subr.mxu0 0.0
    %6528 = vmatpush1.msra.mxu0 0.0
    %6529 = vmatprep.subr.mxu0 0.0
    %6530 = vmatpush1.msra.mxu0 0.0
    %6531 = vmatprep.subr.mxu0 0.0
    %6532 = vmatpush1.msra.mxu0 0.0
    %6533 = vmatprep.subr.mxu0 0.0
    %6534 = vmatpush1.msra.mxu0 0.0
    %6535 = vmatprep.subr.mxu0 0.0
    %6536 = vmatpush1.msra.mxu0 0.0
    %6537 = vmatprep.subr.mxu0 0.0
    %6538 = vmatpush1.msra.mxu0 0.0
    %6539 = vmatprep.subr.mxu0 0.0
    %6540 = vmatpush1.msra.mxu0 0.0
    %6541 = vmatprep.subr.mxu0 0.0
    %6542 = vmatpush1.msra.mxu0 0.0
    %6543 = vmatprep.subr.mxu0 0.0
    %6544 = vmatpush1.msra.mxu0 0.0
    %6545 = vmatprep.subr.mxu0 0.0
    %6546 = vmatpush1.msra.mxu0 0.0
    %6547 = vmatprep.subr.mxu0 0.0
    %6548 = vmatpush1.msra.mxu0 0.0
    %6549 = vmatprep.subr.mxu0 0.0
    %6550 = vmatpush1.msra.mxu0 0.0
    %6551 = vmatprep.subr.mxu0 0.0
    %6552 = vmatpush1.msra.mxu0 0.0
    %6553 = vmatprep.subr.mxu0 0.0
    %6554 = vmatpush1.msra.mxu0 0.0
    %6555 = vmatprep.subr.mxu0 0.0
    %6556 = vmatpush1.msra.mxu0 0.0
    %6557 = vmatprep.subr.mxu0 0.0
    %6558 = vmatpush1.msra.mxu0 0.0
    %6559 = vmatprep.subr.mxu0 0.0
    %6560 = vmatpush1.msra.mxu0 0.0
    %6561 = vmatprep.subr.mxu0 0.0
    %6562 = vmatpush1.msra.mxu0 0.0
    %6563 = vmatprep.subr.mxu0 0.0
    %6564 = vmatpush1.msra.mxu0 0.0
    %6565 = vmatprep.subr.mxu0 0.0
    %6566 = vmatpush1.msra.mxu0 0.0
    %6567 = vmatprep.subr.mxu0 0.0
    %6568 = vmatpush1.msra.mxu0 0.0
    %6569 = vmatprep.subr.mxu0 0.0
    %6570 = vmatpush1.msra.mxu0 0.0
    %6571 = vmatprep.subr.mxu0 0.0
    %6572 = vmatpush1.msra.mxu0 0.0
    %6573 = vmatprep.subr.mxu0 0.0
    %6574 = vmatpush1.msra.mxu0 0.0
    %6575 = vmatprep.subr.mxu0 0.0
    %6576 = vmatpush1.msra.mxu0 0.0
    %6577 = vmatprep.subr.mxu0 0.0
    %6578 = vmatpush1.msra.mxu0 0.0
    %6579 = vmatprep.subr.mxu0 0.0
    %6580 = vmatpush1.msra.mxu0 0.0
    %6581 = vmatprep.mubr.f32.mxu0 0.0
    %6582 = vmatmul.mubr.f32.gmra.mrb[0].mxu0 %v6515
    %v6583 = vpop.f32.mrb[0].mxu0
    %v6584 = vadd.f32 0.0, %v6583
    %v6585 = vpop.f32.mrb[0].mxu0
    %6586 = vdwg.mxu0
    %v6588 = vsel %vm803, %v6512, 0
    %6590 = vmatprep.subr.mxu0 0.0
    %6591 = vmatpush1.msra.mxu0 %v6257
    %6592 = vmatprep.subr.mxu0 0.0
    %6593 = vmatpush1.msra.mxu0 %v6258
    %6594 = vmatprep.subr.mxu0 0.0
    %6595 = vmatpush1.msra.mxu0 %v6259
    %6596 = vmatprep.subr.mxu0 0.0
    %6597 = vmatpush1.msra.mxu0 %v6260
    %6598 = vmatprep.subr.mxu0 0.0
    %6599 = vmatpush1.msra.mxu0 0.0
    %6600 = vmatprep.subr.mxu0 0.0
    %6601 = vmatpush1.msra.mxu0 0.0
    %6602 = vmatprep.subr.mxu0 0.0
    %6603 = vmatpush1.msra.mxu0 0.0
    %6604 = vmatprep.subr.mxu0 0.0
    %6605 = vmatpush1.msra.mxu0 0.0
    %6606 = vmatprep.subr.mxu0 0.0
    %6607 = vmatpush1.msra.mxu0 0.0
    %6608 = vmatprep.subr.mxu0 0.0
    %6609 = vmatpush1.msra.mxu0 0.0
    %6610 = vmatprep.subr.mxu0 0.0
    %6611 = vmatpush1.msra.mxu0 0.0
    %6612 = vmatprep.subr.mxu0 0.0
    %6613 = vmatpush1.msra.mxu0 0.0
    %6614 = vmatprep.subr.mxu0 0.0
    %6615 = vmatpush1.msra.mxu0 0.0
    %6616 = vmatprep.subr.mxu0 0.0
    %6617 = vmatpush1.msra.mxu0 0.0
    %6618 = vmatprep.subr.mxu0 0.0
    %6619 = vmatpush1.msra.mxu0 0.0
    %6620 = vmatprep.subr.mxu0 0.0
    %6621 = vmatpush1.msra.mxu0 0.0
    %6622 = vmatprep.subr.mxu0 0.0
    %6623 = vmatpush1.msra.mxu0 0.0
    %6624 = vmatprep.subr.mxu0 0.0
    %6625 = vmatpush1.msra.mxu0 0.0
    %6626 = vmatprep.subr.mxu0 0.0
    %6627 = vmatpush1.msra.mxu0 0.0
    %6628 = vmatprep.subr.mxu0 0.0
    %6629 = vmatpush1.msra.mxu0 0.0
    %6630 = vmatprep.subr.mxu0 0.0
    %6631 = vmatpush1.msra.mxu0 0.0
    %6632 = vmatprep.subr.mxu0 0.0
    %6633 = vmatpush1.msra.mxu0 0.0
    %6634 = vmatprep.subr.mxu0 0.0
    %6635 = vmatpush1.msra.mxu0 0.0
    %6636 = vmatprep.subr.mxu0 0.0
    %6637 = vmatpush1.msra.mxu0 0.0
    %6638 = vmatprep.subr.mxu0 0.0
    %6639 = vmatpush1.msra.mxu0 0.0
    %6640 = vmatprep.subr.mxu0 0.0
    %6641 = vmatpush1.msra.mxu0 0.0
    %6642 = vmatprep.subr.mxu0 0.0
    %6643 = vmatpush1.msra.mxu0 0.0
    %6644 = vmatprep.subr.mxu0 0.0
    %6645 = vmatpush1.msra.mxu0 0.0
    %6646 = vmatprep.subr.mxu0 0.0
    %6647 = vmatpush1.msra.mxu0 0.0
    %6648 = vmatprep.subr.mxu0 0.0
    %6649 = vmatpush1.msra.mxu0 0.0
    %6650 = vmatprep.subr.mxu0 0.0
    %6651 = vmatpush1.msra.mxu0 0.0
    %6652 = vmatprep.subr.mxu0 0.0
    %6653 = vmatpush1.msra.mxu0 0.0
    %6654 = vmatprep.mubr.f32.mxu0 0.0
    %6655 = vmatmul.mubr.f32.gmra.mrb[0].mxu0 %v6588
    %v6656 = vpop.f32.mrb[0].mxu0
    %v6657 = vadd.f32 %v6584, %v6656
    %v6658 = vpop.f32.mrb[0].mxu0
    %6659 = vdwg.mxu0
    %v6661 = vsel %vm803, %v6513, 0
    %6663 = vmatprep.subr.mxu0 0.0
    %6664 = vmatpush1.msra.mxu0 %v6265
    %6665 = vmatprep.subr.mxu0 0.0
    %6666 = vmatpush1.msra.mxu0 %v6266
    %6667 = vmatprep.subr.mxu0 0.0
    %6668 = vmatpush1.msra.mxu0 %v6267
    %6669 = vmatprep.subr.mxu0 0.0
    %6670 = vmatpush1.msra.mxu0 %v6268
    %6671 = vmatprep.subr.mxu0 0.0
    %6672 = vmatpush1.msra.mxu0 0.0
    %6673 = vmatprep.subr.mxu0 0.0
    %6674 = vmatpush1.msra.mxu0 0.0
    %6675 = vmatprep.subr.mxu0 0.0
    %6676 = vmatpush1.msra.mxu0 0.0
    %6677 = vmatprep.subr.mxu0 0.0
    %6678 = vmatpush1.msra.mxu0 0.0
    %6679 = vmatprep.subr.mxu0 0.0
    %6680 = vmatpush1.msra.mxu0 0.0
    %6681 = vmatprep.subr.mxu0 0.0
    %6682 = vmatpush1.msra.mxu0 0.0
    %6683 = vmatprep.subr.mxu0 0.0
    %6684 = vmatpush1.msra.mxu0 0.0
    %6685 = vmatprep.subr.mxu0 0.0
    %6686 = vmatpush1.msra.mxu0 0.0
    %6687 = vmatprep.subr.mxu0 0.0
    %6688 = vmatpush1.msra.mxu0 0.0
    %6689 = vmatprep.subr.mxu0 0.0
    %6690 = vmatpush1.msra.mxu0 0.0
    %6691 = vmatprep.subr.mxu0 0.0
    %6692 = vmatpush1.msra.mxu0 0.0
    %6693 = vmatprep.subr.mxu0 0.0
    %6694 = vmatpush1.msra.mxu0 0.0
    %6695 = vmatprep.subr.mxu0 0.0
    %6696 = vmatpush1.msra.mxu0 0.0
    %6697 = vmatprep.subr.mxu0 0.0
    %6698 = vmatpush1.msra.mxu0 0.0
    %6699 = vmatprep.subr.mxu0 0.0
    %6700 = vmatpush1.msra.mxu0 0.0
    %6701 = vmatprep.subr.mxu0 0.0
    %6702 = vmatpush1.msra.mxu0 0.0
    %6703 = vmatprep.subr.mxu0 0.0
    %6704 = vmatpush1.msra.mxu0 0.0
    %6705 = vmatprep.subr.mxu0 0.0
    %6706 = vmatpush1.msra.mxu0 0.0
    %6707 = vmatprep.subr.mxu0 0.0
    %6708 = vmatpush1.msra.mxu0 0.0
    %6709 = vmatprep.subr.mxu0 0.0
    %6710 = vmatpush1.msra.mxu0 0.0
    %6711 = vmatprep.subr.mxu0 0.0
    %6712 = vmatpush1.msra.mxu0 0.0
    %6713 = vmatprep.subr.mxu0 0.0
    %6714 = vmatpush1.msra.mxu0 0.0
    %6715 = vmatprep.subr.mxu0 0.0
    %6716 = vmatpush1.msra.mxu0 0.0
    %6717 = vmatprep.subr.mxu0 0.0
    %6718 = vmatpush1.msra.mxu0 0.0
    %6719 = vmatprep.subr.mxu0 0.0
    %6720 = vmatpush1.msra.mxu0 0.0
    %6721 = vmatprep.subr.mxu0 0.0
    %6722 = vmatpush1.msra.mxu0 0.0
    %6723 = vmatprep.subr.mxu0 0.0
    %6724 = vmatpush1.msra.mxu0 0.0
    %6725 = vmatprep.subr.mxu0 0.0
    %6726 = vmatpush1.msra.mxu0 0.0
    %6727 = vmatprep.mubr.f32.mxu0 0.0
    %6728 = vmatmul.mubr.f32.gmra.mrb[0].mxu0 %v6661
    %v6729 = vpop.f32.mrb[0].mxu0
    %v6730 = vadd.f32 0.0, %v6729
    %v6731 = vpop.f32.mrb[0].mxu0
    %6732 = vdwg.mxu0
    %v6733 = vadd.f32 %v6657, %v6730
    %v6734 = vadd.f32 %v6733, %v6509
    %v6736 = vrot.slane %v6734, 4
    %v6738 = vsel %vm325, %v6511, %v6736
    %v6739 = vsel %vm803, %v6738, 0.0
    %v6740 = vrot.slane %v6739, 4
    %v6741 = vadd.f32 %v6739, %v6740
    %v6742 = vrot.slane %v6741, 2
    %v6743 = vadd.f32 %v6741, %v6742
    %v6744 = vrot.slane %v6743, 1
    %v6745 = vadd.f32 %v6743, %v6744
    %v6746 = vrcp.pop 8.0
    %v6747 = vmul.f32 %v6745, %v6746
    %v6748 = vsub.f32 %v6738, %v6747
    %v6749 = vmul.f32 %v6748, %v6748
    %v6750 = vsel %vm803, %v6749, 0.0
    %v6751 = vrot.slane %v6750, 4
    %v6752 = vadd.f32 %v6750, %v6751
    %v6753 = vrot.slane %v6752, 2
    %v6754 = vadd.f32 %v6752, %v6753
    %v6755 = vrot.slane %v6754, 1
    %v6756 = vadd.f32 %v6754, %v6755
    %v6757 = vmul.f32 %v6756, %v6746
    %v6758 = vadd.f32 %v6757, 1e-05
    %v6759 = vrsqrt.pop %v6758
    %v6760 = vmul.f32 %v6748, %v6759
    %v6762 = vlaneseq
    %v6763 = vshrl.u32 %v6762, 7
    %v6764 = vsub.s32 0, %v6763
    %v6765 = vrot.slane %v6272, %v6764
    %v6767 = vmul.f32 %v6760, %v6765
    %v6769 = vlaneseq
    %v6770 = vshrl.u32 %v6769, 7
    %v6771 = vsub.s32 0, %v6770
    %v6772 = vrot.slane %v6274, %v6771
    %v6774 = vadd.f32 %v6767, %v6772
    %vm6775 = vcmp.gt.f32.partialorder %v6774, 0.0
    %v6776 = vmin.f32 %v6774, 0.0
    %v6777 = vmul.f32 %v6776, 1.442695
    %v6778 = vpow.pop %v6777
    %v6779 = vsub.f32 %v6778, 1.0
    %v6780 = vsel %vm6775, %v6774, %v6779
    %v6782 = vrot.slane %v6780, 7
    %v6784 = vsel %vm316, -1e+30, %v6782
    %v6785 = vrot.slane %v6780, 1
    %v6787 = vsel %vm3804, %v6785, -1e+30
    %v6788 = vmax.f32 %v6784, %v6780
    %v6789 = vmax.f32 %v6788, %v6787
    %v6791 = vrot.slane %v6789, 1
    %v6793 = vsel %vm316, %v6789, %v6791
    %v6794 = vrot.slane %v6780, 3
    %v6796 = vsel %vm316, -1e+30, %v6794
    %v6797 = vrot.slane %v6780, 5
    %v6799 = vsel %vm3804, %v6797, -1e+30
    %v6800 = vrot.slane %v6780, 4
    %v6802 = vmax.f32 %v6796, %v6800
    %v6803 = vmax.f32 %v6802, %v6799
    %v6805 = vrot.slane %v6803, 1
    %v6807 = vsel %vm316, %v6803, %v6805
    %v6809 = vrot.slane %v6807, 6
    %v6811 = vsel %vm3802, %v6793, %v6809
    %s6812 = scalar_lea.vmem %s3, 64
    %v6813 = vld [vmem:[%s6812] sm:$0xff]
    %v6814 = vld [vmem:[%s6812 + $0x8] sm:$0xff]
    %v6815 = vld [vmem:[%s6812 + $0x10] sm:$0xff]
    %v6816 = vld [vmem:[%s6812 + $0x18] sm:$0xff]
    %s6817 = scalar_lea.vmem %s5, 64
    %v6818 = vld [vmem:[%s6817] sm:$0xff]
    %v6819 = vld [vmem:[%s6817 + $0x8] sm:$0xff]
    %v6820 = vld [vmem:[%s6817 + $0x10] sm:$0xff]
    %v6821 = vld [vmem:[%s6817 + $0x18] sm:$0xff]
    %s6822 = scalar_lea.vmem [#allocation7], 64
    %v6823 = vld [vmem:[%s6822] sm:$0xff]
    %v6824 = vld [vmem:[%s6822 + $0x8] sm:$0xff]
    %v6825 = vld [vmem:[%s6822 + $0x10] sm:$0xff]
    %v6826 = vld [vmem:[%s6822 + $0x18] sm:$0xff]
    %s6827 = scalar_lea.vmem [#allocation10], 64
    %v6828 = vld [vmem:[%s6827] sm:$0xff]
    %v6829 = vld [vmem:[%s6827 + $0x8] sm:$0xff]
    %v6830 = vld [vmem:[%s6827 + $0x10] sm:$0xff]
    %v6831 = vld [vmem:[%s6827 + $0x18] sm:$0xff]
    %s6832 = scalar_lea.vmem %s4, 2
    %v6833 = vld [vmem:[%s6832] sm:$0x1]
    %v6835 = vlaneseq
    %v6836 = vshrl.u32 %v6835, 7
    %v6837 = vsub.s32 0, %v6836
    %v6838 = vrot.slane %v6833, %v6837
    %v6841 = vsel %vm803, %v6811, 0
    %6843 = vmatprep.subr.mxu0 0.0
    %6844 = vmatpush1.msra.mxu0 %v6813
    %6845 = vmatprep.subr.mxu0 0.0
    %6846 = vmatpush1.msra.mxu0 %v6814
    %6847 = vmatprep.subr.mxu0 0.0
    %6848 = vmatpush1.msra.mxu0 %v6815
    %6849 = vmatprep.subr.mxu0 0.0
    %6850 = vmatpush1.msra.mxu0 %v6816
    %6851 = vmatprep.subr.mxu0 0.0
    %6852 = vmatpush1.msra.mxu0 0.0
    %6853 = vmatprep.subr.mxu0 0.0
    %6854 = vmatpush1.msra.mxu0 0.0
    %6855 = vmatprep.subr.mxu0 0.0
    %6856 = vmatpush1.msra.mxu0 0.0
    %6857 = vmatprep.subr.mxu0 0.0
    %6858 = vmatpush1.msra.mxu0 0.0
    %6859 = vmatprep.subr.mxu0 0.0
    %6860 = vmatpush1.msra.mxu0 0.0
    %6861 = vmatprep.subr.mxu0 0.0
    %6862 = vmatpush1.msra.mxu0 0.0
    %6863 = vmatprep.subr.mxu0 0.0
    %6864 = vmatpush1.msra.mxu0 0.0
    %6865 = vmatprep.subr.mxu0 0.0
    %6866 = vmatpush1.msra.mxu0 0.0
    %6867 = vmatprep.subr.mxu0 0.0
    %6868 = vmatpush1.msra.mxu0 0.0
    %6869 = vmatprep.subr.mxu0 0.0
    %6870 = vmatpush1.msra.mxu0 0.0
    %6871 = vmatprep.subr.mxu0 0.0
    %6872 = vmatpush1.msra.mxu0 0.0
    %6873 = vmatprep.subr.mxu0 0.0
    %6874 = vmatpush1.msra.mxu0 0.0
    %6875 = vmatprep.subr.mxu0 0.0
    %6876 = vmatpush1.msra.mxu0 0.0
    %6877 = vmatprep.subr.mxu0 0.0
    %6878 = vmatpush1.msra.mxu0 0.0
    %6879 = vmatprep.subr.mxu0 0.0
    %6880 = vmatpush1.msra.mxu0 0.0
    %6881 = vmatprep.subr.mxu0 0.0
    %6882 = vmatpush1.msra.mxu0 0.0
    %6883 = vmatprep.subr.mxu0 0.0
    %6884 = vmatpush1.msra.mxu0 0.0
    %6885 = vmatprep.subr.mxu0 0.0
    %6886 = vmatpush1.msra.mxu0 0.0
    %6887 = vmatprep.subr.mxu0 0.0
    %6888 = vmatpush1.msra.mxu0 0.0
    %6889 = vmatprep.subr.mxu0 0.0
    %6890 = vmatpush1.msra.mxu0 0.0
    %6891 = vmatprep.subr.mxu0 0.0
    %6892 = vmatpush1.msra.mxu0 0.0
    %6893 = vmatprep.subr.mxu0 0.0
    %6894 = vmatpush1.msra.mxu0 0.0
    %6895 = vmatprep.subr.mxu0 0.0
    %6896 = vmatpush1.msra.mxu0 0.0
    %6897 = vmatprep.subr.mxu0 0.0
    %6898 = vmatpush1.msra.mxu0 0.0
    %6899 = vmatprep.subr.mxu0 0.0
    %6900 = vmatpush1.msra.mxu0 0.0
    %6901 = vmatprep.subr.mxu0 0.0
    %6902 = vmatpush1.msra.mxu0 0.0
    %6903 = vmatprep.subr.mxu0 0.0
    %6904 = vmatpush1.msra.mxu0 0.0
    %6905 = vmatprep.subr.mxu0 0.0
    %6906 = vmatpush1.msra.mxu0 0.0
    %6907 = vmatprep.mubr.f32.mxu0 0.0
    %6908 = vmatmul.mubr.f32.gmra.mrb[0].mxu0 %v6841
    %v6909 = vpop.f32.mrb[0].mxu0
    %v6910 = vadd.f32 %v6838, %v6909
    %v6911 = vpop.f32.mrb[0].mxu0
    %6912 = vdwg.mxu0
    %v6913 = vmul.f32 %v6910, 0.35355338
    %s6914 = scalar_lea.vmem %s6, 2
    %v6915 = vld [vmem:[%s6914] sm:$0x1]
    %v6917 = vlaneseq
    %v6918 = vshrl.u32 %v6917, 7
    %v6919 = vsub.s32 0, %v6918
    %v6920 = vrot.slane %v6915, %v6919
    %6922 = vmatprep.subr.mxu0 0.0
    %6923 = vmatpush1.msra.mxu0 %v6818
    %6924 = vmatprep.subr.mxu0 0.0
    %6925 = vmatpush1.msra.mxu0 %v6819
    %6926 = vmatprep.subr.mxu0 0.0
    %6927 = vmatpush1.msra.mxu0 %v6820
    %6928 = vmatprep.subr.mxu0 0.0
    %6929 = vmatpush1.msra.mxu0 %v6821
    %6930 = vmatprep.subr.mxu0 0.0
    %6931 = vmatpush1.msra.mxu0 0.0
    %6932 = vmatprep.subr.mxu0 0.0
    %6933 = vmatpush1.msra.mxu0 0.0
    %6934 = vmatprep.subr.mxu0 0.0
    %6935 = vmatpush1.msra.mxu0 0.0
    %6936 = vmatprep.subr.mxu0 0.0
    %6937 = vmatpush1.msra.mxu0 0.0
    %6938 = vmatprep.subr.mxu0 0.0
    %6939 = vmatpush1.msra.mxu0 0.0
    %6940 = vmatprep.subr.mxu0 0.0
    %6941 = vmatpush1.msra.mxu0 0.0
    %6942 = vmatprep.subr.mxu0 0.0
    %6943 = vmatpush1.msra.mxu0 0.0
    %6944 = vmatprep.subr.mxu0 0.0
    %6945 = vmatpush1.msra.mxu0 0.0
    %6946 = vmatprep.subr.mxu0 0.0
    %6947 = vmatpush1.msra.mxu0 0.0
    %6948 = vmatprep.subr.mxu0 0.0
    %6949 = vmatpush1.msra.mxu0 0.0
    %6950 = vmatprep.subr.mxu0 0.0
    %6951 = vmatpush1.msra.mxu0 0.0
    %6952 = vmatprep.subr.mxu0 0.0
    %6953 = vmatpush1.msra.mxu0 0.0
    %6954 = vmatprep.subr.mxu0 0.0
    %6955 = vmatpush1.msra.mxu0 0.0
    %6956 = vmatprep.subr.mxu0 0.0
    %6957 = vmatpush1.msra.mxu0 0.0
    %6958 = vmatprep.subr.mxu0 0.0
    %6959 = vmatpush1.msra.mxu0 0.0
    %6960 = vmatprep.subr.mxu0 0.0
    %6961 = vmatpush1.msra.mxu0 0.0
    %6962 = vmatprep.subr.mxu0 0.0
    %6963 = vmatpush1.msra.mxu0 0.0
    %6964 = vmatprep.subr.mxu0 0.0
    %6965 = vmatpush1.msra.mxu0 0.0
    %6966 = vmatprep.subr.mxu0 0.0
    %6967 = vmatpush1.msra.mxu0 0.0
    %6968 = vmatprep.subr.mxu0 0.0
    %6969 = vmatpush1.msra.mxu0 0.0
    %6970 = vmatprep.subr.mxu0 0.0
    %6971 = vmatpush1.msra.mxu0 0.0
    %6972 = vmatprep.subr.mxu0 0.0
    %6973 = vmatpush1.msra.mxu0 0.0
    %6974 = vmatprep.subr.mxu0 0.0
    %6975 = vmatpush1.msra.mxu0 0.0
    %6976 = vmatprep.subr.mxu0 0.0
    %6977 = vmatpush1.msra.mxu0 0.0
    %6978 = vmatprep.subr.mxu0 0.0
    %6979 = vmatpush1.msra.mxu0 0.0
    %6980 = vmatprep.subr.mxu0 0.0
    %6981 = vmatpush1.msra.mxu0 0.0
    %6982 = vmatprep.subr.mxu0 0.0
    %6983 = vmatpush1.msra.mxu0 0.0
    %6984 = vmatprep.subr.mxu0 0.0
    %6985 = vmatpush1.msra.mxu0 0.0
    %6986 = vmatprep.mubr.f32.mxu0 0.0
    %6987 = vmatmul.mubr.f32.gmra.mrb[0].mxu0 %v6841
    %v6988 = vpop.f32.mrb[0].mxu0
    %v6989 = vadd.f32 %v6920, %v6988
    %v6990 = vpop.f32.mrb[0].mxu0
    %6991 = vdwg.mxu0
    %s6992 = scalar_lea.vmem [#allocation8], 2
    %v6993 = vld [vmem:[%s6992] sm:$0x1]
    %v6995 = vlaneseq
    %v6996 = vshrl.u32 %v6995, 7
    %v6997 = vsub.s32 0, %v6996
    %v6998 = vrot.slane %v6993, %v6997
    %7000 = vmatprep.subr.mxu0 0.0
    %7001 = vmatpush1.msra.mxu0 %v6823
    %7002 = vmatprep.subr.mxu0 0.0
    %7003 = vmatpush1.msra.mxu0 %v6824
    %7004 = vmatprep.subr.mxu0 0.0
    %7005 = vmatpush1.msra.mxu0 %v6825
    %7006 = vmatprep.subr.mxu0 0.0
    %7007 = vmatpush1.msra.mxu0 %v6826
    %7008 = vmatprep.subr.mxu0 0.0
    %7009 = vmatpush1.msra.mxu0 0.0
    %7010 = vmatprep.subr.mxu0 0.0
    %7011 = vmatpush1.msra.mxu0 0.0
    %7012 = vmatprep.subr.mxu0 0.0
    %7013 = vmatpush1.msra.mxu0 0.0
    %7014 = vmatprep.subr.mxu0 0.0
    %7015 = vmatpush1.msra.mxu0 0.0
    %7016 = vmatprep.subr.mxu0 0.0
    %7017 = vmatpush1.msra.mxu0 0.0
    %7018 = vmatprep.subr.mxu0 0.0
    %7019 = vmatpush1.msra.mxu0 0.0
    %7020 = vmatprep.subr.mxu0 0.0
    %7021 = vmatpush1.msra.mxu0 0.0
    %7022 = vmatprep.subr.mxu0 0.0
    %7023 = vmatpush1.msra.mxu0 0.0
    %7024 = vmatprep.subr.mxu0 0.0
    %7025 = vmatpush1.msra.mxu0 0.0
    %7026 = vmatprep.subr.mxu0 0.0
    %7027 = vmatpush1.msra.mxu0 0.0
    %7028 = vmatprep.subr.mxu0 0.0
    %7029 = vmatpush1.msra.mxu0 0.0
    %7030 = vmatprep.subr.mxu0 0.0
    %7031 = vmatpush1.msra.mxu0 0.0
    %7032 = vmatprep.subr.mxu0 0.0
    %7033 = vmatpush1.msra.mxu0 0.0
    %7034 = vmatprep.subr.mxu0 0.0
    %7035 = vmatpush1.msra.mxu0 0.0
    %7036 = vmatprep.subr.mxu0 0.0
    %7037 = vmatpush1.msra.mxu0 0.0
    %7038 = vmatprep.subr.mxu0 0.0
    %7039 = vmatpush1.msra.mxu0 0.0
    %7040 = vmatprep.subr.mxu0 0.0
    %7041 = vmatpush1.msra.mxu0 0.0
    %7042 = vmatprep.subr.mxu0 0.0
    %7043 = vmatpush1.msra.mxu0 0.0
    %7044 = vmatprep.subr.mxu0 0.0
    %7045 = vmatpush1.msra.mxu0 0.0
    %7046 = vmatprep.subr.mxu0 0.0
    %7047 = vmatpush1.msra.mxu0 0.0
    %7048 = vmatprep.subr.mxu0 0.0
    %7049 = vmatpush1.msra.mxu0 0.0
    %7050 = vmatprep.subr.mxu0 0.0
    %7051 = vmatpush1.msra.mxu0 0.0
    %7052 = vmatprep.subr.mxu0 0.0
    %7053 = vmatpush1.msra.mxu0 0.0
    %7054 = vmatprep.subr.mxu0 0.0
    %7055 = vmatpush1.msra.mxu0 0.0
    %7056 = vmatprep.subr.mxu0 0.0
    %7057 = vmatpush1.msra.mxu0 0.0
    %7058 = vmatprep.subr.mxu0 0.0
    %7059 = vmatpush1.msra.mxu0 0.0
    %7060 = vmatprep.subr.mxu0 0.0
    %7061 = vmatpush1.msra.mxu0 0.0
    %7062 = vmatprep.subr.mxu0 0.0
    %7063 = vmatpush1.msra.mxu0 0.0
    %7064 = vmatprep.mubr.f32.mxu0 0.0
    %7065 = vmatmul.mubr.f32.gmra.mrb[0].mxu0 %v6841
    %v7066 = vpop.f32.mrb[0].mxu0
    %v7067 = vadd.f32 %v6998, %v7066
    %v7068 = vpop.f32.mrb[0].mxu0
    %7069 = vdwg.mxu0
    %v7071 = vsel %vm1051, %v6913, 0
    %v7074 = vsel %vm1051, %v6989, 0
    %7076 = vmatprep.subr.mxu0 0.0
    %7077 = vmatpush1.xpose.msra.mxu0 %v7074
    %7078 = vmatprep.subr.mxu0 0.0
    %7079 = vmatpush1.xpose.msra.mxu0 0.0
    %7080 = vmatprep.subr.mxu0 0.0
    %7081 = vmatpush1.xpose.msra.mxu0 0.0
    %7082 = vmatprep.subr.mxu0 0.0
    %7083 = vmatpush1.xpose.msra.mxu0 0.0
    %7084 = vmatprep.subr.mxu0 0.0
    %7085 = vmatpush1.xpose.msra.mxu0 0.0
    %7086 = vmatprep.subr.mxu0 0.0
    %7087 = vmatpush1.xpose.msra.mxu0 0.0
    %7088 = vmatprep.subr.mxu0 0.0
    %7089 = vmatpush1.xpose.msra.mxu0 0.0
    %7090 = vmatprep.subr.mxu0 0.0
    %7091 = vmatpush1.xpose.msra.mxu0 0.0
    %7092 = vmatprep.subr.mxu0 0.0
    %7093 = vmatpush1.xpose.msra.mxu0 0.0
    %7094 = vmatprep.subr.mxu0 0.0
    %7095 = vmatpush1.xpose.msra.mxu0 0.0
    %7096 = vmatprep.subr.mxu0 0.0
    %7097 = vmatpush1.xpose.msra.mxu0 0.0
    %7098 = vmatprep.subr.mxu0 0.0
    %7099 = vmatpush1.xpose.msra.mxu0 0.0
    %7100 = vmatprep.subr.mxu0 0.0
    %7101 = vmatpush1.xpose.msra.mxu0 0.0
    %7102 = vmatprep.subr.mxu0 0.0
    %7103 = vmatpush1.xpose.msra.mxu0 0.0
    %7104 = vmatprep.subr.mxu0 0.0
    %7105 = vmatpush1.xpose.msra.mxu0 0.0
    %7106 = vmatprep.subr.mxu0 0.0
    %7107 = vmatpush1.xpose.msra.mxu0 0.0
    %7108 = vmatprep.subr.mxu0 0.0
    %7109 = vmatpush1.xpose.msra.mxu0 0.0
    %7110 = vmatprep.subr.mxu0 0.0
    %7111 = vmatpush1.xpose.msra.mxu0 0.0
    %7112 = vmatprep.subr.mxu0 0.0
    %7113 = vmatpush1.xpose.msra.mxu0 0.0
    %7114 = vmatprep.subr.mxu0 0.0
    %7115 = vmatpush1.xpose.msra.mxu0 0.0
    %7116 = vmatprep.subr.mxu0 0.0
    %7117 = vmatpush1.xpose.msra.mxu0 0.0
    %7118 = vmatprep.subr.mxu0 0.0
    %7119 = vmatpush1.xpose.msra.mxu0 0.0
    %7120 = vmatprep.subr.mxu0 0.0
    %7121 = vmatpush1.xpose.msra.mxu0 0.0
    %7122 = vmatprep.subr.mxu0 0.0
    %7123 = vmatpush1.xpose.msra.mxu0 0.0
    %7124 = vmatprep.subr.mxu0 0.0
    %7125 = vmatpush1.xpose.msra.mxu0 0.0
    %7126 = vmatprep.subr.mxu0 0.0
    %7127 = vmatpush1.xpose.msra.mxu0 0.0
    %7128 = vmatprep.subr.mxu0 0.0
    %7129 = vmatpush1.xpose.msra.mxu0 0.0
    %7130 = vmatprep.subr.mxu0 0.0
    %7131 = vmatpush1.xpose.msra.mxu0 0.0
    %7132 = vmatprep.subr.mxu0 0.0
    %7133 = vmatpush1.xpose.msra.mxu0 0.0
    %7134 = vmatprep.subr.mxu0 0.0
    %7135 = vmatpush1.xpose.msra.mxu0 0.0
    %7136 = vmatprep.subr.mxu0 0.0
    %7137 = vmatpush1.xpose.msra.mxu0 0.0
    %7138 = vmatprep.subr.mxu0 0.0
    %7139 = vmatpush1.xpose.msra.mxu0 0.0
    %7140 = vmatprep.mubr.f32.mxu0 0.0
    %7141 = vmatmul.mubr.f32.gmra.mrb[0].mxu0 %v7071
    %v7142 = vpop.f32.mrb[0].mxu0
    %v7143 = vadd.f32 0.0, %v7142
    %v7144 = vpop.f32.mrb[0].mxu0
    %7145 = vdwg.mxu0
    %vm7146 = vcmask 9216
    %v7147 = vsel %vm7146, %v7143, -inf
    %7148 = vmax.xlane.f32.xlu0 %v7147
    %v7149 = vpop.xlane.xlu0 %7148
    %v7150 = vsub.f32 %v7143, %v7149
    %v7151 = vmul.f32 %v7150, 1.442695
    %v7152 = vpow.pop %v7151
    %v7153 = vsel %vm7146, %v7152, 0.0
    %7154 = vadd.xlane.f32.xlu0 %v7153
    %v7155 = vpop.xlane.xlu0 %7154
    %v7156 = vrcp.pop %v7155
    %v7157 = vmul.f32 %v7152, %v7156
    %vm7158 = vcmask 15360
    %v7160 = vsel %vm7158, %v7157, 0
    %v7163 = vsel %vm3802, %v7067, 0
    %7165 = vmatprep.subr.mxu0 0.0
    %7166 = vmatpush1.msra.mxu0 %v7163
    %7167 = vmatprep.subr.mxu0 0.0
    %7168 = vmatpush1.msra.mxu0 0.0
    %7169 = vmatprep.subr.mxu0 0.0
    %7170 = vmatpush1.msra.mxu0 0.0
    %7171 = vmatprep.subr.mxu0 0.0
    %7172 = vmatpush1.msra.mxu0 0.0
    %7173 = vmatprep.subr.mxu0 0.0
    %7174 = vmatpush1.msra.mxu0 0.0
    %7175 = vmatprep.subr.mxu0 0.0
    %7176 = vmatpush1.msra.mxu0 0.0
    %7177 = vmatprep.subr.mxu0 0.0
    %7178 = vmatpush1.msra.mxu0 0.0
    %7179 = vmatprep.subr.mxu0 0.0
    %7180 = vmatpush1.msra.mxu0 0.0
    %7181 = vmatprep.subr.mxu0 0.0
    %7182 = vmatpush1.msra.mxu0 0.0
    %7183 = vmatprep.subr.mxu0 0.0
    %7184 = vmatpush1.msra.mxu0 0.0
    %7185 = vmatprep.subr.mxu0 0.0
    %7186 = vmatpush1.msra.mxu0 0.0
    %7187 = vmatprep.subr.mxu0 0.0
    %7188 = vmatpush1.msra.mxu0 0.0
    %7189 = vmatprep.subr.mxu0 0.0
    %7190 = vmatpush1.msra.mxu0 0.0
    %7191 = vmatprep.subr.mxu0 0.0
    %7192 = vmatpush1.msra.mxu0 0.0
    %7193 = vmatprep.subr.mxu0 0.0
    %7194 = vmatpush1.msra.mxu0 0.0
    %7195 = vmatprep.subr.mxu0 0.0
    %7196 = vmatpush1.msra.mxu0 0.0
    %7197 = vmatprep.subr.mxu0 0.0
    %7198 = vmatpush1.msra.mxu0 0.0
    %7199 = vmatprep.subr.mxu0 0.0
    %7200 = vmatpush1.msra.mxu0 0.0
    %7201 = vmatprep.subr.mxu0 0.0
    %7202 = vmatpush1.msra.mxu0 0.0
    %7203 = vmatprep.subr.mxu0 0.0
    %7204 = vmatpush1.msra.mxu0 0.0
    %7205 = vmatprep.subr.mxu0 0.0
    %7206 = vmatpush1.msra.mxu0 0.0
    %7207 = vmatprep.subr.mxu0 0.0
    %7208 = vmatpush1.msra.mxu0 0.0
    %7209 = vmatprep.subr.mxu0 0.0
    %7210 = vmatpush1.msra.mxu0 0.0
    %7211 = vmatprep.subr.mxu0 0.0
    %7212 = vmatpush1.msra.mxu0 0.0
    %7213 = vmatprep.subr.mxu0 0.0
    %7214 = vmatpush1.msra.mxu0 0.0
    %7215 = vmatprep.subr.mxu0 0.0
    %7216 = vmatpush1.msra.mxu0 0.0
    %7217 = vmatprep.subr.mxu0 0.0
    %7218 = vmatpush1.msra.mxu0 0.0
    %7219 = vmatprep.subr.mxu0 0.0
    %7220 = vmatpush1.msra.mxu0 0.0
    %7221 = vmatprep.subr.mxu0 0.0
    %7222 = vmatpush1.msra.mxu0 0.0
    %7223 = vmatprep.subr.mxu0 0.0
    %7224 = vmatpush1.msra.mxu0 0.0
    %7225 = vmatprep.subr.mxu0 0.0
    %7226 = vmatpush1.msra.mxu0 0.0
    %7227 = vmatprep.subr.mxu0 0.0
    %7228 = vmatpush1.msra.mxu0 0.0
    %7229 = vmatprep.mubr.f32.mxu0 0.0
    %7230 = vmatmul.mubr.f32.gmra.mrb[0].mxu0 %v7160
    %v7231 = vpop.f32.mrb[0].mxu0
    %v7232 = vadd.f32 0.0, %v7231
    %v7233 = vpop.f32.mrb[0].mxu0
    %7234 = vdwg.mxu0
    %7235 = vrot.lane.b32.xlu0 %v6913, 120
    %v7236 = vpop.permute.xlu0 %7235
    %7237 = vrot.lane.b32.xlu0 %v6989, 120
    %v7238 = vpop.permute.xlu0 %7237
    %v7239 = vsel %vm1051, %v7236, 0
    %v7241 = vsel %vm1051, %v7238, 0
    %7243 = vmatprep.subr.mxu0 0.0
    %7244 = vmatpush1.xpose.msra.mxu0 %v7241
    %7245 = vmatprep.subr.mxu0 0.0
    %7246 = vmatpush1.xpose.msra.mxu0 0.0
    %7247 = vmatprep.subr.mxu0 0.0
    %7248 = vmatpush1.xpose.msra.mxu0 0.0
    %7249 = vmatprep.subr.mxu0 0.0
    %7250 = vmatpush1.xpose.msra.mxu0 0.0
    %7251 = vmatprep.subr.mxu0 0.0
    %7252 = vmatpush1.xpose.msra.mxu0 0.0
    %7253 = vmatprep.subr.mxu0 0.0
    %7254 = vmatpush1.xpose.msra.mxu0 0.0
    %7255 = vmatprep.subr.mxu0 0.0
    %7256 = vmatpush1.xpose.msra.mxu0 0.0
    %7257 = vmatprep.subr.mxu0 0.0
    %7258 = vmatpush1.xpose.msra.mxu0 0.0
    %7259 = vmatprep.subr.mxu0 0.0
    %7260 = vmatpush1.xpose.msra.mxu0 0.0
    %7261 = vmatprep.subr.mxu0 0.0
    %7262 = vmatpush1.xpose.msra.mxu0 0.0
    %7263 = vmatprep.subr.mxu0 0.0
    %7264 = vmatpush1.xpose.msra.mxu0 0.0
    %7265 = vmatprep.subr.mxu0 0.0
    %7266 = vmatpush1.xpose.msra.mxu0 0.0
    %7267 = vmatprep.subr.mxu0 0.0
    %7268 = vmatpush1.xpose.msra.mxu0 0.0
    %7269 = vmatprep.subr.mxu0 0.0
    %7270 = vmatpush1.xpose.msra.mxu0 0.0
    %7271 = vmatprep.subr.mxu0 0.0
    %7272 = vmatpush1.xpose.msra.mxu0 0.0
    %7273 = vmatprep.subr.mxu0 0.0
    %7274 = vmatpush1.xpose.msra.mxu0 0.0
    %7275 = vmatprep.subr.mxu0 0.0
    %7276 = vmatpush1.xpose.msra.mxu0 0.0
    %7277 = vmatprep.subr.mxu0 0.0
    %7278 = vmatpush1.xpose.msra.mxu0 0.0
    %7279 = vmatprep.subr.mxu0 0.0
    %7280 = vmatpush1.xpose.msra.mxu0 0.0
    %7281 = vmatprep.subr.mxu0 0.0
    %7282 = vmatpush1.xpose.msra.mxu0 0.0
    %7283 = vmatprep.subr.mxu0 0.0
    %7284 = vmatpush1.xpose.msra.mxu0 0.0
    %7285 = vmatprep.subr.mxu0 0.0
    %7286 = vmatpush1.xpose.msra.mxu0 0.0
    %7287 = vmatprep.subr.mxu0 0.0
    %7288 = vmatpush1.xpose.msra.mxu0 0.0
    %7289 = vmatprep.subr.mxu0 0.0
    %7290 = vmatpush1.xpose.msra.mxu0 0.0
    %7291 = vmatprep.subr.mxu0 0.0
    %7292 = vmatpush1.xpose.msra.mxu0 0.0
    %7293 = vmatprep.subr.mxu0 0.0
    %7294 = vmatpush1.xpose.msra.mxu0 0.0
    %7295 = vmatprep.subr.mxu0 0.0
    %7296 = vmatpush1.xpose.msra.mxu0 0.0
    %7297 = vmatprep.subr.mxu0 0.0
    %7298 = vmatpush1.xpose.msra.mxu0 0.0
    %7299 = vmatprep.subr.mxu0 0.0
    %7300 = vmatpush1.xpose.msra.mxu0 0.0
    %7301 = vmatprep.subr.mxu0 0.0
    %7302 = vmatpush1.xpose.msra.mxu0 0.0
    %7303 = vmatprep.subr.mxu0 0.0
    %7304 = vmatpush1.xpose.msra.mxu0 0.0
    %7305 = vmatprep.subr.mxu0 0.0
    %7306 = vmatpush1.xpose.msra.mxu0 0.0
    %7307 = vmatprep.mubr.f32.mxu0 0.0
    %7308 = vmatmul.mubr.f32.gmra.mrb[0].mxu0 %v7239
    %v7309 = vpop.f32.mrb[0].mxu0
    %v7310 = vadd.f32 0.0, %v7309
    %v7311 = vpop.f32.mrb[0].mxu0
    %7312 = vdwg.mxu0
    %v7313 = vsel %vm7146, %v7310, -inf
    %7314 = vmax.xlane.f32.xlu0 %v7313
    %v7315 = vpop.xlane.xlu0 %7314
    %v7316 = vsub.f32 %v7310, %v7315
    %v7317 = vmul.f32 %v7316, 1.442695
    %v7318 = vpow.pop %v7317
    %v7319 = vsel %vm7146, %v7318, 0.0
    %7320 = vadd.xlane.f32.xlu0 %v7319
    %v7321 = vpop.xlane.xlu0 %7320
    %v7322 = vrcp.pop %v7321
    %v7323 = vmul.f32 %v7318, %v7322
    %7324 = vrot.lane.b32.xlu0 %v7067, 120
    %v7325 = vpop.permute.xlu0 %7324
    %v7327 = vsel %vm7158, %v7323, 0
    %v7329 = vsel %vm3802, %v7325, 0
    %7331 = vmatprep.subr.mxu0 0.0
    %7332 = vmatpush1.msra.mxu0 %v7329
    %7333 = vmatprep.subr.mxu0 0.0
    %7334 = vmatpush1.msra.mxu0 0.0
    %7335 = vmatprep.subr.mxu0 0.0
    %7336 = vmatpush1.msra.mxu0 0.0
    %7337 = vmatprep.subr.mxu0 0.0
    %7338 = vmatpush1.msra.mxu0 0.0
    %7339 = vmatprep.subr.mxu0 0.0
    %7340 = vmatpush1.msra.mxu0 0.0
    %7341 = vmatprep.subr.mxu0 0.0
    %7342 = vmatpush1.msra.mxu0 0.0
    %7343 = vmatprep.subr.mxu0 0.0
    %7344 = vmatpush1.msra.mxu0 0.0
    %7345 = vmatprep.subr.mxu0 0.0
    %7346 = vmatpush1.msra.mxu0 0.0
    %7347 = vmatprep.subr.mxu0 0.0
    %7348 = vmatpush1.msra.mxu0 0.0
    %7349 = vmatprep.subr.mxu0 0.0
    %7350 = vmatpush1.msra.mxu0 0.0
    %7351 = vmatprep.subr.mxu0 0.0
    %7352 = vmatpush1.msra.mxu0 0.0
    %7353 = vmatprep.subr.mxu0 0.0
    %7354 = vmatpush1.msra.mxu0 0.0
    %7355 = vmatprep.subr.mxu0 0.0
    %7356 = vmatpush1.msra.mxu0 0.0
    %7357 = vmatprep.subr.mxu0 0.0
    %7358 = vmatpush1.msra.mxu0 0.0
    %7359 = vmatprep.subr.mxu0 0.0
    %7360 = vmatpush1.msra.mxu0 0.0
    %7361 = vmatprep.subr.mxu0 0.0
    %7362 = vmatpush1.msra.mxu0 0.0
    %7363 = vmatprep.subr.mxu0 0.0
    %7364 = vmatpush1.msra.mxu0 0.0
    %7365 = vmatprep.subr.mxu0 0.0
    %7366 = vmatpush1.msra.mxu0 0.0
    %7367 = vmatprep.subr.mxu0 0.0
    %7368 = vmatpush1.msra.mxu0 0.0
    %7369 = vmatprep.subr.mxu0 0.0
    %7370 = vmatpush1.msra.mxu0 0.0
    %7371 = vmatprep.subr.mxu0 0.0
    %7372 = vmatpush1.msra.mxu0 0.0
    %7373 = vmatprep.subr.mxu0 0.0
    %7374 = vmatpush1.msra.mxu0 0.0
    %7375 = vmatprep.subr.mxu0 0.0
    %7376 = vmatpush1.msra.mxu0 0.0
    %7377 = vmatprep.subr.mxu0 0.0
    %7378 = vmatpush1.msra.mxu0 0.0
    %7379 = vmatprep.subr.mxu0 0.0
    %7380 = vmatpush1.msra.mxu0 0.0
    %7381 = vmatprep.subr.mxu0 0.0
    %7382 = vmatpush1.msra.mxu0 0.0
    %7383 = vmatprep.subr.mxu0 0.0
    %7384 = vmatpush1.msra.mxu0 0.0
    %7385 = vmatprep.subr.mxu0 0.0
    %7386 = vmatpush1.msra.mxu0 0.0
    %7387 = vmatprep.subr.mxu0 0.0
    %7388 = vmatpush1.msra.mxu0 0.0
    %7389 = vmatprep.subr.mxu0 0.0
    %7390 = vmatpush1.msra.mxu0 0.0
    %7391 = vmatprep.subr.mxu0 0.0
    %7392 = vmatpush1.msra.mxu0 0.0
    %7393 = vmatprep.subr.mxu0 0.0
    %7394 = vmatpush1.msra.mxu0 0.0
    %7395 = vmatprep.mubr.f32.mxu0 0.0
    %7396 = vmatmul.mubr.f32.gmra.mrb[0].mxu0 %v7327
    %v7397 = vpop.f32.mrb[0].mxu0
    %v7398 = vadd.f32 0.0, %v7397
    %v7399 = vpop.f32.mrb[0].mxu0
    %7400 = vdwg.mxu0
    %v7402 = vsel %vm1051, %v7398, 0
    %7404 = vmatprep.subr.mxu0 0.0
    %7405 = vmatpush1.msra.mxu0 %v6829
    %7406 = vmatprep.subr.mxu0 0.0
    %7407 = vmatpush1.msra.mxu0 0.0
    %7408 = vmatprep.subr.mxu0 0.0
    %7409 = vmatpush1.msra.mxu0 0.0
    %7410 = vmatprep.subr.mxu0 0.0
    %7411 = vmatpush1.msra.mxu0 0.0
    %7412 = vmatprep.subr.mxu0 0.0
    %7413 = vmatpush1.msra.mxu0 0.0
    %7414 = vmatprep.subr.mxu0 0.0
    %7415 = vmatpush1.msra.mxu0 0.0
    %7416 = vmatprep.subr.mxu0 0.0
    %7417 = vmatpush1.msra.mxu0 0.0
    %7418 = vmatprep.subr.mxu0 0.0
    %7419 = vmatpush1.msra.mxu0 0.0
    %7420 = vmatprep.subr.mxu0 0.0
    %7421 = vmatpush1.msra.mxu0 0.0
    %7422 = vmatprep.subr.mxu0 0.0
    %7423 = vmatpush1.msra.mxu0 0.0
    %7424 = vmatprep.subr.mxu0 0.0
    %7425 = vmatpush1.msra.mxu0 0.0
    %7426 = vmatprep.subr.mxu0 0.0
    %7427 = vmatpush1.msra.mxu0 0.0
    %7428 = vmatprep.subr.mxu0 0.0
    %7429 = vmatpush1.msra.mxu0 0.0
    %7430 = vmatprep.subr.mxu0 0.0
    %7431 = vmatpush1.msra.mxu0 0.0
    %7432 = vmatprep.subr.mxu0 0.0
    %7433 = vmatpush1.msra.mxu0 0.0
    %7434 = vmatprep.subr.mxu0 0.0
    %7435 = vmatpush1.msra.mxu0 0.0
    %7436 = vmatprep.subr.mxu0 0.0
    %7437 = vmatpush1.msra.mxu0 0.0
    %7438 = vmatprep.subr.mxu0 0.0
    %7439 = vmatpush1.msra.mxu0 0.0
    %7440 = vmatprep.subr.mxu0 0.0
    %7441 = vmatpush1.msra.mxu0 0.0
    %7442 = vmatprep.subr.mxu0 0.0
    %7443 = vmatpush1.msra.mxu0 0.0
    %7444 = vmatprep.subr.mxu0 0.0
    %7445 = vmatpush1.msra.mxu0 0.0
    %7446 = vmatprep.subr.mxu0 0.0
    %7447 = vmatpush1.msra.mxu0 0.0
    %7448 = vmatprep.subr.mxu0 0.0
    %7449 = vmatpush1.msra.mxu0 0.0
    %7450 = vmatprep.subr.mxu0 0.0
    %7451 = vmatpush1.msra.mxu0 0.0
    %7452 = vmatprep.subr.mxu0 0.0
    %7453 = vmatpush1.msra.mxu0 0.0
    %7454 = vmatprep.subr.mxu0 0.0
    %7455 = vmatpush1.msra.mxu0 0.0
    %7456 = vmatprep.subr.mxu0 0.0
    %7457 = vmatpush1.msra.mxu0 0.0
    %7458 = vmatprep.subr.mxu0 0.0
    %7459 = vmatpush1.msra.mxu0 0.0
    %7460 = vmatprep.subr.mxu0 0.0
    %7461 = vmatpush1.msra.mxu0 0.0
    %7462 = vmatprep.subr.mxu0 0.0
    %7463 = vmatpush1.msra.mxu0 0.0
    %7464 = vmatprep.subr.mxu0 0.0
    %7465 = vmatpush1.msra.mxu0 0.0
    %7466 = vmatprep.subr.mxu0 0.0
    %7467 = vmatpush1.msra.mxu0 0.0
    %7468 = vmatprep.mubr.f32.mxu0 0.0
    %7469 = vmatmul.mubr.f32.gmra.mrb[0].mxu0 %v7402
    %v7470 = vpop.f32.mrb[0].mxu0
    %v7471 = vadd.f32 0.0, %v7470
    %v7472 = vpop.f32.mrb[0].mxu0
    %7473 = vdwg.mxu0
    %v7475 = vsel %vm1051, %v7232, 0
    %7477 = vmatprep.subr.mxu0 0.0
    %7478 = vmatpush1.msra.mxu0 %v6828
    %7479 = vmatprep.subr.mxu0 0.0
    %7480 = vmatpush1.msra.mxu0 0.0
    %7481 = vmatprep.subr.mxu0 0.0
    %7482 = vmatpush1.msra.mxu0 0.0
    %7483 = vmatprep.subr.mxu0 0.0
    %7484 = vmatpush1.msra.mxu0 0.0
    %7485 = vmatprep.subr.mxu0 0.0
    %7486 = vmatpush1.msra.mxu0 0.0
    %7487 = vmatprep.subr.mxu0 0.0
    %7488 = vmatpush1.msra.mxu0 0.0
    %7489 = vmatprep.subr.mxu0 0.0
    %7490 = vmatpush1.msra.mxu0 0.0
    %7491 = vmatprep.subr.mxu0 0.0
    %7492 = vmatpush1.msra.mxu0 0.0
    %7493 = vmatprep.subr.mxu0 0.0
    %7494 = vmatpush1.msra.mxu0 0.0
    %7495 = vmatprep.subr.mxu0 0.0
    %7496 = vmatpush1.msra.mxu0 0.0
    %7497 = vmatprep.subr.mxu0 0.0
    %7498 = vmatpush1.msra.mxu0 0.0
    %7499 = vmatprep.subr.mxu0 0.0
    %7500 = vmatpush1.msra.mxu0 0.0
    %7501 = vmatprep.subr.mxu0 0.0
    %7502 = vmatpush1.msra.mxu0 0.0
    %7503 = vmatprep.subr.mxu0 0.0
    %7504 = vmatpush1.msra.mxu0 0.0
    %7505 = vmatprep.subr.mxu0 0.0
    %7506 = vmatpush1.msra.mxu0 0.0
    %7507 = vmatprep.subr.mxu0 0.0
    %7508 = vmatpush1.msra.mxu0 0.0
    %7509 = vmatprep.subr.mxu0 0.0
    %7510 = vmatpush1.msra.mxu0 0.0
    %7511 = vmatprep.subr.mxu0 0.0
    %7512 = vmatpush1.msra.mxu0 0.0
    %7513 = vmatprep.subr.mxu0 0.0
    %7514 = vmatpush1.msra.mxu0 0.0
    %7515 = vmatprep.subr.mxu0 0.0
    %7516 = vmatpush1.msra.mxu0 0.0
    %7517 = vmatprep.subr.mxu0 0.0
    %7518 = vmatpush1.msra.mxu0 0.0
    %7519 = vmatprep.subr.mxu0 0.0
    %7520 = vmatpush1.msra.mxu0 0.0
    %7521 = vmatprep.subr.mxu0 0.0
    %7522 = vmatpush1.msra.mxu0 0.0
    %7523 = vmatprep.subr.mxu0 0.0
    %7524 = vmatpush1.msra.mxu0 0.0
    %7525 = vmatprep.subr.mxu0 0.0
    %7526 = vmatpush1.msra.mxu0 0.0
    %7527 = vmatprep.subr.mxu0 0.0
    %7528 = vmatpush1.msra.mxu0 0.0
    %7529 = vmatprep.subr.mxu0 0.0
    %7530 = vmatpush1.msra.mxu0 0.0
    %7531 = vmatprep.subr.mxu0 0.0
    %7532 = vmatpush1.msra.mxu0 0.0
    %7533 = vmatprep.subr.mxu0 0.0
    %7534 = vmatpush1.msra.mxu0 0.0
    %7535 = vmatprep.subr.mxu0 0.0
    %7536 = vmatpush1.msra.mxu0 0.0
    %7537 = vmatprep.subr.mxu0 0.0
    %7538 = vmatpush1.msra.mxu0 0.0
    %7539 = vmatprep.subr.mxu0 0.0
    %7540 = vmatpush1.msra.mxu0 0.0
    %7541 = vmatprep.mubr.f32.mxu0 0.0
    %7542 = vmatmul.mubr.f32.gmra.mrb[0].mxu0 %v7475
    %v7543 = vpop.f32.mrb[0].mxu0
    %v7544 = vadd.f32 %v7471, %v7543
    %v7545 = vpop.f32.mrb[0].mxu0
    %7546 = vdwg.mxu0
    %7547 = vrot.lane.b32.xlu0 %v6913, 112
    %v7548 = vpop.permute.xlu0 %7547
    %7549 = vrot.lane.b32.xlu0 %v6989, 112
    %v7550 = vpop.permute.xlu0 %7549
    %v7551 = vsel %vm1051, %v7548, 0
    %v7553 = vsel %vm1051, %v7550, 0
    %7555 = vmatprep.subr.mxu0 0.0
    %7556 = vmatpush1.xpose.msra.mxu0 %v7553
    %7557 = vmatprep.subr.mxu0 0.0
    %7558 = vmatpush1.xpose.msra.mxu0 0.0
    %7559 = vmatprep.subr.mxu0 0.0
    %7560 = vmatpush1.xpose.msra.mxu0 0.0
    %7561 = vmatprep.subr.mxu0 0.0
    %7562 = vmatpush1.xpose.msra.mxu0 0.0
    %7563 = vmatprep.subr.mxu0 0.0
    %7564 = vmatpush1.xpose.msra.mxu0 0.0
    %7565 = vmatprep.subr.mxu0 0.0
    %7566 = vmatpush1.xpose.msra.mxu0 0.0
    %7567 = vmatprep.subr.mxu0 0.0
    %7568 = vmatpush1.xpose.msra.mxu0 0.0
    %7569 = vmatprep.subr.mxu0 0.0
    %7570 = vmatpush1.xpose.msra.mxu0 0.0
    %7571 = vmatprep.subr.mxu0 0.0
    %7572 = vmatpush1.xpose.msra.mxu0 0.0
    %7573 = vmatprep.subr.mxu0 0.0
    %7574 = vmatpush1.xpose.msra.mxu0 0.0
    %7575 = vmatprep.subr.mxu0 0.0
    %7576 = vmatpush1.xpose.msra.mxu0 0.0
    %7577 = vmatprep.subr.mxu0 0.0
    %7578 = vmatpush1.xpose.msra.mxu0 0.0
    %7579 = vmatprep.subr.mxu0 0.0
    %7580 = vmatpush1.xpose.msra.mxu0 0.0
    %7581 = vmatprep.subr.mxu0 0.0
    %7582 = vmatpush1.xpose.msra.mxu0 0.0
    %7583 = vmatprep.subr.mxu0 0.0
    %7584 = vmatpush1.xpose.msra.mxu0 0.0
    %7585 = vmatprep.subr.mxu0 0.0
    %7586 = vmatpush1.xpose.msra.mxu0 0.0
    %7587 = vmatprep.subr.mxu0 0.0
    %7588 = vmatpush1.xpose.msra.mxu0 0.0
    %7589 = vmatprep.subr.mxu0 0.0
    %7590 = vmatpush1.xpose.msra.mxu0 0.0
    %7591 = vmatprep.subr.mxu0 0.0
    %7592 = vmatpush1.xpose.msra.mxu0 0.0
    %7593 = vmatprep.subr.mxu0 0.0
    %7594 = vmatpush1.xpose.msra.mxu0 0.0
    %7595 = vmatprep.subr.mxu0 0.0
    %7596 = vmatpush1.xpose.msra.mxu0 0.0
    %7597 = vmatprep.subr.mxu0 0.0
    %7598 = vmatpush1.xpose.msra.mxu0 0.0
    %7599 = vmatprep.subr.mxu0 0.0
    %7600 = vmatpush1.xpose.msra.mxu0 0.0
    %7601 = vmatprep.subr.mxu0 0.0
    %7602 = vmatpush1.xpose.msra.mxu0 0.0
    %7603 = vmatprep.subr.mxu0 0.0
    %7604 = vmatpush1.xpose.msra.mxu0 0.0
    %7605 = vmatprep.subr.mxu0 0.0
    %7606 = vmatpush1.xpose.msra.mxu0 0.0
    %7607 = vmatprep.subr.mxu0 0.0
    %7608 = vmatpush1.xpose.msra.mxu0 0.0
    %7609 = vmatprep.subr.mxu0 0.0
    %7610 = vmatpush1.xpose.msra.mxu0 0.0
    %7611 = vmatprep.subr.mxu0 0.0
    %7612 = vmatpush1.xpose.msra.mxu0 0.0
    %7613 = vmatprep.subr.mxu0 0.0
    %7614 = vmatpush1.xpose.msra.mxu0 0.0
    %7615 = vmatprep.subr.mxu0 0.0
    %7616 = vmatpush1.xpose.msra.mxu0 0.0
    %7617 = vmatprep.subr.mxu0 0.0
    %7618 = vmatpush1.xpose.msra.mxu0 0.0
    %7619 = vmatprep.mubr.f32.mxu0 0.0
    %7620 = vmatmul.mubr.f32.gmra.mrb[0].mxu0 %v7551
    %v7621 = vpop.f32.mrb[0].mxu0
    %v7622 = vadd.f32 0.0, %v7621
    %v7623 = vpop.f32.mrb[0].mxu0
    %7624 = vdwg.mxu0
    %v7625 = vsel %vm7146, %v7622, -inf
    %7626 = vmax.xlane.f32.xlu0 %v7625
    %v7627 = vpop.xlane.xlu0 %7626
    %v7628 = vsub.f32 %v7622, %v7627
    %v7629 = vmul.f32 %v7628, 1.442695
    %v7630 = vpow.pop %v7629
    %v7631 = vsel %vm7146, %v7630, 0.0
    %7632 = vadd.xlane.f32.xlu0 %v7631
    %v7633 = vpop.xlane.xlu0 %7632
    %v7634 = vrcp.pop %v7633
    %v7635 = vmul.f32 %v7630, %v7634
    %7636 = vrot.lane.b32.xlu0 %v7067, 112
    %v7637 = vpop.permute.xlu0 %7636
    %v7639 = vsel %vm7158, %v7635, 0
    %v7641 = vsel %vm3802, %v7637, 0
    %7643 = vmatprep.subr.mxu0 0.0
    %7644 = vmatpush1.msra.mxu0 %v7641
    %7645 = vmatprep.subr.mxu0 0.0
    %7646 = vmatpush1.msra.mxu0 0.0
    %7647 = vmatprep.subr.mxu0 0.0
    %7648 = vmatpush1.msra.mxu0 0.0
    %7649 = vmatprep.subr.mxu0 0.0
    %7650 = vmatpush1.msra.mxu0 0.0
    %7651 = vmatprep.subr.mxu0 0.0
    %7652 = vmatpush1.msra.mxu0 0.0
    %7653 = vmatprep.subr.mxu0 0.0
    %7654 = vmatpush1.msra.mxu0 0.0
    %7655 = vmatprep.subr.mxu0 0.0
    %7656 = vmatpush1.msra.mxu0 0.0
    %7657 = vmatprep.subr.mxu0 0.0
    %7658 = vmatpush1.msra.mxu0 0.0
    %7659 = vmatprep.subr.mxu0 0.0
    %7660 = vmatpush1.msra.mxu0 0.0
    %7661 = vmatprep.subr.mxu0 0.0
    %7662 = vmatpush1.msra.mxu0 0.0
    %7663 = vmatprep.subr.mxu0 0.0
    %7664 = vmatpush1.msra.mxu0 0.0
    %7665 = vmatprep.subr.mxu0 0.0
    %7666 = vmatpush1.msra.mxu0 0.0
    %7667 = vmatprep.subr.mxu0 0.0
    %7668 = vmatpush1.msra.mxu0 0.0
    %7669 = vmatprep.subr.mxu0 0.0
    %7670 = vmatpush1.msra.mxu0 0.0
    %7671 = vmatprep.subr.mxu0 0.0
    %7672 = vmatpush1.msra.mxu0 0.0
    %7673 = vmatprep.subr.mxu0 0.0
    %7674 = vmatpush1.msra.mxu0 0.0
    %7675 = vmatprep.subr.mxu0 0.0
    %7676 = vmatpush1.msra.mxu0 0.0
    %7677 = vmatprep.subr.mxu0 0.0
    %7678 = vmatpush1.msra.mxu0 0.0
    %7679 = vmatprep.subr.mxu0 0.0
    %7680 = vmatpush1.msra.mxu0 0.0
    %7681 = vmatprep.subr.mxu0 0.0
    %7682 = vmatpush1.msra.mxu0 0.0
    %7683 = vmatprep.subr.mxu0 0.0
    %7684 = vmatpush1.msra.mxu0 0.0
    %7685 = vmatprep.subr.mxu0 0.0
    %7686 = vmatpush1.msra.mxu0 0.0
    %7687 = vmatprep.subr.mxu0 0.0
    %7688 = vmatpush1.msra.mxu0 0.0
    %7689 = vmatprep.subr.mxu0 0.0
    %7690 = vmatpush1.msra.mxu0 0.0
    %7691 = vmatprep.subr.mxu0 0.0
    %7692 = vmatpush1.msra.mxu0 0.0
    %7693 = vmatprep.subr.mxu0 0.0
    %7694 = vmatpush1.msra.mxu0 0.0
    %7695 = vmatprep.subr.mxu0 0.0
    %7696 = vmatpush1.msra.mxu0 0.0
    %7697 = vmatprep.subr.mxu0 0.0
    %7698 = vmatpush1.msra.mxu0 0.0
    %7699 = vmatprep.subr.mxu0 0.0
    %7700 = vmatpush1.msra.mxu0 0.0
    %7701 = vmatprep.subr.mxu0 0.0
    %7702 = vmatpush1.msra.mxu0 0.0
    %7703 = vmatprep.subr.mxu0 0.0
    %7704 = vmatpush1.msra.mxu0 0.0
    %7705 = vmatprep.subr.mxu0 0.0
    %7706 = vmatpush1.msra.mxu0 0.0
    %7707 = vmatprep.mubr.f32.mxu0 0.0
    %7708 = vmatmul.mubr.f32.gmra.mrb[0].mxu0 %v7639
    %v7709 = vpop.f32.mrb[0].mxu0
    %v7710 = vadd.f32 0.0, %v7709
    %v7711 = vpop.f32.mrb[0].mxu0
    %7712 = vdwg.mxu0
    %v7714 = vsel %vm1051, %v7710, 0
    %7716 = vmatprep.subr.mxu0 0.0
    %7717 = vmatpush1.msra.mxu0 %v6830
    %7718 = vmatprep.subr.mxu0 0.0
    %7719 = vmatpush1.msra.mxu0 0.0
    %7720 = vmatprep.subr.mxu0 0.0
    %7721 = vmatpush1.msra.mxu0 0.0
    %7722 = vmatprep.subr.mxu0 0.0
    %7723 = vmatpush1.msra.mxu0 0.0
    %7724 = vmatprep.subr.mxu0 0.0
    %7725 = vmatpush1.msra.mxu0 0.0
    %7726 = vmatprep.subr.mxu0 0.0
    %7727 = vmatpush1.msra.mxu0 0.0
    %7728 = vmatprep.subr.mxu0 0.0
    %7729 = vmatpush1.msra.mxu0 0.0
    %7730 = vmatprep.subr.mxu0 0.0
    %7731 = vmatpush1.msra.mxu0 0.0
    %7732 = vmatprep.subr.mxu0 0.0
    %7733 = vmatpush1.msra.mxu0 0.0
    %7734 = vmatprep.subr.mxu0 0.0
    %7735 = vmatpush1.msra.mxu0 0.0
    %7736 = vmatprep.subr.mxu0 0.0
    %7737 = vmatpush1.msra.mxu0 0.0
    %7738 = vmatprep.subr.mxu0 0.0
    %7739 = vmatpush1.msra.mxu0 0.0
    %7740 = vmatprep.subr.mxu0 0.0
    %7741 = vmatpush1.msra.mxu0 0.0
    %7742 = vmatprep.subr.mxu0 0.0
    %7743 = vmatpush1.msra.mxu0 0.0
    %7744 = vmatprep.subr.mxu0 0.0
    %7745 = vmatpush1.msra.mxu0 0.0
    %7746 = vmatprep.subr.mxu0 0.0
    %7747 = vmatpush1.msra.mxu0 0.0
    %7748 = vmatprep.subr.mxu0 0.0
    %7749 = vmatpush1.msra.mxu0 0.0
    %7750 = vmatprep.subr.mxu0 0.0
    %7751 = vmatpush1.msra.mxu0 0.0
    %7752 = vmatprep.subr.mxu0 0.0
    %7753 = vmatpush1.msra.mxu0 0.0
    %7754 = vmatprep.subr.mxu0 0.0
    %7755 = vmatpush1.msra.mxu0 0.0
    %7756 = vmatprep.subr.mxu0 0.0
    %7757 = vmatpush1.msra.mxu0 0.0
    %7758 = vmatprep.subr.mxu0 0.0
    %7759 = vmatpush1.msra.mxu0 0.0
    %7760 = vmatprep.subr.mxu0 0.0
    %7761 = vmatpush1.msra.mxu0 0.0
    %7762 = vmatprep.subr.mxu0 0.0
    %7763 = vmatpush1.msra.mxu0 0.0
    %7764 = vmatprep.subr.mxu0 0.0
    %7765 = vmatpush1.msra.mxu0 0.0
    %7766 = vmatprep.subr.mxu0 0.0
    %7767 = vmatpush1.msra.mxu0 0.0
    %7768 = vmatprep.subr.mxu0 0.0
    %7769 = vmatpush1.msra.mxu0 0.0
    %7770 = vmatprep.subr.mxu0 0.0
    %7771 = vmatpush1.msra.mxu0 0.0
    %7772 = vmatprep.subr.mxu0 0.0
    %7773 = vmatpush1.msra.mxu0 0.0
    %7774 = vmatprep.subr.mxu0 0.0
    %7775 = vmatpush1.msra.mxu0 0.0
    %7776 = vmatprep.subr.mxu0 0.0
    %7777 = vmatpush1.msra.mxu0 0.0
    %7778 = vmatprep.subr.mxu0 0.0
    %7779 = vmatpush1.msra.mxu0 0.0
    %7780 = vmatprep.mubr.f32.mxu0 0.0
    %7781 = vmatmul.mubr.f32.gmra.mrb[0].mxu0 %v7714
    %v7782 = vpop.f32.mrb[0].mxu0
    %v7783 = vadd.f32 0.0, %v7782
    %v7784 = vpop.f32.mrb[0].mxu0
    %7785 = vdwg.mxu0
    %v7786 = vadd.f32 %v7544, %v7783
    %7787 = vrot.lane.b32.xlu0 %v6913, 104
    %v7788 = vpop.permute.xlu0 %7787
    %7789 = vrot.lane.b32.xlu0 %v6989, 104
    %v7790 = vpop.permute.xlu0 %7789
    %v7791 = vsel %vm1051, %v7788, 0
    %v7793 = vsel %vm1051, %v7790, 0
    %7795 = vmatprep.subr.mxu0 0.0
    %7796 = vmatpush1.xpose.msra.mxu0 %v7793
    %7797 = vmatprep.subr.mxu0 0.0
    %7798 = vmatpush1.xpose.msra.mxu0 0.0
    %7799 = vmatprep.subr.mxu0 0.0
    %7800 = vmatpush1.xpose.msra.mxu0 0.0
    %7801 = vmatprep.subr.mxu0 0.0
    %7802 = vmatpush1.xpose.msra.mxu0 0.0
    %7803 = vmatprep.subr.mxu0 0.0
    %7804 = vmatpush1.xpose.msra.mxu0 0.0
    %7805 = vmatprep.subr.mxu0 0.0
    %7806 = vmatpush1.xpose.msra.mxu0 0.0
    %7807 = vmatprep.subr.mxu0 0.0
    %7808 = vmatpush1.xpose.msra.mxu0 0.0
    %7809 = vmatprep.subr.mxu0 0.0
    %7810 = vmatpush1.xpose.msra.mxu0 0.0
    %7811 = vmatprep.subr.mxu0 0.0
    %7812 = vmatpush1.xpose.msra.mxu0 0.0
    %7813 = vmatprep.subr.mxu0 0.0
    %7814 = vmatpush1.xpose.msra.mxu0 0.0
    %7815 = vmatprep.subr.mxu0 0.0
    %7816 = vmatpush1.xpose.msra.mxu0 0.0
    %7817 = vmatprep.subr.mxu0 0.0
    %7818 = vmatpush1.xpose.msra.mxu0 0.0
    %7819 = vmatprep.subr.mxu0 0.0
    %7820 = vmatpush1.xpose.msra.mxu0 0.0
    %7821 = vmatprep.subr.mxu0 0.0
    %7822 = vmatpush1.xpose.msra.mxu0 0.0
    %7823 = vmatprep.subr.mxu0 0.0
    %7824 = vmatpush1.xpose.msra.mxu0 0.0
    %7825 = vmatprep.subr.mxu0 0.0
    %7826 = vmatpush1.xpose.msra.mxu0 0.0
    %7827 = vmatprep.subr.mxu0 0.0
    %7828 = vmatpush1.xpose.msra.mxu0 0.0
    %7829 = vmatprep.subr.mxu0 0.0
    %7830 = vmatpush1.xpose.msra.mxu0 0.0
    %7831 = vmatprep.subr.mxu0 0.0
    %7832 = vmatpush1.xpose.msra.mxu0 0.0
    %7833 = vmatprep.subr.mxu0 0.0
    %7834 = vmatpush1.xpose.msra.mxu0 0.0
    %7835 = vmatprep.subr.mxu0 0.0
    %7836 = vmatpush1.xpose.msra.mxu0 0.0
    %7837 = vmatprep.subr.mxu0 0.0
    %7838 = vmatpush1.xpose.msra.mxu0 0.0
    %7839 = vmatprep.subr.mxu0 0.0
    %7840 = vmatpush1.xpose.msra.mxu0 0.0
    %7841 = vmatprep.subr.mxu0 0.0
    %7842 = vmatpush1.xpose.msra.mxu0 0.0
    %7843 = vmatprep.subr.mxu0 0.0
    %7844 = vmatpush1.xpose.msra.mxu0 0.0
    %7845 = vmatprep.subr.mxu0 0.0
    %7846 = vmatpush1.xpose.msra.mxu0 0.0
    %7847 = vmatprep.subr.mxu0 0.0
    %7848 = vmatpush1.xpose.msra.mxu0 0.0
    %7849 = vmatprep.subr.mxu0 0.0
    %7850 = vmatpush1.xpose.msra.mxu0 0.0
    %7851 = vmatprep.subr.mxu0 0.0
    %7852 = vmatpush1.xpose.msra.mxu0 0.0
    %7853 = vmatprep.subr.mxu0 0.0
    %7854 = vmatpush1.xpose.msra.mxu0 0.0
    %7855 = vmatprep.subr.mxu0 0.0
    %7856 = vmatpush1.xpose.msra.mxu0 0.0
    %7857 = vmatprep.subr.mxu0 0.0
    %7858 = vmatpush1.xpose.msra.mxu0 0.0
    %7859 = vmatprep.mubr.f32.mxu0 0.0
    %7860 = vmatmul.mubr.f32.gmra.mrb[0].mxu0 %v7791
    %v7861 = vpop.f32.mrb[0].mxu0
    %v7862 = vadd.f32 0.0, %v7861
    %v7863 = vpop.f32.mrb[0].mxu0
    %7864 = vdwg.mxu0
    %v7865 = vsel %vm7146, %v7862, -inf
    %7866 = vmax.xlane.f32.xlu0 %v7865
    %v7867 = vpop.xlane.xlu0 %7866
    %v7868 = vsub.f32 %v7862, %v7867
    %v7869 = vmul.f32 %v7868, 1.442695
    %v7870 = vpow.pop %v7869
    %v7871 = vsel %vm7146, %v7870, 0.0
    %7872 = vadd.xlane.f32.xlu0 %v7871
    %v7873 = vpop.xlane.xlu0 %7872
    %v7874 = vrcp.pop %v7873
    %v7875 = vmul.f32 %v7870, %v7874
    %7876 = vrot.lane.b32.xlu0 %v7067, 104
    %v7877 = vpop.permute.xlu0 %7876
    %v7879 = vsel %vm7158, %v7875, 0
    %v7881 = vsel %vm3802, %v7877, 0
    %7883 = vmatprep.subr.mxu0 0.0
    %7884 = vmatpush1.msra.mxu0 %v7881
    %7885 = vmatprep.subr.mxu0 0.0
    %7886 = vmatpush1.msra.mxu0 0.0
    %7887 = vmatprep.subr.mxu0 0.0
    %7888 = vmatpush1.msra.mxu0 0.0
    %7889 = vmatprep.subr.mxu0 0.0
    %7890 = vmatpush1.msra.mxu0 0.0
    %7891 = vmatprep.subr.mxu0 0.0
    %7892 = vmatpush1.msra.mxu0 0.0
    %7893 = vmatprep.subr.mxu0 0.0
    %7894 = vmatpush1.msra.mxu0 0.0
    %7895 = vmatprep.subr.mxu0 0.0
    %7896 = vmatpush1.msra.mxu0 0.0
    %7897 = vmatprep.subr.mxu0 0.0
    %7898 = vmatpush1.msra.mxu0 0.0
    %7899 = vmatprep.subr.mxu0 0.0
    %7900 = vmatpush1.msra.mxu0 0.0
    %7901 = vmatprep.subr.mxu0 0.0
    %7902 = vmatpush1.msra.mxu0 0.0
    %7903 = vmatprep.subr.mxu0 0.0
    %7904 = vmatpush1.msra.mxu0 0.0
    %7905 = vmatprep.subr.mxu0 0.0
    %7906 = vmatpush1.msra.mxu0 0.0
    %7907 = vmatprep.subr.mxu0 0.0
    %7908 = vmatpush1.msra.mxu0 0.0
    %7909 = vmatprep.subr.mxu0 0.0
    %7910 = vmatpush1.msra.mxu0 0.0
    %7911 = vmatprep.subr.mxu0 0.0
    %7912 = vmatpush1.msra.mxu0 0.0
    %7913 = vmatprep.subr.mxu0 0.0
    %7914 = vmatpush1.msra.mxu0 0.0
    %7915 = vmatprep.subr.mxu0 0.0
    %7916 = vmatpush1.msra.mxu0 0.0
    %7917 = vmatprep.subr.mxu0 0.0
    %7918 = vmatpush1.msra.mxu0 0.0
    %7919 = vmatprep.subr.mxu0 0.0
    %7920 = vmatpush1.msra.mxu0 0.0
    %7921 = vmatprep.subr.mxu0 0.0
    %7922 = vmatpush1.msra.mxu0 0.0
    %7923 = vmatprep.subr.mxu0 0.0
    %7924 = vmatpush1.msra.mxu0 0.0
    %7925 = vmatprep.subr.mxu0 0.0
    %7926 = vmatpush1.msra.mxu0 0.0
    %7927 = vmatprep.subr.mxu0 0.0
    %7928 = vmatpush1.msra.mxu0 0.0
    %7929 = vmatprep.subr.mxu0 0.0
    %7930 = vmatpush1.msra.mxu0 0.0
    %7931 = vmatprep.subr.mxu0 0.0
    %7932 = vmatpush1.msra.mxu0 0.0
    %7933 = vmatprep.subr.mxu0 0.0
    %7934 = vmatpush1.msra.mxu0 0.0
    %7935 = vmatprep.subr.mxu0 0.0
    %7936 = vmatpush1.msra.mxu0 0.0
    %7937 = vmatprep.subr.mxu0 0.0
    %7938 = vmatpush1.msra.mxu0 0.0
    %7939 = vmatprep.subr.mxu0 0.0
    %7940 = vmatpush1.msra.mxu0 0.0
    %7941 = vmatprep.subr.mxu0 0.0
    %7942 = vmatpush1.msra.mxu0 0.0
    %7943 = vmatprep.subr.mxu0 0.0
    %7944 = vmatpush1.msra.mxu0 0.0
    %7945 = vmatprep.subr.mxu0 0.0
    %7946 = vmatpush1.msra.mxu0 0.0
    %7947 = vmatprep.mubr.f32.mxu0 0.0
    %7948 = vmatmul.mubr.f32.gmra.mrb[0].mxu0 %v7879
    %v7949 = vpop.f32.mrb[0].mxu0
    %v7950 = vadd.f32 0.0, %v7949
    %v7951 = vpop.f32.mrb[0].mxu0
    %7952 = vdwg.mxu0
    %v7954 = vsel %vm1051, %v7950, 0
    %7956 = vmatprep.subr.mxu0 0.0
    %7957 = vmatpush1.msra.mxu0 %v6831
    %7958 = vmatprep.subr.mxu0 0.0
    %7959 = vmatpush1.msra.mxu0 0.0
    %7960 = vmatprep.subr.mxu0 0.0
    %7961 = vmatpush1.msra.mxu0 0.0
    %7962 = vmatprep.subr.mxu0 0.0
    %7963 = vmatpush1.msra.mxu0 0.0
    %7964 = vmatprep.subr.mxu0 0.0
    %7965 = vmatpush1.msra.mxu0 0.0
    %7966 = vmatprep.subr.mxu0 0.0
    %7967 = vmatpush1.msra.mxu0 0.0
    %7968 = vmatprep.subr.mxu0 0.0
    %7969 = vmatpush1.msra.mxu0 0.0
    %7970 = vmatprep.subr.mxu0 0.0
    %7971 = vmatpush1.msra.mxu0 0.0
    %7972 = vmatprep.subr.mxu0 0.0
    %7973 = vmatpush1.msra.mxu0 0.0
    %7974 = vmatprep.subr.mxu0 0.0
    %7975 = vmatpush1.msra.mxu0 0.0
    %7976 = vmatprep.subr.mxu0 0.0
    %7977 = vmatpush1.msra.mxu0 0.0
    %7978 = vmatprep.subr.mxu0 0.0
    %7979 = vmatpush1.msra.mxu0 0.0
    %7980 = vmatprep.subr.mxu0 0.0
    %7981 = vmatpush1.msra.mxu0 0.0
    %7982 = vmatprep.subr.mxu0 0.0
    %7983 = vmatpush1.msra.mxu0 0.0
    %7984 = vmatprep.subr.mxu0 0.0
    %7985 = vmatpush1.msra.mxu0 0.0
    %7986 = vmatprep.subr.mxu0 0.0
    %7987 = vmatpush1.msra.mxu0 0.0
    %7988 = vmatprep.subr.mxu0 0.0
    %7989 = vmatpush1.msra.mxu0 0.0
    %7990 = vmatprep.subr.mxu0 0.0
    %7991 = vmatpush1.msra.mxu0 0.0
    %7992 = vmatprep.subr.mxu0 0.0
    %7993 = vmatpush1.msra.mxu0 0.0
    %7994 = vmatprep.subr.mxu0 0.0
    %7995 = vmatpush1.msra.mxu0 0.0
    %7996 = vmatprep.subr.mxu0 0.0
    %7997 = vmatpush1.msra.mxu0 0.0
    %7998 = vmatprep.subr.mxu0 0.0
    %7999 = vmatpush1.msra.mxu0 0.0
    %8000 = vmatprep.subr.mxu0 0.0
    %8001 = vmatpush1.msra.mxu0 0.0
    %8002 = vmatprep.subr.mxu0 0.0
    %8003 = vmatpush1.msra.mxu0 0.0
    %8004 = vmatprep.subr.mxu0 0.0
    %8005 = vmatpush1.msra.mxu0 0.0
    %8006 = vmatprep.subr.mxu0 0.0
    %8007 = vmatpush1.msra.mxu0 0.0
    %8008 = vmatprep.subr.mxu0 0.0
    %8009 = vmatpush1.msra.mxu0 0.0
    %8010 = vmatprep.subr.mxu0 0.0
    %8011 = vmatpush1.msra.mxu0 0.0
    %8012 = vmatprep.subr.mxu0 0.0
    %8013 = vmatpush1.msra.mxu0 0.0
    %8014 = vmatprep.subr.mxu0 0.0
    %8015 = vmatpush1.msra.mxu0 0.0
    %8016 = vmatprep.subr.mxu0 0.0
    %8017 = vmatpush1.msra.mxu0 0.0
    %8018 = vmatprep.subr.mxu0 0.0
    %8019 = vmatpush1.msra.mxu0 0.0
    %8020 = vmatprep.mubr.f32.mxu0 0.0
    %8021 = vmatmul.mubr.f32.gmra.mrb[0].mxu0 %v7954
    %v8022 = vpop.f32.mrb[0].mxu0
    %v8023 = vadd.f32 0.0, %v8022
    %v8024 = vpop.f32.mrb[0].mxu0
    %8025 = vdwg.mxu0
    %v8026 = vadd.f32 %v7786, %v8023
    %v8027 = vrot.slane %v6913, 2
    %v8028 = vrot.slane %v6989, 2
    %v8029 = vsel %vm1051, %v8027, 0
    %v8031 = vsel %vm1051, %v8028, 0
    %8033 = vmatprep.subr.mxu0 0.0
    %8034 = vmatpush1.xpose.msra.mxu0 %v8031
    %8035 = vmatprep.subr.mxu0 0.0
    %8036 = vmatpush1.xpose.msra.mxu0 0.0
    %8037 = vmatprep.subr.mxu0 0.0
    %8038 = vmatpush1.xpose.msra.mxu0 0.0
    %8039 = vmatprep.subr.mxu0 0.0
    %8040 = vmatpush1.xpose.msra.mxu0 0.0
    %8041 = vmatprep.subr.mxu0 0.0
    %8042 = vmatpush1.xpose.msra.mxu0 0.0
    %8043 = vmatprep.subr.mxu0 0.0
    %8044 = vmatpush1.xpose.msra.mxu0 0.0
    %8045 = vmatprep.subr.mxu0 0.0
    %8046 = vmatpush1.xpose.msra.mxu0 0.0
    %8047 = vmatprep.subr.mxu0 0.0
    %8048 = vmatpush1.xpose.msra.mxu0 0.0
    %8049 = vmatprep.subr.mxu0 0.0
    %8050 = vmatpush1.xpose.msra.mxu0 0.0
    %8051 = vmatprep.subr.mxu0 0.0
    %8052 = vmatpush1.xpose.msra.mxu0 0.0
    %8053 = vmatprep.subr.mxu0 0.0
    %8054 = vmatpush1.xpose.msra.mxu0 0.0
    %8055 = vmatprep.subr.mxu0 0.0
    %8056 = vmatpush1.xpose.msra.mxu0 0.0
    %8057 = vmatprep.subr.mxu0 0.0
    %8058 = vmatpush1.xpose.msra.mxu0 0.0
    %8059 = vmatprep.subr.mxu0 0.0
    %8060 = vmatpush1.xpose.msra.mxu0 0.0
    %8061 = vmatprep.subr.mxu0 0.0
    %8062 = vmatpush1.xpose.msra.mxu0 0.0
    %8063 = vmatprep.subr.mxu0 0.0
    %8064 = vmatpush1.xpose.msra.mxu0 0.0
    %8065 = vmatprep.subr.mxu0 0.0
    %8066 = vmatpush1.xpose.msra.mxu0 0.0
    %8067 = vmatprep.subr.mxu0 0.0
    %8068 = vmatpush1.xpose.msra.mxu0 0.0
    %8069 = vmatprep.subr.mxu0 0.0
    %8070 = vmatpush1.xpose.msra.mxu0 0.0
    %8071 = vmatprep.subr.mxu0 0.0
    %8072 = vmatpush1.xpose.msra.mxu0 0.0
    %8073 = vmatprep.subr.mxu0 0.0
    %8074 = vmatpush1.xpose.msra.mxu0 0.0
    %8075 = vmatprep.subr.mxu0 0.0
    %8076 = vmatpush1.xpose.msra.mxu0 0.0
    %8077 = vmatprep.subr.mxu0 0.0
    %8078 = vmatpush1.xpose.msra.mxu0 0.0
    %8079 = vmatprep.subr.mxu0 0.0
    %8080 = vmatpush1.xpose.msra.mxu0 0.0
    %8081 = vmatprep.subr.mxu0 0.0
    %8082 = vmatpush1.xpose.msra.mxu0 0.0
    %8083 = vmatprep.subr.mxu0 0.0
    %8084 = vmatpush1.xpose.msra.mxu0 0.0
    %8085 = vmatprep.subr.mxu0 0.0
    %8086 = vmatpush1.xpose.msra.mxu0 0.0
    %8087 = vmatprep.subr.mxu0 0.0
    %8088 = vmatpush1.xpose.msra.mxu0 0.0
    %8089 = vmatprep.subr.mxu0 0.0
    %8090 = vmatpush1.xpose.msra.mxu0 0.0
    %8091 = vmatprep.subr.mxu0 0.0
    %8092 = vmatpush1.xpose.msra.mxu0 0.0
    %8093 = vmatprep.subr.mxu0 0.0
    %8094 = vmatpush1.xpose.msra.mxu0 0.0
    %8095 = vmatprep.subr.mxu0 0.0
    %8096 = vmatpush1.xpose.msra.mxu0 0.0
    %8097 = vmatprep.mubr.f32.mxu0 0.0
    %8098 = vmatmul.mubr.f32.gmra.mrb[0].mxu0 %v8029
    %v8099 = vpop.f32.mrb[0].mxu0
    %v8100 = vadd.f32 0.0, %v8099
    %v8101 = vpop.f32.mrb[0].mxu0
    %8102 = vdwg.mxu0
    %v8103 = vsel %vm7146, %v8100, -inf
    %8104 = vmax.xlane.f32.xlu0 %v8103
    %v8105 = vpop.xlane.xlu0 %8104
    %v8106 = vsub.f32 %v8100, %v8105
    %v8107 = vmul.f32 %v8106, 1.442695
    %v8108 = vpow.pop %v8107
    %v8109 = vsel %vm7146, %v8108, 0.0
    %8110 = vadd.xlane.f32.xlu0 %v8109
    %v8111 = vpop.xlane.xlu0 %8110
    %v8112 = vrcp.pop %v8111
    %v8113 = vmul.f32 %v8108, %v8112
    %v8114 = vrot.slane %v7067, 2
    %v8116 = vsel %vm7158, %v8113, 0
    %v8118 = vsel %vm3802, %v8114, 0
    %8120 = vmatprep.subr.mxu0 0.0
    %8121 = vmatpush1.msra.mxu0 %v8118
    %8122 = vmatprep.subr.mxu0 0.0
    %8123 = vmatpush1.msra.mxu0 0.0
    %8124 = vmatprep.subr.mxu0 0.0
    %8125 = vmatpush1.msra.mxu0 0.0
    %8126 = vmatprep.subr.mxu0 0.0
    %8127 = vmatpush1.msra.mxu0 0.0
    %8128 = vmatprep.subr.mxu0 0.0
    %8129 = vmatpush1.msra.mxu0 0.0
    %8130 = vmatprep.subr.mxu0 0.0
    %8131 = vmatpush1.msra.mxu0 0.0
    %8132 = vmatprep.subr.mxu0 0.0
    %8133 = vmatpush1.msra.mxu0 0.0
    %8134 = vmatprep.subr.mxu0 0.0
    %8135 = vmatpush1.msra.mxu0 0.0
    %8136 = vmatprep.subr.mxu0 0.0
    %8137 = vmatpush1.msra.mxu0 0.0
    %8138 = vmatprep.subr.mxu0 0.0
    %8139 = vmatpush1.msra.mxu0 0.0
    %8140 = vmatprep.subr.mxu0 0.0
    %8141 = vmatpush1.msra.mxu0 0.0
    %8142 = vmatprep.subr.mxu0 0.0
    %8143 = vmatpush1.msra.mxu0 0.0
    %8144 = vmatprep.subr.mxu0 0.0
    %8145 = vmatpush1.msra.mxu0 0.0
    %8146 = vmatprep.subr.mxu0 0.0
    %8147 = vmatpush1.msra.mxu0 0.0
    %8148 = vmatprep.subr.mxu0 0.0
    %8149 = vmatpush1.msra.mxu0 0.0
    %8150 = vmatprep.subr.mxu0 0.0
    %8151 = vmatpush1.msra.mxu0 0.0
    %8152 = vmatprep.subr.mxu0 0.0
    %8153 = vmatpush1.msra.mxu0 0.0
    %8154 = vmatprep.subr.mxu0 0.0
    %8155 = vmatpush1.msra.mxu0 0.0
    %8156 = vmatprep.subr.mxu0 0.0
    %8157 = vmatpush1.msra.mxu0 0.0
    %8158 = vmatprep.subr.mxu0 0.0
    %8159 = vmatpush1.msra.mxu0 0.0
    %8160 = vmatprep.subr.mxu0 0.0
    %8161 = vmatpush1.msra.mxu0 0.0
    %8162 = vmatprep.subr.mxu0 0.0
    %8163 = vmatpush1.msra.mxu0 0.0
    %8164 = vmatprep.subr.mxu0 0.0
    %8165 = vmatpush1.msra.mxu0 0.0
    %8166 = vmatprep.subr.mxu0 0.0
    %8167 = vmatpush1.msra.mxu0 0.0
    %8168 = vmatprep.subr.mxu0 0.0
    %8169 = vmatpush1.msra.mxu0 0.0
    %8170 = vmatprep.subr.mxu0 0.0
    %8171 = vmatpush1.msra.mxu0 0.0
    %8172 = vmatprep.subr.mxu0 0.0
    %8173 = vmatpush1.msra.mxu0 0.0
    %8174 = vmatprep.subr.mxu0 0.0
    %8175 = vmatpush1.msra.mxu0 0.0
    %8176 = vmatprep.subr.mxu0 0.0
    %8177 = vmatpush1.msra.mxu0 0.0
    %8178 = vmatprep.subr.mxu0 0.0
    %8179 = vmatpush1.msra.mxu0 0.0
    %8180 = vmatprep.subr.mxu0 0.0
    %8181 = vmatpush1.msra.mxu0 0.0
    %8182 = vmatprep.subr.mxu0 0.0
    %8183 = vmatpush1.msra.mxu0 0.0
    %8184 = vmatprep.mubr.f32.mxu0 0.0
    %8185 = vmatmul.mubr.f32.gmra.mrb[0].mxu0 %v8116
    %v8186 = vpop.f32.mrb[0].mxu0
    %v8187 = vadd.f32 0.0, %v8186
    %v8188 = vpop.f32.mrb[0].mxu0
    %8189 = vdwg.mxu0
    %8190 = vrot.lane.b32.xlu0 %v8027, 120
    %v8191 = vpop.permute.xlu0 %8190
    %8192 = vrot.lane.b32.xlu0 %v8028, 120
    %v8193 = vpop.permute.xlu0 %8192
    %v8194 = vsel %vm1051, %v8191, 0
    %v8196 = vsel %vm1051, %v8193, 0
    %8198 = vmatprep.subr.mxu0 0.0
    %8199 = vmatpush1.xpose.msra.mxu0 %v8196
    %8200 = vmatprep.subr.mxu0 0.0
    %8201 = vmatpush1.xpose.msra.mxu0 0.0
    %8202 = vmatprep.subr.mxu0 0.0
    %8203 = vmatpush1.xpose.msra.mxu0 0.0
    %8204 = vmatprep.subr.mxu0 0.0
    %8205 = vmatpush1.xpose.msra.mxu0 0.0
    %8206 = vmatprep.subr.mxu0 0.0
    %8207 = vmatpush1.xpose.msra.mxu0 0.0
    %8208 = vmatprep.subr.mxu0 0.0
    %8209 = vmatpush1.xpose.msra.mxu0 0.0
    %8210 = vmatprep.subr.mxu0 0.0
    %8211 = vmatpush1.xpose.msra.mxu0 0.0
    %8212 = vmatprep.subr.mxu0 0.0
    %8213 = vmatpush1.xpose.msra.mxu0 0.0
    %8214 = vmatprep.subr.mxu0 0.0
    %8215 = vmatpush1.xpose.msra.mxu0 0.0
    %8216 = vmatprep.subr.mxu0 0.0
    %8217 = vmatpush1.xpose.msra.mxu0 0.0
    %8218 = vmatprep.subr.mxu0 0.0
    %8219 = vmatpush1.xpose.msra.mxu0 0.0
    %8220 = vmatprep.subr.mxu0 0.0
    %8221 = vmatpush1.xpose.msra.mxu0 0.0
    %8222 = vmatprep.subr.mxu0 0.0
    %8223 = vmatpush1.xpose.msra.mxu0 0.0
    %8224 = vmatprep.subr.mxu0 0.0
    %8225 = vmatpush1.xpose.msra.mxu0 0.0
    %8226 = vmatprep.subr.mxu0 0.0
    %8227 = vmatpush1.xpose.msra.mxu0 0.0
    %8228 = vmatprep.subr.mxu0 0.0
    %8229 = vmatpush1.xpose.msra.mxu0 0.0
    %8230 = vmatprep.subr.mxu0 0.0
    %8231 = vmatpush1.xpose.msra.mxu0 0.0
    %8232 = vmatprep.subr.mxu0 0.0
    %8233 = vmatpush1.xpose.msra.mxu0 0.0
    %8234 = vmatprep.subr.mxu0 0.0
    %8235 = vmatpush1.xpose.msra.mxu0 0.0
    %8236 = vmatprep.subr.mxu0 0.0
    %8237 = vmatpush1.xpose.msra.mxu0 0.0
    %8238 = vmatprep.subr.mxu0 0.0
    %8239 = vmatpush1.xpose.msra.mxu0 0.0
    %8240 = vmatprep.subr.mxu0 0.0
    %8241 = vmatpush1.xpose.msra.mxu0 0.0
    %8242 = vmatprep.subr.mxu0 0.0
    %8243 = vmatpush1.xpose.msra.mxu0 0.0
    %8244 = vmatprep.subr.mxu0 0.0
    %8245 = vmatpush1.xpose.msra.mxu0 0.0
    %8246 = vmatprep.subr.mxu0 0.0
    %8247 = vmatpush1.xpose.msra.mxu0 0.0
    %8248 = vmatprep.subr.mxu0 0.0
    %8249 = vmatpush1.xpose.msra.mxu0 0.0
    %8250 = vmatprep.subr.mxu0 0.0
    %8251 = vmatpush1.xpose.msra.mxu0 0.0
    %8252 = vmatprep.subr.mxu0 0.0
    %8253 = vmatpush1.xpose.msra.mxu0 0.0
    %8254 = vmatprep.subr.mxu0 0.0
    %8255 = vmatpush1.xpose.msra.mxu0 0.0
    %8256 = vmatprep.subr.mxu0 0.0
    %8257 = vmatpush1.xpose.msra.mxu0 0.0
    %8258 = vmatprep.subr.mxu0 0.0
    %8259 = vmatpush1.xpose.msra.mxu0 0.0
    %8260 = vmatprep.subr.mxu0 0.0
    %8261 = vmatpush1.xpose.msra.mxu0 0.0
    %8262 = vmatprep.mubr.f32.mxu0 0.0
    %8263 = vmatmul.mubr.f32.gmra.mrb[0].mxu0 %v8194
    %v8264 = vpop.f32.mrb[0].mxu0
    %v8265 = vadd.f32 0.0, %v8264
    %v8266 = vpop.f32.mrb[0].mxu0
    %8267 = vdwg.mxu0
    %v8268 = vsel %vm7146, %v8265, -inf
    %8269 = vmax.xlane.f32.xlu0 %v8268
    %v8270 = vpop.xlane.xlu0 %8269
    %v8271 = vsub.f32 %v8265, %v8270
    %v8272 = vmul.f32 %v8271, 1.442695
    %v8273 = vpow.pop %v8272
    %v8274 = vsel %vm7146, %v8273, 0.0
    %8275 = vadd.xlane.f32.xlu0 %v8274
    %v8276 = vpop.xlane.xlu0 %8275
    %v8277 = vrcp.pop %v8276
    %v8278 = vmul.f32 %v8273, %v8277
    %8279 = vrot.lane.b32.xlu0 %v8114, 120
    %v8280 = vpop.permute.xlu0 %8279
    %v8282 = vsel %vm7158, %v8278, 0
    %v8284 = vsel %vm3802, %v8280, 0
    %8286 = vmatprep.subr.mxu0 0.0
    %8287 = vmatpush1.msra.mxu0 %v8284
    %8288 = vmatprep.subr.mxu0 0.0
    %8289 = vmatpush1.msra.mxu0 0.0
    %8290 = vmatprep.subr.mxu0 0.0
    %8291 = vmatpush1.msra.mxu0 0.0
    %8292 = vmatprep.subr.mxu0 0.0
    %8293 = vmatpush1.msra.mxu0 0.0
    %8294 = vmatprep.subr.mxu0 0.0
    %8295 = vmatpush1.msra.mxu0 0.0
    %8296 = vmatprep.subr.mxu0 0.0
    %8297 = vmatpush1.msra.mxu0 0.0
    %8298 = vmatprep.subr.mxu0 0.0
    %8299 = vmatpush1.msra.mxu0 0.0
    %8300 = vmatprep.subr.mxu0 0.0
    %8301 = vmatpush1.msra.mxu0 0.0
    %8302 = vmatprep.subr.mxu0 0.0
    %8303 = vmatpush1.msra.mxu0 0.0
    %8304 = vmatprep.subr.mxu0 0.0
    %8305 = vmatpush1.msra.mxu0 0.0
    %8306 = vmatprep.subr.mxu0 0.0
    %8307 = vmatpush1.msra.mxu0 0.0
    %8308 = vmatprep.subr.mxu0 0.0
    %8309 = vmatpush1.msra.mxu0 0.0
    %8310 = vmatprep.subr.mxu0 0.0
    %8311 = vmatpush1.msra.mxu0 0.0
    %8312 = vmatprep.subr.mxu0 0.0
    %8313 = vmatpush1.msra.mxu0 0.0
    %8314 = vmatprep.subr.mxu0 0.0
    %8315 = vmatpush1.msra.mxu0 0.0
    %8316 = vmatprep.subr.mxu0 0.0
    %8317 = vmatpush1.msra.mxu0 0.0
    %8318 = vmatprep.subr.mxu0 0.0
    %8319 = vmatpush1.msra.mxu0 0.0
    %8320 = vmatprep.subr.mxu0 0.0
    %8321 = vmatpush1.msra.mxu0 0.0
    %8322 = vmatprep.subr.mxu0 0.0
    %8323 = vmatpush1.msra.mxu0 0.0
    %8324 = vmatprep.subr.mxu0 0.0
    %8325 = vmatpush1.msra.mxu0 0.0
    %8326 = vmatprep.subr.mxu0 0.0
    %8327 = vmatpush1.msra.mxu0 0.0
    %8328 = vmatprep.subr.mxu0 0.0
    %8329 = vmatpush1.msra.mxu0 0.0
    %8330 = vmatprep.subr.mxu0 0.0
    %8331 = vmatpush1.msra.mxu0 0.0
    %8332 = vmatprep.subr.mxu0 0.0
    %8333 = vmatpush1.msra.mxu0 0.0
    %8334 = vmatprep.subr.mxu0 0.0
    %8335 = vmatpush1.msra.mxu0 0.0
    %8336 = vmatprep.subr.mxu0 0.0
    %8337 = vmatpush1.msra.mxu0 0.0
    %8338 = vmatprep.subr.mxu0 0.0
    %8339 = vmatpush1.msra.mxu0 0.0
    %8340 = vmatprep.subr.mxu0 0.0
    %8341 = vmatpush1.msra.mxu0 0.0
    %8342 = vmatprep.subr.mxu0 0.0
    %8343 = vmatpush1.msra.mxu0 0.0
    %8344 = vmatprep.subr.mxu0 0.0
    %8345 = vmatpush1.msra.mxu0 0.0
    %8346 = vmatprep.subr.mxu0 0.0
    %8347 = vmatpush1.msra.mxu0 0.0
    %8348 = vmatprep.subr.mxu0 0.0
    %8349 = vmatpush1.msra.mxu0 0.0
    %8350 = vmatprep.mubr.f32.mxu0 0.0
    %8351 = vmatmul.mubr.f32.gmra.mrb[0].mxu0 %v8282
    %v8352 = vpop.f32.mrb[0].mxu0
    %v8353 = vadd.f32 0.0, %v8352
    %v8354 = vpop.f32.mrb[0].mxu0
    %8355 = vdwg.mxu0
    %v8357 = vsel %vm1051, %v8353, 0
    %8359 = vmatprep.subr.mxu0 0.0
    %8360 = vmatpush1.msra.mxu0 %v6829
    %8361 = vmatprep.subr.mxu0 0.0
    %8362 = vmatpush1.msra.mxu0 0.0
    %8363 = vmatprep.subr.mxu0 0.0
    %8364 = vmatpush1.msra.mxu0 0.0
    %8365 = vmatprep.subr.mxu0 0.0
    %8366 = vmatpush1.msra.mxu0 0.0
    %8367 = vmatprep.subr.mxu0 0.0
    %8368 = vmatpush1.msra.mxu0 0.0
    %8369 = vmatprep.subr.mxu0 0.0
    %8370 = vmatpush1.msra.mxu0 0.0
    %8371 = vmatprep.subr.mxu0 0.0
    %8372 = vmatpush1.msra.mxu0 0.0
    %8373 = vmatprep.subr.mxu0 0.0
    %8374 = vmatpush1.msra.mxu0 0.0
    %8375 = vmatprep.subr.mxu0 0.0
    %8376 = vmatpush1.msra.mxu0 0.0
    %8377 = vmatprep.subr.mxu0 0.0
    %8378 = vmatpush1.msra.mxu0 0.0
    %8379 = vmatprep.subr.mxu0 0.0
    %8380 = vmatpush1.msra.mxu0 0.0
    %8381 = vmatprep.subr.mxu0 0.0
    %8382 = vmatpush1.msra.mxu0 0.0
    %8383 = vmatprep.subr.mxu0 0.0
    %8384 = vmatpush1.msra.mxu0 0.0
    %8385 = vmatprep.subr.mxu0 0.0
    %8386 = vmatpush1.msra.mxu0 0.0
    %8387 = vmatprep.subr.mxu0 0.0
    %8388 = vmatpush1.msra.mxu0 0.0
    %8389 = vmatprep.subr.mxu0 0.0
    %8390 = vmatpush1.msra.mxu0 0.0
    %8391 = vmatprep.subr.mxu0 0.0
    %8392 = vmatpush1.msra.mxu0 0.0
    %8393 = vmatprep.subr.mxu0 0.0
    %8394 = vmatpush1.msra.mxu0 0.0
    %8395 = vmatprep.subr.mxu0 0.0
    %8396 = vmatpush1.msra.mxu0 0.0
    %8397 = vmatprep.subr.mxu0 0.0
    %8398 = vmatpush1.msra.mxu0 0.0
    %8399 = vmatprep.subr.mxu0 0.0
    %8400 = vmatpush1.msra.mxu0 0.0
    %8401 = vmatprep.subr.mxu0 0.0
    %8402 = vmatpush1.msra.mxu0 0.0
    %8403 = vmatprep.subr.mxu0 0.0
    %8404 = vmatpush1.msra.mxu0 0.0
    %8405 = vmatprep.subr.mxu0 0.0
    %8406 = vmatpush1.msra.mxu0 0.0
    %8407 = vmatprep.subr.mxu0 0.0
    %8408 = vmatpush1.msra.mxu0 0.0
    %8409 = vmatprep.subr.mxu0 0.0
    %8410 = vmatpush1.msra.mxu0 0.0
    %8411 = vmatprep.subr.mxu0 0.0
    %8412 = vmatpush1.msra.mxu0 0.0
    %8413 = vmatprep.subr.mxu0 0.0
    %8414 = vmatpush1.msra.mxu0 0.0
    %8415 = vmatprep.subr.mxu0 0.0
    %8416 = vmatpush1.msra.mxu0 0.0
    %8417 = vmatprep.subr.mxu0 0.0
    %8418 = vmatpush1.msra.mxu0 0.0
    %8419 = vmatprep.subr.mxu0 0.0
    %8420 = vmatpush1.msra.mxu0 0.0
    %8421 = vmatprep.subr.mxu0 0.0
    %8422 = vmatpush1.msra.mxu0 0.0
    %8423 = vmatprep.mubr.f32.mxu0 0.0
    %8424 = vmatmul.mubr.f32.gmra.mrb[0].mxu0 %v8357
    %v8425 = vpop.f32.mrb[0].mxu0
    %v8426 = vadd.f32 0.0, %v8425
    %v8427 = vpop.f32.mrb[0].mxu0
    %8428 = vdwg.mxu0
    %v8430 = vsel %vm1051, %v8187, 0
    %8432 = vmatprep.subr.mxu0 0.0
    %8433 = vmatpush1.msra.mxu0 %v6828
    %8434 = vmatprep.subr.mxu0 0.0
    %8435 = vmatpush1.msra.mxu0 0.0
    %8436 = vmatprep.subr.mxu0 0.0
    %8437 = vmatpush1.msra.mxu0 0.0
    %8438 = vmatprep.subr.mxu0 0.0
    %8439 = vmatpush1.msra.mxu0 0.0
    %8440 = vmatprep.subr.mxu0 0.0
    %8441 = vmatpush1.msra.mxu0 0.0
    %8442 = vmatprep.subr.mxu0 0.0
    %8443 = vmatpush1.msra.mxu0 0.0
    %8444 = vmatprep.subr.mxu0 0.0
    %8445 = vmatpush1.msra.mxu0 0.0
    %8446 = vmatprep.subr.mxu0 0.0
    %8447 = vmatpush1.msra.mxu0 0.0
    %8448 = vmatprep.subr.mxu0 0.0
    %8449 = vmatpush1.msra.mxu0 0.0
    %8450 = vmatprep.subr.mxu0 0.0
    %8451 = vmatpush1.msra.mxu0 0.0
    %8452 = vmatprep.subr.mxu0 0.0
    %8453 = vmatpush1.msra.mxu0 0.0
    %8454 = vmatprep.subr.mxu0 0.0
    %8455 = vmatpush1.msra.mxu0 0.0
    %8456 = vmatprep.subr.mxu0 0.0
    %8457 = vmatpush1.msra.mxu0 0.0
    %8458 = vmatprep.subr.mxu0 0.0
    %8459 = vmatpush1.msra.mxu0 0.0
    %8460 = vmatprep.subr.mxu0 0.0
    %8461 = vmatpush1.msra.mxu0 0.0
    %8462 = vmatprep.subr.mxu0 0.0
    %8463 = vmatpush1.msra.mxu0 0.0
    %8464 = vmatprep.subr.mxu0 0.0
    %8465 = vmatpush1.msra.mxu0 0.0
    %8466 = vmatprep.subr.mxu0 0.0
    %8467 = vmatpush1.msra.mxu0 0.0
    %8468 = vmatprep.subr.mxu0 0.0
    %8469 = vmatpush1.msra.mxu0 0.0
    %8470 = vmatprep.subr.mxu0 0.0
    %8471 = vmatpush1.msra.mxu0 0.0
    %8472 = vmatprep.subr.mxu0 0.0
    %8473 = vmatpush1.msra.mxu0 0.0
    %8474 = vmatprep.subr.mxu0 0.0
    %8475 = vmatpush1.msra.mxu0 0.0
    %8476 = vmatprep.subr.mxu0 0.0
    %8477 = vmatpush1.msra.mxu0 0.0
    %8478 = vmatprep.subr.mxu0 0.0
    %8479 = vmatpush1.msra.mxu0 0.0
    %8480 = vmatprep.subr.mxu0 0.0
    %8481 = vmatpush1.msra.mxu0 0.0
    %8482 = vmatprep.subr.mxu0 0.0
    %8483 = vmatpush1.msra.mxu0 0.0
    %8484 = vmatprep.subr.mxu0 0.0
    %8485 = vmatpush1.msra.mxu0 0.0
    %8486 = vmatprep.subr.mxu0 0.0
    %8487 = vmatpush1.msra.mxu0 0.0
    %8488 = vmatprep.subr.mxu0 0.0
    %8489 = vmatpush1.msra.mxu0 0.0
    %8490 = vmatprep.subr.mxu0 0.0
    %8491 = vmatpush1.msra.mxu0 0.0
    %8492 = vmatprep.subr.mxu0 0.0
    %8493 = vmatpush1.msra.mxu0 0.0
    %8494 = vmatprep.subr.mxu0 0.0
    %8495 = vmatpush1.msra.mxu0 0.0
    %8496 = vmatprep.mubr.f32.mxu0 0.0
    %8497 = vmatmul.mubr.f32.gmra.mrb[0].mxu0 %v8430
    %v8498 = vpop.f32.mrb[0].mxu0
    %v8499 = vadd.f32 %v8426, %v8498
    %v8500 = vpop.f32.mrb[0].mxu0
    %8501 = vdwg.mxu0
    %8502 = vrot.lane.b32.xlu0 %v8027, 112
    %v8503 = vpop.permute.xlu0 %8502
    %8504 = vrot.lane.b32.xlu0 %v8028, 112
    %v8505 = vpop.permute.xlu0 %8504
    %v8506 = vsel %vm1051, %v8503, 0
    %v8508 = vsel %vm1051, %v8505, 0
    %8510 = vmatprep.subr.mxu0 0.0
    %8511 = vmatpush1.xpose.msra.mxu0 %v8508
    %8512 = vmatprep.subr.mxu0 0.0
    %8513 = vmatpush1.xpose.msra.mxu0 0.0
    %8514 = vmatprep.subr.mxu0 0.0
    %8515 = vmatpush1.xpose.msra.mxu0 0.0
    %8516 = vmatprep.subr.mxu0 0.0
    %8517 = vmatpush1.xpose.msra.mxu0 0.0
    %8518 = vmatprep.subr.mxu0 0.0
    %8519 = vmatpush1.xpose.msra.mxu0 0.0
    %8520 = vmatprep.subr.mxu0 0.0
    %8521 = vmatpush1.xpose.msra.mxu0 0.0
    %8522 = vmatprep.subr.mxu0 0.0
    %8523 = vmatpush1.xpose.msra.mxu0 0.0
    %8524 = vmatprep.subr.mxu0 0.0
    %8525 = vmatpush1.xpose.msra.mxu0 0.0
    %8526 = vmatprep.subr.mxu0 0.0
    %8527 = vmatpush1.xpose.msra.mxu0 0.0
    %8528 = vmatprep.subr.mxu0 0.0
    %8529 = vmatpush1.xpose.msra.mxu0 0.0
    %8530 = vmatprep.subr.mxu0 0.0
    %8531 = vmatpush1.xpose.msra.mxu0 0.0
    %8532 = vmatprep.subr.mxu0 0.0
    %8533 = vmatpush1.xpose.msra.mxu0 0.0
    %8534 = vmatprep.subr.mxu0 0.0
    %8535 = vmatpush1.xpose.msra.mxu0 0.0
    %8536 = vmatprep.subr.mxu0 0.0
    %8537 = vmatpush1.xpose.msra.mxu0 0.0
    %8538 = vmatprep.subr.mxu0 0.0
    %8539 = vmatpush1.xpose.msra.mxu0 0.0
    %8540 = vmatprep.subr.mxu0 0.0
    %8541 = vmatpush1.xpose.msra.mxu0 0.0
    %8542 = vmatprep.subr.mxu0 0.0
    %8543 = vmatpush1.xpose.msra.mxu0 0.0
    %8544 = vmatprep.subr.mxu0 0.0
    %8545 = vmatpush1.xpose.msra.mxu0 0.0
    %8546 = vmatprep.subr.mxu0 0.0
    %8547 = vmatpush1.xpose.msra.mxu0 0.0
    %8548 = vmatprep.subr.mxu0 0.0
    %8549 = vmatpush1.xpose.msra.mxu0 0.0
    %8550 = vmatprep.subr.mxu0 0.0
    %8551 = vmatpush1.xpose.msra.mxu0 0.0
    %8552 = vmatprep.subr.mxu0 0.0
    %8553 = vmatpush1.xpose.msra.mxu0 0.0
    %8554 = vmatprep.subr.mxu0 0.0
    %8555 = vmatpush1.xpose.msra.mxu0 0.0
    %8556 = vmatprep.subr.mxu0 0.0
    %8557 = vmatpush1.xpose.msra.mxu0 0.0
    %8558 = vmatprep.subr.mxu0 0.0
    %8559 = vmatpush1.xpose.msra.mxu0 0.0
    %8560 = vmatprep.subr.mxu0 0.0
    %8561 = vmatpush1.xpose.msra.mxu0 0.0
    %8562 = vmatprep.subr.mxu0 0.0
    %8563 = vmatpush1.xpose.msra.mxu0 0.0
    %8564 = vmatprep.subr.mxu0 0.0
    %8565 = vmatpush1.xpose.msra.mxu0 0.0
    %8566 = vmatprep.subr.mxu0 0.0
    %8567 = vmatpush1.xpose.msra.mxu0 0.0
    %8568 = vmatprep.subr.mxu0 0.0
    %8569 = vmatpush1.xpose.msra.mxu0 0.0
    %8570 = vmatprep.subr.mxu0 0.0
    %8571 = vmatpush1.xpose.msra.mxu0 0.0
    %8572 = vmatprep.subr.mxu0 0.0
    %8573 = vmatpush1.xpose.msra.mxu0 0.0
    %8574 = vmatprep.mubr.f32.mxu0 0.0
    %8575 = vmatmul.mubr.f32.gmra.mrb[0].mxu0 %v8506
    %v8576 = vpop.f32.mrb[0].mxu0
    %v8577 = vadd.f32 0.0, %v8576
    %v8578 = vpop.f32.mrb[0].mxu0
    %8579 = vdwg.mxu0
    %v8580 = vsel %vm7146, %v8577, -inf
    %8581 = vmax.xlane.f32.xlu0 %v8580
    %v8582 = vpop.xlane.xlu0 %8581
    %v8583 = vsub.f32 %v8577, %v8582
    %v8584 = vmul.f32 %v8583, 1.442695
    %v8585 = vpow.pop %v8584
    %v8586 = vsel %vm7146, %v8585, 0.0
    %8587 = vadd.xlane.f32.xlu0 %v8586
    %v8588 = vpop.xlane.xlu0 %8587
    %v8589 = vrcp.pop %v8588
    %v8590 = vmul.f32 %v8585, %v8589
    %8591 = vrot.lane.b32.xlu0 %v8114, 112
    %v8592 = vpop.permute.xlu0 %8591
    %v8594 = vsel %vm7158, %v8590, 0
    %v8596 = vsel %vm3802, %v8592, 0
    %8598 = vmatprep.subr.mxu0 0.0
    %8599 = vmatpush1.msra.mxu0 %v8596
    %8600 = vmatprep.subr.mxu0 0.0
    %8601 = vmatpush1.msra.mxu0 0.0
    %8602 = vmatprep.subr.mxu0 0.0
    %8603 = vmatpush1.msra.mxu0 0.0
    %8604 = vmatprep.subr.mxu0 0.0
    %8605 = vmatpush1.msra.mxu0 0.0
    %8606 = vmatprep.subr.mxu0 0.0
    %8607 = vmatpush1.msra.mxu0 0.0
    %8608 = vmatprep.subr.mxu0 0.0
    %8609 = vmatpush1.msra.mxu0 0.0
    %8610 = vmatprep.subr.mxu0 0.0
    %8611 = vmatpush1.msra.mxu0 0.0
    %8612 = vmatprep.subr.mxu0 0.0
    %8613 = vmatpush1.msra.mxu0 0.0
    %8614 = vmatprep.subr.mxu0 0.0
    %8615 = vmatpush1.msra.mxu0 0.0
    %8616 = vmatprep.subr.mxu0 0.0
    %8617 = vmatpush1.msra.mxu0 0.0
    %8618 = vmatprep.subr.mxu0 0.0
    %8619 = vmatpush1.msra.mxu0 0.0
    %8620 = vmatprep.subr.mxu0 0.0
    %8621 = vmatpush1.msra.mxu0 0.0
    %8622 = vmatprep.subr.mxu0 0.0
    %8623 = vmatpush1.msra.mxu0 0.0
    %8624 = vmatprep.subr.mxu0 0.0
    %8625 = vmatpush1.msra.mxu0 0.0
    %8626 = vmatprep.subr.mxu0 0.0
    %8627 = vmatpush1.msra.mxu0 0.0
    %8628 = vmatprep.subr.mxu0 0.0
    %8629 = vmatpush1.msra.mxu0 0.0
    %8630 = vmatprep.subr.mxu0 0.0
    %8631 = vmatpush1.msra.mxu0 0.0
    %8632 = vmatprep.subr.mxu0 0.0
    %8633 = vmatpush1.msra.mxu0 0.0
    %8634 = vmatprep.subr.mxu0 0.0
    %8635 = vmatpush1.msra.mxu0 0.0
    %8636 = vmatprep.subr.mxu0 0.0
    %8637 = vmatpush1.msra.mxu0 0.0
    %8638 = vmatprep.subr.mxu0 0.0
    %8639 = vmatpush1.msra.mxu0 0.0
    %8640 = vmatprep.subr.mxu0 0.0
    %8641 = vmatpush1.msra.mxu0 0.0
    %8642 = vmatprep.subr.mxu0 0.0
    %8643 = vmatpush1.msra.mxu0 0.0
    %8644 = vmatprep.subr.mxu0 0.0
    %8645 = vmatpush1.msra.mxu0 0.0
    %8646 = vmatprep.subr.mxu0 0.0
    %8647 = vmatpush1.msra.mxu0 0.0
    %8648 = vmatprep.subr.mxu0 0.0
    %8649 = vmatpush1.msra.mxu0 0.0
    %8650 = vmatprep.subr.mxu0 0.0
    %8651 = vmatpush1.msra.mxu0 0.0
    %8652 = vmatprep.subr.mxu0 0.0
    %8653 = vmatpush1.msra.mxu0 0.0
    %8654 = vmatprep.subr.mxu0 0.0
    %8655 = vmatpush1.msra.mxu0 0.0
    %8656 = vmatprep.subr.mxu0 0.0
    %8657 = vmatpush1.msra.mxu0 0.0
    %8658 = vmatprep.subr.mxu0 0.0
    %8659 = vmatpush1.msra.mxu0 0.0
    %8660 = vmatprep.subr.mxu0 0.0
    %8661 = vmatpush1.msra.mxu0 0.0
    %8662 = vmatprep.mubr.f32.mxu0 0.0
    %8663 = vmatmul.mubr.f32.gmra.mrb[0].mxu0 %v8594
    %v8664 = vpop.f32.mrb[0].mxu0
    %v8665 = vadd.f32 0.0, %v8664
    %v8666 = vpop.f32.mrb[0].mxu0
    %8667 = vdwg.mxu0
    %v8669 = vsel %vm1051, %v8665, 0
    %8671 = vmatprep.subr.mxu0 0.0
    %8672 = vmatpush1.msra.mxu0 %v6830
    %8673 = vmatprep.subr.mxu0 0.0
    %8674 = vmatpush1.msra.mxu0 0.0
    %8675 = vmatprep.subr.mxu0 0.0
    %8676 = vmatpush1.msra.mxu0 0.0
    %8677 = vmatprep.subr.mxu0 0.0
    %8678 = vmatpush1.msra.mxu0 0.0
    %8679 = vmatprep.subr.mxu0 0.0
    %8680 = vmatpush1.msra.mxu0 0.0
    %8681 = vmatprep.subr.mxu0 0.0
    %8682 = vmatpush1.msra.mxu0 0.0
    %8683 = vmatprep.subr.mxu0 0.0
    %8684 = vmatpush1.msra.mxu0 0.0
    %8685 = vmatprep.subr.mxu0 0.0
    %8686 = vmatpush1.msra.mxu0 0.0
    %8687 = vmatprep.subr.mxu0 0.0
    %8688 = vmatpush1.msra.mxu0 0.0
    %8689 = vmatprep.subr.mxu0 0.0
    %8690 = vmatpush1.msra.mxu0 0.0
    %8691 = vmatprep.subr.mxu0 0.0
    %8692 = vmatpush1.msra.mxu0 0.0
    %8693 = vmatprep.subr.mxu0 0.0
    %8694 = vmatpush1.msra.mxu0 0.0
    %8695 = vmatprep.subr.mxu0 0.0
    %8696 = vmatpush1.msra.mxu0 0.0
    %8697 = vmatprep.subr.mxu0 0.0
    %8698 = vmatpush1.msra.mxu0 0.0
    %8699 = vmatprep.subr.mxu0 0.0
    %8700 = vmatpush1.msra.mxu0 0.0
    %8701 = vmatprep.subr.mxu0 0.0
    %8702 = vmatpush1.msra.mxu0 0.0
    %8703 = vmatprep.subr.mxu0 0.0
    %8704 = vmatpush1.msra.mxu0 0.0
    %8705 = vmatprep.subr.mxu0 0.0
    %8706 = vmatpush1.msra.mxu0 0.0
    %8707 = vmatprep.subr.mxu0 0.0
    %8708 = vmatpush1.msra.mxu0 0.0
    %8709 = vmatprep.subr.mxu0 0.0
    %8710 = vmatpush1.msra.mxu0 0.0
    %8711 = vmatprep.subr.mxu0 0.0
    %8712 = vmatpush1.msra.mxu0 0.0
    %8713 = vmatprep.subr.mxu0 0.0
    %8714 = vmatpush1.msra.mxu0 0.0
    %8715 = vmatprep.subr.mxu0 0.0
    %8716 = vmatpush1.msra.mxu0 0.0
    %8717 = vmatprep.subr.mxu0 0.0
    %8718 = vmatpush1.msra.mxu0 0.0
    %8719 = vmatprep.subr.mxu0 0.0
    %8720 = vmatpush1.msra.mxu0 0.0
    %8721 = vmatprep.subr.mxu0 0.0
    %8722 = vmatpush1.msra.mxu0 0.0
    %8723 = vmatprep.subr.mxu0 0.0
    %8724 = vmatpush1.msra.mxu0 0.0
    %8725 = vmatprep.subr.mxu0 0.0
    %8726 = vmatpush1.msra.mxu0 0.0
    %8727 = vmatprep.subr.mxu0 0.0
    %8728 = vmatpush1.msra.mxu0 0.0
    %8729 = vmatprep.subr.mxu0 0.0
    %8730 = vmatpush1.msra.mxu0 0.0
    %8731 = vmatprep.subr.mxu0 0.0
    %8732 = vmatpush1.msra.mxu0 0.0
    %8733 = vmatprep.subr.mxu0 0.0
    %8734 = vmatpush1.msra.mxu0 0.0
    %8735 = vmatprep.mubr.f32.mxu0 0.0
    %8736 = vmatmul.mubr.f32.gmra.mrb[0].mxu0 %v8669
    %v8737 = vpop.f32.mrb[0].mxu0
    %v8738 = vadd.f32 0.0, %v8737
    %v8739 = vpop.f32.mrb[0].mxu0
    %8740 = vdwg.mxu0
    %v8741 = vadd.f32 %v8499, %v8738
    %8742 = vrot.lane.b32.xlu0 %v8027, 104
    %v8743 = vpop.permute.xlu0 %8742
    %8744 = vrot.lane.b32.xlu0 %v8028, 104
    %v8745 = vpop.permute.xlu0 %8744
    %v8746 = vsel %vm1051, %v8743, 0
    %v8748 = vsel %vm1051, %v8745, 0
    %8750 = vmatprep.subr.mxu0 0.0
    %8751 = vmatpush1.xpose.msra.mxu0 %v8748
    %8752 = vmatprep.subr.mxu0 0.0
    %8753 = vmatpush1.xpose.msra.mxu0 0.0
    %8754 = vmatprep.subr.mxu0 0.0
    %8755 = vmatpush1.xpose.msra.mxu0 0.0
    %8756 = vmatprep.subr.mxu0 0.0
    %8757 = vmatpush1.xpose.msra.mxu0 0.0
    %8758 = vmatprep.subr.mxu0 0.0
    %8759 = vmatpush1.xpose.msra.mxu0 0.0
    %8760 = vmatprep.subr.mxu0 0.0
    %8761 = vmatpush1.xpose.msra.mxu0 0.0
    %8762 = vmatprep.subr.mxu0 0.0
    %8763 = vmatpush1.xpose.msra.mxu0 0.0
    %8764 = vmatprep.subr.mxu0 0.0
    %8765 = vmatpush1.xpose.msra.mxu0 0.0
    %8766 = vmatprep.subr.mxu0 0.0
    %8767 = vmatpush1.xpose.msra.mxu0 0.0
    %8768 = vmatprep.subr.mxu0 0.0
    %8769 = vmatpush1.xpose.msra.mxu0 0.0
    %8770 = vmatprep.subr.mxu0 0.0
    %8771 = vmatpush1.xpose.msra.mxu0 0.0
    %8772 = vmatprep.subr.mxu0 0.0
    %8773 = vmatpush1.xpose.msra.mxu0 0.0
    %8774 = vmatprep.subr.mxu0 0.0
    %8775 = vmatpush1.xpose.msra.mxu0 0.0
    %8776 = vmatprep.subr.mxu0 0.0
    %8777 = vmatpush1.xpose.msra.mxu0 0.0
    %8778 = vmatprep.subr.mxu0 0.0
    %8779 = vmatpush1.xpose.msra.mxu0 0.0
    %8780 = vmatprep.subr.mxu0 0.0
    %8781 = vmatpush1.xpose.msra.mxu0 0.0
    %8782 = vmatprep.subr.mxu0 0.0
    %8783 = vmatpush1.xpose.msra.mxu0 0.0
    %8784 = vmatprep.subr.mxu0 0.0
    %8785 = vmatpush1.xpose.msra.mxu0 0.0
    %8786 = vmatprep.subr.mxu0 0.0
    %8787 = vmatpush1.xpose.msra.mxu0 0.0
    %8788 = vmatprep.subr.mxu0 0.0
    %8789 = vmatpush1.xpose.msra.mxu0 0.0
    %8790 = vmatprep.subr.mxu0 0.0
    %8791 = vmatpush1.xpose.msra.mxu0 0.0
    %8792 = vmatprep.subr.mxu0 0.0
    %8793 = vmatpush1.xpose.msra.mxu0 0.0
    %8794 = vmatprep.subr.mxu0 0.0
    %8795 = vmatpush1.xpose.msra.mxu0 0.0
    %8796 = vmatprep.subr.mxu0 0.0
    %8797 = vmatpush1.xpose.msra.mxu0 0.0
    %8798 = vmatprep.subr.mxu0 0.0
    %8799 = vmatpush1.xpose.msra.mxu0 0.0
    %8800 = vmatprep.subr.mxu0 0.0
    %8801 = vmatpush1.xpose.msra.mxu0 0.0
    %8802 = vmatprep.subr.mxu0 0.0
    %8803 = vmatpush1.xpose.msra.mxu0 0.0
    %8804 = vmatprep.subr.mxu0 0.0
    %8805 = vmatpush1.xpose.msra.mxu0 0.0
    %8806 = vmatprep.subr.mxu0 0.0
    %8807 = vmatpush1.xpose.msra.mxu0 0.0
    %8808 = vmatprep.subr.mxu0 0.0
    %8809 = vmatpush1.xpose.msra.mxu0 0.0
    %8810 = vmatprep.subr.mxu0 0.0
    %8811 = vmatpush1.xpose.msra.mxu0 0.0
    %8812 = vmatprep.subr.mxu0 0.0
    %8813 = vmatpush1.xpose.msra.mxu0 0.0
    %8814 = vmatprep.mubr.f32.mxu0 0.0
    %8815 = vmatmul.mubr.f32.gmra.mrb[0].mxu0 %v8746
    %v8816 = vpop.f32.mrb[0].mxu0
    %v8817 = vadd.f32 0.0, %v8816
    %v8818 = vpop.f32.mrb[0].mxu0
    %8819 = vdwg.mxu0
    %v8820 = vsel %vm7146, %v8817, -inf
    %8821 = vmax.xlane.f32.xlu0 %v8820
    %v8822 = vpop.xlane.xlu0 %8821
    %v8823 = vsub.f32 %v8817, %v8822
    %v8824 = vmul.f32 %v8823, 1.442695
    %v8825 = vpow.pop %v8824
    %v8826 = vsel %vm7146, %v8825, 0.0
    %8827 = vadd.xlane.f32.xlu0 %v8826
    %v8828 = vpop.xlane.xlu0 %8827
    %v8829 = vrcp.pop %v8828
    %v8830 = vmul.f32 %v8825, %v8829
    %8831 = vrot.lane.b32.xlu0 %v8114, 104
    %v8832 = vpop.permute.xlu0 %8831
    %v8834 = vsel %vm7158, %v8830, 0
    %v8836 = vsel %vm3802, %v8832, 0
    %8838 = vmatprep.subr.mxu0 0.0
    %8839 = vmatpush1.msra.mxu0 %v8836
    %8840 = vmatprep.subr.mxu0 0.0
    %8841 = vmatpush1.msra.mxu0 0.0
    %8842 = vmatprep.subr.mxu0 0.0
    %8843 = vmatpush1.msra.mxu0 0.0
    %8844 = vmatprep.subr.mxu0 0.0
    %8845 = vmatpush1.msra.mxu0 0.0
    %8846 = vmatprep.subr.mxu0 0.0
    %8847 = vmatpush1.msra.mxu0 0.0
    %8848 = vmatprep.subr.mxu0 0.0
    %8849 = vmatpush1.msra.mxu0 0.0
    %8850 = vmatprep.subr.mxu0 0.0
    %8851 = vmatpush1.msra.mxu0 0.0
    %8852 = vmatprep.subr.mxu0 0.0
    %8853 = vmatpush1.msra.mxu0 0.0
    %8854 = vmatprep.subr.mxu0 0.0
    %8855 = vmatpush1.msra.mxu0 0.0
    %8856 = vmatprep.subr.mxu0 0.0
    %8857 = vmatpush1.msra.mxu0 0.0
    %8858 = vmatprep.subr.mxu0 0.0
    %8859 = vmatpush1.msra.mxu0 0.0
    %8860 = vmatprep.subr.mxu0 0.0
    %8861 = vmatpush1.msra.mxu0 0.0
    %8862 = vmatprep.subr.mxu0 0.0
    %8863 = vmatpush1.msra.mxu0 0.0
    %8864 = vmatprep.subr.mxu0 0.0
    %8865 = vmatpush1.msra.mxu0 0.0
    %8866 = vmatprep.subr.mxu0 0.0
    %8867 = vmatpush1.msra.mxu0 0.0
    %8868 = vmatprep.subr.mxu0 0.0
    %8869 = vmatpush1.msra.mxu0 0.0
    %8870 = vmatprep.subr.mxu0 0.0
    %8871 = vmatpush1.msra.mxu0 0.0
    %8872 = vmatprep.subr.mxu0 0.0
    %8873 = vmatpush1.msra.mxu0 0.0
    %8874 = vmatprep.subr.mxu0 0.0
    %8875 = vmatpush1.msra.mxu0 0.0
    %8876 = vmatprep.subr.mxu0 0.0
    %8877 = vmatpush1.msra.mxu0 0.0
    %8878 = vmatprep.subr.mxu0 0.0
    %8879 = vmatpush1.msra.mxu0 0.0
    %8880 = vmatprep.subr.mxu0 0.0
    %8881 = vmatpush1.msra.mxu0 0.0
    %8882 = vmatprep.subr.mxu0 0.0
    %8883 = vmatpush1.msra.mxu0 0.0
    %8884 = vmatprep.subr.mxu0 0.0
    %8885 = vmatpush1.msra.mxu0 0.0
    %8886 = vmatprep.subr.mxu0 0.0
    %8887 = vmatpush1.msra.mxu0 0.0
    %8888 = vmatprep.subr.mxu0 0.0
    %8889 = vmatpush1.msra.mxu0 0.0
    %8890 = vmatprep.subr.mxu0 0.0
    %8891 = vmatpush1.msra.mxu0 0.0
    %8892 = vmatprep.subr.mxu0 0.0
    %8893 = vmatpush1.msra.mxu0 0.0
    %8894 = vmatprep.subr.mxu0 0.0
    %8895 = vmatpush1.msra.mxu0 0.0
    %8896 = vmatprep.subr.mxu0 0.0
    %8897 = vmatpush1.msra.mxu0 0.0
    %8898 = vmatprep.subr.mxu0 0.0
    %8899 = vmatpush1.msra.mxu0 0.0
    %8900 = vmatprep.subr.mxu0 0.0
    %8901 = vmatpush1.msra.mxu0 0.0
    %8902 = vmatprep.mubr.f32.mxu0 0.0
    %8903 = vmatmul.mubr.f32.gmra.mrb[0].mxu0 %v8834
    %v8904 = vpop.f32.mrb[0].mxu0
    %v8905 = vadd.f32 0.0, %v8904
    %v8906 = vpop.f32.mrb[0].mxu0
    %8907 = vdwg.mxu0
    %v8909 = vsel %vm1051, %v8905, 0
    %8911 = vmatprep.subr.mxu0 0.0
    %8912 = vmatpush1.msra.mxu0 %v6831
    %8913 = vmatprep.subr.mxu0 0.0
    %8914 = vmatpush1.msra.mxu0 0.0
    %8915 = vmatprep.subr.mxu0 0.0
    %8916 = vmatpush1.msra.mxu0 0.0
    %8917 = vmatprep.subr.mxu0 0.0
    %8918 = vmatpush1.msra.mxu0 0.0
    %8919 = vmatprep.subr.mxu0 0.0
    %8920 = vmatpush1.msra.mxu0 0.0
    %8921 = vmatprep.subr.mxu0 0.0
    %8922 = vmatpush1.msra.mxu0 0.0
    %8923 = vmatprep.subr.mxu0 0.0
    %8924 = vmatpush1.msra.mxu0 0.0
    %8925 = vmatprep.subr.mxu0 0.0
    %8926 = vmatpush1.msra.mxu0 0.0
    %8927 = vmatprep.subr.mxu0 0.0
    %8928 = vmatpush1.msra.mxu0 0.0
    %8929 = vmatprep.subr.mxu0 0.0
    %8930 = vmatpush1.msra.mxu0 0.0
    %8931 = vmatprep.subr.mxu0 0.0
    %8932 = vmatpush1.msra.mxu0 0.0
    %8933 = vmatprep.subr.mxu0 0.0
    %8934 = vmatpush1.msra.mxu0 0.0
    %8935 = vmatprep.subr.mxu0 0.0
    %8936 = vmatpush1.msra.mxu0 0.0
    %8937 = vmatprep.subr.mxu0 0.0
    %8938 = vmatpush1.msra.mxu0 0.0
    %8939 = vmatprep.subr.mxu0 0.0
    %8940 = vmatpush1.msra.mxu0 0.0
    %8941 = vmatprep.subr.mxu0 0.0
    %8942 = vmatpush1.msra.mxu0 0.0
    %8943 = vmatprep.subr.mxu0 0.0
    %8944 = vmatpush1.msra.mxu0 0.0
    %8945 = vmatprep.subr.mxu0 0.0
    %8946 = vmatpush1.msra.mxu0 0.0
    %8947 = vmatprep.subr.mxu0 0.0
    %8948 = vmatpush1.msra.mxu0 0.0
    %8949 = vmatprep.subr.mxu0 0.0
    %8950 = vmatpush1.msra.mxu0 0.0
    %8951 = vmatprep.subr.mxu0 0.0
    %8952 = vmatpush1.msra.mxu0 0.0
    %8953 = vmatprep.subr.mxu0 0.0
    %8954 = vmatpush1.msra.mxu0 0.0
    %8955 = vmatprep.subr.mxu0 0.0
    %8956 = vmatpush1.msra.mxu0 0.0
    %8957 = vmatprep.subr.mxu0 0.0
    %8958 = vmatpush1.msra.mxu0 0.0
    %8959 = vmatprep.subr.mxu0 0.0
    %8960 = vmatpush1.msra.mxu0 0.0
    %8961 = vmatprep.subr.mxu0 0.0
    %8962 = vmatpush1.msra.mxu0 0.0
    %8963 = vmatprep.subr.mxu0 0.0
    %8964 = vmatpush1.msra.mxu0 0.0
    %8965 = vmatprep.subr.mxu0 0.0
    %8966 = vmatpush1.msra.mxu0 0.0
    %8967 = vmatprep.subr.mxu0 0.0
    %8968 = vmatpush1.msra.mxu0 0.0
    %8969 = vmatprep.subr.mxu0 0.0
    %8970 = vmatpush1.msra.mxu0 0.0
    %8971 = vmatprep.subr.mxu0 0.0
    %8972 = vmatpush1.msra.mxu0 0.0
    %8973 = vmatprep.subr.mxu0 0.0
    %8974 = vmatpush1.msra.mxu0 0.0
    %8975 = vmatprep.mubr.f32.mxu0 0.0
    %8976 = vmatmul.mubr.f32.gmra.mrb[0].mxu0 %v8909
    %v8977 = vpop.f32.mrb[0].mxu0
    %v8978 = vadd.f32 0.0, %v8977
    %v8979 = vpop.f32.mrb[0].mxu0
    %8980 = vdwg.mxu0
    %v8981 = vadd.f32 %v8741, %v8978
    %v8983 = vrot.slane %v8981, 6
    %v8985 = vsel %vm3802, %v8026, %v8983
    %s8986 = scalar_lea.vmem [#allocation11], 2
    %v8987 = vld [vmem:[%s8986] sm:$0x1]
    %v8989 = vlaneseq
    %v8990 = vshrl.u32 %v8989, 7
    %v8991 = vsub.s32 0, %v8990
    %v8992 = vrot.slane %v8987, %v8991
    %v8994 = vadd.f32 %v8985, %v8992
    %v8995 = vadd.f32 %v6811, %v8994
    %s8996 = scalar_lea.vmem [#allocation17], 2
    %v8997 = vld [vmem:[%s8996] sm:$0x1]
    %s8998 = scalar_lea.vmem [#allocation19], 2
    %v8999 = vld [vmem:[%s8998] sm:$0x1]
    %vm9000 = vcmask 257024
    %v9001 = vsel %vm9000, %v8995, 0.0
    %9002 = vadd.xlane.f32.xlu0 %v9001
    %v9003 = vpop.xlane.xlu0 %9002
    %v9004 = vmul.f32 %v9003, %v2971
    %v9005 = vsub.f32 %v8995, %v9004
    %v9006 = vmul.f32 %v9005, %v9005
    %v9007 = vsel %vm9000, %v9006, 0.0
    %9008 = vadd.xlane.f32.xlu0 %v9007
    %v9009 = vpop.xlane.xlu0 %9008
    %v9010 = vmul.f32 %v9009, %v2971
    %v9011 = vadd.f32 %v9010, 1e-05
    %v9012 = vrsqrt.pop %v9011
    %v9013 = vmul.f32 %v9005, %v9012
    %v9015 = vlaneseq
    %v9016 = vshrl.u32 %v9015, 7
    %v9017 = vsub.s32 0, %v9016
    %v9018 = vrot.slane %v8997, %v9017
    %v9020 = vmul.f32 %v9013, %v9018
    %v9022 = vlaneseq
    %v9023 = vshrl.u32 %v9022, 7
    %v9024 = vsub.s32 0, %v9023
    %v9025 = vrot.slane %v8999, %v9024
    %v9027 = vadd.f32 %v9020, %v9025
    %s9028 = scalar_lea.vmem [#allocation13], 64
    %v9029 = vld [vmem:[%s9028] sm:$0xff]
    %v9030 = vld [vmem:[%s9028 + $0x8] sm:$0xff]
    %v9031 = vld [vmem:[%s9028 + $0x10] sm:$0xff]
    %v9032 = vld [vmem:[%s9028 + $0x18] sm:$0xff]
    %s9033 = scalar_lea.vmem [#allocation14], 2
    %v9034 = vld [vmem:[%s9033] sm:$0x1]
    %v9036 = vlaneseq
    %v9037 = vshrl.u32 %v9036, 7
    %v9038 = vsub.s32 0, %v9037
    %v9039 = vrot.slane %v9034, %v9038
    %v9042 = vsel %vm803, %v9027, 0
    %9044 = vmatprep.subr.mxu0 0.0
    %9045 = vmatpush1.msra.mxu0 %v9029
    %9046 = vmatprep.subr.mxu0 0.0
    %9047 = vmatpush1.msra.mxu0 %v9030
    %9048 = vmatprep.subr.mxu0 0.0
    %9049 = vmatpush1.msra.mxu0 %v9031
    %9050 = vmatprep.subr.mxu0 0.0
    %9051 = vmatpush1.msra.mxu0 %v9032
    %9052 = vmatprep.subr.mxu0 0.0
    %9053 = vmatpush1.msra.mxu0 0.0
    %9054 = vmatprep.subr.mxu0 0.0
    %9055 = vmatpush1.msra.mxu0 0.0
    %9056 = vmatprep.subr.mxu0 0.0
    %9057 = vmatpush1.msra.mxu0 0.0
    %9058 = vmatprep.subr.mxu0 0.0
    %9059 = vmatpush1.msra.mxu0 0.0
    %9060 = vmatprep.subr.mxu0 0.0
    %9061 = vmatpush1.msra.mxu0 0.0
    %9062 = vmatprep.subr.mxu0 0.0
    %9063 = vmatpush1.msra.mxu0 0.0
    %9064 = vmatprep.subr.mxu0 0.0
    %9065 = vmatpush1.msra.mxu0 0.0
    %9066 = vmatprep.subr.mxu0 0.0
    %9067 = vmatpush1.msra.mxu0 0.0
    %9068 = vmatprep.subr.mxu0 0.0
    %9069 = vmatpush1.msra.mxu0 0.0
    %9070 = vmatprep.subr.mxu0 0.0
    %9071 = vmatpush1.msra.mxu0 0.0
    %9072 = vmatprep.subr.mxu0 0.0
    %9073 = vmatpush1.msra.mxu0 0.0
    %9074 = vmatprep.subr.mxu0 0.0
    %9075 = vmatpush1.msra.mxu0 0.0
    %9076 = vmatprep.subr.mxu0 0.0
    %9077 = vmatpush1.msra.mxu0 0.0
    %9078 = vmatprep.subr.mxu0 0.0
    %9079 = vmatpush1.msra.mxu0 0.0
    %9080 = vmatprep.subr.mxu0 0.0
    %9081 = vmatpush1.msra.mxu0 0.0
    %9082 = vmatprep.subr.mxu0 0.0
    %9083 = vmatpush1.msra.mxu0 0.0
    %9084 = vmatprep.subr.mxu0 0.0
    %9085 = vmatpush1.msra.mxu0 0.0
    %9086 = vmatprep.subr.mxu0 0.0
    %9087 = vmatpush1.msra.mxu0 0.0
    %9088 = vmatprep.subr.mxu0 0.0
    %9089 = vmatpush1.msra.mxu0 0.0
    %9090 = vmatprep.subr.mxu0 0.0
    %9091 = vmatpush1.msra.mxu0 0.0
    %9092 = vmatprep.subr.mxu0 0.0
    %9093 = vmatpush1.msra.mxu0 0.0
    %9094 = vmatprep.subr.mxu0 0.0
    %9095 = vmatpush1.msra.mxu0 0.0
    %9096 = vmatprep.subr.mxu0 0.0
    %9097 = vmatpush1.msra.mxu0 0.0
    %9098 = vmatprep.subr.mxu0 0.0
    %9099 = vmatpush1.msra.mxu0 0.0
    %9100 = vmatprep.subr.mxu0 0.0
    %9101 = vmatpush1.msra.mxu0 0.0
    %9102 = vmatprep.subr.mxu0 0.0
    %9103 = vmatpush1.msra.mxu0 0.0
    %9104 = vmatprep.subr.mxu0 0.0
    %9105 = vmatpush1.msra.mxu0 0.0
    %9106 = vmatprep.subr.mxu0 0.0
    %9107 = vmatpush1.msra.mxu0 0.0
    %9108 = vmatprep.mubr.f32.mxu0 0.0
    %9109 = vmatmul.mubr.f32.gmra.mrb[0].mxu0 %v9042
    %v9110 = vpop.f32.mrb[0].mxu0
    %v9111 = vadd.f32 %v9039, %v9110
    %v9112 = vpop.f32.mrb[0].mxu0
    %9113 = vdwg.mxu0
    %v9114 = vmul.f32 %v9111, 0.5
    %v9115 = vmul.f32 %v9111, 0.70710677
    %v9116 = verf.f32.pop %v9115
    %v9117 = vadd.f32 %v9116, 1.0
    %v9118 = vmul.f32 %v9114, %v9117
    %s9119 = scalar_lea.vmem %s13, 128
    %v9120 = vld [vmem:[%s9119] sm:$0xff]
    %v9121 = vld [vmem:[%s9119 + $0x8] sm:$0xff]
    %v9122 = vld [vmem:[%s9119 + $0x10] sm:$0xff]
    %v9123 = vld [vmem:[%s9119 + $0x18] sm:$0xff]
    %v9124 = vld [vmem:[%s9119 + $0x20] sm:$0xff]
    %v9125 = vld [vmem:[%s9119 + $0x28] sm:$0xff]
    %v9126 = vld [vmem:[%s9119 + $0x30] sm:$0xff]
    %v9127 = vld [vmem:[%s9119 + $0x38] sm:$0xff]
    %s9128 = scalar_lea.vmem [#allocation16], 2
    %v9129 = vld [vmem:[%s9128] sm:$0x1]
    %v9131 = vlaneseq
    %v9132 = vshrl.u32 %v9131, 7
    %v9133 = vsub.s32 0, %v9132
    %v9134 = vrot.slane %v9129, %v9133
    %v9137 = vsel %vm3125, %v9118, 0
    %9139 = vmatprep.subr.mxu0 0.0
    %9140 = vmatpush1.msra.mxu0 %v9120
    %9141 = vmatprep.subr.mxu0 0.0
    %9142 = vmatpush1.msra.mxu0 %v9121
    %9143 = vmatprep.subr.mxu0 0.0
    %9144 = vmatpush1.msra.mxu0 %v9122
    %9145 = vmatprep.subr.mxu0 0.0
    %9146 = vmatpush1.msra.mxu0 %v9123
    %9147 = vmatprep.subr.mxu0 0.0
    %9148 = vmatpush1.msra.mxu0 %v9124
    %9149 = vmatprep.subr.mxu0 0.0
    %9150 = vmatpush1.msra.mxu0 %v9125
    %9151 = vmatprep.subr.mxu0 0.0
    %9152 = vmatpush1.msra.mxu0 %v9126
    %9153 = vmatprep.subr.mxu0 0.0
    %9154 = vmatpush1.msra.mxu0 %v9127
    %9155 = vmatprep.subr.mxu0 0.0
    %9156 = vmatpush1.msra.mxu0 0.0
    %9157 = vmatprep.subr.mxu0 0.0
    %9158 = vmatpush1.msra.mxu0 0.0
    %9159 = vmatprep.subr.mxu0 0.0
    %9160 = vmatpush1.msra.mxu0 0.0
    %9161 = vmatprep.subr.mxu0 0.0
    %9162 = vmatpush1.msra.mxu0 0.0
    %9163 = vmatprep.subr.mxu0 0.0
    %9164 = vmatpush1.msra.mxu0 0.0
    %9165 = vmatprep.subr.mxu0 0.0
    %9166 = vmatpush1.msra.mxu0 0.0
    %9167 = vmatprep.subr.mxu0 0.0
    %9168 = vmatpush1.msra.mxu0 0.0
    %9169 = vmatprep.subr.mxu0 0.0
    %9170 = vmatpush1.msra.mxu0 0.0
    %9171 = vmatprep.subr.mxu0 0.0
    %9172 = vmatpush1.msra.mxu0 0.0
    %9173 = vmatprep.subr.mxu0 0.0
    %9174 = vmatpush1.msra.mxu0 0.0
    %9175 = vmatprep.subr.mxu0 0.0
    %9176 = vmatpush1.msra.mxu0 0.0
    %9177 = vmatprep.subr.mxu0 0.0
    %9178 = vmatpush1.msra.mxu0 0.0
    %9179 = vmatprep.subr.mxu0 0.0
    %9180 = vmatpush1.msra.mxu0 0.0
    %9181 = vmatprep.subr.mxu0 0.0
    %9182 = vmatpush1.msra.mxu0 0.0
    %9183 = vmatprep.subr.mxu0 0.0
    %9184 = vmatpush1.msra.mxu0 0.0
    %9185 = vmatprep.subr.mxu0 0.0
    %9186 = vmatpush1.msra.mxu0 0.0
    %9187 = vmatprep.subr.mxu0 0.0
    %9188 = vmatpush1.msra.mxu0 0.0
    %9189 = vmatprep.subr.mxu0 0.0
    %9190 = vmatpush1.msra.mxu0 0.0
    %9191 = vmatprep.subr.mxu0 0.0
    %9192 = vmatpush1.msra.mxu0 0.0
    %9193 = vmatprep.subr.mxu0 0.0
    %9194 = vmatpush1.msra.mxu0 0.0
    %9195 = vmatprep.subr.mxu0 0.0
    %9196 = vmatpush1.msra.mxu0 0.0
    %9197 = vmatprep.subr.mxu0 0.0
    %9198 = vmatpush1.msra.mxu0 0.0
    %9199 = vmatprep.subr.mxu0 0.0
    %9200 = vmatpush1.msra.mxu0 0.0
    %9201 = vmatprep.subr.mxu0 0.0
    %9202 = vmatpush1.msra.mxu0 0.0
    %9203 = vmatprep.mubr.f32.mxu0 0.0
    %9204 = vmatmul.mubr.f32.gmra.mrb[0].mxu0 %v9137
    %v9205 = vpop.f32.mrb[0].mxu0
    %v9206 = vadd.f32 %v9134, %v9205
    %v9207 = vpop.f32.mrb[0].mxu0
    %9208 = vdwg.mxu0
    %v9209 = vadd.f32 %v9027, %v9206
    %s9210 = scalar_lea.vmem [#allocation20], 2
    %v9211 = vld [vmem:[%s9210] sm:$0x1]
    %s9212 = scalar_lea.vmem [#allocation22], 2
    %v9213 = vld [vmem:[%s9212] sm:$0x1]
    %v9214 = vsel %vm9000, %v9209, 0.0
    %9215 = vadd.xlane.f32.xlu0 %v9214
    %v9216 = vpop.xlane.xlu0 %9215
    %v9217 = vmul.f32 %v9216, %v2971
    %v9218 = vsub.f32 %v9209, %v9217
    %v9219 = vmul.f32 %v9218, %v9218
    %v9220 = vsel %vm9000, %v9219, 0.0
    %9221 = vadd.xlane.f32.xlu0 %v9220
    %v9222 = vpop.xlane.xlu0 %9221
    %v9223 = vmul.f32 %v9222, %v2971
    %v9224 = vadd.f32 %v9223, 1e-05
    %v9225 = vrsqrt.pop %v9224
    %v9226 = vmul.f32 %v9218, %v9225
    %v9228 = vlaneseq
    %v9229 = vshrl.u32 %v9228, 7
    %v9230 = vsub.s32 0, %v9229
    %v9231 = vrot.slane %v9211, %v9230
    %v9233 = vmul.f32 %v9226, %v9231
    %v9235 = vlaneseq
    %v9236 = vshrl.u32 %v9235, 7
    %v9237 = vsub.s32 0, %v9236
    %v9238 = vrot.slane %v9213, %v9237
    %v9240 = vadd.f32 %v9233, %v9238
    %v9241 = vld [vmem:[%s23] sm:$0x1]
    %v9242 = vld [vmem:[#allocation28] sm:$0x1]
    %v9243 = vsel %vm9000, %v9240, 0.0
    %9244 = vadd.xlane.f32.xlu0 %v9243
    %v9245 = vpop.xlane.xlu0 %9244
    %v9246 = vmul.f32 %v9245, %v2971
    %v9247 = vsub.f32 %v9240, %v9246
    %v9248 = vmul.f32 %v9247, %v9247
    %v9249 = vsel %vm9000, %v9248, 0.0
    %9250 = vadd.xlane.f32.xlu0 %v9249
    %v9251 = vpop.xlane.xlu0 %9250
    %v9252 = vmul.f32 %v9251, %v2971
    %v9253 = vadd.f32 %v9252, 1e-05
    %v9254 = vrsqrt.pop %v9253
    %v9255 = vmul.f32 %v9247, %v9254
    %v9257 = vlaneseq
    %v9258 = vshrl.u32 %v9257, 7
    %v9259 = vsub.s32 0, %v9258
    %v9260 = vrot.slane %v9241, %v9259
    %v9262 = vmul.f32 %v9255, %v9260
    %v9264 = vlaneseq
    %v9265 = vshrl.u32 %v9264, 7
    %v9266 = vsub.s32 0, %v9265
    %v9267 = vrot.slane %v9242, %v9266
    %v9269 = vadd.f32 %v9262, %v9267
    %9270 = vst.msk [vmem:[#allocation29] sm:$0xf] %vm9000, %v9269
    // Predicated region
    $region170: #{informer_forward.1} parent=1 // pred_check
      _
    $region171: #{informer_forward.1} parent=1 // pred_check_branch
      %9272 = sbr.rel (0) target = $region173
    $region172: #{informer_forward.1} parent=1 // pred_region
      %s9274 = ssub.s32 64, 64
      %9275 = vsyncadd [#allocation4], %s9274
      %s9277 = sshll.u32 [#allocation29], 4
      %s9278 = int_to_ptr.vmem [resolvable:$true] %s9277
      %9280 = dma.vmem_to_hbm [thread:$0]  %s9278, 64, %s25, [#allocation4]
    $region173: #{informer_forward.1} parent=1 // pred_fallthru
      _
    // Predicated region
    $region174: #{informer_forward.1} parent=1 // pred_check
      _
    $region175: #{informer_forward.1} parent=1 // pred_check_branch
      %9282 = sbr.rel (0) target = $region177
    $region176: #{informer_forward.1} parent=1 // pred_region
      %9283 = dma.done [#allocation4], 64
    $region177: #{informer_forward.1} parent=1 // pred_fallthru
      _
    %9284 = vsyncpa [#allocation3], 1
    %9285 = vsyncpa [#allocation6], 1
    %9286 = vsyncpa [#allocation9], 1
    %9287 = vsyncpa [#allocation12], 1
    %9288 = vsyncpa [#allocation15], 1
    %9289 = vsyncpa [#allocation18], 1
    %9290 = vsyncpa [#allocation21], 1
    %9291 = vsyncpa [#allocation24], 1
    %9292 = vsyncpa [#allocation27], 1
    %9293 = vsyncpa [#allocation4], 1

</llo_original>
